<compile_context>
chip_gen: v7x
topology: tpu7x:2x2x1
jax: 0.10.0
libtpu: 0.0.40
codegen_flags: <defaults>
</compile_context>

<pallas_src>
import functools

import jax
import jax.numpy as jnp
import numpy as np
from jax.experimental import pallas as pl
from jax.experimental.pallas import tpu as pltpu


_VMEM_SPEC = pl.BlockSpec(memory_space=pltpu.MemorySpace.VMEM)
_ANY_SPEC = pl.BlockSpec(memory_space=pl.ANY)

# Set to False to route every row shift / row pool through precomputed bf16
# selection matmuls instead of XLU sublane rolls (safe fallback path).
_USE_SUBLANE_ROLL = True

# Rows of the packed bias operand (one lane-tiled bias row per conv).
_B_E1, _B_E2, _B_E3, _B_E4, _B_BOT = 0, 1, 2, 3, 4
_B_DU = (5, 7, 9, 11)   # d1..d4 transposed-conv biases
_B_DC = (6, 8, 10, 12)  # d1..d4 decoder-conv biases


# -----------------------------------------------------------------------------
# Static "plan": which levels use rolls vs. selection matmuls, and where each
# precomputed small matrix / boundary-mask column lives inside the packs.
# Must be a pure function of (batch, size) so prep and wrapper stay in sync.
# -----------------------------------------------------------------------------
def _plan(n, size):
    hs = [size >> k for k in range(5)]           # conv heights H1..H5 (H5 == 1)
    plan = {"n": n, "size": size, "max_rows": n * size,
            "shift": {}, "pool_rsel": {}, "pool_csel": {}, "up_sel": {}}
    small, mask_cols = [], []

    def add(kind, h):
        small.append((kind, h))
        return len(small) - 1

    def use_roll(rows):
        return _USE_SUBLANE_ROLL and rows >= 8 and rows % 8 == 0

    for h in hs:                                  # 3x3-conv row shifts
        if h == 1:
            continue
        rows = n * h
        if use_roll(rows):
            plan["shift"][h] = ("roll", 2 * len(mask_cols))
            mask_cols.append(h)
        else:
            plan["shift"][h] = ("mat", (add("shift_dn", h), add("shift_up", h)))
    for li, h in enumerate(hs[:4]):               # 2x2 maxpools
        rows = n * h
        if use_roll(rows):
            plan["pool_rsel"][h] = ("roll", add("pool_even", h))
        else:
            plan["pool_rsel"][h] = ("mat", (add("pool_even", h), add("pool_odd", h)))
        plan["pool_csel"][h] = li
    for h in (hs[4], hs[3], hs[2], hs[1]):        # 2x2 transposed convs
        plan["up_sel"][h] = (add("up_e0", h), add("up_e1", h))
    plan["small"] = tuple(small)
    plan["mask_cols"] = tuple(mask_cols)
    return plan


# -----------------------------------------------------------------------------
# The single fused kernel.  All activations are 2-D values (n*rows, width*chan)
# with channels packed on the lane axis (lane-dense), so every op is a bf16
# MXU matmul, an XLU roll or a VPU max / bias / ReLU.
# -----------------------------------------------------------------------------
def _miniunet_kernel(x_ref, e1w_ref, encw_ref, bias_ref, selpack_ref,
                     maskpack_ref, cselpack_ref, outw_ref, outb_ref,
                     upw_hbm, decw_hbm,
                     o_ref,
                     upw_v, decw_v, dma_sems, *, plan):
    n, size = plan["n"], plan["size"]

    # Kick off the (large) decoder-weight DMAs immediately so they stream in
    # underneath the whole encoder compute (review: hide the weight DMA).
    up_cp = pltpu.make_async_copy(upw_hbm, upw_v, dma_sems.at[0])
    dec_cp = pltpu.make_async_copy(decw_hbm, decw_v, dma_sems.at[1])
    up_cp.start()
    dec_cp.start()

    def bias(k):
        return bias_ref[k:k + 1, :]                         # (1, lanes) f32

    def small(idx, a, b):
        return selpack_ref[idx][0:a, 0:b]                   # precomputed bf16

    def shift_add(acc, y0, y2, h):
        """acc += down_shift(y0) + up_shift(y2) with per-image zero padding."""
        rows = n * h
        kind, info = plan["shift"][h]
        if kind == "roll":                                   # exact, XLU slot
            col = info
            top = maskpack_ref[0:rows, col:col + 1]          # 0 on first row/img
            bot = maskpack_ref[0:rows, col + 1:col + 2]      # 0 on last row/img
            acc = acc + top * pltpu.roll(y0, shift=1, axis=0)
            acc = acc + bot * pltpu.roll(y2, shift=rows - 1, axis=0)
        else:                                                # tiny bf16 matmuls
            i_dn, i_up = info
            acc = acc + jnp.dot(small(i_dn, rows, rows), y0.astype(jnp.bfloat16),
                                preferred_element_type=jnp.float32)
            acc = acc + jnp.dot(small(i_up, rows, rows), y2.astype(jnp.bfloat16),
                                preferred_element_type=jnp.float32)
        return acc

    def conv3x3_relu(x_bf, get_w, bk, h):
        acc = jnp.dot(x_bf, get_w(1), preferred_element_type=jnp.float32)
        if h > 1:     # for 1-row images the dy=0/2 taps only see zero padding
            y0 = jnp.dot(x_bf, get_w(0), preferred_element_type=jnp.float32)
            y2 = jnp.dot(x_bf, get_w(2), preferred_element_type=jnp.float32)
            acc = shift_add(acc, y0, y2, h)
        return jnp.maximum(acc + bias(bk), 0.0)

    def maxpool2x2(s, h, c):
        rows = n * h
        lanes = s.shape[1]
        # column pair-max via lane roll (exact, f32, XLU slot)
        m = jnp.maximum(s, pltpu.roll(s, shift=lanes - c, axis=1))
        kind, info = plan["pool_rsel"][h]
        if kind == "roll":
            # row pair-max via sublane roll, then a single even-row selector
            m = jnp.maximum(m, pltpu.roll(m, shift=rows - 1, axis=0))
            t = jnp.dot(small(info, rows // 2, rows), m.astype(jnp.bfloat16),
                        preferred_element_type=jnp.float32)
        else:
            ie, io = info
            mb = m.astype(jnp.bfloat16)
            t = jnp.maximum(
                jnp.dot(small(ie, rows // 2, rows), mb,
                        preferred_element_type=jnp.float32),
                jnp.dot(small(io, rows // 2, rows), mb,
                        preferred_element_type=jnp.float32))
        csel = cselpack_ref[plan["pool_csel"][h]]            # (w*c, (w/2)*c)
        return jnp.dot(t.astype(jnp.bfloat16), csel,
                       preferred_element_type=jnp.float32).astype(jnp.bfloat16)

    def conv_transpose2x2(x_bf, lvl, h):
        u0 = jnp.dot(x_bf, upw_v[2 * lvl + 0], preferred_element_type=jnp.float32)
        u1 = jnp.dot(x_bf, upw_v[2 * lvl + 1], preferred_element_type=jnp.float32)
        ri, ro = n * h, 2 * n * h
        i0, i1 = plan["up_sel"][h]
        up = (jnp.dot(small(i0, ro, ri), u0.astype(jnp.bfloat16),
                      preferred_element_type=jnp.float32) +
              jnp.dot(small(i1, ro, ri), u1.astype(jnp.bfloat16),
                      preferred_element_type=jnp.float32))
        return up + bias(_B_DU[lvl])

    def decoder(x_bf, skip, lvl, h):
        up = conv_transpose2x2(x_bf, lvl, h)
        h2 = 2 * h
        ub = up.astype(jnp.bfloat16)
        sb = skip.astype(jnp.bfloat16)

        def tap(dy):   # fused skip-concat: two K-chunk matmuls per dy tap
            return (jnp.dot(ub, decw_v[6 * lvl + dy],
                            preferred_element_type=jnp.float32) +
                    jnp.dot(sb, decw_v[6 * lvl + 3 + dy],
                            preferred_element_type=jnp.float32))

        acc = shift_add(tap(1), tap(0), tap(2), h2)
        return jnp.maximum(acc + bias(_B_DC[lvl]), 0.0)

    # ---------------- encoder ----------------
    x_bf = x_ref[...].astype(jnp.bfloat16)
    s1 = conv3x3_relu(x_bf, lambda dy: e1w_ref[dy], _B_E1, size)
    p1 = maxpool2x2(s1, size, 16)
    s2 = conv3x3_relu(p1, lambda dy: encw_ref[dy], _B_E2, size // 2)
    p2 = maxpool2x2(s2, size // 2, 32)
    s3 = conv3x3_relu(p2, lambda dy: encw_ref[3 + dy], _B_E3, size // 4)
    p3 = maxpool2x2(s3, size // 4, 64)
    s4 = conv3x3_relu(p3, lambda dy: encw_ref[6 + dy], _B_E4, size // 8)
    p4 = maxpool2x2(s4, size // 8, 128)
    bn = conv3x3_relu(p4, lambda dy: encw_ref[9 + dy], _B_BOT, size // 16)

    # Decoder weights have been streaming underneath the encoder; block here.
    up_cp.wait()
    dec_cp.wait()

    # ---------------- decoder ----------------
    d1 = decoder(bn.astype(jnp.bfloat16), s4, 0, size // 16)
    d2 = decoder(d1.astype(jnp.bfloat16), s3, 1, size // 8)
    d3 = decoder(d2.astype(jnp.bfloat16), s2, 2, size // 4)
    d4 = decoder(d3.astype(jnp.bfloat16), s1, 3, size // 2)

    # 1x1 output conv (block-diagonal folded weight).
    o = jnp.dot(d4.astype(jnp.bfloat16), outw_ref[...],
                preferred_element_type=jnp.float32) + outb_ref[...]
    o_ref[...] = o


def miniunet_forward(prepped, x_nchw):
    (e1w, encw, biases, selpack, maskpack, cselpack,
     outw, outb, upw, decw) = prepped
    n, cin, hgt, wdt = x_nchw.shape
    assert cin == 3 and hgt == wdt and hgt >= 16 and (hgt & (hgt - 1)) == 0
    plan = _plan(n, hgt)
    assert selpack.shape == (len(plan["small"]), plan["max_rows"], plan["max_rows"]), \
        "prepare_params() batch/size must match the input batch/size"
    x2d = jnp.transpose(x_nchw, (0, 2, 3, 1)).reshape(n * hgt, wdt * 3)
    out2d = pl.pallas_call(
        functools.partial(_miniunet_kernel, plan=plan),
        out_shape=jax.ShapeDtypeStruct((n * hgt, wdt * 4), jnp.float32),
        in_specs=[_VMEM_SPEC] * 9 + [_ANY_SPEC] * 2,
        out_specs=_VMEM_SPEC,
        scratch_shapes=[
            pltpu.VMEM(upw.shape, jnp.bfloat16),    # decoder up-conv weights
            pltpu.VMEM(decw.shape, jnp.bfloat16),   # decoder 3x3 conv weights
            pltpu.SemaphoreType.DMA((2,)),
        ],
        compiler_params=pltpu.CompilerParams(vmem_limit_bytes=32 * 1024 * 1024),
    )(x2d, e1w, encw, biases, selpack, maskpack, cselpack, outw, outb, upw, decw)
    return jnp.transpose(out2d.reshape(n, hgt, wdt, 4), (0, 3, 1, 2))


# -----------------------------------------------------------------------------
# One-time parameter preparation (weight folding, packing, bf16 cast) + the
# precomputed selection / shift / boundary-mask packs.  All outside the hot path.
# -----------------------------------------------------------------------------
def _np_f32(a):
    return np.asarray(a, dtype=np.float32)


def _fold_conv3x3(w, wsp):
    """(cout, cin, 3, 3) torch conv weight -> (3, wsp*cin, wsp*cout) f32."""
    cout, cin = w.shape[0], w.shape[1]
    wf = np.zeros((3, wsp * cin, wsp * cout), np.float32)
    for dy in range(3):
        for dx in range(3):
            blk = w[:, :, dy, dx].T
            for jo in range(wsp):
                js = jo + dx - 1
                if 0 <= js < wsp:
                    wf[dy, js * cin:(js + 1) * cin, jo * cout:(jo + 1) * cout] = blk
    return wf


def _fold_convT2x2(w, wsp):
    """(cin, cout, 2, 2) torch ConvTranspose weight -> (2, wsp*cin, 2*wsp*cout)."""
    cin, cout = w.shape[0], w.shape[1]
    wu = np.zeros((2, wsp * cin, 2 * wsp * cout), np.float32)
    for di in range(2):
        for dj in range(2):
            blk = w[:, :, di, dj]
            for j in range(wsp):
                jx = 2 * j + dj
                wu[di, j * cin:(j + 1) * cin, jx * cout:(jx + 1) * cout] = blk
    return wu


def _fold_conv1x1(w, wsp):
    """(cout, cin, 1, 1) -> block-diagonal (wsp*cin, wsp*cout)."""
    cout, cin = w.shape[0], w.shape[1]
    blk = w[:, :, 0, 0].T
    wf = np.zeros((wsp * cin, wsp * cout), np.float32)
    for j in range(wsp):
        wf[j * cin:(j + 1) * cin, j * cout:(j + 1) * cout] = blk
    return wf


def _pool_row_selector(n, h, parity):
    ho = h // 2
    m = np.zeros((n * ho, n * h), np.float32)
    for img in range(n):
        for o in range(ho):
            m[img * ho + o, img * h + 2 * o + parity] = 1.0
    return m


def _up_row_interleaver(n, h, parity):
    h2 = 2 * h
    m = np.zeros((n * h2, n * h), np.float32)
    for img in range(n):
        for i in range(h):
            m[img * h2 + 2 * i + parity, img * h + i] = 1.0
    return m


def _shift_matrix(n, h, direction):
    r = n * h
    m = np.zeros((r, r), np.float32)
    for img in range(n):
        for i in range(h):
            j = i + direction
            if 0 <= j < h:
                m[img * h + i, img * h + j] = 1.0
    return m


def _pool_col_selector(w, c):
    wo = w // 2
    m = np.zeros((w * c, wo * c), np.float32)
    for jo in range(wo):
        for ch in range(c):
            m[(2 * jo) * c + ch, jo * c + ch] = 1.0
    return m


def _boundary_masks(n, h):
    r = n * h
    top = np.ones((r, 1), np.float32)
    bot = np.ones((r, 1), np.float32)
    for img in range(n):
        top[img * h, 0] = 0.0
        bot[img * h + h - 1, 0] = 0.0
    return top, bot


def _small_matrix(kind, n, h):
    if kind == "shift_dn":
        return _shift_matrix(n, h, -1)
    if kind == "shift_up":
        return _shift_matrix(n, h, +1)
    if kind == "pool_even":
        return _pool_row_selector(n, h, 0)
    if kind == "pool_odd":
        return _pool_row_selector(n, h, 1)
    if kind == "up_e0":
        return _up_row_interleaver(n, h, 0)
    if kind == "up_e1":
        return _up_row_interleaver(n, h, 1)
    raise ValueError(kind)


def prepare_params(params, size=16, batch=2):
    s = size
    plan = _plan(batch, s)

    # Encoder / bottleneck 3x3 convs (row-band folded, stacked where shapes match).
    e1w = _fold_conv3x3(_np_f32(params["e1"][0]), s)
    encw = np.stack([_fold_conv3x3(_np_f32(params[nm][0]), wsp)
                     for nm, wsp in zip(("e2", "e3", "e4", "b"),
                                        (s // 2, s // 4, s // 8, s // 16))])
    encw = encw.reshape(-1, 8 * s, 16 * s)

    brows = [np.tile(_np_f32(params["e1"][1]), s)]
    for nm, wsp in zip(("e2", "e3", "e4", "b"), (s // 2, s // 4, s // 8, s // 16)):
        brows.append(np.tile(_np_f32(params[nm][1]), wsp))

    upw_l, decw_l = [], []
    for nm, wsp in zip(("d1", "d2", "d3", "d4"), (s // 16, s // 8, s // 4, s // 2)):
        wu, bu = params[nm + "_up"]
        wc, bc = params[nm + "_conv"]
        cm = np.asarray(wu).shape[1]          # up-path cout == skip channel count
        upw_l.append(_fold_convT2x2(_np_f32(wu), wsp))
        brows.append(np.tile(_np_f32(bu), 2 * wsp))
        wcn = _np_f32(wc)
        decw_l.append(_fold_conv3x3(wcn[:, :cm], 2 * wsp))   # up half of concat
        decw_l.append(_fold_conv3x3(wcn[:, cm:], 2 * wsp))   # skip half of concat
        brows.append(np.tile(_np_f32(bc), 2 * wsp))
    upw = np.stack(upw_l).reshape(-1, 16 * s, 16 * s)
    decw = np.stack(decw_l).reshape(-1, 16 * s, 16 * s)
    biases = np.stack(brows)

    wo, bo = params["out"]
    outw = _fold_conv1x1(_np_f32(wo), s)
    outb = np.tile(_np_f32(bo), s)[None, :]

    # Auxiliary selection / shift / boundary-mask packs (review item 1).
    mr = plan["max_rows"]
    selpack = np.zeros((len(plan["small"]), mr, mr), np.float32)
    for k, (kind, h) in enumerate(plan["small"]):
        m = _small_matrix(kind, batch, h)
        selpack[k, :m.shape[0], :m.shape[1]] = m
    maskpack = np.ones((mr, max(2 * len(plan["mask_cols"]), 8)), np.float32)
    for i, h in enumerate(plan["mask_cols"]):
        top, bot = _boundary_masks(batch, h)
        maskpack[:batch * h, 2 * i:2 * i + 1] = top
        maskpack[:batch * h, 2 * i + 1:2 * i + 2] = bot
    cselpack = np.stack([_pool_col_selector(s >> li, 16 << li) for li in range(4)])

    bf = lambda a: jnp.asarray(a, jnp.bfloat16)
    f32 = lambda a: jnp.asarray(a, jnp.float32)
    return (bf(e1w), bf(encw), f32(biases), bf(selpack), f32(maskpack),
            bf(cselpack), bf(outw), f32(outb), bf(upw), bf(decw))


# -----------------------------------------------------------------------------
# Plain-JAX reference (mirrors the PyTorch module; used only for verification).
# -----------------------------------------------------------------------------
def _ref_conv3x3_relu(x, w, b):
    y = jax.lax.conv_general_dilated(x, w, window_strides=(1, 1), padding="SAME",
                                     dimension_numbers=("NCHW", "OIHW", "NCHW"))
    return jnp.maximum(y + b[None, :, None, None], 0.0)


def _ref_maxpool2x2(x):
    n, c, h, w = x.shape
    return jnp.max(x.reshape(n, c, h // 2, 2, w // 2, 2), axis=(3, 5))


def _ref_convT2x2(x, w, b):
    y = jnp.einsum("ncij,cokl->noikjl", x, w)
    n, co, h, _, wd, _ = y.shape
    return y.reshape(n, co, 2 * h, 2 * wd) + b[None, :, None, None]


def ref_forward(params, x):
    s1 = _ref_conv3x3_relu(x, *params["e1"]); p1 = _ref_maxpool2x2(s1)
    s2 = _ref_conv3x3_relu(p1, *params["e2"]); p2 = _ref_maxpool2x2(s2)
    s3 = _ref_conv3x3_relu(p2, *params["e3"]); p3 = _ref_maxpool2x2(s3)
    s4 = _ref_conv3x3_relu(p3, *params["e4"]); p4 = _ref_maxpool2x2(s4)
    bn = _ref_conv3x3_relu(p4, *params["b"])

    def dec(xd, skip, up_p, conv_p):
        u = _ref_convT2x2(xd, *up_p)
        return _ref_conv3x3_relu(jnp.concatenate([u, skip], axis=1), *conv_p)

    d1 = dec(bn, s4, params["d1_up"], params["d1_conv"])
    d2 = dec(d1, s3, params["d2_up"], params["d2_conv"])
    d3 = dec(d2, s2, params["d3_up"], params["d3_conv"])
    d4 = dec(d3, s1, params["d4_up"], params["d4_conv"])
    wo, bo = params["out"]
    return jnp.einsum("ncij,oc->noij", d4, wo[:, :, 0, 0]) + bo[None, :, None, None]


# -----------------------------------------------------------------------------
# Deterministic parameter init (PyTorch-style uniform fan-in bounds).
# -----------------------------------------------------------------------------
def init_params(key):
    params = {}

    def conv_p(k, cout, cin, ksz):
        k1, k2 = jax.random.split(k)
        bound = 1.0 / np.sqrt(cin * ksz * ksz)
        w = jax.random.uniform(k1, (cout, cin, ksz, ksz), jnp.float32, -bound, bound)
        b = jax.random.uniform(k2, (cout,), jnp.float32, -bound, bound)
        return w, b

    def convT_p(k, cin, cout, ksz):
        k1, k2 = jax.random.split(k)
        bound = 1.0 / np.sqrt(cout * ksz * ksz)
        w = jax.random.uniform(k1, (cin, cout, ksz, ksz), jnp.float32, -bound, bound)
        b = jax.random.uniform(k2, (cout,), jnp.float32, -bound, bound)
        return w, b

    keys = jax.random.split(key, 16)
    params["e1"] = conv_p(keys[0], 16, 3, 3)
    params["e2"] = conv_p(keys[1], 32, 16, 3)
    params["e3"] = conv_p(keys[2], 64, 32, 3)
    params["e4"] = conv_p(keys[3], 128, 64, 3)
    params["b"] = conv_p(keys[4], 256, 128, 3)
    params["d1_up"] = convT_p(keys[5], 256, 128, 2)
    params["d1_conv"] = conv_p(keys[6], 128, 256, 3)
    params["d2_up"] = convT_p(keys[7], 128, 64, 2)
    params["d2_conv"] = conv_p(keys[8], 64, 128, 3)
    params["d3_up"] = convT_p(keys[9], 64, 32, 2)
    params["d3_conv"] = conv_p(keys[10], 32, 64, 3)
    params["d4_up"] = convT_p(keys[11], 32, 16, 2)
    params["d4_conv"] = conv_p(keys[12], 16, 32, 3)
    params["out"] = conv_p(keys[13], 4, 16, 1)
    return params


if __name__ == "__main__":
    key = jax.random.PRNGKey(0)
    k_param, k_input = jax.random.split(key)

    params = init_params(k_param)
    prepped = prepare_params(params, size=16, batch=2)   # one-time weight folding
    x = jax.random.normal(k_input, (2, 3, 16, 16), dtype=jnp.float32)  # NCHW

    fwd = jax.jit(miniunet_forward)
    y = fwd(prepped, x)
    jax.block_until_ready(y)

    assert y.shape == (2, 4, 16, 16), y.shape
    assert bool(jnp.all(jnp.isfinite(y)))

    # Cross-check against a plain-JAX reference of the PyTorch module.
    # (Tolerance tightened vs. rev 2: all MXU matmuls use bf16 inputs with f32
    #  accumulation; shifts / pools / masks stay exact, so ~1% is expected.)
    ref = ref_forward(params, x)
    rel = float(jnp.max(jnp.abs(y - ref)) / (jnp.max(jnp.abs(ref)) + 1e-8))
    assert rel < 3e-2, f"kernel/reference mismatch, rel={rel:.4f}"
    print("KERNEL_OK")
</pallas_src>

<mosaic_0001>
module attributes {stable_mosaic.version = 11 : i64} {
  func.func @_miniunet_kernel(%arg0: memref<32x48xf32, #tpu.memory_space<vmem>>, %arg1: memref<3x48x256xbf16, #tpu.memory_space<vmem>>, %arg2: memref<12x128x256xbf16, #tpu.memory_space<vmem>>, %arg3: memref<13x256xf32, #tpu.memory_space<vmem>>, %arg4: memref<15x32x32xbf16, #tpu.memory_space<vmem>>, %arg5: memref<32x8xf32, #tpu.memory_space<vmem>>, %arg6: memref<4x256x128xbf16, #tpu.memory_space<vmem>>, %arg7: memref<256x64xbf16, #tpu.memory_space<vmem>>, %arg8: memref<1x64xf32, #tpu.memory_space<vmem>>, %arg9: memref<8x256x256xbf16, #tpu.memory_space<any>>, %arg10: memref<24x256x256xbf16, #tpu.memory_space<any>>, %arg11: memref<32x64xf32, #tpu.memory_space<vmem>>, %arg12: memref<8x256x256xbf16, #tpu.memory_space<vmem>>, %arg13: memref<24x256x256xbf16, #tpu.memory_space<vmem>>, %arg14: memref<2x!tpu.dma_semaphore, #tpu.memory_space<semaphore_mem>>) attributes {dimension_semantics = [], scalar_prefetch = 0 : i64, scratch_operands = 3 : i64, tpu.core_type = #tpu.core_type<tc>} {
    %c0_i32 = arith.constant 0 : i32
    %0 = tpu.memref_slice %arg14[%c0_i32] : memref<2x!tpu.dma_semaphore, #tpu.memory_space<semaphore_mem>> -> memref<1x!tpu.dma_semaphore, #tpu.memory_space<semaphore_mem>>
    %1 = tpu.memref_squeeze %0 : memref<1x!tpu.dma_semaphore, #tpu.memory_space<semaphore_mem>> -> memref<!tpu.dma_semaphore, #tpu.memory_space<semaphore_mem>>
    tpu.enqueue_dma source(%arg9 : memref<8x256x256xbf16, #tpu.memory_space<any>>) target(%arg12 : memref<8x256x256xbf16, #tpu.memory_space<vmem>>) target_semaphore(%1 : memref<!tpu.dma_semaphore, #tpu.memory_space<semaphore_mem>>)
    %c1_i32 = arith.constant 1 : i32
    %2 = tpu.memref_slice %arg14[%c1_i32] : memref<2x!tpu.dma_semaphore, #tpu.memory_space<semaphore_mem>> -> memref<1x!tpu.dma_semaphore, #tpu.memory_space<semaphore_mem>>
    %3 = tpu.memref_squeeze %2 : memref<1x!tpu.dma_semaphore, #tpu.memory_space<semaphore_mem>> -> memref<!tpu.dma_semaphore, #tpu.memory_space<semaphore_mem>>
    tpu.enqueue_dma source(%arg10 : memref<24x256x256xbf16, #tpu.memory_space<any>>) target(%arg13 : memref<24x256x256xbf16, #tpu.memory_space<vmem>>) target_semaphore(%3 : memref<!tpu.dma_semaphore, #tpu.memory_space<semaphore_mem>>)
    %c0 = arith.constant 0 : index
    %c0_0 = arith.constant 0 : index
    %4 = vector.load %arg0[%c0, %c0_0] : memref<32x48xf32, #tpu.memory_space<vmem>>, vector<32x48xf32>
    %5 = arith.truncf %4 : vector<32x48xf32> to vector<32x48xbf16>
    %c1 = arith.constant 1 : index
    %c0_1 = arith.constant 0 : index
    %c0_2 = arith.constant 0 : index
    %6 = vector.load %arg1[%c1, %c0_1, %c0_2] : memref<3x48x256xbf16, #tpu.memory_space<vmem>>, vector<1x48x256xbf16>
    %7 = vector.shape_cast %6 : vector<1x48x256xbf16> to vector<48x256xbf16>
    %cst = arith.constant dense<0.000000e+00> : vector<32x256xf32>
    %8 = tpu.matmul %5, %7, %cst {dimension_numbers = #tpu.dot_dimension_numbers<[1], [0], [0], [1], [0, 0, 1, 1], [], []>} : vector<32x48xbf16>, vector<48x256xbf16>, vector<32x256xf32> -> vector<32x256xf32>
    %c0_3 = arith.constant 0 : index
    %c0_4 = arith.constant 0 : index
    %c0_5 = arith.constant 0 : index
    %9 = vector.load %arg1[%c0_3, %c0_4, %c0_5] : memref<3x48x256xbf16, #tpu.memory_space<vmem>>, vector<1x48x256xbf16>
    %10 = vector.shape_cast %9 : vector<1x48x256xbf16> to vector<48x256xbf16>
    %cst_6 = arith.constant dense<0.000000e+00> : vector<32x256xf32>
    %11 = tpu.matmul %5, %10, %cst_6 {dimension_numbers = #tpu.dot_dimension_numbers<[1], [0], [0], [1], [0, 0, 1, 1], [], []>} : vector<32x48xbf16>, vector<48x256xbf16>, vector<32x256xf32> -> vector<32x256xf32>
    %c2 = arith.constant 2 : index
    %c0_7 = arith.constant 0 : index
    %c0_8 = arith.constant 0 : index
    %12 = vector.load %arg1[%c2, %c0_7, %c0_8] : memref<3x48x256xbf16, #tpu.memory_space<vmem>>, vector<1x48x256xbf16>
    %13 = vector.shape_cast %12 : vector<1x48x256xbf16> to vector<48x256xbf16>
    %cst_9 = arith.constant dense<0.000000e+00> : vector<32x256xf32>
    %14 = tpu.matmul %5, %13, %cst_9 {dimension_numbers = #tpu.dot_dimension_numbers<[1], [0], [0], [1], [0, 0, 1, 1], [], []>} : vector<32x48xbf16>, vector<48x256xbf16>, vector<32x256xf32> -> vector<32x256xf32>
    %c0_10 = arith.constant 0 : index
    %c0_11 = arith.constant 0 : index
    %15 = vector.load %arg5[%c0_10, %c0_11] : memref<32x8xf32, #tpu.memory_space<vmem>>, vector<32x1xf32>
    %c0_12 = arith.constant 0 : index
    %c1_13 = arith.constant 1 : index
    %16 = vector.load %arg5[%c0_12, %c1_13] : memref<32x8xf32, #tpu.memory_space<vmem>>, vector<32x1xf32>
    %c1_i32_14 = arith.constant 1 : i32
    %17 = tpu.dynamic_rotate %11 by %c1_i32_14 dim 0 : vector<32x256xf32>, i32 -> vector<32x256xf32>
    %18 = vector.broadcast %15 : vector<32x1xf32> to vector<32x256xf32>
    %19 = arith.mulf %18, %17 : vector<32x256xf32>
    %20 = arith.addf %8, %19 : vector<32x256xf32>
    %c31_i32 = arith.constant 31 : i32
    %21 = tpu.dynamic_rotate %14 by %c31_i32 dim 0 : vector<32x256xf32>, i32 -> vector<32x256xf32>
    %22 = vector.broadcast %16 : vector<32x1xf32> to vector<32x256xf32>
    %23 = arith.mulf %22, %21 : vector<32x256xf32>
    %24 = arith.addf %20, %23 : vector<32x256xf32>
    %c0_15 = arith.constant 0 : index
    %c0_16 = arith.constant 0 : index
    %25 = vector.load %arg3[%c0_15, %c0_16] : memref<13x256xf32, #tpu.memory_space<vmem>>, vector<1x256xf32>
    %26 = vector.broadcast %25 : vector<1x256xf32> to vector<32x256xf32>
    %27 = arith.addf %24, %26 : vector<32x256xf32>
    %cst_17 = arith.constant 0.000000e+00 : f32
    %28 = vector.broadcast %cst_17 : f32 to vector<32x256xf32>
    %29 = arith.maximumf %27, %28 : vector<32x256xf32>
    %c240_i32 = arith.constant 240 : i32
    %30 = tpu.dynamic_rotate %29 by %c240_i32 dim 1 : vector<32x256xf32>, i32 -> vector<32x256xf32>
    %31 = arith.maximumf %29, %30 : vector<32x256xf32>
    %c31_i32_18 = arith.constant 31 : i32
    %32 = tpu.dynamic_rotate %31 by %c31_i32_18 dim 0 : vector<32x256xf32>, i32 -> vector<32x256xf32>
    %33 = arith.maximumf %31, %32 : vector<32x256xf32>
    %c2_19 = arith.constant 2 : index
    %c0_20 = arith.constant 0 : index
    %c0_21 = arith.constant 0 : index
    %34 = vector.load %arg4[%c2_19, %c0_20, %c0_21] : memref<15x32x32xbf16, #tpu.memory_space<vmem>>, vector<1x32x32xbf16>
    %35 = vector.shape_cast %34 : vector<1x32x32xbf16> to vector<32x32xbf16>
    %36 = vector.extract_strided_slice %35 {offsets = [0, 0], sizes = [16, 32], strides = [1, 1]} : vector<32x32xbf16> to vector<16x32xbf16>
    %37 = arith.truncf %33 : vector<32x256xf32> to vector<32x256xbf16>
    %cst_22 = arith.constant dense<0.000000e+00> : vector<16x256xf32>
    %38 = tpu.matmul %36, %37, %cst_22 {dimension_numbers = #tpu.dot_dimension_numbers<[1], [0], [0], [1], [0, 0, 1, 1], [], []>} : vector<16x32xbf16>, vector<32x256xbf16>, vector<16x256xf32> -> vector<16x256xf32>
    %c0_23 = arith.constant 0 : index
    %c0_24 = arith.constant 0 : index
    %c0_25 = arith.constant 0 : index
    %39 = vector.load %arg6[%c0_23, %c0_24, %c0_25] : memref<4x256x128xbf16, #tpu.memory_space<vmem>>, vector<1x256x128xbf16>
    %40 = vector.shape_cast %39 : vector<1x256x128xbf16> to vector<256x128xbf16>
    %41 = arith.truncf %38 : vector<16x256xf32> to vector<16x256xbf16>
    %cst_26 = arith.constant dense<0.000000e+00> : vector<16x128xf32>
    %42 = tpu.matmul %41, %40, %cst_26 {dimension_numbers = #tpu.dot_dimension_numbers<[1], [0], [0], [1], [0, 0, 1, 1], [], []>} : vector<16x256xbf16>, vector<256x128xbf16>, vector<16x128xf32> -> vector<16x128xf32>
    %43 = arith.truncf %42 : vector<16x128xf32> to vector<16x128xbf16>
    %c1_27 = arith.constant 1 : index
    %c0_28 = arith.constant 0 : index
    %c0_29 = arith.constant 0 : index
    %44 = vector.load %arg2[%c1_27, %c0_28, %c0_29] : memref<12x128x256xbf16, #tpu.memory_space<vmem>>, vector<1x128x256xbf16>
    %45 = vector.shape_cast %44 : vector<1x128x256xbf16> to vector<128x256xbf16>
    %cst_30 = arith.constant dense<0.000000e+00> : vector<16x256xf32>
    %46 = tpu.matmul %43, %45, %cst_30 {dimension_numbers = #tpu.dot_dimension_numbers<[1], [0], [0], [1], [0, 0, 1, 1], [], []>} : vector<16x128xbf16>, vector<128x256xbf16>, vector<16x256xf32> -> vector<16x256xf32>
    %c0_31 = arith.constant 0 : index
    %c0_32 = arith.constant 0 : index
    %c0_33 = arith.constant 0 : index
    %47 = vector.load %arg2[%c0_31, %c0_32, %c0_33] : memref<12x128x256xbf16, #tpu.memory_space<vmem>>, vector<1x128x256xbf16>
    %48 = vector.shape_cast %47 : vector<1x128x256xbf16> to vector<128x256xbf16>
    %cst_34 = arith.constant dense<0.000000e+00> : vector<16x256xf32>
    %49 = tpu.matmul %43, %48, %cst_34 {dimension_numbers = #tpu.dot_dimension_numbers<[1], [0], [0], [1], [0, 0, 1, 1], [], []>} : vector<16x128xbf16>, vector<128x256xbf16>, vector<16x256xf32> -> vector<16x256xf32>
    %c2_35 = arith.constant 2 : index
    %c0_36 = arith.constant 0 : index
    %c0_37 = arith.constant 0 : index
    %50 = vector.load %arg2[%c2_35, %c0_36, %c0_37] : memref<12x128x256xbf16, #tpu.memory_space<vmem>>, vector<1x128x256xbf16>
    %51 = vector.shape_cast %50 : vector<1x128x256xbf16> to vector<128x256xbf16>
    %cst_38 = arith.constant dense<0.000000e+00> : vector<16x256xf32>
    %52 = tpu.matmul %43, %51, %cst_38 {dimension_numbers = #tpu.dot_dimension_numbers<[1], [0], [0], [1], [0, 0, 1, 1], [], []>} : vector<16x128xbf16>, vector<128x256xbf16>, vector<16x256xf32> -> vector<16x256xf32>
    %c0_39 = arith.constant 0 : index
    %c2_40 = arith.constant 2 : index
    %53 = vector.load %arg5[%c0_39, %c2_40] : memref<32x8xf32, #tpu.memory_space<vmem>>, vector<16x1xf32>
    %c0_41 = arith.constant 0 : index
    %c3 = arith.constant 3 : index
    %54 = vector.load %arg5[%c0_41, %c3] : memref<32x8xf32, #tpu.memory_space<vmem>>, vector<16x1xf32>
    %c1_i32_42 = arith.constant 1 : i32
    %55 = tpu.dynamic_rotate %49 by %c1_i32_42 dim 0 : vector<16x256xf32>, i32 -> vector<16x256xf32>
    %56 = vector.broadcast %53 : vector<16x1xf32> to vector<16x256xf32>
    %57 = arith.mulf %56, %55 : vector<16x256xf32>
    %58 = arith.addf %46, %57 : vector<16x256xf32>
    %c15_i32 = arith.constant 15 : i32
    %59 = tpu.dynamic_rotate %52 by %c15_i32 dim 0 : vector<16x256xf32>, i32 -> vector<16x256xf32>
    %60 = vector.broadcast %54 : vector<16x1xf32> to vector<16x256xf32>
    %61 = arith.mulf %60, %59 : vector<16x256xf32>
    %62 = arith.addf %58, %61 : vector<16x256xf32>
    %c1_43 = arith.constant 1 : index
    %c0_44 = arith.constant 0 : index
    %63 = vector.load %arg3[%c1_43, %c0_44] : memref<13x256xf32, #tpu.memory_space<vmem>>, vector<1x256xf32>
    %64 = vector.broadcast %63 : vector<1x256xf32> to vector<16x256xf32>
    %65 = arith.addf %62, %64 : vector<16x256xf32>
    %cst_45 = arith.constant 0.000000e+00 : f32
    %66 = vector.broadcast %cst_45 : f32 to vector<16x256xf32>
    %67 = arith.maximumf %65, %66 : vector<16x256xf32>
    %c224_i32 = arith.constant 224 : i32
    %68 = tpu.dynamic_rotate %67 by %c224_i32 dim 1 : vector<16x256xf32>, i32 -> vector<16x256xf32>
    %69 = arith.maximumf %67, %68 : vector<16x256xf32>
    %c15_i32_46 = arith.constant 15 : i32
    %70 = tpu.dynamic_rotate %69 by %c15_i32_46 dim 0 : vector<16x256xf32>, i32 -> vector<16x256xf32>
    %71 = arith.maximumf %69, %70 : vector<16x256xf32>
    %c3_47 = arith.constant 3 : index
    %c0_48 = arith.constant 0 : index
    %c0_49 = arith.constant 0 : index
    %72 = vector.load %arg4[%c3_47, %c0_48, %c0_49] : memref<15x32x32xbf16, #tpu.memory_space<vmem>>, vector<1x32x32xbf16>
    %73 = vector.shape_cast %72 : vector<1x32x32xbf16> to vector<32x32xbf16>
    %74 = vector.extract_strided_slice %73 {offsets = [0, 0], sizes = [8, 16], strides = [1, 1]} : vector<32x32xbf16> to vector<8x16xbf16>
    %75 = arith.truncf %71 : vector<16x256xf32> to vector<16x256xbf16>
    %cst_50 = arith.constant dense<0.000000e+00> : vector<8x256xf32>
    %76 = tpu.matmul %74, %75, %cst_50 {dimension_numbers = #tpu.dot_dimension_numbers<[1], [0], [0], [1], [0, 0, 1, 1], [], []>} : vector<8x16xbf16>, vector<16x256xbf16>, vector<8x256xf32> -> vector<8x256xf32>
    %c1_51 = arith.constant 1 : index
    %c0_52 = arith.constant 0 : index
    %c0_53 = arith.constant 0 : index
    %77 = vector.load %arg6[%c1_51, %c0_52, %c0_53] : memref<4x256x128xbf16, #tpu.memory_space<vmem>>, vector<1x256x128xbf16>
    %78 = vector.shape_cast %77 : vector<1x256x128xbf16> to vector<256x128xbf16>
    %79 = arith.truncf %76 : vector<8x256xf32> to vector<8x256xbf16>
    %cst_54 = arith.constant dense<0.000000e+00> : vector<8x128xf32>
    %80 = tpu.matmul %79, %78, %cst_54 {dimension_numbers = #tpu.dot_dimension_numbers<[1], [0], [0], [1], [0, 0, 1, 1], [], []>} : vector<8x256xbf16>, vector<256x128xbf16>, vector<8x128xf32> -> vector<8x128xf32>
    %81 = arith.truncf %80 : vector<8x128xf32> to vector<8x128xbf16>
    %c4 = arith.constant 4 : index
    %c0_55 = arith.constant 0 : index
    %c0_56 = arith.constant 0 : index
    %82 = vector.load %arg2[%c4, %c0_55, %c0_56] : memref<12x128x256xbf16, #tpu.memory_space<vmem>>, vector<1x128x256xbf16>
    %83 = vector.shape_cast %82 : vector<1x128x256xbf16> to vector<128x256xbf16>
    %cst_57 = arith.constant dense<0.000000e+00> : vector<8x256xf32>
    %84 = tpu.matmul %81, %83, %cst_57 {dimension_numbers = #tpu.dot_dimension_numbers<[1], [0], [0], [1], [0, 0, 1, 1], [], []>} : vector<8x128xbf16>, vector<128x256xbf16>, vector<8x256xf32> -> vector<8x256xf32>
    %c3_58 = arith.constant 3 : index
    %c0_59 = arith.constant 0 : index
    %c0_60 = arith.constant 0 : index
    %85 = vector.load %arg2[%c3_58, %c0_59, %c0_60] : memref<12x128x256xbf16, #tpu.memory_space<vmem>>, vector<1x128x256xbf16>
    %86 = vector.shape_cast %85 : vector<1x128x256xbf16> to vector<128x256xbf16>
    %cst_61 = arith.constant dense<0.000000e+00> : vector<8x256xf32>
    %87 = tpu.matmul %81, %86, %cst_61 {dimension_numbers = #tpu.dot_dimension_numbers<[1], [0], [0], [1], [0, 0, 1, 1], [], []>} : vector<8x128xbf16>, vector<128x256xbf16>, vector<8x256xf32> -> vector<8x256xf32>
    %c5 = arith.constant 5 : index
    %c0_62 = arith.constant 0 : index
    %c0_63 = arith.constant 0 : index
    %88 = vector.load %arg2[%c5, %c0_62, %c0_63] : memref<12x128x256xbf16, #tpu.memory_space<vmem>>, vector<1x128x256xbf16>
    %89 = vector.shape_cast %88 : vector<1x128x256xbf16> to vector<128x256xbf16>
    %cst_64 = arith.constant dense<0.000000e+00> : vector<8x256xf32>
    %90 = tpu.matmul %81, %89, %cst_64 {dimension_numbers = #tpu.dot_dimension_numbers<[1], [0], [0], [1], [0, 0, 1, 1], [], []>} : vector<8x128xbf16>, vector<128x256xbf16>, vector<8x256xf32> -> vector<8x256xf32>
    %c0_65 = arith.constant 0 : index
    %c4_66 = arith.constant 4 : index
    %91 = vector.load %arg5[%c0_65, %c4_66] : memref<32x8xf32, #tpu.memory_space<vmem>>, vector<8x1xf32>
    %c0_67 = arith.constant 0 : index
    %c5_68 = arith.constant 5 : index
    %92 = vector.load %arg5[%c0_67, %c5_68] : memref<32x8xf32, #tpu.memory_space<vmem>>, vector<8x1xf32>
    %c1_i32_69 = arith.constant 1 : i32
    %93 = tpu.dynamic_rotate %87 by %c1_i32_69 dim 0 : vector<8x256xf32>, i32 -> vector<8x256xf32>
    %94 = vector.broadcast %91 : vector<8x1xf32> to vector<8x256xf32>
    %95 = arith.mulf %94, %93 : vector<8x256xf32>
    %96 = arith.addf %84, %95 : vector<8x256xf32>
    %c7_i32 = arith.constant 7 : i32
    %97 = tpu.dynamic_rotate %90 by %c7_i32 dim 0 : vector<8x256xf32>, i32 -> vector<8x256xf32>
    %98 = vector.broadcast %92 : vector<8x1xf32> to vector<8x256xf32>
    %99 = arith.mulf %98, %97 : vector<8x256xf32>
    %100 = arith.addf %96, %99 : vector<8x256xf32>
    %c2_70 = arith.constant 2 : index
    %c0_71 = arith.constant 0 : index
    %101 = vector.load %arg3[%c2_70, %c0_71] : memref<13x256xf32, #tpu.memory_space<vmem>>, vector<1x256xf32>
    %102 = vector.broadcast %101 : vector<1x256xf32> to vector<8x256xf32>
    %103 = arith.addf %100, %102 : vector<8x256xf32>
    %cst_72 = arith.constant 0.000000e+00 : f32
    %104 = vector.broadcast %cst_72 : f32 to vector<8x256xf32>
    %105 = arith.maximumf %103, %104 : vector<8x256xf32>
    %c192_i32 = arith.constant 192 : i32
    %106 = tpu.dynamic_rotate %105 by %c192_i32 dim 1 : vector<8x256xf32>, i32 -> vector<8x256xf32>
    %107 = arith.maximumf %105, %106 : vector<8x256xf32>
    %c7_i32_73 = arith.constant 7 : i32
    %108 = tpu.dynamic_rotate %107 by %c7_i32_73 dim 0 : vector<8x256xf32>, i32 -> vector<8x256xf32>
    %109 = arith.maximumf %107, %108 : vector<8x256xf32>
    %c4_74 = arith.constant 4 : index
    %c0_75 = arith.constant 0 : index
    %c0_76 = arith.constant 0 : index
    %110 = vector.load %arg4[%c4_74, %c0_75, %c0_76] : memref<15x32x32xbf16, #tpu.memory_space<vmem>>, vector<1x32x32xbf16>
    %111 = vector.shape_cast %110 : vector<1x32x32xbf16> to vector<32x32xbf16>
    %112 = vector.extract_strided_slice %111 {offsets = [0, 0], sizes = [4, 8], strides = [1, 1]} : vector<32x32xbf16> to vector<4x8xbf16>
    %113 = arith.truncf %109 : vector<8x256xf32> to vector<8x256xbf16>
    %cst_77 = arith.constant dense<0.000000e+00> : vector<4x256xf32>
    %114 = tpu.matmul %112, %113, %cst_77 {dimension_numbers = #tpu.dot_dimension_numbers<[1], [0], [0], [1], [0, 0, 1, 1], [], []>} : vector<4x8xbf16>, vector<8x256xbf16>, vector<4x256xf32> -> vector<4x256xf32>
    %c2_78 = arith.constant 2 : index
    %c0_79 = arith.constant 0 : index
    %c0_80 = arith.constant 0 : index
    %115 = vector.load %arg6[%c2_78, %c0_79, %c0_80] : memref<4x256x128xbf16, #tpu.memory_space<vmem>>, vector<1x256x128xbf16>
    %116 = vector.shape_cast %115 : vector<1x256x128xbf16> to vector<256x128xbf16>
    %117 = arith.truncf %114 : vector<4x256xf32> to vector<4x256xbf16>
    %cst_81 = arith.constant dense<0.000000e+00> : vector<4x128xf32>
    %118 = tpu.matmul %117, %116, %cst_81 {dimension_numbers = #tpu.dot_dimension_numbers<[1], [0], [0], [1], [0, 0, 1, 1], [], []>} : vector<4x256xbf16>, vector<256x128xbf16>, vector<4x128xf32> -> vector<4x128xf32>
    %119 = arith.truncf %118 : vector<4x128xf32> to vector<4x128xbf16>
    %c7 = arith.constant 7 : index
    %c0_82 = arith.constant 0 : index
    %c0_83 = arith.constant 0 : index
    %120 = vector.load %arg2[%c7, %c0_82, %c0_83] : memref<12x128x256xbf16, #tpu.memory_space<vmem>>, vector<1x128x256xbf16>
    %121 = vector.shape_cast %120 : vector<1x128x256xbf16> to vector<128x256xbf16>
    %cst_84 = arith.constant dense<0.000000e+00> : vector<4x256xf32>
    %122 = tpu.matmul %119, %121, %cst_84 {dimension_numbers = #tpu.dot_dimension_numbers<[1], [0], [0], [1], [0, 0, 1, 1], [], []>} : vector<4x128xbf16>, vector<128x256xbf16>, vector<4x256xf32> -> vector<4x256xf32>
    %c6 = arith.constant 6 : index
    %c0_85 = arith.constant 0 : index
    %c0_86 = arith.constant 0 : index
    %123 = vector.load %arg2[%c6, %c0_85, %c0_86] : memref<12x128x256xbf16, #tpu.memory_space<vmem>>, vector<1x128x256xbf16>
    %124 = vector.shape_cast %123 : vector<1x128x256xbf16> to vector<128x256xbf16>
    %cst_87 = arith.constant dense<0.000000e+00> : vector<4x256xf32>
    %125 = tpu.matmul %119, %124, %cst_87 {dimension_numbers = #tpu.dot_dimension_numbers<[1], [0], [0], [1], [0, 0, 1, 1], [], []>} : vector<4x128xbf16>, vector<128x256xbf16>, vector<4x256xf32> -> vector<4x256xf32>
    %c8 = arith.constant 8 : index
    %c0_88 = arith.constant 0 : index
    %c0_89 = arith.constant 0 : index
    %126 = vector.load %arg2[%c8, %c0_88, %c0_89] : memref<12x128x256xbf16, #tpu.memory_space<vmem>>, vector<1x128x256xbf16>
    %127 = vector.shape_cast %126 : vector<1x128x256xbf16> to vector<128x256xbf16>
    %cst_90 = arith.constant dense<0.000000e+00> : vector<4x256xf32>
    %128 = tpu.matmul %119, %127, %cst_90 {dimension_numbers = #tpu.dot_dimension_numbers<[1], [0], [0], [1], [0, 0, 1, 1], [], []>} : vector<4x128xbf16>, vector<128x256xbf16>, vector<4x256xf32> -> vector<4x256xf32>
    %c0_91 = arith.constant 0 : index
    %c0_92 = arith.constant 0 : index
    %c0_93 = arith.constant 0 : index
    %129 = vector.load %arg4[%c0_91, %c0_92, %c0_93] : memref<15x32x32xbf16, #tpu.memory_space<vmem>>, vector<1x32x32xbf16>
    %130 = vector.shape_cast %129 : vector<1x32x32xbf16> to vector<32x32xbf16>
    %131 = vector.extract_strided_slice %130 {offsets = [0, 0], sizes = [4, 4], strides = [1, 1]} : vector<32x32xbf16> to vector<4x4xbf16>
    %132 = arith.truncf %125 : vector<4x256xf32> to vector<4x256xbf16>
    %cst_94 = arith.constant dense<0.000000e+00> : vector<4x256xf32>
    %133 = tpu.matmul %131, %132, %cst_94 {dimension_numbers = #tpu.dot_dimension_numbers<[1], [0], [0], [1], [0, 0, 1, 1], [], []>} : vector<4x4xbf16>, vector<4x256xbf16>, vector<4x256xf32> -> vector<4x256xf32>
    %134 = arith.addf %122, %133 : vector<4x256xf32>
    %c1_95 = arith.constant 1 : index
    %c0_96 = arith.constant 0 : index
    %c0_97 = arith.constant 0 : index
    %135 = vector.load %arg4[%c1_95, %c0_96, %c0_97] : memref<15x32x32xbf16, #tpu.memory_space<vmem>>, vector<1x32x32xbf16>
    %136 = vector.shape_cast %135 : vector<1x32x32xbf16> to vector<32x32xbf16>
    %137 = vector.extract_strided_slice %136 {offsets = [0, 0], sizes = [4, 4], strides = [1, 1]} : vector<32x32xbf16> to vector<4x4xbf16>
    %138 = arith.truncf %128 : vector<4x256xf32> to vector<4x256xbf16>
    %cst_98 = arith.constant dense<0.000000e+00> : vector<4x256xf32>
    %139 = tpu.matmul %137, %138, %cst_98 {dimension_numbers = #tpu.dot_dimension_numbers<[1], [0], [0], [1], [0, 0, 1, 1], [], []>} : vector<4x4xbf16>, vector<4x256xbf16>, vector<4x256xf32> -> vector<4x256xf32>
    %140 = arith.addf %134, %139 : vector<4x256xf32>
    %c3_99 = arith.constant 3 : index
    %c0_100 = arith.constant 0 : index
    %141 = vector.load %arg3[%c3_99, %c0_100] : memref<13x256xf32, #tpu.memory_space<vmem>>, vector<1x256xf32>
    %142 = vector.broadcast %141 : vector<1x256xf32> to vector<4x256xf32>
    %143 = arith.addf %140, %142 : vector<4x256xf32>
    %cst_101 = arith.constant 0.000000e+00 : f32
    %144 = vector.broadcast %cst_101 : f32 to vector<4x256xf32>
    %145 = arith.maximumf %143, %144 : vector<4x256xf32>
    %c128_i32 = arith.constant 128 : i32
    %146 = tpu.dynamic_rotate %145 by %c128_i32 dim 1 : vector<4x256xf32>, i32 -> vector<4x256xf32>
    %147 = arith.maximumf %145, %146 : vector<4x256xf32>
    %148 = arith.truncf %147 : vector<4x256xf32> to vector<4x256xbf16>
    %c5_102 = arith.constant 5 : index
    %c0_103 = arith.constant 0 : index
    %c0_104 = arith.constant 0 : index
    %149 = vector.load %arg4[%c5_102, %c0_103, %c0_104] : memref<15x32x32xbf16, #tpu.memory_space<vmem>>, vector<1x32x32xbf16>
    %150 = vector.shape_cast %149 : vector<1x32x32xbf16> to vector<32x32xbf16>
    %151 = vector.extract_strided_slice %150 {offsets = [0, 0], sizes = [2, 4], strides = [1, 1]} : vector<32x32xbf16> to vector<2x4xbf16>
    %cst_105 = arith.constant dense<0.000000e+00> : vector<2x256xf32>
    %152 = tpu.matmul %151, %148, %cst_105 {dimension_numbers = #tpu.dot_dimension_numbers<[1], [0], [0], [1], [0, 0, 1, 1], [], []>} : vector<2x4xbf16>, vector<4x256xbf16>, vector<2x256xf32> -> vector<2x256xf32>
    %c6_106 = arith.constant 6 : index
    %c0_107 = arith.constant 0 : index
    %c0_108 = arith.constant 0 : index
    %153 = vector.load %arg4[%c6_106, %c0_107, %c0_108] : memref<15x32x32xbf16, #tpu.memory_space<vmem>>, vector<1x32x32xbf16>
    %154 = vector.shape_cast %153 : vector<1x32x32xbf16> to vector<32x32xbf16>
    %155 = vector.extract_strided_slice %154 {offsets = [0, 0], sizes = [2, 4], strides = [1, 1]} : vector<32x32xbf16> to vector<2x4xbf16>
    %cst_109 = arith.constant dense<0.000000e+00> : vector<2x256xf32>
    %156 = tpu.matmul %155, %148, %cst_109 {dimension_numbers = #tpu.dot_dimension_numbers<[1], [0], [0], [1], [0, 0, 1, 1], [], []>} : vector<2x4xbf16>, vector<4x256xbf16>, vector<2x256xf32> -> vector<2x256xf32>
    %157 = arith.maximumf %152, %156 : vector<2x256xf32>
    %c3_110 = arith.constant 3 : index
    %c0_111 = arith.constant 0 : index
    %c0_112 = arith.constant 0 : index
    %158 = vector.load %arg6[%c3_110, %c0_111, %c0_112] : memref<4x256x128xbf16, #tpu.memory_space<vmem>>, vector<1x256x128xbf16>
    %159 = vector.shape_cast %158 : vector<1x256x128xbf16> to vector<256x128xbf16>
    %160 = arith.truncf %157 : vector<2x256xf32> to vector<2x256xbf16>
    %cst_113 = arith.constant dense<0.000000e+00> : vector<2x128xf32>
    %161 = tpu.matmul %160, %159, %cst_113 {dimension_numbers = #tpu.dot_dimension_numbers<[1], [0], [0], [1], [0, 0, 1, 1], [], []>} : vector<2x256xbf16>, vector<256x128xbf16>, vector<2x128xf32> -> vector<2x128xf32>
    %162 = arith.truncf %161 : vector<2x128xf32> to vector<2x128xbf16>
    %c10 = arith.constant 10 : index
    %c0_114 = arith.constant 0 : index
    %c0_115 = arith.constant 0 : index
    %163 = vector.load %arg2[%c10, %c0_114, %c0_115] : memref<12x128x256xbf16, #tpu.memory_space<vmem>>, vector<1x128x256xbf16>
    %164 = vector.shape_cast %163 : vector<1x128x256xbf16> to vector<128x256xbf16>
    %cst_116 = arith.constant dense<0.000000e+00> : vector<2x256xf32>
    %165 = tpu.matmul %162, %164, %cst_116 {dimension_numbers = #tpu.dot_dimension_numbers<[1], [0], [0], [1], [0, 0, 1, 1], [], []>} : vector<2x128xbf16>, vector<128x256xbf16>, vector<2x256xf32> -> vector<2x256xf32>
    %c4_117 = arith.constant 4 : index
    %c0_118 = arith.constant 0 : index
    %166 = vector.load %arg3[%c4_117, %c0_118] : memref<13x256xf32, #tpu.memory_space<vmem>>, vector<1x256xf32>
    %167 = vector.broadcast %166 : vector<1x256xf32> to vector<2x256xf32>
    %168 = arith.addf %165, %167 : vector<2x256xf32>
    %cst_119 = arith.constant 0.000000e+00 : f32
    %169 = vector.broadcast %cst_119 : f32 to vector<2x256xf32>
    %170 = arith.maximumf %168, %169 : vector<2x256xf32>
    %c0_i32_120 = arith.constant 0 : i32
    %171 = tpu.memref_slice %arg14[%c0_i32_120] : memref<2x!tpu.dma_semaphore, #tpu.memory_space<semaphore_mem>> -> memref<1x!tpu.dma_semaphore, #tpu.memory_space<semaphore_mem>>
    %172 = tpu.memref_squeeze %171 : memref<1x!tpu.dma_semaphore, #tpu.memory_space<semaphore_mem>> -> memref<!tpu.dma_semaphore, #tpu.memory_space<semaphore_mem>>
    tpu.wait_dma2 semaphore(%172 : memref<!tpu.dma_semaphore, #tpu.memory_space<semaphore_mem>>) src(%arg9 : memref<8x256x256xbf16, #tpu.memory_space<any>>) dst(%arg12 : memref<8x256x256xbf16, #tpu.memory_space<vmem>>)
    %c1_i32_121 = arith.constant 1 : i32
    %173 = tpu.memref_slice %arg14[%c1_i32_121] : memref<2x!tpu.dma_semaphore, #tpu.memory_space<semaphore_mem>> -> memref<1x!tpu.dma_semaphore, #tpu.memory_space<semaphore_mem>>
    %174 = tpu.memref_squeeze %173 : memref<1x!tpu.dma_semaphore, #tpu.memory_space<semaphore_mem>> -> memref<!tpu.dma_semaphore, #tpu.memory_space<semaphore_mem>>
    tpu.wait_dma2 semaphore(%174 : memref<!tpu.dma_semaphore, #tpu.memory_space<semaphore_mem>>) src(%arg10 : memref<24x256x256xbf16, #tpu.memory_space<any>>) dst(%arg13 : memref<24x256x256xbf16, #tpu.memory_space<vmem>>)
    %175 = arith.truncf %170 : vector<2x256xf32> to vector<2x256xbf16>
    %c0_122 = arith.constant 0 : index
    %c0_123 = arith.constant 0 : index
    %c0_124 = arith.constant 0 : index
    %176 = vector.load %arg12[%c0_122, %c0_123, %c0_124] : memref<8x256x256xbf16, #tpu.memory_space<vmem>>, vector<1x256x256xbf16>
    %177 = vector.shape_cast %176 : vector<1x256x256xbf16> to vector<256x256xbf16>
    %cst_125 = arith.constant dense<0.000000e+00> : vector<2x256xf32>
    %178 = tpu.matmul %175, %177, %cst_125 {dimension_numbers = #tpu.dot_dimension_numbers<[1], [0], [0], [1], [0, 0, 1, 1], [], []>} : vector<2x256xbf16>, vector<256x256xbf16>, vector<2x256xf32> -> vector<2x256xf32>
    %c1_126 = arith.constant 1 : index
    %c0_127 = arith.constant 0 : index
    %c0_128 = arith.constant 0 : index
    %179 = vector.load %arg12[%c1_126, %c0_127, %c0_128] : memref<8x256x256xbf16, #tpu.memory_space<vmem>>, vector<1x256x256xbf16>
    %180 = vector.shape_cast %179 : vector<1x256x256xbf16> to vector<256x256xbf16>
    %cst_129 = arith.constant dense<0.000000e+00> : vector<2x256xf32>
    %181 = tpu.matmul %175, %180, %cst_129 {dimension_numbers = #tpu.dot_dimension_numbers<[1], [0], [0], [1], [0, 0, 1, 1], [], []>} : vector<2x256xbf16>, vector<256x256xbf16>, vector<2x256xf32> -> vector<2x256xf32>
    %c7_130 = arith.constant 7 : index
    %c0_131 = arith.constant 0 : index
    %c0_132 = arith.constant 0 : index
    %182 = vector.load %arg4[%c7_130, %c0_131, %c0_132] : memref<15x32x32xbf16, #tpu.memory_space<vmem>>, vector<1x32x32xbf16>
    %183 = vector.shape_cast %182 : vector<1x32x32xbf16> to vector<32x32xbf16>
    %184 = vector.extract_strided_slice %183 {offsets = [0, 0], sizes = [4, 2], strides = [1, 1]} : vector<32x32xbf16> to vector<4x2xbf16>
    %185 = arith.truncf %178 : vector<2x256xf32> to vector<2x256xbf16>
    %cst_133 = arith.constant dense<0.000000e+00> : vector<4x256xf32>
    %186 = tpu.matmul %184, %185, %cst_133 {dimension_numbers = #tpu.dot_dimension_numbers<[1], [0], [0], [1], [0, 0, 1, 1], [], []>} : vector<4x2xbf16>, vector<2x256xbf16>, vector<4x256xf32> -> vector<4x256xf32>
    %c8_134 = arith.constant 8 : index
    %c0_135 = arith.constant 0 : index
    %c0_136 = arith.constant 0 : index
    %187 = vector.load %arg4[%c8_134, %c0_135, %c0_136] : memref<15x32x32xbf16, #tpu.memory_space<vmem>>, vector<1x32x32xbf16>
    %188 = vector.shape_cast %187 : vector<1x32x32xbf16> to vector<32x32xbf16>
    %189 = vector.extract_strided_slice %188 {offsets = [0, 0], sizes = [4, 2], strides = [1, 1]} : vector<32x32xbf16> to vector<4x2xbf16>
    %190 = arith.truncf %181 : vector<2x256xf32> to vector<2x256xbf16>
    %cst_137 = arith.constant dense<0.000000e+00> : vector<4x256xf32>
    %191 = tpu.matmul %189, %190, %cst_137 {dimension_numbers = #tpu.dot_dimension_numbers<[1], [0], [0], [1], [0, 0, 1, 1], [], []>} : vector<4x2xbf16>, vector<2x256xbf16>, vector<4x256xf32> -> vector<4x256xf32>
    %192 = arith.addf %186, %191 : vector<4x256xf32>
    %c5_138 = arith.constant 5 : index
    %c0_139 = arith.constant 0 : index
    %193 = vector.load %arg3[%c5_138, %c0_139] : memref<13x256xf32, #tpu.memory_space<vmem>>, vector<1x256xf32>
    %194 = vector.broadcast %193 : vector<1x256xf32> to vector<4x256xf32>
    %195 = arith.addf %192, %194 : vector<4x256xf32>
    %196 = arith.truncf %195 : vector<4x256xf32> to vector<4x256xbf16>
    %197 = arith.truncf %145 : vector<4x256xf32> to vector<4x256xbf16>
    %c1_140 = arith.constant 1 : index
    %c0_141 = arith.constant 0 : index
    %c0_142 = arith.constant 0 : index
    %198 = vector.load %arg13[%c1_140, %c0_141, %c0_142] : memref<24x256x256xbf16, #tpu.memory_space<vmem>>, vector<1x256x256xbf16>
    %199 = vector.shape_cast %198 : vector<1x256x256xbf16> to vector<256x256xbf16>
    %cst_143 = arith.constant dense<0.000000e+00> : vector<4x256xf32>
    %200 = tpu.matmul %196, %199, %cst_143 {dimension_numbers = #tpu.dot_dimension_numbers<[1], [0], [0], [1], [0, 0, 1, 1], [], []>} : vector<4x256xbf16>, vector<256x256xbf16>, vector<4x256xf32> -> vector<4x256xf32>
    %c4_144 = arith.constant 4 : index
    %c0_145 = arith.constant 0 : index
    %c0_146 = arith.constant 0 : index
    %201 = vector.load %arg13[%c4_144, %c0_145, %c0_146] : memref<24x256x256xbf16, #tpu.memory_space<vmem>>, vector<1x256x256xbf16>
    %202 = vector.shape_cast %201 : vector<1x256x256xbf16> to vector<256x256xbf16>
    %cst_147 = arith.constant dense<0.000000e+00> : vector<4x256xf32>
    %203 = tpu.matmul %197, %202, %cst_147 {dimension_numbers = #tpu.dot_dimension_numbers<[1], [0], [0], [1], [0, 0, 1, 1], [], []>} : vector<4x256xbf16>, vector<256x256xbf16>, vector<4x256xf32> -> vector<4x256xf32>
    %204 = arith.addf %200, %203 : vector<4x256xf32>
    %c0_148 = arith.constant 0 : index
    %c0_149 = arith.constant 0 : index
    %c0_150 = arith.constant 0 : index
    %205 = vector.load %arg13[%c0_148, %c0_149, %c0_150] : memref<24x256x256xbf16, #tpu.memory_space<vmem>>, vector<1x256x256xbf16>
    %206 = vector.shape_cast %205 : vector<1x256x256xbf16> to vector<256x256xbf16>
    %cst_151 = arith.constant dense<0.000000e+00> : vector<4x256xf32>
    %207 = tpu.matmul %196, %206, %cst_151 {dimension_numbers = #tpu.dot_dimension_numbers<[1], [0], [0], [1], [0, 0, 1, 1], [], []>} : vector<4x256xbf16>, vector<256x256xbf16>, vector<4x256xf32> -> vector<4x256xf32>
    %c3_152 = arith.constant 3 : index
    %c0_153 = arith.constant 0 : index
    %c0_154 = arith.constant 0 : index
    %208 = vector.load %arg13[%c3_152, %c0_153, %c0_154] : memref<24x256x256xbf16, #tpu.memory_space<vmem>>, vector<1x256x256xbf16>
    %209 = vector.shape_cast %208 : vector<1x256x256xbf16> to vector<256x256xbf16>
    %cst_155 = arith.constant dense<0.000000e+00> : vector<4x256xf32>
    %210 = tpu.matmul %197, %209, %cst_155 {dimension_numbers = #tpu.dot_dimension_numbers<[1], [0], [0], [1], [0, 0, 1, 1], [], []>} : vector<4x256xbf16>, vector<256x256xbf16>, vector<4x256xf32> -> vector<4x256xf32>
    %211 = arith.addf %207, %210 : vector<4x256xf32>
    %c2_156 = arith.constant 2 : index
    %c0_157 = arith.constant 0 : index
    %c0_158 = arith.constant 0 : index
    %212 = vector.load %arg13[%c2_156, %c0_157, %c0_158] : memref<24x256x256xbf16, #tpu.memory_space<vmem>>, vector<1x256x256xbf16>
    %213 = vector.shape_cast %212 : vector<1x256x256xbf16> to vector<256x256xbf16>
    %cst_159 = arith.constant dense<0.000000e+00> : vector<4x256xf32>
    %214 = tpu.matmul %196, %213, %cst_159 {dimension_numbers = #tpu.dot_dimension_numbers<[1], [0], [0], [1], [0, 0, 1, 1], [], []>} : vector<4x256xbf16>, vector<256x256xbf16>, vector<4x256xf32> -> vector<4x256xf32>
    %c5_160 = arith.constant 5 : index
    %c0_161 = arith.constant 0 : index
    %c0_162 = arith.constant 0 : index
    %215 = vector.load %arg13[%c5_160, %c0_161, %c0_162] : memref<24x256x256xbf16, #tpu.memory_space<vmem>>, vector<1x256x256xbf16>
    %216 = vector.shape_cast %215 : vector<1x256x256xbf16> to vector<256x256xbf16>
    %cst_163 = arith.constant dense<0.000000e+00> : vector<4x256xf32>
    %217 = tpu.matmul %197, %216, %cst_163 {dimension_numbers = #tpu.dot_dimension_numbers<[1], [0], [0], [1], [0, 0, 1, 1], [], []>} : vector<4x256xbf16>, vector<256x256xbf16>, vector<4x256xf32> -> vector<4x256xf32>
    %218 = arith.addf %214, %217 : vector<4x256xf32>
    %c0_164 = arith.constant 0 : index
    %c0_165 = arith.constant 0 : index
    %c0_166 = arith.constant 0 : index
    %219 = vector.load %arg4[%c0_164, %c0_165, %c0_166] : memref<15x32x32xbf16, #tpu.memory_space<vmem>>, vector<1x32x32xbf16>
    %220 = vector.shape_cast %219 : vector<1x32x32xbf16> to vector<32x32xbf16>
    %221 = vector.extract_strided_slice %220 {offsets = [0, 0], sizes = [4, 4], strides = [1, 1]} : vector<32x32xbf16> to vector<4x4xbf16>
    %222 = arith.truncf %211 : vector<4x256xf32> to vector<4x256xbf16>
    %cst_167 = arith.constant dense<0.000000e+00> : vector<4x256xf32>
    %223 = tpu.matmul %221, %222, %cst_167 {dimension_numbers = #tpu.dot_dimension_numbers<[1], [0], [0], [1], [0, 0, 1, 1], [], []>} : vector<4x4xbf16>, vector<4x256xbf16>, vector<4x256xf32> -> vector<4x256xf32>
    %224 = arith.addf %204, %223 : vector<4x256xf32>
    %c1_168 = arith.constant 1 : index
    %c0_169 = arith.constant 0 : index
    %c0_170 = arith.constant 0 : index
    %225 = vector.load %arg4[%c1_168, %c0_169, %c0_170] : memref<15x32x32xbf16, #tpu.memory_space<vmem>>, vector<1x32x32xbf16>
    %226 = vector.shape_cast %225 : vector<1x32x32xbf16> to vector<32x32xbf16>
    %227 = vector.extract_strided_slice %226 {offsets = [0, 0], sizes = [4, 4], strides = [1, 1]} : vector<32x32xbf16> to vector<4x4xbf16>
    %228 = arith.truncf %218 : vector<4x256xf32> to vector<4x256xbf16>
    %cst_171 = arith.constant dense<0.000000e+00> : vector<4x256xf32>
    %229 = tpu.matmul %227, %228, %cst_171 {dimension_numbers = #tpu.dot_dimension_numbers<[1], [0], [0], [1], [0, 0, 1, 1], [], []>} : vector<4x4xbf16>, vector<4x256xbf16>, vector<4x256xf32> -> vector<4x256xf32>
    %230 = arith.addf %224, %229 : vector<4x256xf32>
    %c6_172 = arith.constant 6 : index
    %c0_173 = arith.constant 0 : index
    %231 = vector.load %arg3[%c6_172, %c0_173] : memref<13x256xf32, #tpu.memory_space<vmem>>, vector<1x256xf32>
    %232 = vector.broadcast %231 : vector<1x256xf32> to vector<4x256xf32>
    %233 = arith.addf %230, %232 : vector<4x256xf32>
    %cst_174 = arith.constant 0.000000e+00 : f32
    %234 = vector.broadcast %cst_174 : f32 to vector<4x256xf32>
    %235 = arith.maximumf %233, %234 : vector<4x256xf32>
    %236 = arith.truncf %235 : vector<4x256xf32> to vector<4x256xbf16>
    %c2_175 = arith.constant 2 : index
    %c0_176 = arith.constant 0 : index
    %c0_177 = arith.constant 0 : index
    %237 = vector.load %arg12[%c2_175, %c0_176, %c0_177] : memref<8x256x256xbf16, #tpu.memory_space<vmem>>, vector<1x256x256xbf16>
    %238 = vector.shape_cast %237 : vector<1x256x256xbf16> to vector<256x256xbf16>
    %cst_178 = arith.constant dense<0.000000e+00> : vector<4x256xf32>
    %239 = tpu.matmul %236, %238, %cst_178 {dimension_numbers = #tpu.dot_dimension_numbers<[1], [0], [0], [1], [0, 0, 1, 1], [], []>} : vector<4x256xbf16>, vector<256x256xbf16>, vector<4x256xf32> -> vector<4x256xf32>
    %c3_179 = arith.constant 3 : index
    %c0_180 = arith.constant 0 : index
    %c0_181 = arith.constant 0 : index
    %240 = vector.load %arg12[%c3_179, %c0_180, %c0_181] : memref<8x256x256xbf16, #tpu.memory_space<vmem>>, vector<1x256x256xbf16>
    %241 = vector.shape_cast %240 : vector<1x256x256xbf16> to vector<256x256xbf16>
    %cst_182 = arith.constant dense<0.000000e+00> : vector<4x256xf32>
    %242 = tpu.matmul %236, %241, %cst_182 {dimension_numbers = #tpu.dot_dimension_numbers<[1], [0], [0], [1], [0, 0, 1, 1], [], []>} : vector<4x256xbf16>, vector<256x256xbf16>, vector<4x256xf32> -> vector<4x256xf32>
    %c9 = arith.constant 9 : index
    %c0_183 = arith.constant 0 : index
    %c0_184 = arith.constant 0 : index
    %243 = vector.load %arg4[%c9, %c0_183, %c0_184] : memref<15x32x32xbf16, #tpu.memory_space<vmem>>, vector<1x32x32xbf16>
    %244 = vector.shape_cast %243 : vector<1x32x32xbf16> to vector<32x32xbf16>
    %245 = vector.extract_strided_slice %244 {offsets = [0, 0], sizes = [8, 4], strides = [1, 1]} : vector<32x32xbf16> to vector<8x4xbf16>
    %246 = arith.truncf %239 : vector<4x256xf32> to vector<4x256xbf16>
    %cst_185 = arith.constant dense<0.000000e+00> : vector<8x256xf32>
    %247 = tpu.matmul %245, %246, %cst_185 {dimension_numbers = #tpu.dot_dimension_numbers<[1], [0], [0], [1], [0, 0, 1, 1], [], []>} : vector<8x4xbf16>, vector<4x256xbf16>, vector<8x256xf32> -> vector<8x256xf32>
    %c10_186 = arith.constant 10 : index
    %c0_187 = arith.constant 0 : index
    %c0_188 = arith.constant 0 : index
    %248 = vector.load %arg4[%c10_186, %c0_187, %c0_188] : memref<15x32x32xbf16, #tpu.memory_space<vmem>>, vector<1x32x32xbf16>
    %249 = vector.shape_cast %248 : vector<1x32x32xbf16> to vector<32x32xbf16>
    %250 = vector.extract_strided_slice %249 {offsets = [0, 0], sizes = [8, 4], strides = [1, 1]} : vector<32x32xbf16> to vector<8x4xbf16>
    %251 = arith.truncf %242 : vector<4x256xf32> to vector<4x256xbf16>
    %cst_189 = arith.constant dense<0.000000e+00> : vector<8x256xf32>
    %252 = tpu.matmul %250, %251, %cst_189 {dimension_numbers = #tpu.dot_dimension_numbers<[1], [0], [0], [1], [0, 0, 1, 1], [], []>} : vector<8x4xbf16>, vector<4x256xbf16>, vector<8x256xf32> -> vector<8x256xf32>
    %253 = arith.addf %247, %252 : vector<8x256xf32>
    %c7_190 = arith.constant 7 : index
    %c0_191 = arith.constant 0 : index
    %254 = vector.load %arg3[%c7_190, %c0_191] : memref<13x256xf32, #tpu.memory_space<vmem>>, vector<1x256xf32>
    %255 = vector.broadcast %254 : vector<1x256xf32> to vector<8x256xf32>
    %256 = arith.addf %253, %255 : vector<8x256xf32>
    %257 = arith.truncf %256 : vector<8x256xf32> to vector<8x256xbf16>
    %258 = arith.truncf %105 : vector<8x256xf32> to vector<8x256xbf16>
    %c7_192 = arith.constant 7 : index
    %c0_193 = arith.constant 0 : index
    %c0_194 = arith.constant 0 : index
    %259 = vector.load %arg13[%c7_192, %c0_193, %c0_194] : memref<24x256x256xbf16, #tpu.memory_space<vmem>>, vector<1x256x256xbf16>
    %260 = vector.shape_cast %259 : vector<1x256x256xbf16> to vector<256x256xbf16>
    %cst_195 = arith.constant dense<0.000000e+00> : vector<8x256xf32>
    %261 = tpu.matmul %257, %260, %cst_195 {dimension_numbers = #tpu.dot_dimension_numbers<[1], [0], [0], [1], [0, 0, 1, 1], [], []>} : vector<8x256xbf16>, vector<256x256xbf16>, vector<8x256xf32> -> vector<8x256xf32>
    %c10_196 = arith.constant 10 : index
    %c0_197 = arith.constant 0 : index
    %c0_198 = arith.constant 0 : index
    %262 = vector.load %arg13[%c10_196, %c0_197, %c0_198] : memref<24x256x256xbf16, #tpu.memory_space<vmem>>, vector<1x256x256xbf16>
    %263 = vector.shape_cast %262 : vector<1x256x256xbf16> to vector<256x256xbf16>
    %cst_199 = arith.constant dense<0.000000e+00> : vector<8x256xf32>
    %264 = tpu.matmul %258, %263, %cst_199 {dimension_numbers = #tpu.dot_dimension_numbers<[1], [0], [0], [1], [0, 0, 1, 1], [], []>} : vector<8x256xbf16>, vector<256x256xbf16>, vector<8x256xf32> -> vector<8x256xf32>
    %265 = arith.addf %261, %264 : vector<8x256xf32>
    %c6_200 = arith.constant 6 : index
    %c0_201 = arith.constant 0 : index
    %c0_202 = arith.constant 0 : index
    %266 = vector.load %arg13[%c6_200, %c0_201, %c0_202] : memref<24x256x256xbf16, #tpu.memory_space<vmem>>, vector<1x256x256xbf16>
    %267 = vector.shape_cast %266 : vector<1x256x256xbf16> to vector<256x256xbf16>
    %cst_203 = arith.constant dense<0.000000e+00> : vector<8x256xf32>
    %268 = tpu.matmul %257, %267, %cst_203 {dimension_numbers = #tpu.dot_dimension_numbers<[1], [0], [0], [1], [0, 0, 1, 1], [], []>} : vector<8x256xbf16>, vector<256x256xbf16>, vector<8x256xf32> -> vector<8x256xf32>
    %c9_204 = arith.constant 9 : index
    %c0_205 = arith.constant 0 : index
    %c0_206 = arith.constant 0 : index
    %269 = vector.load %arg13[%c9_204, %c0_205, %c0_206] : memref<24x256x256xbf16, #tpu.memory_space<vmem>>, vector<1x256x256xbf16>
    %270 = vector.shape_cast %269 : vector<1x256x256xbf16> to vector<256x256xbf16>
    %cst_207 = arith.constant dense<0.000000e+00> : vector<8x256xf32>
    %271 = tpu.matmul %258, %270, %cst_207 {dimension_numbers = #tpu.dot_dimension_numbers<[1], [0], [0], [1], [0, 0, 1, 1], [], []>} : vector<8x256xbf16>, vector<256x256xbf16>, vector<8x256xf32> -> vector<8x256xf32>
    %272 = arith.addf %268, %271 : vector<8x256xf32>
    %c8_208 = arith.constant 8 : index
    %c0_209 = arith.constant 0 : index
    %c0_210 = arith.constant 0 : index
    %273 = vector.load %arg13[%c8_208, %c0_209, %c0_210] : memref<24x256x256xbf16, #tpu.memory_space<vmem>>, vector<1x256x256xbf16>
    %274 = vector.shape_cast %273 : vector<1x256x256xbf16> to vector<256x256xbf16>
    %cst_211 = arith.constant dense<0.000000e+00> : vector<8x256xf32>
    %275 = tpu.matmul %257, %274, %cst_211 {dimension_numbers = #tpu.dot_dimension_numbers<[1], [0], [0], [1], [0, 0, 1, 1], [], []>} : vector<8x256xbf16>, vector<256x256xbf16>, vector<8x256xf32> -> vector<8x256xf32>
    %c11 = arith.constant 11 : index
    %c0_212 = arith.constant 0 : index
    %c0_213 = arith.constant 0 : index
    %276 = vector.load %arg13[%c11, %c0_212, %c0_213] : memref<24x256x256xbf16, #tpu.memory_space<vmem>>, vector<1x256x256xbf16>
    %277 = vector.shape_cast %276 : vector<1x256x256xbf16> to vector<256x256xbf16>
    %cst_214 = arith.constant dense<0.000000e+00> : vector<8x256xf32>
    %278 = tpu.matmul %258, %277, %cst_214 {dimension_numbers = #tpu.dot_dimension_numbers<[1], [0], [0], [1], [0, 0, 1, 1], [], []>} : vector<8x256xbf16>, vector<256x256xbf16>, vector<8x256xf32> -> vector<8x256xf32>
    %279 = arith.addf %275, %278 : vector<8x256xf32>
    %c0_215 = arith.constant 0 : index
    %c4_216 = arith.constant 4 : index
    %280 = vector.load %arg5[%c0_215, %c4_216] : memref<32x8xf32, #tpu.memory_space<vmem>>, vector<8x1xf32>
    %c0_217 = arith.constant 0 : index
    %c5_218 = arith.constant 5 : index
    %281 = vector.load %arg5[%c0_217, %c5_218] : memref<32x8xf32, #tpu.memory_space<vmem>>, vector<8x1xf32>
    %c1_i32_219 = arith.constant 1 : i32
    %282 = tpu.dynamic_rotate %272 by %c1_i32_219 dim 0 : vector<8x256xf32>, i32 -> vector<8x256xf32>
    %283 = vector.broadcast %280 : vector<8x1xf32> to vector<8x256xf32>
    %284 = arith.mulf %283, %282 : vector<8x256xf32>
    %285 = arith.addf %265, %284 : vector<8x256xf32>
    %c7_i32_220 = arith.constant 7 : i32
    %286 = tpu.dynamic_rotate %279 by %c7_i32_220 dim 0 : vector<8x256xf32>, i32 -> vector<8x256xf32>
    %287 = vector.broadcast %281 : vector<8x1xf32> to vector<8x256xf32>
    %288 = arith.mulf %287, %286 : vector<8x256xf32>
    %289 = arith.addf %285, %288 : vector<8x256xf32>
    %c8_221 = arith.constant 8 : index
    %c0_222 = arith.constant 0 : index
    %290 = vector.load %arg3[%c8_221, %c0_222] : memref<13x256xf32, #tpu.memory_space<vmem>>, vector<1x256xf32>
    %291 = vector.broadcast %290 : vector<1x256xf32> to vector<8x256xf32>
    %292 = arith.addf %289, %291 : vector<8x256xf32>
    %cst_223 = arith.constant 0.000000e+00 : f32
    %293 = vector.broadcast %cst_223 : f32 to vector<8x256xf32>
    %294 = arith.maximumf %292, %293 : vector<8x256xf32>
    %295 = arith.truncf %294 : vector<8x256xf32> to vector<8x256xbf16>
    %c4_224 = arith.constant 4 : index
    %c0_225 = arith.constant 0 : index
    %c0_226 = arith.constant 0 : index
    %296 = vector.load %arg12[%c4_224, %c0_225, %c0_226] : memref<8x256x256xbf16, #tpu.memory_space<vmem>>, vector<1x256x256xbf16>
    %297 = vector.shape_cast %296 : vector<1x256x256xbf16> to vector<256x256xbf16>
    %cst_227 = arith.constant dense<0.000000e+00> : vector<8x256xf32>
    %298 = tpu.matmul %295, %297, %cst_227 {dimension_numbers = #tpu.dot_dimension_numbers<[1], [0], [0], [1], [0, 0, 1, 1], [], []>} : vector<8x256xbf16>, vector<256x256xbf16>, vector<8x256xf32> -> vector<8x256xf32>
    %c5_228 = arith.constant 5 : index
    %c0_229 = arith.constant 0 : index
    %c0_230 = arith.constant 0 : index
    %299 = vector.load %arg12[%c5_228, %c0_229, %c0_230] : memref<8x256x256xbf16, #tpu.memory_space<vmem>>, vector<1x256x256xbf16>
    %300 = vector.shape_cast %299 : vector<1x256x256xbf16> to vector<256x256xbf16>
    %cst_231 = arith.constant dense<0.000000e+00> : vector<8x256xf32>
    %301 = tpu.matmul %295, %300, %cst_231 {dimension_numbers = #tpu.dot_dimension_numbers<[1], [0], [0], [1], [0, 0, 1, 1], [], []>} : vector<8x256xbf16>, vector<256x256xbf16>, vector<8x256xf32> -> vector<8x256xf32>
    %c11_232 = arith.constant 11 : index
    %c0_233 = arith.constant 0 : index
    %c0_234 = arith.constant 0 : index
    %302 = vector.load %arg4[%c11_232, %c0_233, %c0_234] : memref<15x32x32xbf16, #tpu.memory_space<vmem>>, vector<1x32x32xbf16>
    %303 = vector.shape_cast %302 : vector<1x32x32xbf16> to vector<32x32xbf16>
    %304 = vector.extract_strided_slice %303 {offsets = [0, 0], sizes = [16, 8], strides = [1, 1]} : vector<32x32xbf16> to vector<16x8xbf16>
    %305 = arith.truncf %298 : vector<8x256xf32> to vector<8x256xbf16>
    %cst_235 = arith.constant dense<0.000000e+00> : vector<16x256xf32>
    %306 = tpu.matmul %304, %305, %cst_235 {dimension_numbers = #tpu.dot_dimension_numbers<[1], [0], [0], [1], [0, 0, 1, 1], [], []>} : vector<16x8xbf16>, vector<8x256xbf16>, vector<16x256xf32> -> vector<16x256xf32>
    %c12 = arith.constant 12 : index
    %c0_236 = arith.constant 0 : index
    %c0_237 = arith.constant 0 : index
    %307 = vector.load %arg4[%c12, %c0_236, %c0_237] : memref<15x32x32xbf16, #tpu.memory_space<vmem>>, vector<1x32x32xbf16>
    %308 = vector.shape_cast %307 : vector<1x32x32xbf16> to vector<32x32xbf16>
    %309 = vector.extract_strided_slice %308 {offsets = [0, 0], sizes = [16, 8], strides = [1, 1]} : vector<32x32xbf16> to vector<16x8xbf16>
    %310 = arith.truncf %301 : vector<8x256xf32> to vector<8x256xbf16>
    %cst_238 = arith.constant dense<0.000000e+00> : vector<16x256xf32>
    %311 = tpu.matmul %309, %310, %cst_238 {dimension_numbers = #tpu.dot_dimension_numbers<[1], [0], [0], [1], [0, 0, 1, 1], [], []>} : vector<16x8xbf16>, vector<8x256xbf16>, vector<16x256xf32> -> vector<16x256xf32>
    %312 = arith.addf %306, %311 : vector<16x256xf32>
    %c9_239 = arith.constant 9 : index
    %c0_240 = arith.constant 0 : index
    %313 = vector.load %arg3[%c9_239, %c0_240] : memref<13x256xf32, #tpu.memory_space<vmem>>, vector<1x256xf32>
    %314 = vector.broadcast %313 : vector<1x256xf32> to vector<16x256xf32>
    %315 = arith.addf %312, %314 : vector<16x256xf32>
    %316 = arith.truncf %315 : vector<16x256xf32> to vector<16x256xbf16>
    %317 = arith.truncf %67 : vector<16x256xf32> to vector<16x256xbf16>
    %c13 = arith.constant 13 : index
    %c0_241 = arith.constant 0 : index
    %c0_242 = arith.constant 0 : index
    %318 = vector.load %arg13[%c13, %c0_241, %c0_242] : memref<24x256x256xbf16, #tpu.memory_space<vmem>>, vector<1x256x256xbf16>
    %319 = vector.shape_cast %318 : vector<1x256x256xbf16> to vector<256x256xbf16>
    %cst_243 = arith.constant dense<0.000000e+00> : vector<16x256xf32>
    %320 = tpu.matmul %316, %319, %cst_243 {dimension_numbers = #tpu.dot_dimension_numbers<[1], [0], [0], [1], [0, 0, 1, 1], [], []>} : vector<16x256xbf16>, vector<256x256xbf16>, vector<16x256xf32> -> vector<16x256xf32>
    %c16 = arith.constant 16 : index
    %c0_244 = arith.constant 0 : index
    %c0_245 = arith.constant 0 : index
    %321 = vector.load %arg13[%c16, %c0_244, %c0_245] : memref<24x256x256xbf16, #tpu.memory_space<vmem>>, vector<1x256x256xbf16>
    %322 = vector.shape_cast %321 : vector<1x256x256xbf16> to vector<256x256xbf16>
    %cst_246 = arith.constant dense<0.000000e+00> : vector<16x256xf32>
    %323 = tpu.matmul %317, %322, %cst_246 {dimension_numbers = #tpu.dot_dimension_numbers<[1], [0], [0], [1], [0, 0, 1, 1], [], []>} : vector<16x256xbf16>, vector<256x256xbf16>, vector<16x256xf32> -> vector<16x256xf32>
    %324 = arith.addf %320, %323 : vector<16x256xf32>
    %c12_247 = arith.constant 12 : index
    %c0_248 = arith.constant 0 : index
    %c0_249 = arith.constant 0 : index
    %325 = vector.load %arg13[%c12_247, %c0_248, %c0_249] : memref<24x256x256xbf16, #tpu.memory_space<vmem>>, vector<1x256x256xbf16>
    %326 = vector.shape_cast %325 : vector<1x256x256xbf16> to vector<256x256xbf16>
    %cst_250 = arith.constant dense<0.000000e+00> : vector<16x256xf32>
    %327 = tpu.matmul %316, %326, %cst_250 {dimension_numbers = #tpu.dot_dimension_numbers<[1], [0], [0], [1], [0, 0, 1, 1], [], []>} : vector<16x256xbf16>, vector<256x256xbf16>, vector<16x256xf32> -> vector<16x256xf32>
    %c15 = arith.constant 15 : index
    %c0_251 = arith.constant 0 : index
    %c0_252 = arith.constant 0 : index
    %328 = vector.load %arg13[%c15, %c0_251, %c0_252] : memref<24x256x256xbf16, #tpu.memory_space<vmem>>, vector<1x256x256xbf16>
    %329 = vector.shape_cast %328 : vector<1x256x256xbf16> to vector<256x256xbf16>
    %cst_253 = arith.constant dense<0.000000e+00> : vector<16x256xf32>
    %330 = tpu.matmul %317, %329, %cst_253 {dimension_numbers = #tpu.dot_dimension_numbers<[1], [0], [0], [1], [0, 0, 1, 1], [], []>} : vector<16x256xbf16>, vector<256x256xbf16>, vector<16x256xf32> -> vector<16x256xf32>
    %331 = arith.addf %327, %330 : vector<16x256xf32>
    %c14 = arith.constant 14 : index
    %c0_254 = arith.constant 0 : index
    %c0_255 = arith.constant 0 : index
    %332 = vector.load %arg13[%c14, %c0_254, %c0_255] : memref<24x256x256xbf16, #tpu.memory_space<vmem>>, vector<1x256x256xbf16>
    %333 = vector.shape_cast %332 : vector<1x256x256xbf16> to vector<256x256xbf16>
    %cst_256 = arith.constant dense<0.000000e+00> : vector<16x256xf32>
    %334 = tpu.matmul %316, %333, %cst_256 {dimension_numbers = #tpu.dot_dimension_numbers<[1], [0], [0], [1], [0, 0, 1, 1], [], []>} : vector<16x256xbf16>, vector<256x256xbf16>, vector<16x256xf32> -> vector<16x256xf32>
    %c17 = arith.constant 17 : index
    %c0_257 = arith.constant 0 : index
    %c0_258 = arith.constant 0 : index
    %335 = vector.load %arg13[%c17, %c0_257, %c0_258] : memref<24x256x256xbf16, #tpu.memory_space<vmem>>, vector<1x256x256xbf16>
    %336 = vector.shape_cast %335 : vector<1x256x256xbf16> to vector<256x256xbf16>
    %cst_259 = arith.constant dense<0.000000e+00> : vector<16x256xf32>
    %337 = tpu.matmul %317, %336, %cst_259 {dimension_numbers = #tpu.dot_dimension_numbers<[1], [0], [0], [1], [0, 0, 1, 1], [], []>} : vector<16x256xbf16>, vector<256x256xbf16>, vector<16x256xf32> -> vector<16x256xf32>
    %338 = arith.addf %334, %337 : vector<16x256xf32>
    %c0_260 = arith.constant 0 : index
    %c2_261 = arith.constant 2 : index
    %339 = vector.load %arg5[%c0_260, %c2_261] : memref<32x8xf32, #tpu.memory_space<vmem>>, vector<16x1xf32>
    %c0_262 = arith.constant 0 : index
    %c3_263 = arith.constant 3 : index
    %340 = vector.load %arg5[%c0_262, %c3_263] : memref<32x8xf32, #tpu.memory_space<vmem>>, vector<16x1xf32>
    %c1_i32_264 = arith.constant 1 : i32
    %341 = tpu.dynamic_rotate %331 by %c1_i32_264 dim 0 : vector<16x256xf32>, i32 -> vector<16x256xf32>
    %342 = vector.broadcast %339 : vector<16x1xf32> to vector<16x256xf32>
    %343 = arith.mulf %342, %341 : vector<16x256xf32>
    %344 = arith.addf %324, %343 : vector<16x256xf32>
    %c15_i32_265 = arith.constant 15 : i32
    %345 = tpu.dynamic_rotate %338 by %c15_i32_265 dim 0 : vector<16x256xf32>, i32 -> vector<16x256xf32>
    %346 = vector.broadcast %340 : vector<16x1xf32> to vector<16x256xf32>
    %347 = arith.mulf %346, %345 : vector<16x256xf32>
    %348 = arith.addf %344, %347 : vector<16x256xf32>
    %c10_266 = arith.constant 10 : index
    %c0_267 = arith.constant 0 : index
    %349 = vector.load %arg3[%c10_266, %c0_267] : memref<13x256xf32, #tpu.memory_space<vmem>>, vector<1x256xf32>
    %350 = vector.broadcast %349 : vector<1x256xf32> to vector<16x256xf32>
    %351 = arith.addf %348, %350 : vector<16x256xf32>
    %cst_268 = arith.constant 0.000000e+00 : f32
    %352 = vector.broadcast %cst_268 : f32 to vector<16x256xf32>
    %353 = arith.maximumf %351, %352 : vector<16x256xf32>
    %354 = arith.truncf %353 : vector<16x256xf32> to vector<16x256xbf16>
    %c6_269 = arith.constant 6 : index
    %c0_270 = arith.constant 0 : index
    %c0_271 = arith.constant 0 : index
    %355 = vector.load %arg12[%c6_269, %c0_270, %c0_271] : memref<8x256x256xbf16, #tpu.memory_space<vmem>>, vector<1x256x256xbf16>
    %356 = vector.shape_cast %355 : vector<1x256x256xbf16> to vector<256x256xbf16>
    %cst_272 = arith.constant dense<0.000000e+00> : vector<16x256xf32>
    %357 = tpu.matmul %354, %356, %cst_272 {dimension_numbers = #tpu.dot_dimension_numbers<[1], [0], [0], [1], [0, 0, 1, 1], [], []>} : vector<16x256xbf16>, vector<256x256xbf16>, vector<16x256xf32> -> vector<16x256xf32>
    %c7_273 = arith.constant 7 : index
    %c0_274 = arith.constant 0 : index
    %c0_275 = arith.constant 0 : index
    %358 = vector.load %arg12[%c7_273, %c0_274, %c0_275] : memref<8x256x256xbf16, #tpu.memory_space<vmem>>, vector<1x256x256xbf16>
    %359 = vector.shape_cast %358 : vector<1x256x256xbf16> to vector<256x256xbf16>
    %cst_276 = arith.constant dense<0.000000e+00> : vector<16x256xf32>
    %360 = tpu.matmul %354, %359, %cst_276 {dimension_numbers = #tpu.dot_dimension_numbers<[1], [0], [0], [1], [0, 0, 1, 1], [], []>} : vector<16x256xbf16>, vector<256x256xbf16>, vector<16x256xf32> -> vector<16x256xf32>
    %c13_277 = arith.constant 13 : index
    %c0_278 = arith.constant 0 : index
    %c0_279 = arith.constant 0 : index
    %361 = vector.load %arg4[%c13_277, %c0_278, %c0_279] : memref<15x32x32xbf16, #tpu.memory_space<vmem>>, vector<1x32x32xbf16>
    %362 = vector.shape_cast %361 : vector<1x32x32xbf16> to vector<32x32xbf16>
    %363 = vector.extract_strided_slice %362 {offsets = [0, 0], sizes = [32, 16], strides = [1, 1]} : vector<32x32xbf16> to vector<32x16xbf16>
    %364 = arith.truncf %357 : vector<16x256xf32> to vector<16x256xbf16>
    %cst_280 = arith.constant dense<0.000000e+00> : vector<32x256xf32>
    %365 = tpu.matmul %363, %364, %cst_280 {dimension_numbers = #tpu.dot_dimension_numbers<[1], [0], [0], [1], [0, 0, 1, 1], [], []>} : vector<32x16xbf16>, vector<16x256xbf16>, vector<32x256xf32> -> vector<32x256xf32>
    %c14_281 = arith.constant 14 : index
    %c0_282 = arith.constant 0 : index
    %c0_283 = arith.constant 0 : index
    %366 = vector.load %arg4[%c14_281, %c0_282, %c0_283] : memref<15x32x32xbf16, #tpu.memory_space<vmem>>, vector<1x32x32xbf16>
    %367 = vector.shape_cast %366 : vector<1x32x32xbf16> to vector<32x32xbf16>
    %368 = vector.extract_strided_slice %367 {offsets = [0, 0], sizes = [32, 16], strides = [1, 1]} : vector<32x32xbf16> to vector<32x16xbf16>
    %369 = arith.truncf %360 : vector<16x256xf32> to vector<16x256xbf16>
    %cst_284 = arith.constant dense<0.000000e+00> : vector<32x256xf32>
    %370 = tpu.matmul %368, %369, %cst_284 {dimension_numbers = #tpu.dot_dimension_numbers<[1], [0], [0], [1], [0, 0, 1, 1], [], []>} : vector<32x16xbf16>, vector<16x256xbf16>, vector<32x256xf32> -> vector<32x256xf32>
    %371 = arith.addf %365, %370 : vector<32x256xf32>
    %c11_285 = arith.constant 11 : index
    %c0_286 = arith.constant 0 : index
    %372 = vector.load %arg3[%c11_285, %c0_286] : memref<13x256xf32, #tpu.memory_space<vmem>>, vector<1x256xf32>
    %373 = vector.broadcast %372 : vector<1x256xf32> to vector<32x256xf32>
    %374 = arith.addf %371, %373 : vector<32x256xf32>
    %375 = arith.truncf %374 : vector<32x256xf32> to vector<32x256xbf16>
    %376 = arith.truncf %29 : vector<32x256xf32> to vector<32x256xbf16>
    %c19 = arith.constant 19 : index
    %c0_287 = arith.constant 0 : index
    %c0_288 = arith.constant 0 : index
    %377 = vector.load %arg13[%c19, %c0_287, %c0_288] : memref<24x256x256xbf16, #tpu.memory_space<vmem>>, vector<1x256x256xbf16>
    %378 = vector.shape_cast %377 : vector<1x256x256xbf16> to vector<256x256xbf16>
    %cst_289 = arith.constant dense<0.000000e+00> : vector<32x256xf32>
    %379 = tpu.matmul %375, %378, %cst_289 {dimension_numbers = #tpu.dot_dimension_numbers<[1], [0], [0], [1], [0, 0, 1, 1], [], []>} : vector<32x256xbf16>, vector<256x256xbf16>, vector<32x256xf32> -> vector<32x256xf32>
    %c22 = arith.constant 22 : index
    %c0_290 = arith.constant 0 : index
    %c0_291 = arith.constant 0 : index
    %380 = vector.load %arg13[%c22, %c0_290, %c0_291] : memref<24x256x256xbf16, #tpu.memory_space<vmem>>, vector<1x256x256xbf16>
    %381 = vector.shape_cast %380 : vector<1x256x256xbf16> to vector<256x256xbf16>
    %cst_292 = arith.constant dense<0.000000e+00> : vector<32x256xf32>
    %382 = tpu.matmul %376, %381, %cst_292 {dimension_numbers = #tpu.dot_dimension_numbers<[1], [0], [0], [1], [0, 0, 1, 1], [], []>} : vector<32x256xbf16>, vector<256x256xbf16>, vector<32x256xf32> -> vector<32x256xf32>
    %383 = arith.addf %379, %382 : vector<32x256xf32>
    %c18 = arith.constant 18 : index
    %c0_293 = arith.constant 0 : index
    %c0_294 = arith.constant 0 : index
    %384 = vector.load %arg13[%c18, %c0_293, %c0_294] : memref<24x256x256xbf16, #tpu.memory_space<vmem>>, vector<1x256x256xbf16>
    %385 = vector.shape_cast %384 : vector<1x256x256xbf16> to vector<256x256xbf16>
    %cst_295 = arith.constant dense<0.000000e+00> : vector<32x256xf32>
    %386 = tpu.matmul %375, %385, %cst_295 {dimension_numbers = #tpu.dot_dimension_numbers<[1], [0], [0], [1], [0, 0, 1, 1], [], []>} : vector<32x256xbf16>, vector<256x256xbf16>, vector<32x256xf32> -> vector<32x256xf32>
    %c21 = arith.constant 21 : index
    %c0_296 = arith.constant 0 : index
    %c0_297 = arith.constant 0 : index
    %387 = vector.load %arg13[%c21, %c0_296, %c0_297] : memref<24x256x256xbf16, #tpu.memory_space<vmem>>, vector<1x256x256xbf16>
    %388 = vector.shape_cast %387 : vector<1x256x256xbf16> to vector<256x256xbf16>
    %cst_298 = arith.constant dense<0.000000e+00> : vector<32x256xf32>
    %389 = tpu.matmul %376, %388, %cst_298 {dimension_numbers = #tpu.dot_dimension_numbers<[1], [0], [0], [1], [0, 0, 1, 1], [], []>} : vector<32x256xbf16>, vector<256x256xbf16>, vector<32x256xf32> -> vector<32x256xf32>
    %390 = arith.addf %386, %389 : vector<32x256xf32>
    %c20 = arith.constant 20 : index
    %c0_299 = arith.constant 0 : index
    %c0_300 = arith.constant 0 : index
    %391 = vector.load %arg13[%c20, %c0_299, %c0_300] : memref<24x256x256xbf16, #tpu.memory_space<vmem>>, vector<1x256x256xbf16>
    %392 = vector.shape_cast %391 : vector<1x256x256xbf16> to vector<256x256xbf16>
    %cst_301 = arith.constant dense<0.000000e+00> : vector<32x256xf32>
    %393 = tpu.matmul %375, %392, %cst_301 {dimension_numbers = #tpu.dot_dimension_numbers<[1], [0], [0], [1], [0, 0, 1, 1], [], []>} : vector<32x256xbf16>, vector<256x256xbf16>, vector<32x256xf32> -> vector<32x256xf32>
    %c23 = arith.constant 23 : index
    %c0_302 = arith.constant 0 : index
    %c0_303 = arith.constant 0 : index
    %394 = vector.load %arg13[%c23, %c0_302, %c0_303] : memref<24x256x256xbf16, #tpu.memory_space<vmem>>, vector<1x256x256xbf16>
    %395 = vector.shape_cast %394 : vector<1x256x256xbf16> to vector<256x256xbf16>
    %cst_304 = arith.constant dense<0.000000e+00> : vector<32x256xf32>
    %396 = tpu.matmul %376, %395, %cst_304 {dimension_numbers = #tpu.dot_dimension_numbers<[1], [0], [0], [1], [0, 0, 1, 1], [], []>} : vector<32x256xbf16>, vector<256x256xbf16>, vector<32x256xf32> -> vector<32x256xf32>
    %397 = arith.addf %393, %396 : vector<32x256xf32>
    %c0_305 = arith.constant 0 : index
    %c0_306 = arith.constant 0 : index
    %398 = vector.load %arg5[%c0_305, %c0_306] : memref<32x8xf32, #tpu.memory_space<vmem>>, vector<32x1xf32>
    %c0_307 = arith.constant 0 : index
    %c1_308 = arith.constant 1 : index
    %399 = vector.load %arg5[%c0_307, %c1_308] : memref<32x8xf32, #tpu.memory_space<vmem>>, vector<32x1xf32>
    %c1_i32_309 = arith.constant 1 : i32
    %400 = tpu.dynamic_rotate %390 by %c1_i32_309 dim 0 : vector<32x256xf32>, i32 -> vector<32x256xf32>
    %401 = vector.broadcast %398 : vector<32x1xf32> to vector<32x256xf32>
    %402 = arith.mulf %401, %400 : vector<32x256xf32>
    %403 = arith.addf %383, %402 : vector<32x256xf32>
    %c31_i32_310 = arith.constant 31 : i32
    %404 = tpu.dynamic_rotate %397 by %c31_i32_310 dim 0 : vector<32x256xf32>, i32 -> vector<32x256xf32>
    %405 = vector.broadcast %399 : vector<32x1xf32> to vector<32x256xf32>
    %406 = arith.mulf %405, %404 : vector<32x256xf32>
    %407 = arith.addf %403, %406 : vector<32x256xf32>
    %c12_311 = arith.constant 12 : index
    %c0_312 = arith.constant 0 : index
    %408 = vector.load %arg3[%c12_311, %c0_312] : memref<13x256xf32, #tpu.memory_space<vmem>>, vector<1x256xf32>
    %409 = vector.broadcast %408 : vector<1x256xf32> to vector<32x256xf32>
    %410 = arith.addf %407, %409 : vector<32x256xf32>
    %cst_313 = arith.constant 0.000000e+00 : f32
    %411 = vector.broadcast %cst_313 : f32 to vector<32x256xf32>
    %412 = arith.maximumf %410, %411 : vector<32x256xf32>
    %413 = arith.truncf %412 : vector<32x256xf32> to vector<32x256xbf16>
    %c0_314 = arith.constant 0 : index
    %c0_315 = arith.constant 0 : index
    %414 = vector.load %arg7[%c0_314, %c0_315] : memref<256x64xbf16, #tpu.memory_space<vmem>>, vector<256x64xbf16>
    %cst_316 = arith.constant dense<0.000000e+00> : vector<32x64xf32>
    %415 = tpu.matmul %413, %414, %cst_316 {dimension_numbers = #tpu.dot_dimension_numbers<[1], [0], [0], [1], [0, 0, 1, 1], [], []>} : vector<32x256xbf16>, vector<256x64xbf16>, vector<32x64xf32> -> vector<32x64xf32>
    %c0_317 = arith.constant 0 : index
    %c0_318 = arith.constant 0 : index
    %416 = vector.load %arg8[%c0_317, %c0_318] : memref<1x64xf32, #tpu.memory_space<vmem>>, vector<1x64xf32>
    %417 = vector.broadcast %416 : vector<1x64xf32> to vector<32x64xf32>
    %418 = arith.addf %415, %417 : vector<32x64xf32>
    %c0_319 = arith.constant 0 : index
    %c0_320 = arith.constant 0 : index
    %419 = vector.load %arg11[%c0_319, %c0_320] : memref<32x64xf32, #tpu.memory_space<vmem>>, vector<32x64xf32>
    tpu.vector_store %arg11[%c0_319, %c0_320], %418 {strides = array<i32>} : memref<32x64xf32, #tpu.memory_space<vmem>>, vector<32x64xf32>,
    return
  }
}

</mosaic_0001>

<llo_original>
// kernel: miniunet_forward.1
$region0: #{miniunet_forward.1}
  #allocation0 [shape = 'u32[]', space=smem, size = 0x4, offset = 0x4, fixed_abs, tag = 'smem constant byte address 0x4 - core index']
  #allocation1 [shape = 'u32[144,128]{1,0:T(1,128)}', space=vmem, size = 0x12000, scoped, tag = 'internal scratch']
  #allocation2 [shape = 'bf16[8,256,256]{2,1,0:T(16,128)(2,1)}', space=vmem, size = 0x100000, scoped, tag = 'scratch operand']
  #allocation3 [shape = 'bf16[24,256,256]{2,1,0:T(16,128)(2,1)}', space=vmem, size = 0x300000, scoped, tag = 'scratch operand']
  #allocation4 [shape = 's32[2]{0}', space=sflag, size = 0x8, scoped, tag = 'scratch operand']
  #allocation15 [shape = 's32[]', space=sflag, size = 0x4, offset = 0, fixed_abs, tag = 'sflag constant byte address 0x0 - dummy sync flag']
  #allocation17 [shape = 's32[]', space=sflag, size = 0x4, offset = 0, fixed_abs, tag = 'sflag constant byte address 0x0 - dummy sync flag']
  %s0 = inlined_call_operand.vmem [shape: f32[32,48], index: 0, kind: input, shape index: {}]
  %s1 = inlined_call_operand.hbm [shape: bf16[3,48,256], index: 1, kind: input, shape index: {}]
  %s2 = inlined_call_operand.hbm [shape: bf16[12,128,256], index: 2, kind: input, shape index: {}]
  %s3 = inlined_call_operand.hbm [shape: f32[13,256], index: 3, kind: input, shape index: {}]
  %s4 = inlined_call_operand.hbm [shape: bf16[15,32,32], index: 4, kind: input, shape index: {}]
  %s5 = inlined_call_operand.vmem [shape: f32[32,8], index: 5, kind: input, shape index: {}]
  %s6 = inlined_call_operand.hbm [shape: bf16[4,256,128], index: 6, kind: input, shape index: {}]
  %s7 = inlined_call_operand.vmem [shape: bf16[256,64], index: 7, kind: input, shape index: {}]
  %s8 = inlined_call_operand.hbm [shape: f32[1,64], index: 8, kind: input, shape index: {}]
  %s9 = inlined_call_operand.hbm [shape: bf16[8,256,256], index: 9, kind: input, shape index: {}]
  %s10 = inlined_call_operand.hbm [shape: bf16[24,256,256], index: 10, kind: input, shape index: {}]
  %s11 = inlined_call_operand.vmem [shape: f32[32,64], index: 11, kind: output, shape index: {}]
  %s12 = sld [smem:[#allocation0]]
  $region70: #{miniunet_forward.1} parent=0
    _
  %s14 = ssub.s32 1, %s12
  %s15 = scalar_select 0, %s14, %s12
  $region1: #{miniunet_forward.1} parent=0
    #allocation5 [shape = 'u8[73728]{0}', space=vmem, size = 0x12000, scoped, tag = 'input window, operand 1, single buffered']
    #allocation6 [shape = 's32[1]{0}', space=sflag, size = 0x4, scoped, tag = 'scoped memory for miniunet_forward.1']
    #allocation7 [shape = 'u8[786432]{0}', space=vmem, size = 0xc0000, scoped, tag = 'input window, operand 2, single buffered']
    #allocation8 [shape = 's32[1]{0}', space=sflag, size = 0x4, scoped, tag = 'scoped memory for miniunet_forward.1']
    #allocation9 [shape = 'u8[16384]{0}', space=vmem, size = 0x4000, scoped, tag = 'input window, operand 3, single buffered']
    #allocation10 [shape = 'u8[122880]{0}', space=vmem, size = 0x1e000, scoped, tag = 'input window, operand 4, single buffered']
    #allocation11 [shape = 's32[1]{0}', space=sflag, size = 0x4, scoped, tag = 'scoped memory for miniunet_forward.1']
    #allocation12 [shape = 'u8[262144]{0}', space=vmem, size = 0x40000, scoped, tag = 'input window, operand 6, single buffered']
    #allocation13 [shape = 'u8[512]{0}', space=vmem, size = 0x400, scoped, tag = 'input window, operand 8, single buffered']
    #allocation14 [shape = 's32[1]{0}', space=sflag, size = 0x4, scoped, tag = 'scoped memory for miniunet_forward.1']
    #allocation16 [shape = 'u32[9]{0}', space=smem, size = 0x24, scoped, tag = 'DMA stride descriptor']
    #allocation18 [shape = 'u32[9]{0}', space=smem, size = 0x24, scoped, tag = 'DMA stride descriptor']
    %16 = vsyncpa [#allocation6], 0
    %17 = vsyncpa [#allocation8], 0
    %18 = vsyncpa [#allocation11], 0
    %19 = vsyncpa [#allocation14], 0
    // Predicated region
    $region2: #{miniunet_forward.1} parent=1 // pred_check
      _
    $region3: #{miniunet_forward.1} parent=1 // pred_check_branch
      %21 = sbr.rel (0) target = $region5
    $region4: #{miniunet_forward.1} parent=1 // pred_region
      _
    $region5: #{miniunet_forward.1} parent=1 // pred_fallthru
      _
    // Predicated region
    $region6: #{miniunet_forward.1} parent=1 // pred_check
      _
    $region7: #{miniunet_forward.1} parent=1 // pred_check_branch
      %23 = sbr.rel (0) target = $region9
    $region8: #{miniunet_forward.1} parent=1 // pred_region
      %s25 = ssub.s32 2304, 2304
      %26 = vsyncadd [#allocation6], %s25
      %s27 = sshll.u32 [#allocation5], 4
      %s28 = int_to_ptr.vmem [resolvable:$true] %s27
      %33 = dma.hbm_to_vmem [thread:$0]  %s1, 2304, %s28, [#allocation6], 128, 128, 8
    $region9: #{miniunet_forward.1} parent=1 // pred_fallthru
      _
    // Predicated region
    $region10: #{miniunet_forward.1} parent=1 // pred_check
      _
    $region11: #{miniunet_forward.1} parent=1 // pred_check_branch
      %35 = sbr.rel (0) target = $region13
    $region12: #{miniunet_forward.1} parent=1 // pred_region
      %s37 = ssub.s32 24576, 24576
      %38 = vsyncadd [#allocation8], %s37
      %s39 = sshll.u32 [#allocation7], 4
      %s40 = int_to_ptr.vmem [resolvable:$true] %s39
      %45 = dma.hbm_to_vmem [thread:$0]  %s2, 24576, %s40, [#allocation8], 128, 128, 8
    $region13: #{miniunet_forward.1} parent=1 // pred_fallthru
      _
    // Predicated region
    $region14: #{miniunet_forward.1} parent=1 // pred_check
      _
    $region15: #{miniunet_forward.1} parent=1 // pred_check_branch
      %47 = sbr.rel (0) target = $region17
    $region16: #{miniunet_forward.1} parent=1 // pred_region
      %s49 = ssub.s32 512, 512
      %50 = vsyncadd [#allocation8], %s49
      %s51 = sshll.u32 [#allocation9], 4
      %s52 = int_to_ptr.vmem [resolvable:$true] %s51
      %57 = dma.hbm_to_vmem [thread:$0]  %s3, 512, %s52, [#allocation8], 256, 256, 16
    $region17: #{miniunet_forward.1} parent=1 // pred_fallthru
      _
    // Predicated region
    $region18: #{miniunet_forward.1} parent=1 // pred_check
      _
    $region19: #{miniunet_forward.1} parent=1 // pred_check_branch
      %59 = sbr.rel (0) target = $region21
    $region20: #{miniunet_forward.1} parent=1 // pred_region
      %s61 = ssub.s32 3840, 3840
      %62 = vsyncadd [#allocation11], %s61
      %s63 = sshll.u32 [#allocation10], 4
      %s64 = int_to_ptr.vmem [resolvable:$true] %s63
      %69 = dma.hbm_to_vmem [thread:$0]  %s4, 3840, %s64, [#allocation11], 64, 64, 4
    $region21: #{miniunet_forward.1} parent=1 // pred_fallthru
      _
    // Predicated region
    $region22: #{miniunet_forward.1} parent=1 // pred_check
      _
    $region23: #{miniunet_forward.1} parent=1 // pred_check_branch
      %71 = sbr.rel (0) target = $region25
    $region24: #{miniunet_forward.1} parent=1 // pred_region
      _
    $region25: #{miniunet_forward.1} parent=1 // pred_fallthru
      _
    // Predicated region
    $region26: #{miniunet_forward.1} parent=1 // pred_check
      _
    $region27: #{miniunet_forward.1} parent=1 // pred_check_branch
      %73 = sbr.rel (0) target = $region29
    $region28: #{miniunet_forward.1} parent=1 // pred_region
      %s75 = ssub.s32 8192, 8192
      %76 = vsyncadd [#allocation11], %s75
      %s77 = sshll.u32 [#allocation12], 4
      %s78 = int_to_ptr.vmem [resolvable:$true] %s77
      %83 = dma.hbm_to_vmem [thread:$0]  %s6, 8192, %s78, [#allocation11], 64, 64, 4
    $region29: #{miniunet_forward.1} parent=1 // pred_fallthru
      _
    // Predicated region
    $region30: #{miniunet_forward.1} parent=1 // pred_check
      _
    $region31: #{miniunet_forward.1} parent=1 // pred_check_branch
      %85 = sbr.rel (0) target = $region33
    $region32: #{miniunet_forward.1} parent=1 // pred_region
      _
    $region33: #{miniunet_forward.1} parent=1 // pred_fallthru
      _
    // Predicated region
    $region34: #{miniunet_forward.1} parent=1 // pred_check
      _
    $region35: #{miniunet_forward.1} parent=1 // pred_check_branch
      %87 = sbr.rel (0) target = $region37
    $region36: #{miniunet_forward.1} parent=1 // pred_region
      %s89 = ssub.s32 16, 16
      %90 = vsyncadd [#allocation14], %s89
      %s92 = sshll.u32 [#allocation13], 4
      %s93 = int_to_ptr.vmem [resolvable:$true] %s92
      %95 = dma.hbm_to_vmem [thread:$0]  %s8, 16, %s93, [#allocation14]
    $region37: #{miniunet_forward.1} parent=1 // pred_fallthru
      _
    // Predicated region
    $region38: #{miniunet_forward.1} parent=1 // pred_check
      _
    $region39: #{miniunet_forward.1} parent=1 // pred_check_branch
      %97 = sbr.rel (0) target = $region41
    $region40: #{miniunet_forward.1} parent=1 // pred_region
      %98 = dma.done [#allocation6], 2304
    $region41: #{miniunet_forward.1} parent=1 // pred_fallthru
      _
    // Predicated region
    $region42: #{miniunet_forward.1} parent=1 // pred_check
      _
    $region43: #{miniunet_forward.1} parent=1 // pred_check_branch
      %100 = sbr.rel (0) target = $region45
    $region44: #{miniunet_forward.1} parent=1 // pred_region
      %101 = dma.done [#allocation8], 24576
    $region45: #{miniunet_forward.1} parent=1 // pred_fallthru
      _
    // Predicated region
    $region46: #{miniunet_forward.1} parent=1 // pred_check
      _
    $region47: #{miniunet_forward.1} parent=1 // pred_check_branch
      %103 = sbr.rel (0) target = $region49
    $region48: #{miniunet_forward.1} parent=1 // pred_region
      %104 = dma.done [#allocation8], 512
    $region49: #{miniunet_forward.1} parent=1 // pred_fallthru
      _
    // Predicated region
    $region50: #{miniunet_forward.1} parent=1 // pred_check
      _
    $region51: #{miniunet_forward.1} parent=1 // pred_check_branch
      %106 = sbr.rel (0) target = $region53
    $region52: #{miniunet_forward.1} parent=1 // pred_region
      %107 = dma.done [#allocation11], 3840
    $region53: #{miniunet_forward.1} parent=1 // pred_fallthru
      _
    // Predicated region
    $region54: #{miniunet_forward.1} parent=1 // pred_check
      _
    $region55: #{miniunet_forward.1} parent=1 // pred_check_branch
      %109 = sbr.rel (0) target = $region57
    $region56: #{miniunet_forward.1} parent=1 // pred_region
      %110 = dma.done [#allocation11], 8192
    $region57: #{miniunet_forward.1} parent=1 // pred_fallthru
      _
    // Predicated region
    $region58: #{miniunet_forward.1} parent=1 // pred_check
      _
    $region59: #{miniunet_forward.1} parent=1 // pred_check_branch
      %112 = sbr.rel (0) target = $region61
    $region60: #{miniunet_forward.1} parent=1 // pred_region
      %113 = dma.done [#allocation14], 16
    $region61: #{miniunet_forward.1} parent=1 // pred_fallthru
      _
    %s116 = sshll.u32 1, 14
    %s117 = sxor.u32 4294967295, %s116
    %s119 = sld [smem:[#allocation0]]
    %s120 = sadd.s32 2, %s119
    %s122 = sshll.u32 7, 26
    %s123 = sxor.u32 4294967295, %s122
    %s124 = sand.u32 0, %s123
    %s125 = sshll.u32 %s120, 26
    %s126 = sor.u32 %s124, %s125
    %s127 = sshll.u32 [#allocation2], 4
    %s128 = int_to_ptr.vmem [resolvable:$true] %s127
    %131 = sst [smem:[#allocation16]] 256
    %s132 = scalar_lea.smem [#allocation16], 1
    %133 = sst [smem:[%s132]] 256
    %s134 = scalar_lea.smem [#allocation16], 2
    %135 = sst [smem:[%s134]] 2
    %s136 = scalar_lea.smem [#allocation16], 3
    %137 = sst [smem:[%s136]] 64
    %s138 = scalar_lea.smem [#allocation16], 4
    %139 = sst [smem:[%s138]] 128
    %s140 = scalar_lea.smem [#allocation16], 5
    %141 = sst [smem:[%s140]] 2
    %s142 = scalar_lea.smem [#allocation16], 6
    %143 = sst [smem:[%s142]] 128
    %s144 = scalar_lea.smem [#allocation16], 7
    %145 = sst [smem:[%s144]] 64
    %s146 = scalar_lea.smem [#allocation16], 8
    %147 = sst [smem:[%s146]] 4
    %149 = dma.general %s9, 32768, %s128, [#allocation4], [#allocation15], [#allocation16], %s126, 0
    %s150 = scalar_lea.sflag [#allocation4], 1
    %s152 = sshll.u32 1, 14
    %s153 = sxor.u32 4294967295, %s152
    %s155 = sadd.s32 2, %s119
    %s157 = sshll.u32 7, 26
    %s158 = sxor.u32 4294967295, %s157
    %s159 = sand.u32 0, %s158
    %s160 = sshll.u32 %s155, 26
    %s161 = sor.u32 %s159, %s160
    %s162 = sshll.u32 [#allocation3], 4
    %s163 = int_to_ptr.vmem [resolvable:$true] %s162
    %166 = sst [smem:[#allocation18]] 256
    %s167 = scalar_lea.smem [#allocation18], 1
    %168 = sst [smem:[%s167]] 256
    %s169 = scalar_lea.smem [#allocation18], 2
    %170 = sst [smem:[%s169]] 2
    %s171 = scalar_lea.smem [#allocation18], 3
    %172 = sst [smem:[%s171]] 64
    %s173 = scalar_lea.smem [#allocation18], 4
    %174 = sst [smem:[%s173]] 128
    %s175 = scalar_lea.smem [#allocation18], 5
    %176 = sst [smem:[%s175]] 2
    %s177 = scalar_lea.smem [#allocation18], 6
    %178 = sst [smem:[%s177]] 128
    %s179 = scalar_lea.smem [#allocation18], 7
    %180 = sst [smem:[%s179]] 64
    %s181 = scalar_lea.smem [#allocation18], 8
    %182 = sst [smem:[%s181]] 4
    %184 = dma.general %s10, 98304, %s163, %s150, [#allocation17], [#allocation18], %s161, 0
    %v185 = vld [vmem:[%s0] sm:$0xff]
    %v186 = vld [vmem:[%s0 + $0x8] sm:$0xff]
    %v187 = vld [vmem:[%s0 + $0x10] sm:$0xff]
    %v188 = vld [vmem:[%s0 + $0x18] sm:$0xff]
    %v189 = vpack.c.bf16 %v186, %v185
    %v190 = vpack.c.bf16 %v188, %v187
    %s191 = scalar_lea.vmem [#allocation5], 48
    %v192 = vld [vmem:[%s191] sm:$0xff]
    %v193 = vld [vmem:[%s191 + $0x8] sm:$0xff]
    %v194 = vld [vmem:[%s191 + $0x10] sm:$0xff]
    %v195 = vld [vmem:[%s191 + $0x18] sm:$0xff]
    %v196 = vld [vmem:[%s191 + $0x20] sm:$0xff]
    %v197 = vld [vmem:[%s191 + $0x28] sm:$0xff]
    %v198 = vld [vmem:[#allocation5] sm:$0xff]
    %v199 = vld [vmem:[#allocation5 + $0x8] sm:$0xff]
    %v200 = vld [vmem:[#allocation5 + $0x10] sm:$0xff]
    %v201 = vld [vmem:[#allocation5 + $0x18] sm:$0xff]
    %v202 = vld [vmem:[#allocation5 + $0x20] sm:$0xff]
    %v203 = vld [vmem:[#allocation5 + $0x28] sm:$0xff]
    %v210 = vunpack.c.l.b16 %v198
    %v211 = vunpack.c.h.b16 %v198
    %v212 = vunpack.c.l.b16 %v199
    %v213 = vunpack.c.h.b16 %v199
    %v214 = vunpack.c.l.b16 %v200
    %v215 = vunpack.c.h.b16 %v200
    %v216 = vunpack.c.l.b16 %v201
    %v217 = vunpack.c.h.b16 %v201
    %v218 = vunpack.c.l.b16 %v202
    %v219 = vunpack.c.h.b16 %v202
    %v220 = vunpack.c.l.b16 %v203
    %v221 = vunpack.c.h.b16 %v203
    %v222 = vpack.c.b16 %v212, %v210
    %v223 = vpack.c.b16 %v213, %v211
    %v224 = vpack.c.b16 %v216, %v214
    %v225 = vpack.c.b16 %v217, %v215
    %v226 = vpack.c.b16 %v220, %v218
    %v227 = vpack.c.b16 %v221, %v219
    %vm234 = vcmask 392192
    %v236 = vsel %vm234, %v189, 0
    %v239 = vsel %vm234, %v190, 0
    %241 = vmatprep.subr.bf16.mxu0 %v223
    %242 = vmatpush1.bf16.msra.mxu0 %v222
    %243 = vmatprep.subr.bf16.mxu0 %v225
    %244 = vmatpush1.bf16.msra.mxu0 %v224
    %245 = vmatprep.subr.bf16.mxu0 %v227
    %246 = vmatpush1.bf16.msra.mxu0 %v226
    %247 = vmatprep.subr.bf16.mxu0 0
    %248 = vmatpush1.bf16.msra.mxu0 0
    %249 = vmatprep.subr.bf16.mxu0 0
    %250 = vmatpush1.bf16.msra.mxu0 0
    %251 = vmatprep.subr.bf16.mxu0 0
    %252 = vmatpush1.bf16.msra.mxu0 0
    %253 = vmatprep.subr.bf16.mxu0 0
    %254 = vmatpush1.bf16.msra.mxu0 0
    %255 = vmatprep.subr.bf16.mxu0 0
    %256 = vmatpush1.bf16.msra.mxu0 0
    %257 = vmatprep.subr.bf16.mxu0 0
    %258 = vmatpush1.bf16.msra.mxu0 0
    %259 = vmatprep.subr.bf16.mxu0 0
    %260 = vmatpush1.bf16.msra.mxu0 0
    %261 = vmatprep.subr.bf16.mxu0 0
    %262 = vmatpush1.bf16.msra.mxu0 0
    %263 = vmatprep.subr.bf16.mxu0 0
    %264 = vmatpush1.bf16.msra.mxu0 0
    %265 = vmatprep.subr.bf16.mxu0 0
    %266 = vmatpush1.bf16.msra.mxu0 0
    %267 = vmatprep.subr.bf16.mxu0 0
    %268 = vmatpush1.bf16.msra.mxu0 0
    %269 = vmatprep.subr.bf16.mxu0 0
    %270 = vmatpush1.bf16.msra.mxu0 0
    %271 = vmatprep.subr.bf16.mxu0 0
    %272 = vmatpush1.bf16.msra.mxu0 0
    %273 = vmatprep.mubr.bf16.mxu0 0
    %274 = vmatmul.mubr.bf16.gmra.mrb[0].mxu0 %v236
    %v275 = vpop.f32.mrb[0].mxu0
    %v276 = vadd.f32 0.0, %v275
    %v277 = vpop.f32.mrb[0].mxu0
    %v278 = vadd.f32 0.0, %v277
    %v279 = vpop.f32.mrb[0].mxu0
    %v280 = vadd.f32 0.0, %v279
    %v281 = vpop.f32.mrb[0].mxu0
    %v282 = vadd.f32 0.0, %v281
    %283 = vmatprep.mubr.bf16.mxu0 0
    %284 = vmatmul.mubr.bf16.gmra.mrb[0].mxu0 %v239
    %v285 = vpop.f32.mrb[0].mxu0
    %v286 = vadd.f32 0.0, %v285
    %v287 = vpop.f32.mrb[0].mxu0
    %v288 = vadd.f32 0.0, %v287
    %v289 = vpop.f32.mrb[0].mxu0
    %v290 = vadd.f32 0.0, %v289
    %v291 = vpop.f32.mrb[0].mxu0
    %v292 = vadd.f32 0.0, %v291
    %293 = vdwg.mxu0
    %s294 = scalar_lea.vmem [#allocation5], 96
    %v295 = vld [vmem:[%s294] sm:$0xff]
    %v296 = vld [vmem:[%s294 + $0x8] sm:$0xff]
    %v297 = vld [vmem:[%s294 + $0x10] sm:$0xff]
    %v298 = vld [vmem:[%s294 + $0x18] sm:$0xff]
    %v299 = vld [vmem:[%s294 + $0x20] sm:$0xff]
    %v300 = vld [vmem:[%s294 + $0x28] sm:$0xff]
    %v307 = vunpack.c.l.b16 %v295
    %v308 = vunpack.c.h.b16 %v295
    %v309 = vunpack.c.l.b16 %v296
    %v310 = vunpack.c.h.b16 %v296
    %v311 = vunpack.c.l.b16 %v297
    %v312 = vunpack.c.h.b16 %v297
    %v313 = vunpack.c.l.b16 %v298
    %v314 = vunpack.c.h.b16 %v298
    %v315 = vunpack.c.l.b16 %v299
    %v316 = vunpack.c.h.b16 %v299
    %v317 = vunpack.c.l.b16 %v300
    %v318 = vunpack.c.h.b16 %v300
    %v319 = vpack.c.b16 %v309, %v307
    %v320 = vpack.c.b16 %v310, %v308
    %v321 = vpack.c.b16 %v313, %v311
    %v322 = vpack.c.b16 %v314, %v312
    %v323 = vpack.c.b16 %v317, %v315
    %v324 = vpack.c.b16 %v318, %v316
    %331 = vmatprep.subr.bf16.mxu0 %v320
    %332 = vmatpush1.bf16.msra.mxu0 %v319
    %333 = vmatprep.subr.bf16.mxu0 %v322
    %334 = vmatpush1.bf16.msra.mxu0 %v321
    %335 = vmatprep.subr.bf16.mxu0 %v324
    %336 = vmatpush1.bf16.msra.mxu0 %v323
    %337 = vmatprep.subr.bf16.mxu0 0
    %338 = vmatpush1.bf16.msra.mxu0 0
    %339 = vmatprep.subr.bf16.mxu0 0
    %340 = vmatpush1.bf16.msra.mxu0 0
    %341 = vmatprep.subr.bf16.mxu0 0
    %342 = vmatpush1.bf16.msra.mxu0 0
    %343 = vmatprep.subr.bf16.mxu0 0
    %344 = vmatpush1.bf16.msra.mxu0 0
    %345 = vmatprep.subr.bf16.mxu0 0
    %346 = vmatpush1.bf16.msra.mxu0 0
    %347 = vmatprep.subr.bf16.mxu0 0
    %348 = vmatpush1.bf16.msra.mxu0 0
    %349 = vmatprep.subr.bf16.mxu0 0
    %350 = vmatpush1.bf16.msra.mxu0 0
    %351 = vmatprep.subr.bf16.mxu0 0
    %352 = vmatpush1.bf16.msra.mxu0 0
    %353 = vmatprep.subr.bf16.mxu0 0
    %354 = vmatpush1.bf16.msra.mxu0 0
    %355 = vmatprep.subr.bf16.mxu0 0
    %356 = vmatpush1.bf16.msra.mxu0 0
    %357 = vmatprep.subr.bf16.mxu0 0
    %358 = vmatpush1.bf16.msra.mxu0 0
    %359 = vmatprep.subr.bf16.mxu0 0
    %360 = vmatpush1.bf16.msra.mxu0 0
    %361 = vmatprep.subr.bf16.mxu0 0
    %362 = vmatpush1.bf16.msra.mxu0 0
    %363 = vmatprep.mubr.bf16.mxu0 0
    %364 = vmatmul.mubr.bf16.gmra.mrb[0].mxu0 %v236
    %v365 = vpop.f32.mrb[0].mxu0
    %v366 = vadd.f32 0.0, %v365
    %v367 = vpop.f32.mrb[0].mxu0
    %v368 = vadd.f32 0.0, %v367
    %v369 = vpop.f32.mrb[0].mxu0
    %v370 = vadd.f32 0.0, %v369
    %v371 = vpop.f32.mrb[0].mxu0
    %v372 = vadd.f32 0.0, %v371
    %373 = vmatprep.mubr.bf16.mxu0 0
    %374 = vmatmul.mubr.bf16.gmra.mrb[0].mxu0 %v239
    %v375 = vpop.f32.mrb[0].mxu0
    %v376 = vadd.f32 0.0, %v375
    %v377 = vpop.f32.mrb[0].mxu0
    %v378 = vadd.f32 0.0, %v377
    %v379 = vpop.f32.mrb[0].mxu0
    %v380 = vadd.f32 0.0, %v379
    %v381 = vpop.f32.mrb[0].mxu0
    %v382 = vadd.f32 0.0, %v381
    %383 = vdwg.mxu0
    %v384 = vld [vmem:[%s5] sm:$0xff]
    %v385 = vld [vmem:[%s5 + $0x8] sm:$0xff]
    %v386 = vld [vmem:[%s5 + $0x10] sm:$0xff]
    %v387 = vld [vmem:[%s5 + $0x18] sm:$0xff]
    %v388 = vrot.slane %v276, 7
    %v389 = vrot.slane %v278, 7
    %v390 = vrot.slane %v280, 7
    %v391 = vrot.slane %v282, 7
    %v392 = vrot.slane %v286, 7
    %v393 = vrot.slane %v288, 7
    %v394 = vrot.slane %v290, 7
    %v395 = vrot.slane %v292, 7
    %v396 = vlaneseq
    %v397 = vshrl.u32 %v396, 7
    %vm398 = vcmp.lt.s32.totalorder %v397, 1
    %v399 = vsel %vm398, %v392, %v394
    %v400 = vsel %vm398, %v393, %v395
    %v401 = vsel %vm398, %v390, %v392
    %v402 = vsel %vm398, %v391, %v393
    %v403 = vsel %vm398, %v388, %v390
    %v404 = vsel %vm398, %v389, %v391
    %v405 = vsel %vm398, %v394, %v388
    %v406 = vsel %vm398, %v395, %v389
    %408 = vset.pattern.permute.xlu0 0
    %409 = vperm.xlu0 %408, %v384
    %v410 = vpop.permute.xlu0 %409
    %413 = vset.pattern.permute.xlu0 0
    %414 = vperm.xlu0 %413, %v385
    %v415 = vpop.permute.xlu0 %414
    %418 = vset.pattern.permute.xlu0 0
    %419 = vperm.xlu0 %418, %v386
    %v420 = vpop.permute.xlu0 %419
    %423 = vset.pattern.permute.xlu0 0
    %424 = vperm.xlu0 %423, %v387
    %v425 = vpop.permute.xlu0 %424
    %v427 = vmul.f32 %v410, %v405
    %v428 = vmul.f32 %v410, %v406
    %v429 = vmul.f32 %v415, %v403
    %v430 = vmul.f32 %v415, %v404
    %v431 = vmul.f32 %v420, %v401
    %v432 = vmul.f32 %v420, %v402
    %v433 = vmul.f32 %v425, %v399
    %v434 = vmul.f32 %v425, %v400
    %v441 = vunpack.c.l.b16 %v192
    %v442 = vunpack.c.h.b16 %v192
    %v443 = vunpack.c.l.b16 %v193
    %v444 = vunpack.c.h.b16 %v193
    %v445 = vunpack.c.l.b16 %v194
    %v446 = vunpack.c.h.b16 %v194
    %v447 = vunpack.c.l.b16 %v195
    %v448 = vunpack.c.h.b16 %v195
    %v449 = vunpack.c.l.b16 %v196
    %v450 = vunpack.c.h.b16 %v196
    %v451 = vunpack.c.l.b16 %v197
    %v452 = vunpack.c.h.b16 %v197
    %v453 = vpack.c.b16 %v443, %v441
    %v454 = vpack.c.b16 %v444, %v442
    %v455 = vpack.c.b16 %v447, %v445
    %v456 = vpack.c.b16 %v448, %v446
    %v457 = vpack.c.b16 %v451, %v449
    %v458 = vpack.c.b16 %v452, %v450
    %465 = vmatprep.subr.bf16.mxu0 %v454
    %466 = vmatpush1.bf16.msra.mxu0 %v453
    %467 = vmatprep.subr.bf16.mxu0 %v456
    %468 = vmatpush1.bf16.msra.mxu0 %v455
    %469 = vmatprep.subr.bf16.mxu0 %v458
    %470 = vmatpush1.bf16.msra.mxu0 %v457
    %471 = vmatprep.subr.bf16.mxu0 0
    %472 = vmatpush1.bf16.msra.mxu0 0
    %473 = vmatprep.subr.bf16.mxu0 0
    %474 = vmatpush1.bf16.msra.mxu0 0
    %475 = vmatprep.subr.bf16.mxu0 0
    %476 = vmatpush1.bf16.msra.mxu0 0
    %477 = vmatprep.subr.bf16.mxu0 0
    %478 = vmatpush1.bf16.msra.mxu0 0
    %479 = vmatprep.subr.bf16.mxu0 0
    %480 = vmatpush1.bf16.msra.mxu0 0
    %481 = vmatprep.subr.bf16.mxu0 0
    %482 = vmatpush1.bf16.msra.mxu0 0
    %483 = vmatprep.subr.bf16.mxu0 0
    %484 = vmatpush1.bf16.msra.mxu0 0
    %485 = vmatprep.subr.bf16.mxu0 0
    %486 = vmatpush1.bf16.msra.mxu0 0
    %487 = vmatprep.subr.bf16.mxu0 0
    %488 = vmatpush1.bf16.msra.mxu0 0
    %489 = vmatprep.subr.bf16.mxu0 0
    %490 = vmatpush1.bf16.msra.mxu0 0
    %491 = vmatprep.subr.bf16.mxu0 0
    %492 = vmatpush1.bf16.msra.mxu0 0
    %493 = vmatprep.subr.bf16.mxu0 0
    %494 = vmatpush1.bf16.msra.mxu0 0
    %495 = vmatprep.subr.bf16.mxu0 0
    %496 = vmatpush1.bf16.msra.mxu0 0
    %497 = vmatprep.mubr.bf16.mxu0 0
    %498 = vmatmul.mubr.bf16.gmra.mrb[0].mxu0 %v236
    %v499 = vpop.f32.mrb[0].mxu0
    %v500 = vadd.f32 %v427, %v499
    %v501 = vpop.f32.mrb[0].mxu0
    %v502 = vadd.f32 %v428, %v501
    %v503 = vpop.f32.mrb[0].mxu0
    %v504 = vadd.f32 %v429, %v503
    %v505 = vpop.f32.mrb[0].mxu0
    %v506 = vadd.f32 %v430, %v505
    %507 = vmatprep.mubr.bf16.mxu0 0
    %508 = vmatmul.mubr.bf16.gmra.mrb[0].mxu0 %v239
    %v509 = vpop.f32.mrb[0].mxu0
    %v510 = vadd.f32 %v431, %v509
    %v511 = vpop.f32.mrb[0].mxu0
    %v512 = vadd.f32 %v432, %v511
    %v513 = vpop.f32.mrb[0].mxu0
    %v514 = vadd.f32 %v433, %v513
    %v515 = vpop.f32.mrb[0].mxu0
    %v516 = vadd.f32 %v434, %v515
    %517 = vdwg.mxu0
    %v518 = vrot.slane %v366, 1
    %v519 = vrot.slane %v368, 1
    %v520 = vrot.slane %v370, 1
    %v521 = vrot.slane %v372, 1
    %v522 = vrot.slane %v376, 1
    %v523 = vrot.slane %v378, 1
    %v524 = vrot.slane %v380, 1
    %v525 = vrot.slane %v382, 1
    %vm526 = vcmp.lt.s32.totalorder %v397, 7
    %v527 = vsel %vm526, %v522, %v524
    %v528 = vsel %vm526, %v523, %v525
    %v529 = vsel %vm526, %v520, %v522
    %v530 = vsel %vm526, %v521, %v523
    %v531 = vsel %vm526, %v518, %v520
    %v532 = vsel %vm526, %v519, %v521
    %v533 = vsel %vm526, %v524, %v518
    %v534 = vsel %vm526, %v525, %v519
    %535 = vset.pattern.permute.xlu0 1
    %536 = vperm.xlu0 %535, %v384
    %v537 = vpop.permute.xlu0 %536
    %539 = vset.pattern.permute.xlu0 1
    %540 = vperm.xlu0 %539, %v385
    %v541 = vpop.permute.xlu0 %540
    %543 = vset.pattern.permute.xlu0 1
    %544 = vperm.xlu0 %543, %v386
    %v545 = vpop.permute.xlu0 %544
    %547 = vset.pattern.permute.xlu0 1
    %548 = vperm.xlu0 %547, %v387
    %v549 = vpop.permute.xlu0 %548
    %v551 = vmul.f32 %v537, %v531
    %v552 = vmul.f32 %v537, %v532
    %v553 = vmul.f32 %v541, %v529
    %v554 = vmul.f32 %v541, %v530
    %v555 = vmul.f32 %v545, %v527
    %v556 = vmul.f32 %v545, %v528
    %v557 = vmul.f32 %v549, %v533
    %v558 = vmul.f32 %v549, %v534
    %v559 = vadd.f32 %v500, %v551
    %v560 = vadd.f32 %v502, %v552
    %v561 = vadd.f32 %v504, %v553
    %v562 = vadd.f32 %v506, %v554
    %v563 = vadd.f32 %v510, %v555
    %v564 = vadd.f32 %v512, %v556
    %v565 = vadd.f32 %v514, %v557
    %v566 = vadd.f32 %v516, %v558
    %v567 = vld [vmem:[#allocation9] ss:$8 sm:$0x3]
    %v569 = vlaneseq
    %v570 = vshrl.u32 %v569, 7
    %v571 = vsub.s32 0, %v570
    %v572 = vrot.slane %v567, %v571
    %v573 = vlaneseq
    %v574 = vshrl.u32 %v573, 7
    %v575 = vsub.s32 1, %v574
    %v576 = vrot.slane %v567, %v575
    %v579 = vadd.f32 %v559, %v572
    %v580 = vadd.f32 %v560, %v576
    %v581 = vadd.f32 %v561, %v572
    %v582 = vadd.f32 %v562, %v576
    %v583 = vadd.f32 %v563, %v572
    %v584 = vadd.f32 %v564, %v576
    %v585 = vadd.f32 %v565, %v572
    %v586 = vadd.f32 %v566, %v576
    %v587 = vmax.f32 %v579, 0.0
    %v588 = vmax.f32 %v580, 0.0
    %v589 = vmax.f32 %v581, 0.0
    %v590 = vmax.f32 %v582, 0.0
    %v591 = vmax.f32 %v583, 0.0
    %v592 = vmax.f32 %v584, 0.0
    %v593 = vmax.f32 %v585, 0.0
    %v594 = vmax.f32 %v586, 0.0
    %595 = vrot.lane.b32.xlu0 %v587, 112
    %v596 = vpop.permute.xlu0 %595
    %597 = vrot.lane.b32.xlu0 %v589, 112
    %v598 = vpop.permute.xlu0 %597
    %599 = vrot.lane.b32.xlu0 %v591, 112
    %v600 = vpop.permute.xlu0 %599
    %601 = vrot.lane.b32.xlu0 %v593, 112
    %v602 = vpop.permute.xlu0 %601
    %603 = vrot.lane.b32.xlu0 %v588, 112
    %v604 = vpop.permute.xlu0 %603
    %605 = vrot.lane.b32.xlu0 %v590, 112
    %v606 = vpop.permute.xlu0 %605
    %607 = vrot.lane.b32.xlu0 %v592, 112
    %v608 = vpop.permute.xlu0 %607
    %609 = vrot.lane.b32.xlu0 %v594, 112
    %v610 = vpop.permute.xlu0 %609
    %v611 = vlaneseq
    %v612 = vand.u32 %v611, 127
    %vm613 = vcmp.lt.s32.totalorder %v612, 112
    %v614 = vsel %vm613, %v596, %v604
    %v615 = vsel %vm613, %v598, %v606
    %v616 = vsel %vm613, %v600, %v608
    %v617 = vsel %vm613, %v602, %v610
    %v618 = vsel %vm613, %v604, %v596
    %v619 = vsel %vm613, %v606, %v598
    %v620 = vsel %vm613, %v608, %v600
    %v621 = vsel %vm613, %v610, %v602
    %v622 = vmax.f32 %v587, %v614
    %v623 = vmax.f32 %v588, %v618
    %v624 = vmax.f32 %v589, %v615
    %v625 = vmax.f32 %v590, %v619
    %v626 = vmax.f32 %v591, %v616
    %v627 = vmax.f32 %v592, %v620
    %v628 = vmax.f32 %v593, %v617
    %v629 = vmax.f32 %v594, %v621
    %v630 = vrot.slane %v622, 1
    %v631 = vrot.slane %v623, 1
    %v632 = vrot.slane %v624, 1
    %v633 = vrot.slane %v625, 1
    %v634 = vrot.slane %v626, 1
    %v635 = vrot.slane %v627, 1
    %v636 = vrot.slane %v628, 1
    %v637 = vrot.slane %v629, 1
    %v638 = vsel %vm526, %v634, %v636
    %v639 = vsel %vm526, %v635, %v637
    %v640 = vsel %vm526, %v632, %v634
    %v641 = vsel %vm526, %v633, %v635
    %v642 = vsel %vm526, %v630, %v632
    %v643 = vsel %vm526, %v631, %v633
    %v644 = vsel %vm526, %v636, %v630
    %v645 = vsel %vm526, %v637, %v631
    %v646 = vmax.f32 %v622, %v642
    %v647 = vmax.f32 %v623, %v643
    %v648 = vmax.f32 %v624, %v640
    %v649 = vmax.f32 %v625, %v641
    %v650 = vmax.f32 %v626, %v638
    %v651 = vmax.f32 %v627, %v639
    %v652 = vmax.f32 %v628, %v644
    %v653 = vmax.f32 %v629, %v645
    %s654 = scalar_lea.vmem [#allocation10], 32
    %v655 = vld [vmem:[%s654] sm:$0xf]
    %v656 = vld [vmem:[%s654 + $0x4] sm:$0xf]
    %v657 = vpack.c.bf16 %v648, %v646
    %v658 = vpack.c.bf16 %v649, %v647
    %v659 = vpack.c.bf16 %v652, %v650
    %v660 = vpack.c.bf16 %v653, %v651
    %v663 = vunpack.c.l.b16 %v655
    %v664 = vunpack.c.l.b16 %v656
    %v665 = vpack.c.b16 %v664, %v663
    %vm666 = vcmask 261120
    %v668 = vsel %vm666, %v665, 0
    %670 = vmatprep.subr.bf16.mxu0 %v658
    %671 = vmatpush1.bf16.msra.mxu0 %v657
    %672 = vmatprep.subr.bf16.mxu0 %v660
    %673 = vmatpush1.bf16.msra.mxu0 %v659
    %674 = vmatprep.subr.bf16.mxu0 0
    %675 = vmatpush1.bf16.msra.mxu0 0
    %676 = vmatprep.subr.bf16.mxu0 0
    %677 = vmatpush1.bf16.msra.mxu0 0
    %678 = vmatprep.subr.bf16.mxu0 0
    %679 = vmatpush1.bf16.msra.mxu0 0
    %680 = vmatprep.subr.bf16.mxu0 0
    %681 = vmatpush1.bf16.msra.mxu0 0
    %682 = vmatprep.subr.bf16.mxu0 0
    %683 = vmatpush1.bf16.msra.mxu0 0
    %684 = vmatprep.subr.bf16.mxu0 0
    %685 = vmatpush1.bf16.msra.mxu0 0
    %686 = vmatprep.subr.bf16.mxu0 0
    %687 = vmatpush1.bf16.msra.mxu0 0
    %688 = vmatprep.subr.bf16.mxu0 0
    %689 = vmatpush1.bf16.msra.mxu0 0
    %690 = vmatprep.subr.bf16.mxu0 0
    %691 = vmatpush1.bf16.msra.mxu0 0
    %692 = vmatprep.subr.bf16.mxu0 0
    %693 = vmatpush1.bf16.msra.mxu0 0
    %694 = vmatprep.subr.bf16.mxu0 0
    %695 = vmatpush1.bf16.msra.mxu0 0
    %696 = vmatprep.subr.bf16.mxu0 0
    %697 = vmatpush1.bf16.msra.mxu0 0
    %698 = vmatprep.subr.bf16.mxu0 0
    %699 = vmatpush1.bf16.msra.mxu0 0
    %700 = vmatprep.subr.bf16.mxu0 0
    %701 = vmatpush1.bf16.msra.mxu0 0
    %702 = vmatprep.mubr.bf16.mxu0 0
    %703 = vmatmul.mubr.bf16.gmra.mrb[0].mxu0 %v668
    %v704 = vpop.f32.mrb[0].mxu0
    %v705 = vadd.f32 0.0, %v704
    %v706 = vpop.f32.mrb[0].mxu0
    %v707 = vadd.f32 0.0, %v706
    %v708 = vpop.f32.mrb[0].mxu0
    %v709 = vadd.f32 0.0, %v708
    %v710 = vpop.f32.mrb[0].mxu0
    %v711 = vadd.f32 0.0, %v710
    %712 = vdwg.mxu0
    %v713 = vld [vmem:[#allocation12] sm:$0xf]
    %v714 = vld [vmem:[#allocation12 + $0x4] sm:$0xf]
    %v715 = vld [vmem:[#allocation12 + $0x8] sm:$0xf]
    %v716 = vld [vmem:[#allocation12 + $0xc] sm:$0xf]
    %v717 = vld [vmem:[#allocation12 + $0x10] sm:$0xf]
    %v718 = vld [vmem:[#allocation12 + $0x14] sm:$0xf]
    %v719 = vld [vmem:[#allocation12 + $0x18] sm:$0xf]
    %v720 = vld [vmem:[#allocation12 + $0x1c] sm:$0xf]
    %v721 = vld [vmem:[#allocation12 + $0x20] sm:$0xf]
    %v722 = vld [vmem:[#allocation12 + $0x24] sm:$0xf]
    %v723 = vld [vmem:[#allocation12 + $0x28] sm:$0xf]
    %v724 = vld [vmem:[#allocation12 + $0x2c] sm:$0xf]
    %v725 = vld [vmem:[#allocation12 + $0x30] sm:$0xf]
    %v726 = vld [vmem:[#allocation12 + $0x34] sm:$0xf]
    %v727 = vld [vmem:[#allocation12 + $0x38] sm:$0xf]
    %v728 = vld [vmem:[#allocation12 + $0x3c] sm:$0xf]
    %v729 = vld [vmem:[#allocation12 + $0x40] sm:$0xf]
    %v730 = vld [vmem:[#allocation12 + $0x44] sm:$0xf]
    %v731 = vld [vmem:[#allocation12 + $0x48] sm:$0xf]
    %v732 = vld [vmem:[#allocation12 + $0x4c] sm:$0xf]
    %v733 = vld [vmem:[#allocation12 + $0x50] sm:$0xf]
    %v734 = vld [vmem:[#allocation12 + $0x54] sm:$0xf]
    %v735 = vld [vmem:[#allocation12 + $0x58] sm:$0xf]
    %v736 = vld [vmem:[#allocation12 + $0x5c] sm:$0xf]
    %v737 = vld [vmem:[#allocation12 + $0x60] sm:$0xf]
    %v738 = vld [vmem:[#allocation12 + $0x64] sm:$0xf]
    %v739 = vld [vmem:[#allocation12 + $0x68] sm:$0xf]
    %v740 = vld [vmem:[#allocation12 + $0x6c] sm:$0xf]
    %v741 = vld [vmem:[#allocation12 + $0x70] sm:$0xf]
    %v742 = vld [vmem:[#allocation12 + $0x74] sm:$0xf]
    %v743 = vld [vmem:[#allocation12 + $0x78] sm:$0xf]
    %v744 = vld [vmem:[#allocation12 + $0x7c] sm:$0xf]
    %v745 = vpack.c.bf16 %v709, %v705
    %v746 = vpack.c.bf16 %v711, %v707
    %v779 = vunpack.c.l.b16 %v713
    %v780 = vunpack.c.l.b16 %v714
    %v781 = vunpack.c.l.b16 %v715
    %v782 = vunpack.c.l.b16 %v716
    %v783 = vunpack.c.l.b16 %v717
    %v784 = vunpack.c.l.b16 %v718
    %v785 = vunpack.c.l.b16 %v719
    %v786 = vunpack.c.l.b16 %v720
    %v787 = vunpack.c.l.b16 %v721
    %v788 = vunpack.c.l.b16 %v722
    %v789 = vunpack.c.l.b16 %v723
    %v790 = vunpack.c.l.b16 %v724
    %v791 = vunpack.c.l.b16 %v725
    %v792 = vunpack.c.l.b16 %v726
    %v793 = vunpack.c.l.b16 %v727
    %v794 = vunpack.c.l.b16 %v728
    %v795 = vunpack.c.l.b16 %v729
    %v796 = vunpack.c.l.b16 %v730
    %v797 = vunpack.c.l.b16 %v731
    %v798 = vunpack.c.l.b16 %v732
    %v799 = vunpack.c.l.b16 %v733
    %v800 = vunpack.c.l.b16 %v734
    %v801 = vunpack.c.l.b16 %v735
    %v802 = vunpack.c.l.b16 %v736
    %v803 = vunpack.c.l.b16 %v737
    %v804 = vunpack.c.l.b16 %v738
    %v805 = vunpack.c.l.b16 %v739
    %v806 = vunpack.c.l.b16 %v740
    %v807 = vunpack.c.l.b16 %v741
    %v808 = vunpack.c.l.b16 %v742
    %v809 = vunpack.c.l.b16 %v743
    %v810 = vunpack.c.l.b16 %v744
    %v811 = vpack.c.b16 %v780, %v779
    %v812 = vpack.c.b16 %v782, %v781
    %v813 = vpack.c.b16 %v784, %v783
    %v814 = vpack.c.b16 %v786, %v785
    %v815 = vpack.c.b16 %v788, %v787
    %v816 = vpack.c.b16 %v790, %v789
    %v817 = vpack.c.b16 %v792, %v791
    %v818 = vpack.c.b16 %v794, %v793
    %v819 = vpack.c.b16 %v796, %v795
    %v820 = vpack.c.b16 %v798, %v797
    %v821 = vpack.c.b16 %v800, %v799
    %v822 = vpack.c.b16 %v802, %v801
    %v823 = vpack.c.b16 %v804, %v803
    %v824 = vpack.c.b16 %v806, %v805
    %v825 = vpack.c.b16 %v808, %v807
    %v826 = vpack.c.b16 %v810, %v809
    %843 = vmatprep.subr.bf16.mxu0 0
    %844 = vmatpush1.bf16.msra.mxu0 %v811
    %845 = vmatprep.subr.bf16.mxu0 0
    %846 = vmatpush1.bf16.msra.mxu0 %v812
    %847 = vmatprep.subr.bf16.mxu0 0
    %848 = vmatpush1.bf16.msra.mxu0 %v813
    %849 = vmatprep.subr.bf16.mxu0 0
    %850 = vmatpush1.bf16.msra.mxu0 %v814
    %851 = vmatprep.subr.bf16.mxu0 0
    %852 = vmatpush1.bf16.msra.mxu0 %v815
    %853 = vmatprep.subr.bf16.mxu0 0
    %854 = vmatpush1.bf16.msra.mxu0 %v816
    %855 = vmatprep.subr.bf16.mxu0 0
    %856 = vmatpush1.bf16.msra.mxu0 %v817
    %857 = vmatprep.subr.bf16.mxu0 0
    %858 = vmatpush1.bf16.msra.mxu0 %v818
    %859 = vmatprep.subr.bf16.mxu0 0
    %860 = vmatpush1.bf16.msra.mxu0 %v819
    %861 = vmatprep.subr.bf16.mxu0 0
    %862 = vmatpush1.bf16.msra.mxu0 %v820
    %863 = vmatprep.subr.bf16.mxu0 0
    %864 = vmatpush1.bf16.msra.mxu0 %v821
    %865 = vmatprep.subr.bf16.mxu0 0
    %866 = vmatpush1.bf16.msra.mxu0 %v822
    %867 = vmatprep.subr.bf16.mxu0 0
    %868 = vmatpush1.bf16.msra.mxu0 %v823
    %869 = vmatprep.subr.bf16.mxu0 0
    %870 = vmatpush1.bf16.msra.mxu0 %v824
    %871 = vmatprep.subr.bf16.mxu0 0
    %872 = vmatpush1.bf16.msra.mxu0 %v825
    %873 = vmatprep.subr.bf16.mxu0 0
    %874 = vmatpush1.bf16.msra.mxu0 %v826
    %875 = vmatprep.mubr.bf16.mxu0 %v746
    %876 = vmatmul.mubr.bf16.gmra.mrb[0].mxu0 %v745
    %v877 = vpop.f32.mrb[0].mxu0
    %v878 = vadd.f32 0.0, %v877
    %v879 = vpop.f32.mrb[0].mxu0
    %v880 = vpop.f32.mrb[0].mxu0
    %v881 = vadd.f32 0.0, %v880
    %v882 = vpop.f32.mrb[0].mxu0
    %883 = vdwg.mxu0
    %v884 = vpack.c.bf16 %v881, %v878
    %s885 = scalar_lea.vmem [#allocation7], 128
    %v886 = vld [vmem:[%s885] sm:$0xff]
    %v887 = vld [vmem:[%s885 + $0x8] sm:$0xff]
    %v888 = vld [vmem:[%s885 + $0x10] sm:$0xff]
    %v889 = vld [vmem:[%s885 + $0x18] sm:$0xff]
    %v890 = vld [vmem:[%s885 + $0x20] sm:$0xff]
    %v891 = vld [vmem:[%s885 + $0x28] sm:$0xff]
    %v892 = vld [vmem:[%s885 + $0x30] sm:$0xff]
    %v893 = vld [vmem:[%s885 + $0x38] sm:$0xff]
    %v894 = vld [vmem:[%s885 + $0x40] sm:$0xff]
    %v895 = vld [vmem:[%s885 + $0x48] sm:$0xff]
    %v896 = vld [vmem:[%s885 + $0x50] sm:$0xff]
    %v897 = vld [vmem:[%s885 + $0x58] sm:$0xff]
    %v898 = vld [vmem:[%s885 + $0x60] sm:$0xff]
    %v899 = vld [vmem:[%s885 + $0x68] sm:$0xff]
    %v900 = vld [vmem:[%s885 + $0x70] sm:$0xff]
    %v901 = vld [vmem:[%s885 + $0x78] sm:$0xff]
    %v902 = vld [vmem:[#allocation7] sm:$0xff]
    %v903 = vld [vmem:[#allocation7 + $0x8] sm:$0xff]
    %v904 = vld [vmem:[#allocation7 + $0x10] sm:$0xff]
    %v905 = vld [vmem:[#allocation7 + $0x18] sm:$0xff]
    %v906 = vld [vmem:[#allocation7 + $0x20] sm:$0xff]
    %v907 = vld [vmem:[#allocation7 + $0x28] sm:$0xff]
    %v908 = vld [vmem:[#allocation7 + $0x30] sm:$0xff]
    %v909 = vld [vmem:[#allocation7 + $0x38] sm:$0xff]
    %v910 = vld [vmem:[#allocation7 + $0x40] sm:$0xff]
    %v911 = vld [vmem:[#allocation7 + $0x48] sm:$0xff]
    %v912 = vld [vmem:[#allocation7 + $0x50] sm:$0xff]
    %v913 = vld [vmem:[#allocation7 + $0x58] sm:$0xff]
    %v914 = vld [vmem:[#allocation7 + $0x60] sm:$0xff]
    %v915 = vld [vmem:[#allocation7 + $0x68] sm:$0xff]
    %v916 = vld [vmem:[#allocation7 + $0x70] sm:$0xff]
    %v917 = vld [vmem:[#allocation7 + $0x78] sm:$0xff]
    %v934 = vunpack.c.l.b16 %v902
    %v935 = vunpack.c.h.b16 %v902
    %v936 = vunpack.c.l.b16 %v903
    %v937 = vunpack.c.h.b16 %v903
    %v938 = vunpack.c.l.b16 %v904
    %v939 = vunpack.c.h.b16 %v904
    %v940 = vunpack.c.l.b16 %v905
    %v941 = vunpack.c.h.b16 %v905
    %v942 = vunpack.c.l.b16 %v906
    %v943 = vunpack.c.h.b16 %v906
    %v944 = vunpack.c.l.b16 %v907
    %v945 = vunpack.c.h.b16 %v907
    %v946 = vunpack.c.l.b16 %v908
    %v947 = vunpack.c.h.b16 %v908
    %v948 = vunpack.c.l.b16 %v909
    %v949 = vunpack.c.h.b16 %v909
    %v950 = vunpack.c.l.b16 %v910
    %v951 = vunpack.c.h.b16 %v910
    %v952 = vunpack.c.l.b16 %v911
    %v953 = vunpack.c.h.b16 %v911
    %v954 = vunpack.c.l.b16 %v912
    %v955 = vunpack.c.h.b16 %v912
    %v956 = vunpack.c.l.b16 %v913
    %v957 = vunpack.c.h.b16 %v913
    %v958 = vunpack.c.l.b16 %v914
    %v959 = vunpack.c.h.b16 %v914
    %v960 = vunpack.c.l.b16 %v915
    %v961 = vunpack.c.h.b16 %v915
    %v962 = vunpack.c.l.b16 %v916
    %v963 = vunpack.c.h.b16 %v916
    %v964 = vunpack.c.l.b16 %v917
    %v965 = vunpack.c.h.b16 %v917
    %v966 = vpack.c.b16 %v936, %v934
    %v967 = vpack.c.b16 %v937, %v935
    %v968 = vpack.c.b16 %v940, %v938
    %v969 = vpack.c.b16 %v941, %v939
    %v970 = vpack.c.b16 %v944, %v942
    %v971 = vpack.c.b16 %v945, %v943
    %v972 = vpack.c.b16 %v948, %v946
    %v973 = vpack.c.b16 %v949, %v947
    %v974 = vpack.c.b16 %v952, %v950
    %v975 = vpack.c.b16 %v953, %v951
    %v976 = vpack.c.b16 %v956, %v954
    %v977 = vpack.c.b16 %v957, %v955
    %v978 = vpack.c.b16 %v960, %v958
    %v979 = vpack.c.b16 %v961, %v959
    %v980 = vpack.c.b16 %v964, %v962
    %v981 = vpack.c.b16 %v965, %v963
    %998 = vmatprep.subr.bf16.mxu0 %v967
    %999 = vmatpush1.bf16.msra.mxu0 %v966
    %1000 = vmatprep.subr.bf16.mxu0 %v969
    %1001 = vmatpush1.bf16.msra.mxu0 %v968
    %1002 = vmatprep.subr.bf16.mxu0 %v971
    %1003 = vmatpush1.bf16.msra.mxu0 %v970
    %1004 = vmatprep.subr.bf16.mxu0 %v973
    %1005 = vmatpush1.bf16.msra.mxu0 %v972
    %1006 = vmatprep.subr.bf16.mxu0 %v975
    %1007 = vmatpush1.bf16.msra.mxu0 %v974
    %1008 = vmatprep.subr.bf16.mxu0 %v977
    %1009 = vmatpush1.bf16.msra.mxu0 %v976
    %1010 = vmatprep.subr.bf16.mxu0 %v979
    %1011 = vmatpush1.bf16.msra.mxu0 %v978
    %1012 = vmatprep.subr.bf16.mxu0 %v981
    %1013 = vmatpush1.bf16.msra.mxu0 %v980
    %1014 = vmatprep.subr.bf16.mxu0 0
    %1015 = vmatpush1.bf16.msra.mxu0 0
    %1016 = vmatprep.subr.bf16.mxu0 0
    %1017 = vmatpush1.bf16.msra.mxu0 0
    %1018 = vmatprep.subr.bf16.mxu0 0
    %1019 = vmatpush1.bf16.msra.mxu0 0
    %1020 = vmatprep.subr.bf16.mxu0 0
    %1021 = vmatpush1.bf16.msra.mxu0 0
    %1022 = vmatprep.subr.bf16.mxu0 0
    %1023 = vmatpush1.bf16.msra.mxu0 0
    %1024 = vmatprep.subr.bf16.mxu0 0
    %1025 = vmatpush1.bf16.msra.mxu0 0
    %1026 = vmatprep.subr.bf16.mxu0 0
    %1027 = vmatpush1.bf16.msra.mxu0 0
    %1028 = vmatprep.subr.bf16.mxu0 0
    %1029 = vmatpush1.bf16.msra.mxu0 0
    %1030 = vmatprep.mubr.bf16.mxu0 0
    %1031 = vmatmul.mubr.bf16.gmra.mrb[0].mxu0 %v884
    %v1032 = vpop.f32.mrb[0].mxu0
    %v1033 = vadd.f32 0.0, %v1032
    %v1034 = vpop.f32.mrb[0].mxu0
    %v1035 = vadd.f32 0.0, %v1034
    %v1036 = vpop.f32.mrb[0].mxu0
    %v1037 = vadd.f32 0.0, %v1036
    %v1038 = vpop.f32.mrb[0].mxu0
    %v1039 = vadd.f32 0.0, %v1038
    %1040 = vdwg.mxu0
    %s1041 = scalar_lea.vmem [#allocation7], 256
    %v1042 = vld [vmem:[%s1041] sm:$0xff]
    %v1043 = vld [vmem:[%s1041 + $0x8] sm:$0xff]
    %v1044 = vld [vmem:[%s1041 + $0x10] sm:$0xff]
    %v1045 = vld [vmem:[%s1041 + $0x18] sm:$0xff]
    %v1046 = vld [vmem:[%s1041 + $0x20] sm:$0xff]
    %v1047 = vld [vmem:[%s1041 + $0x28] sm:$0xff]
    %v1048 = vld [vmem:[%s1041 + $0x30] sm:$0xff]
    %v1049 = vld [vmem:[%s1041 + $0x38] sm:$0xff]
    %v1050 = vld [vmem:[%s1041 + $0x40] sm:$0xff]
    %v1051 = vld [vmem:[%s1041 + $0x48] sm:$0xff]
    %v1052 = vld [vmem:[%s1041 + $0x50] sm:$0xff]
    %v1053 = vld [vmem:[%s1041 + $0x58] sm:$0xff]
    %v1054 = vld [vmem:[%s1041 + $0x60] sm:$0xff]
    %v1055 = vld [vmem:[%s1041 + $0x68] sm:$0xff]
    %v1056 = vld [vmem:[%s1041 + $0x70] sm:$0xff]
    %v1057 = vld [vmem:[%s1041 + $0x78] sm:$0xff]
    %v1074 = vunpack.c.l.b16 %v1042
    %v1075 = vunpack.c.h.b16 %v1042
    %v1076 = vunpack.c.l.b16 %v1043
    %v1077 = vunpack.c.h.b16 %v1043
    %v1078 = vunpack.c.l.b16 %v1044
    %v1079 = vunpack.c.h.b16 %v1044
    %v1080 = vunpack.c.l.b16 %v1045
    %v1081 = vunpack.c.h.b16 %v1045
    %v1082 = vunpack.c.l.b16 %v1046
    %v1083 = vunpack.c.h.b16 %v1046
    %v1084 = vunpack.c.l.b16 %v1047
    %v1085 = vunpack.c.h.b16 %v1047
    %v1086 = vunpack.c.l.b16 %v1048
    %v1087 = vunpack.c.h.b16 %v1048
    %v1088 = vunpack.c.l.b16 %v1049
    %v1089 = vunpack.c.h.b16 %v1049
    %v1090 = vunpack.c.l.b16 %v1050
    %v1091 = vunpack.c.h.b16 %v1050
    %v1092 = vunpack.c.l.b16 %v1051
    %v1093 = vunpack.c.h.b16 %v1051
    %v1094 = vunpack.c.l.b16 %v1052
    %v1095 = vunpack.c.h.b16 %v1052
    %v1096 = vunpack.c.l.b16 %v1053
    %v1097 = vunpack.c.h.b16 %v1053
    %v1098 = vunpack.c.l.b16 %v1054
    %v1099 = vunpack.c.h.b16 %v1054
    %v1100 = vunpack.c.l.b16 %v1055
    %v1101 = vunpack.c.h.b16 %v1055
    %v1102 = vunpack.c.l.b16 %v1056
    %v1103 = vunpack.c.h.b16 %v1056
    %v1104 = vunpack.c.l.b16 %v1057
    %v1105 = vunpack.c.h.b16 %v1057
    %v1106 = vpack.c.b16 %v1076, %v1074
    %v1107 = vpack.c.b16 %v1077, %v1075
    %v1108 = vpack.c.b16 %v1080, %v1078
    %v1109 = vpack.c.b16 %v1081, %v1079
    %v1110 = vpack.c.b16 %v1084, %v1082
    %v1111 = vpack.c.b16 %v1085, %v1083
    %v1112 = vpack.c.b16 %v1088, %v1086
    %v1113 = vpack.c.b16 %v1089, %v1087
    %v1114 = vpack.c.b16 %v1092, %v1090
    %v1115 = vpack.c.b16 %v1093, %v1091
    %v1116 = vpack.c.b16 %v1096, %v1094
    %v1117 = vpack.c.b16 %v1097, %v1095
    %v1118 = vpack.c.b16 %v1100, %v1098
    %v1119 = vpack.c.b16 %v1101, %v1099
    %v1120 = vpack.c.b16 %v1104, %v1102
    %v1121 = vpack.c.b16 %v1105, %v1103
    %1138 = vmatprep.subr.bf16.mxu0 %v1107
    %1139 = vmatpush1.bf16.msra.mxu0 %v1106
    %1140 = vmatprep.subr.bf16.mxu0 %v1109
    %1141 = vmatpush1.bf16.msra.mxu0 %v1108
    %1142 = vmatprep.subr.bf16.mxu0 %v1111
    %1143 = vmatpush1.bf16.msra.mxu0 %v1110
    %1144 = vmatprep.subr.bf16.mxu0 %v1113
    %1145 = vmatpush1.bf16.msra.mxu0 %v1112
    %1146 = vmatprep.subr.bf16.mxu0 %v1115
    %1147 = vmatpush1.bf16.msra.mxu0 %v1114
    %1148 = vmatprep.subr.bf16.mxu0 %v1117
    %1149 = vmatpush1.bf16.msra.mxu0 %v1116
    %1150 = vmatprep.subr.bf16.mxu0 %v1119
    %1151 = vmatpush1.bf16.msra.mxu0 %v1118
    %1152 = vmatprep.subr.bf16.mxu0 %v1121
    %1153 = vmatpush1.bf16.msra.mxu0 %v1120
    %1154 = vmatprep.subr.bf16.mxu0 0
    %1155 = vmatpush1.bf16.msra.mxu0 0
    %1156 = vmatprep.subr.bf16.mxu0 0
    %1157 = vmatpush1.bf16.msra.mxu0 0
    %1158 = vmatprep.subr.bf16.mxu0 0
    %1159 = vmatpush1.bf16.msra.mxu0 0
    %1160 = vmatprep.subr.bf16.mxu0 0
    %1161 = vmatpush1.bf16.msra.mxu0 0
    %1162 = vmatprep.subr.bf16.mxu0 0
    %1163 = vmatpush1.bf16.msra.mxu0 0
    %1164 = vmatprep.subr.bf16.mxu0 0
    %1165 = vmatpush1.bf16.msra.mxu0 0
    %1166 = vmatprep.subr.bf16.mxu0 0
    %1167 = vmatpush1.bf16.msra.mxu0 0
    %1168 = vmatprep.subr.bf16.mxu0 0
    %1169 = vmatpush1.bf16.msra.mxu0 0
    %1170 = vmatprep.mubr.bf16.mxu0 0
    %1171 = vmatmul.mubr.bf16.gmra.mrb[0].mxu0 %v884
    %v1172 = vpop.f32.mrb[0].mxu0
    %v1173 = vadd.f32 0.0, %v1172
    %v1174 = vpop.f32.mrb[0].mxu0
    %v1175 = vadd.f32 0.0, %v1174
    %v1176 = vpop.f32.mrb[0].mxu0
    %v1177 = vadd.f32 0.0, %v1176
    %v1178 = vpop.f32.mrb[0].mxu0
    %v1179 = vadd.f32 0.0, %v1178
    %1180 = vdwg.mxu0
    %v1181 = vld [vmem:[%s5] sm:$0xff]
    %v1182 = vld [vmem:[%s5 + $0x8] sm:$0xff]
    %v1183 = vrot.slane %v1033, 7
    %v1184 = vrot.slane %v1035, 7
    %v1185 = vrot.slane %v1037, 7
    %v1186 = vrot.slane %v1039, 7
    %v1187 = vsel %vm398, %v1183, %v1185
    %v1188 = vsel %vm398, %v1184, %v1186
    %v1189 = vsel %vm398, %v1185, %v1183
    %v1190 = vsel %vm398, %v1186, %v1184
    %1192 = vset.pattern.permute.xlu0 2
    %1193 = vperm.xlu0 %1192, %v1181
    %v1194 = vpop.permute.xlu0 %1193
    %1197 = vset.pattern.permute.xlu0 2
    %1198 = vperm.xlu0 %1197, %v1182
    %v1199 = vpop.permute.xlu0 %1198
    %v1201 = vmul.f32 %v1194, %v1189
    %v1202 = vmul.f32 %v1194, %v1190
    %v1203 = vmul.f32 %v1199, %v1187
    %v1204 = vmul.f32 %v1199, %v1188
    %v1221 = vunpack.c.l.b16 %v886
    %v1222 = vunpack.c.h.b16 %v886
    %v1223 = vunpack.c.l.b16 %v887
    %v1224 = vunpack.c.h.b16 %v887
    %v1225 = vunpack.c.l.b16 %v888
    %v1226 = vunpack.c.h.b16 %v888
    %v1227 = vunpack.c.l.b16 %v889
    %v1228 = vunpack.c.h.b16 %v889
    %v1229 = vunpack.c.l.b16 %v890
    %v1230 = vunpack.c.h.b16 %v890
    %v1231 = vunpack.c.l.b16 %v891
    %v1232 = vunpack.c.h.b16 %v891
    %v1233 = vunpack.c.l.b16 %v892
    %v1234 = vunpack.c.h.b16 %v892
    %v1235 = vunpack.c.l.b16 %v893
    %v1236 = vunpack.c.h.b16 %v893
    %v1237 = vunpack.c.l.b16 %v894
    %v1238 = vunpack.c.h.b16 %v894
    %v1239 = vunpack.c.l.b16 %v895
    %v1240 = vunpack.c.h.b16 %v895
    %v1241 = vunpack.c.l.b16 %v896
    %v1242 = vunpack.c.h.b16 %v896
    %v1243 = vunpack.c.l.b16 %v897
    %v1244 = vunpack.c.h.b16 %v897
    %v1245 = vunpack.c.l.b16 %v898
    %v1246 = vunpack.c.h.b16 %v898
    %v1247 = vunpack.c.l.b16 %v899
    %v1248 = vunpack.c.h.b16 %v899
    %v1249 = vunpack.c.l.b16 %v900
    %v1250 = vunpack.c.h.b16 %v900
    %v1251 = vunpack.c.l.b16 %v901
    %v1252 = vunpack.c.h.b16 %v901
    %v1253 = vpack.c.b16 %v1223, %v1221
    %v1254 = vpack.c.b16 %v1224, %v1222
    %v1255 = vpack.c.b16 %v1227, %v1225
    %v1256 = vpack.c.b16 %v1228, %v1226
    %v1257 = vpack.c.b16 %v1231, %v1229
    %v1258 = vpack.c.b16 %v1232, %v1230
    %v1259 = vpack.c.b16 %v1235, %v1233
    %v1260 = vpack.c.b16 %v1236, %v1234
    %v1261 = vpack.c.b16 %v1239, %v1237
    %v1262 = vpack.c.b16 %v1240, %v1238
    %v1263 = vpack.c.b16 %v1243, %v1241
    %v1264 = vpack.c.b16 %v1244, %v1242
    %v1265 = vpack.c.b16 %v1247, %v1245
    %v1266 = vpack.c.b16 %v1248, %v1246
    %v1267 = vpack.c.b16 %v1251, %v1249
    %v1268 = vpack.c.b16 %v1252, %v1250
    %1285 = vmatprep.subr.bf16.mxu0 %v1254
    %1286 = vmatpush1.bf16.msra.mxu0 %v1253
    %1287 = vmatprep.subr.bf16.mxu0 %v1256
    %1288 = vmatpush1.bf16.msra.mxu0 %v1255
    %1289 = vmatprep.subr.bf16.mxu0 %v1258
    %1290 = vmatpush1.bf16.msra.mxu0 %v1257
    %1291 = vmatprep.subr.bf16.mxu0 %v1260
    %1292 = vmatpush1.bf16.msra.mxu0 %v1259
    %1293 = vmatprep.subr.bf16.mxu0 %v1262
    %1294 = vmatpush1.bf16.msra.mxu0 %v1261
    %1295 = vmatprep.subr.bf16.mxu0 %v1264
    %1296 = vmatpush1.bf16.msra.mxu0 %v1263
    %1297 = vmatprep.subr.bf16.mxu0 %v1266
    %1298 = vmatpush1.bf16.msra.mxu0 %v1265
    %1299 = vmatprep.subr.bf16.mxu0 %v1268
    %1300 = vmatpush1.bf16.msra.mxu0 %v1267
    %1301 = vmatprep.subr.bf16.mxu0 0
    %1302 = vmatpush1.bf16.msra.mxu0 0
    %1303 = vmatprep.subr.bf16.mxu0 0
    %1304 = vmatpush1.bf16.msra.mxu0 0
    %1305 = vmatprep.subr.bf16.mxu0 0
    %1306 = vmatpush1.bf16.msra.mxu0 0
    %1307 = vmatprep.subr.bf16.mxu0 0
    %1308 = vmatpush1.bf16.msra.mxu0 0
    %1309 = vmatprep.subr.bf16.mxu0 0
    %1310 = vmatpush1.bf16.msra.mxu0 0
    %1311 = vmatprep.subr.bf16.mxu0 0
    %1312 = vmatpush1.bf16.msra.mxu0 0
    %1313 = vmatprep.subr.bf16.mxu0 0
    %1314 = vmatpush1.bf16.msra.mxu0 0
    %1315 = vmatprep.subr.bf16.mxu0 0
    %1316 = vmatpush1.bf16.msra.mxu0 0
    %1317 = vmatprep.mubr.bf16.mxu0 0
    %1318 = vmatmul.mubr.bf16.gmra.mrb[0].mxu0 %v884
    %v1319 = vpop.f32.mrb[0].mxu0
    %v1320 = vadd.f32 %v1201, %v1319
    %v1321 = vpop.f32.mrb[0].mxu0
    %v1322 = vadd.f32 %v1202, %v1321
    %v1323 = vpop.f32.mrb[0].mxu0
    %v1324 = vadd.f32 %v1203, %v1323
    %v1325 = vpop.f32.mrb[0].mxu0
    %v1326 = vadd.f32 %v1204, %v1325
    %1327 = vdwg.mxu0
    %v1328 = vrot.slane %v1173, 1
    %v1329 = vrot.slane %v1175, 1
    %v1330 = vrot.slane %v1177, 1
    %v1331 = vrot.slane %v1179, 1
    %v1332 = vsel %vm526, %v1328, %v1330
    %v1333 = vsel %vm526, %v1329, %v1331
    %v1334 = vsel %vm526, %v1330, %v1328
    %v1335 = vsel %vm526, %v1331, %v1329
    %1336 = vset.pattern.permute.xlu0 3
    %1337 = vperm.xlu0 %1336, %v1181
    %v1338 = vpop.permute.xlu0 %1337
    %1340 = vset.pattern.permute.xlu0 3
    %1341 = vperm.xlu0 %1340, %v1182
    %v1342 = vpop.permute.xlu0 %1341
    %v1344 = vmul.f32 %v1338, %v1332
    %v1345 = vmul.f32 %v1338, %v1333
    %v1346 = vmul.f32 %v1342, %v1334
    %v1347 = vmul.f32 %v1342, %v1335
    %v1348 = vadd.f32 %v1320, %v1344
    %v1349 = vadd.f32 %v1322, %v1345
    %v1350 = vadd.f32 %v1324, %v1346
    %v1351 = vadd.f32 %v1326, %v1347
    %s1352 = scalar_lea.vmem [#allocation9], 1
    %v1353 = vld [vmem:[%s1352] ss:$8 sm:$0x3]
    %v1355 = vlaneseq
    %v1356 = vshrl.u32 %v1355, 7
    %v1357 = vsub.s32 0, %v1356
    %v1358 = vrot.slane %v1353, %v1357
    %v1359 = vlaneseq
    %v1360 = vshrl.u32 %v1359, 7
    %v1361 = vsub.s32 1, %v1360
    %v1362 = vrot.slane %v1353, %v1361
    %v1365 = vadd.f32 %v1348, %v1358
    %v1366 = vadd.f32 %v1349, %v1362
    %v1367 = vadd.f32 %v1350, %v1358
    %v1368 = vadd.f32 %v1351, %v1362
    %v1369 = vmax.f32 %v1365, 0.0
    %v1370 = vmax.f32 %v1366, 0.0
    %v1371 = vmax.f32 %v1367, 0.0
    %v1372 = vmax.f32 %v1368, 0.0
    %1373 = vrot.lane.b32.xlu0 %v1369, 96
    %v1374 = vpop.permute.xlu0 %1373
    %1375 = vrot.lane.b32.xlu0 %v1371, 96
    %v1376 = vpop.permute.xlu0 %1375
    %1377 = vrot.lane.b32.xlu0 %v1370, 96
    %v1378 = vpop.permute.xlu0 %1377
    %1379 = vrot.lane.b32.xlu0 %v1372, 96
    %v1380 = vpop.permute.xlu0 %1379
    %vm1381 = vcmp.lt.s32.totalorder %v612, 96
    %v1382 = vsel %vm1381, %v1374, %v1378
    %v1383 = vsel %vm1381, %v1376, %v1380
    %v1384 = vsel %vm1381, %v1378, %v1374
    %v1385 = vsel %vm1381, %v1380, %v1376
    %v1386 = vmax.f32 %v1369, %v1382
    %v1387 = vmax.f32 %v1370, %v1384
    %v1388 = vmax.f32 %v1371, %v1383
    %v1389 = vmax.f32 %v1372, %v1385
    %v1390 = vrot.slane %v1386, 1
    %v1391 = vrot.slane %v1387, 1
    %v1392 = vrot.slane %v1388, 1
    %v1393 = vrot.slane %v1389, 1
    %v1394 = vsel %vm526, %v1390, %v1392
    %v1395 = vsel %vm526, %v1391, %v1393
    %v1396 = vsel %vm526, %v1392, %v1390
    %v1397 = vsel %vm526, %v1393, %v1391
    %v1398 = vmax.f32 %v1386, %v1394
    %v1399 = vmax.f32 %v1387, %v1395
    %v1400 = vmax.f32 %v1388, %v1396
    %v1401 = vmax.f32 %v1389, %v1397
    %s1402 = scalar_lea.vmem [#allocation10], 48
    %v1403 = vld [vmem:[%s1402] sm:$0xf]
    %v1404 = vpack.c.bf16 %v1400, %v1398
    %v1405 = vpack.c.bf16 %v1401, %v1399
    %vm1406 = vcmask 130048
    %v1408 = vsel %vm1406, %v1403, 0
    %1410 = vmatprep.subr.bf16.mxu0 %v1405
    %1411 = vmatpush1.bf16.msra.mxu0 %v1404
    %1412 = vmatprep.subr.bf16.mxu0 0
    %1413 = vmatpush1.bf16.msra.mxu0 0
    %1414 = vmatprep.subr.bf16.mxu0 0
    %1415 = vmatpush1.bf16.msra.mxu0 0
    %1416 = vmatprep.subr.bf16.mxu0 0
    %1417 = vmatpush1.bf16.msra.mxu0 0
    %1418 = vmatprep.subr.bf16.mxu0 0
    %1419 = vmatpush1.bf16.msra.mxu0 0
    %1420 = vmatprep.subr.bf16.mxu0 0
    %1421 = vmatpush1.bf16.msra.mxu0 0
    %1422 = vmatprep.subr.bf16.mxu0 0
    %1423 = vmatpush1.bf16.msra.mxu0 0
    %1424 = vmatprep.subr.bf16.mxu0 0
    %1425 = vmatpush1.bf16.msra.mxu0 0
    %1426 = vmatprep.subr.bf16.mxu0 0
    %1427 = vmatpush1.bf16.msra.mxu0 0
    %1428 = vmatprep.subr.bf16.mxu0 0
    %1429 = vmatpush1.bf16.msra.mxu0 0
    %1430 = vmatprep.subr.bf16.mxu0 0
    %1431 = vmatpush1.bf16.msra.mxu0 0
    %1432 = vmatprep.subr.bf16.mxu0 0
    %1433 = vmatpush1.bf16.msra.mxu0 0
    %1434 = vmatprep.subr.bf16.mxu0 0
    %1435 = vmatpush1.bf16.msra.mxu0 0
    %1436 = vmatprep.subr.bf16.mxu0 0
    %1437 = vmatpush1.bf16.msra.mxu0 0
    %1438 = vmatprep.subr.bf16.mxu0 0
    %1439 = vmatpush1.bf16.msra.mxu0 0
    %1440 = vmatprep.subr.bf16.mxu0 0
    %1441 = vmatpush1.bf16.msra.mxu0 0
    %1442 = vmatprep.mubr.bf16.mxu0 0
    %1443 = vmatmul.mubr.bf16.gmra.mrb[0].mxu0 %v1408
    %v1444 = vpop.f32.mrb[0].mxu0
    %v1445 = vadd.f32 0.0, %v1444
    %v1446 = vpop.f32.mrb[0].mxu0
    %v1447 = vadd.f32 0.0, %v1446
    %v1448 = vpop.f32.mrb[0].mxu0
    %v1449 = vpop.f32.mrb[0].mxu0
    %1450 = vdwg.mxu0
    %s1451 = scalar_lea.vmem [#allocation12], 128
    %v1452 = vld [vmem:[%s1451] sm:$0xf]
    %v1453 = vld [vmem:[%s1451 + $0x4] sm:$0xf]
    %v1454 = vld [vmem:[%s1451 + $0x8] sm:$0xf]
    %v1455 = vld [vmem:[%s1451 + $0xc] sm:$0xf]
    %v1456 = vld [vmem:[%s1451 + $0x10] sm:$0xf]
    %v1457 = vld [vmem:[%s1451 + $0x14] sm:$0xf]
    %v1458 = vld [vmem:[%s1451 + $0x18] sm:$0xf]
    %v1459 = vld [vmem:[%s1451 + $0x1c] sm:$0xf]
    %v1460 = vld [vmem:[%s1451 + $0x20] sm:$0xf]
    %v1461 = vld [vmem:[%s1451 + $0x24] sm:$0xf]
    %v1462 = vld [vmem:[%s1451 + $0x28] sm:$0xf]
    %v1463 = vld [vmem:[%s1451 + $0x2c] sm:$0xf]
    %v1464 = vld [vmem:[%s1451 + $0x30] sm:$0xf]
    %v1465 = vld [vmem:[%s1451 + $0x34] sm:$0xf]
    %v1466 = vld [vmem:[%s1451 + $0x38] sm:$0xf]
    %v1467 = vld [vmem:[%s1451 + $0x3c] sm:$0xf]
    %v1468 = vld [vmem:[%s1451 + $0x40] sm:$0xf]
    %v1469 = vld [vmem:[%s1451 + $0x44] sm:$0xf]
    %v1470 = vld [vmem:[%s1451 + $0x48] sm:$0xf]
    %v1471 = vld [vmem:[%s1451 + $0x4c] sm:$0xf]
    %v1472 = vld [vmem:[%s1451 + $0x50] sm:$0xf]
    %v1473 = vld [vmem:[%s1451 + $0x54] sm:$0xf]
    %v1474 = vld [vmem:[%s1451 + $0x58] sm:$0xf]
    %v1475 = vld [vmem:[%s1451 + $0x5c] sm:$0xf]
    %v1476 = vld [vmem:[%s1451 + $0x60] sm:$0xf]
    %v1477 = vld [vmem:[%s1451 + $0x64] sm:$0xf]
    %v1478 = vld [vmem:[%s1451 + $0x68] sm:$0xf]
    %v1479 = vld [vmem:[%s1451 + $0x6c] sm:$0xf]
    %v1480 = vld [vmem:[%s1451 + $0x70] sm:$0xf]
    %v1481 = vld [vmem:[%s1451 + $0x74] sm:$0xf]
    %v1482 = vld [vmem:[%s1451 + $0x78] sm:$0xf]
    %v1483 = vld [vmem:[%s1451 + $0x7c] sm:$0xf]
    %v1484 = vpack.c.bf16 %v1445, %v1445
    %v1485 = vpack.c.bf16 %v1447, %v1447
    %v1518 = vunpack.c.l.b16 %v1452
    %v1519 = vunpack.c.l.b16 %v1453
    %v1520 = vunpack.c.l.b16 %v1454
    %v1521 = vunpack.c.l.b16 %v1455
    %v1522 = vunpack.c.l.b16 %v1456
    %v1523 = vunpack.c.l.b16 %v1457
    %v1524 = vunpack.c.l.b16 %v1458
    %v1525 = vunpack.c.l.b16 %v1459
    %v1526 = vunpack.c.l.b16 %v1460
    %v1527 = vunpack.c.l.b16 %v1461
    %v1528 = vunpack.c.l.b16 %v1462
    %v1529 = vunpack.c.l.b16 %v1463
    %v1530 = vunpack.c.l.b16 %v1464
    %v1531 = vunpack.c.l.b16 %v1465
    %v1532 = vunpack.c.l.b16 %v1466
    %v1533 = vunpack.c.l.b16 %v1467
    %v1534 = vunpack.c.l.b16 %v1468
    %v1535 = vunpack.c.l.b16 %v1469
    %v1536 = vunpack.c.l.b16 %v1470
    %v1537 = vunpack.c.l.b16 %v1471
    %v1538 = vunpack.c.l.b16 %v1472
    %v1539 = vunpack.c.l.b16 %v1473
    %v1540 = vunpack.c.l.b16 %v1474
    %v1541 = vunpack.c.l.b16 %v1475
    %v1542 = vunpack.c.l.b16 %v1476
    %v1543 = vunpack.c.l.b16 %v1477
    %v1544 = vunpack.c.l.b16 %v1478
    %v1545 = vunpack.c.l.b16 %v1479
    %v1546 = vunpack.c.l.b16 %v1480
    %v1547 = vunpack.c.l.b16 %v1481
    %v1548 = vunpack.c.l.b16 %v1482
    %v1549 = vunpack.c.l.b16 %v1483
    %v1550 = vpack.c.b16 %v1519, %v1518
    %v1551 = vpack.c.b16 %v1521, %v1520
    %v1552 = vpack.c.b16 %v1523, %v1522
    %v1553 = vpack.c.b16 %v1525, %v1524
    %v1554 = vpack.c.b16 %v1527, %v1526
    %v1555 = vpack.c.b16 %v1529, %v1528
    %v1556 = vpack.c.b16 %v1531, %v1530
    %v1557 = vpack.c.b16 %v1533, %v1532
    %v1558 = vpack.c.b16 %v1535, %v1534
    %v1559 = vpack.c.b16 %v1537, %v1536
    %v1560 = vpack.c.b16 %v1539, %v1538
    %v1561 = vpack.c.b16 %v1541, %v1540
    %v1562 = vpack.c.b16 %v1543, %v1542
    %v1563 = vpack.c.b16 %v1545, %v1544
    %v1564 = vpack.c.b16 %v1547, %v1546
    %v1565 = vpack.c.b16 %v1549, %v1548
    %1582 = vmatprep.subr.bf16.mxu0 0
    %1583 = vmatpush1.bf16.msra.mxu0 %v1550
    %1584 = vmatprep.subr.bf16.mxu0 0
    %1585 = vmatpush1.bf16.msra.mxu0 %v1551
    %1586 = vmatprep.subr.bf16.mxu0 0
    %1587 = vmatpush1.bf16.msra.mxu0 %v1552
    %1588 = vmatprep.subr.bf16.mxu0 0
    %1589 = vmatpush1.bf16.msra.mxu0 %v1553
    %1590 = vmatprep.subr.bf16.mxu0 0
    %1591 = vmatpush1.bf16.msra.mxu0 %v1554
    %1592 = vmatprep.subr.bf16.mxu0 0
    %1593 = vmatpush1.bf16.msra.mxu0 %v1555
    %1594 = vmatprep.subr.bf16.mxu0 0
    %1595 = vmatpush1.bf16.msra.mxu0 %v1556
    %1596 = vmatprep.subr.bf16.mxu0 0
    %1597 = vmatpush1.bf16.msra.mxu0 %v1557
    %1598 = vmatprep.subr.bf16.mxu0 0
    %1599 = vmatpush1.bf16.msra.mxu0 %v1558
    %1600 = vmatprep.subr.bf16.mxu0 0
    %1601 = vmatpush1.bf16.msra.mxu0 %v1559
    %1602 = vmatprep.subr.bf16.mxu0 0
    %1603 = vmatpush1.bf16.msra.mxu0 %v1560
    %1604 = vmatprep.subr.bf16.mxu0 0
    %1605 = vmatpush1.bf16.msra.mxu0 %v1561
    %1606 = vmatprep.subr.bf16.mxu0 0
    %1607 = vmatpush1.bf16.msra.mxu0 %v1562
    %1608 = vmatprep.subr.bf16.mxu0 0
    %1609 = vmatpush1.bf16.msra.mxu0 %v1563
    %1610 = vmatprep.subr.bf16.mxu0 0
    %1611 = vmatpush1.bf16.msra.mxu0 %v1564
    %1612 = vmatprep.subr.bf16.mxu0 0
    %1613 = vmatpush1.bf16.msra.mxu0 %v1565
    %1614 = vmatprep.mubr.bf16.mxu0 %v1485
    %1615 = vmatmul.mubr.bf16.gmra.mrb[0].mxu0 %v1484
    %v1616 = vpop.f32.mrb[0].mxu0
    %v1617 = vadd.f32 0.0, %v1616
    %v1618 = vpop.f32.mrb[0].mxu0
    %v1619 = vpop.f32.mrb[0].mxu0
    %v1620 = vpop.f32.mrb[0].mxu0
    %1621 = vdwg.mxu0
    %v1622 = vpack.c.bf16 %v1617, %v1617
    %s1623 = scalar_lea.vmem [#allocation7], 512
    %v1624 = vld [vmem:[%s1623] sm:$0xff]
    %v1625 = vld [vmem:[%s1623 + $0x8] sm:$0xff]
    %v1626 = vld [vmem:[%s1623 + $0x10] sm:$0xff]
    %v1627 = vld [vmem:[%s1623 + $0x18] sm:$0xff]
    %v1628 = vld [vmem:[%s1623 + $0x20] sm:$0xff]
    %v1629 = vld [vmem:[%s1623 + $0x28] sm:$0xff]
    %v1630 = vld [vmem:[%s1623 + $0x30] sm:$0xff]
    %v1631 = vld [vmem:[%s1623 + $0x38] sm:$0xff]
    %v1632 = vld [vmem:[%s1623 + $0x40] sm:$0xff]
    %v1633 = vld [vmem:[%s1623 + $0x48] sm:$0xff]
    %v1634 = vld [vmem:[%s1623 + $0x50] sm:$0xff]
    %v1635 = vld [vmem:[%s1623 + $0x58] sm:$0xff]
    %v1636 = vld [vmem:[%s1623 + $0x60] sm:$0xff]
    %v1637 = vld [vmem:[%s1623 + $0x68] sm:$0xff]
    %v1638 = vld [vmem:[%s1623 + $0x70] sm:$0xff]
    %v1639 = vld [vmem:[%s1623 + $0x78] sm:$0xff]
    %s1640 = scalar_lea.vmem [#allocation7], 384
    %v1641 = vld [vmem:[%s1640] sm:$0xff]
    %v1642 = vld [vmem:[%s1640 + $0x8] sm:$0xff]
    %v1643 = vld [vmem:[%s1640 + $0x10] sm:$0xff]
    %v1644 = vld [vmem:[%s1640 + $0x18] sm:$0xff]
    %v1645 = vld [vmem:[%s1640 + $0x20] sm:$0xff]
    %v1646 = vld [vmem:[%s1640 + $0x28] sm:$0xff]
    %v1647 = vld [vmem:[%s1640 + $0x30] sm:$0xff]
    %v1648 = vld [vmem:[%s1640 + $0x38] sm:$0xff]
    %v1649 = vld [vmem:[%s1640 + $0x40] sm:$0xff]
    %v1650 = vld [vmem:[%s1640 + $0x48] sm:$0xff]
    %v1651 = vld [vmem:[%s1640 + $0x50] sm:$0xff]
    %v1652 = vld [vmem:[%s1640 + $0x58] sm:$0xff]
    %v1653 = vld [vmem:[%s1640 + $0x60] sm:$0xff]
    %v1654 = vld [vmem:[%s1640 + $0x68] sm:$0xff]
    %v1655 = vld [vmem:[%s1640 + $0x70] sm:$0xff]
    %v1656 = vld [vmem:[%s1640 + $0x78] sm:$0xff]
    %v1673 = vunpack.c.l.b16 %v1641
    %v1674 = vunpack.c.h.b16 %v1641
    %v1675 = vunpack.c.l.b16 %v1642
    %v1676 = vunpack.c.h.b16 %v1642
    %v1677 = vunpack.c.l.b16 %v1643
    %v1678 = vunpack.c.h.b16 %v1643
    %v1679 = vunpack.c.l.b16 %v1644
    %v1680 = vunpack.c.h.b16 %v1644
    %v1681 = vunpack.c.l.b16 %v1645
    %v1682 = vunpack.c.h.b16 %v1645
    %v1683 = vunpack.c.l.b16 %v1646
    %v1684 = vunpack.c.h.b16 %v1646
    %v1685 = vunpack.c.l.b16 %v1647
    %v1686 = vunpack.c.h.b16 %v1647
    %v1687 = vunpack.c.l.b16 %v1648
    %v1688 = vunpack.c.h.b16 %v1648
    %v1689 = vunpack.c.l.b16 %v1649
    %v1690 = vunpack.c.h.b16 %v1649
    %v1691 = vunpack.c.l.b16 %v1650
    %v1692 = vunpack.c.h.b16 %v1650
    %v1693 = vunpack.c.l.b16 %v1651
    %v1694 = vunpack.c.h.b16 %v1651
    %v1695 = vunpack.c.l.b16 %v1652
    %v1696 = vunpack.c.h.b16 %v1652
    %v1697 = vunpack.c.l.b16 %v1653
    %v1698 = vunpack.c.h.b16 %v1653
    %v1699 = vunpack.c.l.b16 %v1654
    %v1700 = vunpack.c.h.b16 %v1654
    %v1701 = vunpack.c.l.b16 %v1655
    %v1702 = vunpack.c.h.b16 %v1655
    %v1703 = vunpack.c.l.b16 %v1656
    %v1704 = vunpack.c.h.b16 %v1656
    %v1705 = vpack.c.b16 %v1675, %v1673
    %v1706 = vpack.c.b16 %v1676, %v1674
    %v1707 = vpack.c.b16 %v1679, %v1677
    %v1708 = vpack.c.b16 %v1680, %v1678
    %v1709 = vpack.c.b16 %v1683, %v1681
    %v1710 = vpack.c.b16 %v1684, %v1682
    %v1711 = vpack.c.b16 %v1687, %v1685
    %v1712 = vpack.c.b16 %v1688, %v1686
    %v1713 = vpack.c.b16 %v1691, %v1689
    %v1714 = vpack.c.b16 %v1692, %v1690
    %v1715 = vpack.c.b16 %v1695, %v1693
    %v1716 = vpack.c.b16 %v1696, %v1694
    %v1717 = vpack.c.b16 %v1699, %v1697
    %v1718 = vpack.c.b16 %v1700, %v1698
    %v1719 = vpack.c.b16 %v1703, %v1701
    %v1720 = vpack.c.b16 %v1704, %v1702
    %1737 = vmatprep.subr.bf16.mxu0 %v1706
    %1738 = vmatpush1.bf16.msra.mxu0 %v1705
    %1739 = vmatprep.subr.bf16.mxu0 %v1708
    %1740 = vmatpush1.bf16.msra.mxu0 %v1707
    %1741 = vmatprep.subr.bf16.mxu0 %v1710
    %1742 = vmatpush1.bf16.msra.mxu0 %v1709
    %1743 = vmatprep.subr.bf16.mxu0 %v1712
    %1744 = vmatpush1.bf16.msra.mxu0 %v1711
    %1745 = vmatprep.subr.bf16.mxu0 %v1714
    %1746 = vmatpush1.bf16.msra.mxu0 %v1713
    %1747 = vmatprep.subr.bf16.mxu0 %v1716
    %1748 = vmatpush1.bf16.msra.mxu0 %v1715
    %1749 = vmatprep.subr.bf16.mxu0 %v1718
    %1750 = vmatpush1.bf16.msra.mxu0 %v1717
    %1751 = vmatprep.subr.bf16.mxu0 %v1720
    %1752 = vmatpush1.bf16.msra.mxu0 %v1719
    %1753 = vmatprep.subr.bf16.mxu0 0
    %1754 = vmatpush1.bf16.msra.mxu0 0
    %1755 = vmatprep.subr.bf16.mxu0 0
    %1756 = vmatpush1.bf16.msra.mxu0 0
    %1757 = vmatprep.subr.bf16.mxu0 0
    %1758 = vmatpush1.bf16.msra.mxu0 0
    %1759 = vmatprep.subr.bf16.mxu0 0
    %1760 = vmatpush1.bf16.msra.mxu0 0
    %1761 = vmatprep.subr.bf16.mxu0 0
    %1762 = vmatpush1.bf16.msra.mxu0 0
    %1763 = vmatprep.subr.bf16.mxu0 0
    %1764 = vmatpush1.bf16.msra.mxu0 0
    %1765 = vmatprep.subr.bf16.mxu0 0
    %1766 = vmatpush1.bf16.msra.mxu0 0
    %1767 = vmatprep.subr.bf16.mxu0 0
    %1768 = vmatpush1.bf16.msra.mxu0 0
    %1769 = vmatprep.mubr.bf16.mxu0 0
    %1770 = vmatmul.mubr.bf16.gmra.mrb[0].mxu0 %v1622
    %v1771 = vpop.f32.mrb[0].mxu0
    %v1772 = vadd.f32 0.0, %v1771
    %v1773 = vpop.f32.mrb[0].mxu0
    %v1774 = vadd.f32 0.0, %v1773
    %v1775 = vpop.f32.mrb[0].mxu0
    %v1776 = vpop.f32.mrb[0].mxu0
    %1777 = vdwg.mxu0
    %s1778 = scalar_lea.vmem [#allocation7], 640
    %v1779 = vld [vmem:[%s1778] sm:$0xff]
    %v1780 = vld [vmem:[%s1778 + $0x8] sm:$0xff]
    %v1781 = vld [vmem:[%s1778 + $0x10] sm:$0xff]
    %v1782 = vld [vmem:[%s1778 + $0x18] sm:$0xff]
    %v1783 = vld [vmem:[%s1778 + $0x20] sm:$0xff]
    %v1784 = vld [vmem:[%s1778 + $0x28] sm:$0xff]
    %v1785 = vld [vmem:[%s1778 + $0x30] sm:$0xff]
    %v1786 = vld [vmem:[%s1778 + $0x38] sm:$0xff]
    %v1787 = vld [vmem:[%s1778 + $0x40] sm:$0xff]
    %v1788 = vld [vmem:[%s1778 + $0x48] sm:$0xff]
    %v1789 = vld [vmem:[%s1778 + $0x50] sm:$0xff]
    %v1790 = vld [vmem:[%s1778 + $0x58] sm:$0xff]
    %v1791 = vld [vmem:[%s1778 + $0x60] sm:$0xff]
    %v1792 = vld [vmem:[%s1778 + $0x68] sm:$0xff]
    %v1793 = vld [vmem:[%s1778 + $0x70] sm:$0xff]
    %v1794 = vld [vmem:[%s1778 + $0x78] sm:$0xff]
    %v1811 = vunpack.c.l.b16 %v1779
    %v1812 = vunpack.c.h.b16 %v1779
    %v1813 = vunpack.c.l.b16 %v1780
    %v1814 = vunpack.c.h.b16 %v1780
    %v1815 = vunpack.c.l.b16 %v1781
    %v1816 = vunpack.c.h.b16 %v1781
    %v1817 = vunpack.c.l.b16 %v1782
    %v1818 = vunpack.c.h.b16 %v1782
    %v1819 = vunpack.c.l.b16 %v1783
    %v1820 = vunpack.c.h.b16 %v1783
    %v1821 = vunpack.c.l.b16 %v1784
    %v1822 = vunpack.c.h.b16 %v1784
    %v1823 = vunpack.c.l.b16 %v1785
    %v1824 = vunpack.c.h.b16 %v1785
    %v1825 = vunpack.c.l.b16 %v1786
    %v1826 = vunpack.c.h.b16 %v1786
    %v1827 = vunpack.c.l.b16 %v1787
    %v1828 = vunpack.c.h.b16 %v1787
    %v1829 = vunpack.c.l.b16 %v1788
    %v1830 = vunpack.c.h.b16 %v1788
    %v1831 = vunpack.c.l.b16 %v1789
    %v1832 = vunpack.c.h.b16 %v1789
    %v1833 = vunpack.c.l.b16 %v1790
    %v1834 = vunpack.c.h.b16 %v1790
    %v1835 = vunpack.c.l.b16 %v1791
    %v1836 = vunpack.c.h.b16 %v1791
    %v1837 = vunpack.c.l.b16 %v1792
    %v1838 = vunpack.c.h.b16 %v1792
    %v1839 = vunpack.c.l.b16 %v1793
    %v1840 = vunpack.c.h.b16 %v1793
    %v1841 = vunpack.c.l.b16 %v1794
    %v1842 = vunpack.c.h.b16 %v1794
    %v1843 = vpack.c.b16 %v1813, %v1811
    %v1844 = vpack.c.b16 %v1814, %v1812
    %v1845 = vpack.c.b16 %v1817, %v1815
    %v1846 = vpack.c.b16 %v1818, %v1816
    %v1847 = vpack.c.b16 %v1821, %v1819
    %v1848 = vpack.c.b16 %v1822, %v1820
    %v1849 = vpack.c.b16 %v1825, %v1823
    %v1850 = vpack.c.b16 %v1826, %v1824
    %v1851 = vpack.c.b16 %v1829, %v1827
    %v1852 = vpack.c.b16 %v1830, %v1828
    %v1853 = vpack.c.b16 %v1833, %v1831
    %v1854 = vpack.c.b16 %v1834, %v1832
    %v1855 = vpack.c.b16 %v1837, %v1835
    %v1856 = vpack.c.b16 %v1838, %v1836
    %v1857 = vpack.c.b16 %v1841, %v1839
    %v1858 = vpack.c.b16 %v1842, %v1840
    %1875 = vmatprep.subr.bf16.mxu0 %v1844
    %1876 = vmatpush1.bf16.msra.mxu0 %v1843
    %1877 = vmatprep.subr.bf16.mxu0 %v1846
    %1878 = vmatpush1.bf16.msra.mxu0 %v1845
    %1879 = vmatprep.subr.bf16.mxu0 %v1848
    %1880 = vmatpush1.bf16.msra.mxu0 %v1847
    %1881 = vmatprep.subr.bf16.mxu0 %v1850
    %1882 = vmatpush1.bf16.msra.mxu0 %v1849
    %1883 = vmatprep.subr.bf16.mxu0 %v1852
    %1884 = vmatpush1.bf16.msra.mxu0 %v1851
    %1885 = vmatprep.subr.bf16.mxu0 %v1854
    %1886 = vmatpush1.bf16.msra.mxu0 %v1853
    %1887 = vmatprep.subr.bf16.mxu0 %v1856
    %1888 = vmatpush1.bf16.msra.mxu0 %v1855
    %1889 = vmatprep.subr.bf16.mxu0 %v1858
    %1890 = vmatpush1.bf16.msra.mxu0 %v1857
    %1891 = vmatprep.subr.bf16.mxu0 0
    %1892 = vmatpush1.bf16.msra.mxu0 0
    %1893 = vmatprep.subr.bf16.mxu0 0
    %1894 = vmatpush1.bf16.msra.mxu0 0
    %1895 = vmatprep.subr.bf16.mxu0 0
    %1896 = vmatpush1.bf16.msra.mxu0 0
    %1897 = vmatprep.subr.bf16.mxu0 0
    %1898 = vmatpush1.bf16.msra.mxu0 0
    %1899 = vmatprep.subr.bf16.mxu0 0
    %1900 = vmatpush1.bf16.msra.mxu0 0
    %1901 = vmatprep.subr.bf16.mxu0 0
    %1902 = vmatpush1.bf16.msra.mxu0 0
    %1903 = vmatprep.subr.bf16.mxu0 0
    %1904 = vmatpush1.bf16.msra.mxu0 0
    %1905 = vmatprep.subr.bf16.mxu0 0
    %1906 = vmatpush1.bf16.msra.mxu0 0
    %1907 = vmatprep.mubr.bf16.mxu0 0
    %1908 = vmatmul.mubr.bf16.gmra.mrb[0].mxu0 %v1622
    %v1909 = vpop.f32.mrb[0].mxu0
    %v1910 = vadd.f32 0.0, %v1909
    %v1911 = vpop.f32.mrb[0].mxu0
    %v1912 = vadd.f32 0.0, %v1911
    %v1913 = vpop.f32.mrb[0].mxu0
    %v1914 = vpop.f32.mrb[0].mxu0
    %1915 = vdwg.mxu0
    %v1916 = vld [vmem:[%s5] sm:$0xff]
    %v1917 = vrot.slane %v1772, 7
    %v1918 = vrot.slane %v1774, 7
    %1920 = vset.pattern.permute.xlu0 4
    %1921 = vperm.xlu0 %1920, %v1916
    %v1922 = vpop.permute.xlu0 %1921
    %v1924 = vmul.f32 %v1922, %v1917
    %v1925 = vmul.f32 %v1922, %v1918
    %v1942 = vunpack.c.l.b16 %v1624
    %v1943 = vunpack.c.h.b16 %v1624
    %v1944 = vunpack.c.l.b16 %v1625
    %v1945 = vunpack.c.h.b16 %v1625
    %v1946 = vunpack.c.l.b16 %v1626
    %v1947 = vunpack.c.h.b16 %v1626
    %v1948 = vunpack.c.l.b16 %v1627
    %v1949 = vunpack.c.h.b16 %v1627
    %v1950 = vunpack.c.l.b16 %v1628
    %v1951 = vunpack.c.h.b16 %v1628
    %v1952 = vunpack.c.l.b16 %v1629
    %v1953 = vunpack.c.h.b16 %v1629
    %v1954 = vunpack.c.l.b16 %v1630
    %v1955 = vunpack.c.h.b16 %v1630
    %v1956 = vunpack.c.l.b16 %v1631
    %v1957 = vunpack.c.h.b16 %v1631
    %v1958 = vunpack.c.l.b16 %v1632
    %v1959 = vunpack.c.h.b16 %v1632
    %v1960 = vunpack.c.l.b16 %v1633
    %v1961 = vunpack.c.h.b16 %v1633
    %v1962 = vunpack.c.l.b16 %v1634
    %v1963 = vunpack.c.h.b16 %v1634
    %v1964 = vunpack.c.l.b16 %v1635
    %v1965 = vunpack.c.h.b16 %v1635
    %v1966 = vunpack.c.l.b16 %v1636
    %v1967 = vunpack.c.h.b16 %v1636
    %v1968 = vunpack.c.l.b16 %v1637
    %v1969 = vunpack.c.h.b16 %v1637
    %v1970 = vunpack.c.l.b16 %v1638
    %v1971 = vunpack.c.h.b16 %v1638
    %v1972 = vunpack.c.l.b16 %v1639
    %v1973 = vunpack.c.h.b16 %v1639
    %v1974 = vpack.c.b16 %v1944, %v1942
    %v1975 = vpack.c.b16 %v1945, %v1943
    %v1976 = vpack.c.b16 %v1948, %v1946
    %v1977 = vpack.c.b16 %v1949, %v1947
    %v1978 = vpack.c.b16 %v1952, %v1950
    %v1979 = vpack.c.b16 %v1953, %v1951
    %v1980 = vpack.c.b16 %v1956, %v1954
    %v1981 = vpack.c.b16 %v1957, %v1955
    %v1982 = vpack.c.b16 %v1960, %v1958
    %v1983 = vpack.c.b16 %v1961, %v1959
    %v1984 = vpack.c.b16 %v1964, %v1962
    %v1985 = vpack.c.b16 %v1965, %v1963
    %v1986 = vpack.c.b16 %v1968, %v1966
    %v1987 = vpack.c.b16 %v1969, %v1967
    %v1988 = vpack.c.b16 %v1972, %v1970
    %v1989 = vpack.c.b16 %v1973, %v1971
    %2006 = vmatprep.subr.bf16.mxu0 %v1975
    %2007 = vmatpush1.bf16.msra.mxu0 %v1974
    %2008 = vmatprep.subr.bf16.mxu0 %v1977
    %2009 = vmatpush1.bf16.msra.mxu0 %v1976
    %2010 = vmatprep.subr.bf16.mxu0 %v1979
    %2011 = vmatpush1.bf16.msra.mxu0 %v1978
    %2012 = vmatprep.subr.bf16.mxu0 %v1981
    %2013 = vmatpush1.bf16.msra.mxu0 %v1980
    %2014 = vmatprep.subr.bf16.mxu0 %v1983
    %2015 = vmatpush1.bf16.msra.mxu0 %v1982
    %2016 = vmatprep.subr.bf16.mxu0 %v1985
    %2017 = vmatpush1.bf16.msra.mxu0 %v1984
    %2018 = vmatprep.subr.bf16.mxu0 %v1987
    %2019 = vmatpush1.bf16.msra.mxu0 %v1986
    %2020 = vmatprep.subr.bf16.mxu0 %v1989
    %2021 = vmatpush1.bf16.msra.mxu0 %v1988
    %2022 = vmatprep.subr.bf16.mxu0 0
    %2023 = vmatpush1.bf16.msra.mxu0 0
    %2024 = vmatprep.subr.bf16.mxu0 0
    %2025 = vmatpush1.bf16.msra.mxu0 0
    %2026 = vmatprep.subr.bf16.mxu0 0
    %2027 = vmatpush1.bf16.msra.mxu0 0
    %2028 = vmatprep.subr.bf16.mxu0 0
    %2029 = vmatpush1.bf16.msra.mxu0 0
    %2030 = vmatprep.subr.bf16.mxu0 0
    %2031 = vmatpush1.bf16.msra.mxu0 0
    %2032 = vmatprep.subr.bf16.mxu0 0
    %2033 = vmatpush1.bf16.msra.mxu0 0
    %2034 = vmatprep.subr.bf16.mxu0 0
    %2035 = vmatpush1.bf16.msra.mxu0 0
    %2036 = vmatprep.subr.bf16.mxu0 0
    %2037 = vmatpush1.bf16.msra.mxu0 0
    %2038 = vmatprep.mubr.bf16.mxu0 0
    %2039 = vmatmul.mubr.bf16.gmra.mrb[0].mxu0 %v1622
    %v2040 = vpop.f32.mrb[0].mxu0
    %v2041 = vadd.f32 %v1924, %v2040
    %v2042 = vpop.f32.mrb[0].mxu0
    %v2043 = vadd.f32 %v1925, %v2042
    %v2044 = vpop.f32.mrb[0].mxu0
    %v2045 = vpop.f32.mrb[0].mxu0
    %2046 = vdwg.mxu0
    %v2047 = vrot.slane %v1910, 1
    %v2048 = vrot.slane %v1912, 1
    %2049 = vset.pattern.permute.xlu0 5
    %2050 = vperm.xlu0 %2049, %v1916
    %v2051 = vpop.permute.xlu0 %2050
    %v2053 = vmul.f32 %v2051, %v2047
    %v2054 = vmul.f32 %v2051, %v2048
    %v2055 = vadd.f32 %v2041, %v2053
    %v2056 = vadd.f32 %v2043, %v2054
    %s2057 = scalar_lea.vmem [#allocation9], 2
    %v2058 = vld [vmem:[%s2057] ss:$8 sm:$0x3]
    %v2060 = vlaneseq
    %v2061 = vshrl.u32 %v2060, 7
    %v2062 = vsub.s32 0, %v2061
    %v2063 = vrot.slane %v2058, %v2062
    %v2064 = vlaneseq
    %v2065 = vshrl.u32 %v2064, 7
    %v2066 = vsub.s32 1, %v2065
    %v2067 = vrot.slane %v2058, %v2066
    %v2070 = vadd.f32 %v2055, %v2063
    %v2071 = vadd.f32 %v2056, %v2067
    %v2072 = vmax.f32 %v2070, 0.0
    %v2073 = vmax.f32 %v2071, 0.0
    %2074 = vrot.lane.b32.xlu0 %v2072, 64
    %v2075 = vpop.permute.xlu0 %2074
    %2076 = vrot.lane.b32.xlu0 %v2073, 64
    %v2077 = vpop.permute.xlu0 %2076
    %vm2078 = vcmp.lt.s32.totalorder %v612, 64
    %v2079 = vsel %vm2078, %v2075, %v2077
    %v2080 = vsel %vm2078, %v2077, %v2075
    %v2081 = vmax.f32 %v2072, %v2079
    %v2082 = vmax.f32 %v2073, %v2080
    %v2083 = vrot.slane %v2081, 1
    %v2084 = vrot.slane %v2082, 1
    %v2085 = vmax.f32 %v2081, %v2083
    %v2086 = vmax.f32 %v2082, %v2084
    %s2087 = scalar_lea.vmem [#allocation10], 64
    %v2088 = vld [vmem:[%s2087] sm:$0xf]
    %v2089 = vpack.c.bf16 %v2085, %v2085
    %v2090 = vpack.c.bf16 %v2086, %v2086
    %vm2091 = vcmask 64512
    %v2093 = vsel %vm2091, %v2088, 0
    %vm2095 = vcmask 1043456
    %v2097 = vsel %vm2095, %v2089, 0
    %v2100 = vsel %vm2095, %v2090, 0
    %2102 = vmatprep.subr.bf16.mxu0 %v2100
    %2103 = vmatpush1.bf16.msra.mxu0 %v2097
    %2104 = vmatprep.subr.bf16.mxu0 0
    %2105 = vmatpush1.bf16.msra.mxu0 0
    %2106 = vmatprep.subr.bf16.mxu0 0
    %2107 = vmatpush1.bf16.msra.mxu0 0
    %2108 = vmatprep.subr.bf16.mxu0 0
    %2109 = vmatpush1.bf16.msra.mxu0 0
    %2110 = vmatprep.subr.bf16.mxu0 0
    %2111 = vmatpush1.bf16.msra.mxu0 0
    %2112 = vmatprep.subr.bf16.mxu0 0
    %2113 = vmatpush1.bf16.msra.mxu0 0
    %2114 = vmatprep.subr.bf16.mxu0 0
    %2115 = vmatpush1.bf16.msra.mxu0 0
    %2116 = vmatprep.subr.bf16.mxu0 0
    %2117 = vmatpush1.bf16.msra.mxu0 0
    %2118 = vmatprep.subr.bf16.mxu0 0
    %2119 = vmatpush1.bf16.msra.mxu0 0
    %2120 = vmatprep.subr.bf16.mxu0 0
    %2121 = vmatpush1.bf16.msra.mxu0 0
    %2122 = vmatprep.subr.bf16.mxu0 0
    %2123 = vmatpush1.bf16.msra.mxu0 0
    %2124 = vmatprep.subr.bf16.mxu0 0
    %2125 = vmatpush1.bf16.msra.mxu0 0
    %2126 = vmatprep.subr.bf16.mxu0 0
    %2127 = vmatpush1.bf16.msra.mxu0 0
    %2128 = vmatprep.subr.bf16.mxu0 0
    %2129 = vmatpush1.bf16.msra.mxu0 0
    %2130 = vmatprep.subr.bf16.mxu0 0
    %2131 = vmatpush1.bf16.msra.mxu0 0
    %2132 = vmatprep.subr.bf16.mxu0 0
    %2133 = vmatpush1.bf16.msra.mxu0 0
    %2134 = vmatprep.mubr.bf16.mxu0 0
    %2135 = vmatmul.mubr.bf16.gmra.mrb[0].mxu0 %v2093
    %v2136 = vpop.f32.mrb[0].mxu0
    %v2137 = vadd.f32 0.0, %v2136
    %v2138 = vpop.f32.mrb[0].mxu0
    %v2139 = vadd.f32 0.0, %v2138
    %v2140 = vpop.f32.mrb[0].mxu0
    %v2141 = vpop.f32.mrb[0].mxu0
    %2142 = vdwg.mxu0
    %s2143 = scalar_lea.vmem [#allocation12], 256
    %v2144 = vld [vmem:[%s2143] sm:$0xf]
    %v2145 = vld [vmem:[%s2143 + $0x4] sm:$0xf]
    %v2146 = vld [vmem:[%s2143 + $0x8] sm:$0xf]
    %v2147 = vld [vmem:[%s2143 + $0xc] sm:$0xf]
    %v2148 = vld [vmem:[%s2143 + $0x10] sm:$0xf]
    %v2149 = vld [vmem:[%s2143 + $0x14] sm:$0xf]
    %v2150 = vld [vmem:[%s2143 + $0x18] sm:$0xf]
    %v2151 = vld [vmem:[%s2143 + $0x1c] sm:$0xf]
    %v2152 = vld [vmem:[%s2143 + $0x20] sm:$0xf]
    %v2153 = vld [vmem:[%s2143 + $0x24] sm:$0xf]
    %v2154 = vld [vmem:[%s2143 + $0x28] sm:$0xf]
    %v2155 = vld [vmem:[%s2143 + $0x2c] sm:$0xf]
    %v2156 = vld [vmem:[%s2143 + $0x30] sm:$0xf]
    %v2157 = vld [vmem:[%s2143 + $0x34] sm:$0xf]
    %v2158 = vld [vmem:[%s2143 + $0x38] sm:$0xf]
    %v2159 = vld [vmem:[%s2143 + $0x3c] sm:$0xf]
    %v2160 = vld [vmem:[%s2143 + $0x40] sm:$0xf]
    %v2161 = vld [vmem:[%s2143 + $0x44] sm:$0xf]
    %v2162 = vld [vmem:[%s2143 + $0x48] sm:$0xf]
    %v2163 = vld [vmem:[%s2143 + $0x4c] sm:$0xf]
    %v2164 = vld [vmem:[%s2143 + $0x50] sm:$0xf]
    %v2165 = vld [vmem:[%s2143 + $0x54] sm:$0xf]
    %v2166 = vld [vmem:[%s2143 + $0x58] sm:$0xf]
    %v2167 = vld [vmem:[%s2143 + $0x5c] sm:$0xf]
    %v2168 = vld [vmem:[%s2143 + $0x60] sm:$0xf]
    %v2169 = vld [vmem:[%s2143 + $0x64] sm:$0xf]
    %v2170 = vld [vmem:[%s2143 + $0x68] sm:$0xf]
    %v2171 = vld [vmem:[%s2143 + $0x6c] sm:$0xf]
    %v2172 = vld [vmem:[%s2143 + $0x70] sm:$0xf]
    %v2173 = vld [vmem:[%s2143 + $0x74] sm:$0xf]
    %v2174 = vld [vmem:[%s2143 + $0x78] sm:$0xf]
    %v2175 = vld [vmem:[%s2143 + $0x7c] sm:$0xf]
    %v2176 = vpack.c.bf16 %v2137, %v2137
    %v2177 = vpack.c.bf16 %v2139, %v2139
    %v2210 = vunpack.c.l.b16 %v2144
    %v2211 = vunpack.c.l.b16 %v2145
    %v2212 = vunpack.c.l.b16 %v2146
    %v2213 = vunpack.c.l.b16 %v2147
    %v2214 = vunpack.c.l.b16 %v2148
    %v2215 = vunpack.c.l.b16 %v2149
    %v2216 = vunpack.c.l.b16 %v2150
    %v2217 = vunpack.c.l.b16 %v2151
    %v2218 = vunpack.c.l.b16 %v2152
    %v2219 = vunpack.c.l.b16 %v2153
    %v2220 = vunpack.c.l.b16 %v2154
    %v2221 = vunpack.c.l.b16 %v2155
    %v2222 = vunpack.c.l.b16 %v2156
    %v2223 = vunpack.c.l.b16 %v2157
    %v2224 = vunpack.c.l.b16 %v2158
    %v2225 = vunpack.c.l.b16 %v2159
    %v2226 = vunpack.c.l.b16 %v2160
    %v2227 = vunpack.c.l.b16 %v2161
    %v2228 = vunpack.c.l.b16 %v2162
    %v2229 = vunpack.c.l.b16 %v2163
    %v2230 = vunpack.c.l.b16 %v2164
    %v2231 = vunpack.c.l.b16 %v2165
    %v2232 = vunpack.c.l.b16 %v2166
    %v2233 = vunpack.c.l.b16 %v2167
    %v2234 = vunpack.c.l.b16 %v2168
    %v2235 = vunpack.c.l.b16 %v2169
    %v2236 = vunpack.c.l.b16 %v2170
    %v2237 = vunpack.c.l.b16 %v2171
    %v2238 = vunpack.c.l.b16 %v2172
    %v2239 = vunpack.c.l.b16 %v2173
    %v2240 = vunpack.c.l.b16 %v2174
    %v2241 = vunpack.c.l.b16 %v2175
    %v2242 = vpack.c.b16 %v2211, %v2210
    %v2243 = vpack.c.b16 %v2213, %v2212
    %v2244 = vpack.c.b16 %v2215, %v2214
    %v2245 = vpack.c.b16 %v2217, %v2216
    %v2246 = vpack.c.b16 %v2219, %v2218
    %v2247 = vpack.c.b16 %v2221, %v2220
    %v2248 = vpack.c.b16 %v2223, %v2222
    %v2249 = vpack.c.b16 %v2225, %v2224
    %v2250 = vpack.c.b16 %v2227, %v2226
    %v2251 = vpack.c.b16 %v2229, %v2228
    %v2252 = vpack.c.b16 %v2231, %v2230
    %v2253 = vpack.c.b16 %v2233, %v2232
    %v2254 = vpack.c.b16 %v2235, %v2234
    %v2255 = vpack.c.b16 %v2237, %v2236
    %v2256 = vpack.c.b16 %v2239, %v2238
    %v2257 = vpack.c.b16 %v2241, %v2240
    %2274 = vmatprep.subr.bf16.mxu0 0
    %2275 = vmatpush1.bf16.msra.mxu0 %v2242
    %2276 = vmatprep.subr.bf16.mxu0 0
    %2277 = vmatpush1.bf16.msra.mxu0 %v2243
    %2278 = vmatprep.subr.bf16.mxu0 0
    %2279 = vmatpush1.bf16.msra.mxu0 %v2244
    %2280 = vmatprep.subr.bf16.mxu0 0
    %2281 = vmatpush1.bf16.msra.mxu0 %v2245
    %2282 = vmatprep.subr.bf16.mxu0 0
    %2283 = vmatpush1.bf16.msra.mxu0 %v2246
    %2284 = vmatprep.subr.bf16.mxu0 0
    %2285 = vmatpush1.bf16.msra.mxu0 %v2247
    %2286 = vmatprep.subr.bf16.mxu0 0
    %2287 = vmatpush1.bf16.msra.mxu0 %v2248
    %2288 = vmatprep.subr.bf16.mxu0 0
    %2289 = vmatpush1.bf16.msra.mxu0 %v2249
    %2290 = vmatprep.subr.bf16.mxu0 0
    %2291 = vmatpush1.bf16.msra.mxu0 %v2250
    %2292 = vmatprep.subr.bf16.mxu0 0
    %2293 = vmatpush1.bf16.msra.mxu0 %v2251
    %2294 = vmatprep.subr.bf16.mxu0 0
    %2295 = vmatpush1.bf16.msra.mxu0 %v2252
    %2296 = vmatprep.subr.bf16.mxu0 0
    %2297 = vmatpush1.bf16.msra.mxu0 %v2253
    %2298 = vmatprep.subr.bf16.mxu0 0
    %2299 = vmatpush1.bf16.msra.mxu0 %v2254
    %2300 = vmatprep.subr.bf16.mxu0 0
    %2301 = vmatpush1.bf16.msra.mxu0 %v2255
    %2302 = vmatprep.subr.bf16.mxu0 0
    %2303 = vmatpush1.bf16.msra.mxu0 %v2256
    %2304 = vmatprep.subr.bf16.mxu0 0
    %2305 = vmatpush1.bf16.msra.mxu0 %v2257
    %2306 = vmatprep.mubr.bf16.mxu0 %v2177
    %2307 = vmatmul.mubr.bf16.gmra.mrb[0].mxu0 %v2176
    %v2308 = vpop.f32.mrb[0].mxu0
    %v2309 = vadd.f32 0.0, %v2308
    %v2310 = vpop.f32.mrb[0].mxu0
    %v2311 = vpop.f32.mrb[0].mxu0
    %v2312 = vpop.f32.mrb[0].mxu0
    %2313 = vdwg.mxu0
    %v2314 = vpack.c.bf16 %v2309, %v2309
    %s2315 = scalar_lea.vmem [#allocation7], 896
    %v2316 = vld [vmem:[%s2315] sm:$0xff]
    %v2317 = vld [vmem:[%s2315 + $0x8] sm:$0xff]
    %v2318 = vld [vmem:[%s2315 + $0x10] sm:$0xff]
    %v2319 = vld [vmem:[%s2315 + $0x18] sm:$0xff]
    %v2320 = vld [vmem:[%s2315 + $0x20] sm:$0xff]
    %v2321 = vld [vmem:[%s2315 + $0x28] sm:$0xff]
    %v2322 = vld [vmem:[%s2315 + $0x30] sm:$0xff]
    %v2323 = vld [vmem:[%s2315 + $0x38] sm:$0xff]
    %v2324 = vld [vmem:[%s2315 + $0x40] sm:$0xff]
    %v2325 = vld [vmem:[%s2315 + $0x48] sm:$0xff]
    %v2326 = vld [vmem:[%s2315 + $0x50] sm:$0xff]
    %v2327 = vld [vmem:[%s2315 + $0x58] sm:$0xff]
    %v2328 = vld [vmem:[%s2315 + $0x60] sm:$0xff]
    %v2329 = vld [vmem:[%s2315 + $0x68] sm:$0xff]
    %v2330 = vld [vmem:[%s2315 + $0x70] sm:$0xff]
    %v2331 = vld [vmem:[%s2315 + $0x78] sm:$0xff]
    %s2332 = scalar_lea.vmem [#allocation7], 768
    %v2333 = vld [vmem:[%s2332] sm:$0xff]
    %v2334 = vld [vmem:[%s2332 + $0x8] sm:$0xff]
    %v2335 = vld [vmem:[%s2332 + $0x10] sm:$0xff]
    %v2336 = vld [vmem:[%s2332 + $0x18] sm:$0xff]
    %v2337 = vld [vmem:[%s2332 + $0x20] sm:$0xff]
    %v2338 = vld [vmem:[%s2332 + $0x28] sm:$0xff]
    %v2339 = vld [vmem:[%s2332 + $0x30] sm:$0xff]
    %v2340 = vld [vmem:[%s2332 + $0x38] sm:$0xff]
    %v2341 = vld [vmem:[%s2332 + $0x40] sm:$0xff]
    %v2342 = vld [vmem:[%s2332 + $0x48] sm:$0xff]
    %v2343 = vld [vmem:[%s2332 + $0x50] sm:$0xff]
    %v2344 = vld [vmem:[%s2332 + $0x58] sm:$0xff]
    %v2345 = vld [vmem:[%s2332 + $0x60] sm:$0xff]
    %v2346 = vld [vmem:[%s2332 + $0x68] sm:$0xff]
    %v2347 = vld [vmem:[%s2332 + $0x70] sm:$0xff]
    %v2348 = vld [vmem:[%s2332 + $0x78] sm:$0xff]
    %v2365 = vunpack.c.l.b16 %v2333
    %v2366 = vunpack.c.h.b16 %v2333
    %v2367 = vunpack.c.l.b16 %v2334
    %v2368 = vunpack.c.h.b16 %v2334
    %v2369 = vunpack.c.l.b16 %v2335
    %v2370 = vunpack.c.h.b16 %v2335
    %v2371 = vunpack.c.l.b16 %v2336
    %v2372 = vunpack.c.h.b16 %v2336
    %v2373 = vunpack.c.l.b16 %v2337
    %v2374 = vunpack.c.h.b16 %v2337
    %v2375 = vunpack.c.l.b16 %v2338
    %v2376 = vunpack.c.h.b16 %v2338
    %v2377 = vunpack.c.l.b16 %v2339
    %v2378 = vunpack.c.h.b16 %v2339
    %v2379 = vunpack.c.l.b16 %v2340
    %v2380 = vunpack.c.h.b16 %v2340
    %v2381 = vunpack.c.l.b16 %v2341
    %v2382 = vunpack.c.h.b16 %v2341
    %v2383 = vunpack.c.l.b16 %v2342
    %v2384 = vunpack.c.h.b16 %v2342
    %v2385 = vunpack.c.l.b16 %v2343
    %v2386 = vunpack.c.h.b16 %v2343
    %v2387 = vunpack.c.l.b16 %v2344
    %v2388 = vunpack.c.h.b16 %v2344
    %v2389 = vunpack.c.l.b16 %v2345
    %v2390 = vunpack.c.h.b16 %v2345
    %v2391 = vunpack.c.l.b16 %v2346
    %v2392 = vunpack.c.h.b16 %v2346
    %v2393 = vunpack.c.l.b16 %v2347
    %v2394 = vunpack.c.h.b16 %v2347
    %v2395 = vunpack.c.l.b16 %v2348
    %v2396 = vunpack.c.h.b16 %v2348
    %v2397 = vpack.c.b16 %v2367, %v2365
    %v2398 = vpack.c.b16 %v2368, %v2366
    %v2399 = vpack.c.b16 %v2371, %v2369
    %v2400 = vpack.c.b16 %v2372, %v2370
    %v2401 = vpack.c.b16 %v2375, %v2373
    %v2402 = vpack.c.b16 %v2376, %v2374
    %v2403 = vpack.c.b16 %v2379, %v2377
    %v2404 = vpack.c.b16 %v2380, %v2378
    %v2405 = vpack.c.b16 %v2383, %v2381
    %v2406 = vpack.c.b16 %v2384, %v2382
    %v2407 = vpack.c.b16 %v2387, %v2385
    %v2408 = vpack.c.b16 %v2388, %v2386
    %v2409 = vpack.c.b16 %v2391, %v2389
    %v2410 = vpack.c.b16 %v2392, %v2390
    %v2411 = vpack.c.b16 %v2395, %v2393
    %v2412 = vpack.c.b16 %v2396, %v2394
    %2429 = vmatprep.subr.bf16.mxu0 %v2398
    %2430 = vmatpush1.bf16.msra.mxu0 %v2397
    %2431 = vmatprep.subr.bf16.mxu0 %v2400
    %2432 = vmatpush1.bf16.msra.mxu0 %v2399
    %2433 = vmatprep.subr.bf16.mxu0 %v2402
    %2434 = vmatpush1.bf16.msra.mxu0 %v2401
    %2435 = vmatprep.subr.bf16.mxu0 %v2404
    %2436 = vmatpush1.bf16.msra.mxu0 %v2403
    %2437 = vmatprep.subr.bf16.mxu0 %v2406
    %2438 = vmatpush1.bf16.msra.mxu0 %v2405
    %2439 = vmatprep.subr.bf16.mxu0 %v2408
    %2440 = vmatpush1.bf16.msra.mxu0 %v2407
    %2441 = vmatprep.subr.bf16.mxu0 %v2410
    %2442 = vmatpush1.bf16.msra.mxu0 %v2409
    %2443 = vmatprep.subr.bf16.mxu0 %v2412
    %2444 = vmatpush1.bf16.msra.mxu0 %v2411
    %2445 = vmatprep.subr.bf16.mxu0 0
    %2446 = vmatpush1.bf16.msra.mxu0 0
    %2447 = vmatprep.subr.bf16.mxu0 0
    %2448 = vmatpush1.bf16.msra.mxu0 0
    %2449 = vmatprep.subr.bf16.mxu0 0
    %2450 = vmatpush1.bf16.msra.mxu0 0
    %2451 = vmatprep.subr.bf16.mxu0 0
    %2452 = vmatpush1.bf16.msra.mxu0 0
    %2453 = vmatprep.subr.bf16.mxu0 0
    %2454 = vmatpush1.bf16.msra.mxu0 0
    %2455 = vmatprep.subr.bf16.mxu0 0
    %2456 = vmatpush1.bf16.msra.mxu0 0
    %2457 = vmatprep.subr.bf16.mxu0 0
    %2458 = vmatpush1.bf16.msra.mxu0 0
    %2459 = vmatprep.subr.bf16.mxu0 0
    %2460 = vmatpush1.bf16.msra.mxu0 0
    %2461 = vmatprep.mubr.bf16.mxu0 0
    %2462 = vmatmul.mubr.bf16.gmra.mrb[0].mxu0 %v2314
    %v2463 = vpop.f32.mrb[0].mxu0
    %v2464 = vadd.f32 0.0, %v2463
    %v2465 = vpop.f32.mrb[0].mxu0
    %v2466 = vadd.f32 0.0, %v2465
    %v2467 = vpop.f32.mrb[0].mxu0
    %v2468 = vpop.f32.mrb[0].mxu0
    %2469 = vdwg.mxu0
    %s2470 = scalar_lea.vmem [#allocation7], 1024
    %v2471 = vld [vmem:[%s2470] sm:$0xff]
    %v2472 = vld [vmem:[%s2470 + $0x8] sm:$0xff]
    %v2473 = vld [vmem:[%s2470 + $0x10] sm:$0xff]
    %v2474 = vld [vmem:[%s2470 + $0x18] sm:$0xff]
    %v2475 = vld [vmem:[%s2470 + $0x20] sm:$0xff]
    %v2476 = vld [vmem:[%s2470 + $0x28] sm:$0xff]
    %v2477 = vld [vmem:[%s2470 + $0x30] sm:$0xff]
    %v2478 = vld [vmem:[%s2470 + $0x38] sm:$0xff]
    %v2479 = vld [vmem:[%s2470 + $0x40] sm:$0xff]
    %v2480 = vld [vmem:[%s2470 + $0x48] sm:$0xff]
    %v2481 = vld [vmem:[%s2470 + $0x50] sm:$0xff]
    %v2482 = vld [vmem:[%s2470 + $0x58] sm:$0xff]
    %v2483 = vld [vmem:[%s2470 + $0x60] sm:$0xff]
    %v2484 = vld [vmem:[%s2470 + $0x68] sm:$0xff]
    %v2485 = vld [vmem:[%s2470 + $0x70] sm:$0xff]
    %v2486 = vld [vmem:[%s2470 + $0x78] sm:$0xff]
    %v2503 = vunpack.c.l.b16 %v2471
    %v2504 = vunpack.c.h.b16 %v2471
    %v2505 = vunpack.c.l.b16 %v2472
    %v2506 = vunpack.c.h.b16 %v2472
    %v2507 = vunpack.c.l.b16 %v2473
    %v2508 = vunpack.c.h.b16 %v2473
    %v2509 = vunpack.c.l.b16 %v2474
    %v2510 = vunpack.c.h.b16 %v2474
    %v2511 = vunpack.c.l.b16 %v2475
    %v2512 = vunpack.c.h.b16 %v2475
    %v2513 = vunpack.c.l.b16 %v2476
    %v2514 = vunpack.c.h.b16 %v2476
    %v2515 = vunpack.c.l.b16 %v2477
    %v2516 = vunpack.c.h.b16 %v2477
    %v2517 = vunpack.c.l.b16 %v2478
    %v2518 = vunpack.c.h.b16 %v2478
    %v2519 = vunpack.c.l.b16 %v2479
    %v2520 = vunpack.c.h.b16 %v2479
    %v2521 = vunpack.c.l.b16 %v2480
    %v2522 = vunpack.c.h.b16 %v2480
    %v2523 = vunpack.c.l.b16 %v2481
    %v2524 = vunpack.c.h.b16 %v2481
    %v2525 = vunpack.c.l.b16 %v2482
    %v2526 = vunpack.c.h.b16 %v2482
    %v2527 = vunpack.c.l.b16 %v2483
    %v2528 = vunpack.c.h.b16 %v2483
    %v2529 = vunpack.c.l.b16 %v2484
    %v2530 = vunpack.c.h.b16 %v2484
    %v2531 = vunpack.c.l.b16 %v2485
    %v2532 = vunpack.c.h.b16 %v2485
    %v2533 = vunpack.c.l.b16 %v2486
    %v2534 = vunpack.c.h.b16 %v2486
    %v2535 = vpack.c.b16 %v2505, %v2503
    %v2536 = vpack.c.b16 %v2506, %v2504
    %v2537 = vpack.c.b16 %v2509, %v2507
    %v2538 = vpack.c.b16 %v2510, %v2508
    %v2539 = vpack.c.b16 %v2513, %v2511
    %v2540 = vpack.c.b16 %v2514, %v2512
    %v2541 = vpack.c.b16 %v2517, %v2515
    %v2542 = vpack.c.b16 %v2518, %v2516
    %v2543 = vpack.c.b16 %v2521, %v2519
    %v2544 = vpack.c.b16 %v2522, %v2520
    %v2545 = vpack.c.b16 %v2525, %v2523
    %v2546 = vpack.c.b16 %v2526, %v2524
    %v2547 = vpack.c.b16 %v2529, %v2527
    %v2548 = vpack.c.b16 %v2530, %v2528
    %v2549 = vpack.c.b16 %v2533, %v2531
    %v2550 = vpack.c.b16 %v2534, %v2532
    %2567 = vmatprep.subr.bf16.mxu0 %v2536
    %2568 = vmatpush1.bf16.msra.mxu0 %v2535
    %2569 = vmatprep.subr.bf16.mxu0 %v2538
    %2570 = vmatpush1.bf16.msra.mxu0 %v2537
    %2571 = vmatprep.subr.bf16.mxu0 %v2540
    %2572 = vmatpush1.bf16.msra.mxu0 %v2539
    %2573 = vmatprep.subr.bf16.mxu0 %v2542
    %2574 = vmatpush1.bf16.msra.mxu0 %v2541
    %2575 = vmatprep.subr.bf16.mxu0 %v2544
    %2576 = vmatpush1.bf16.msra.mxu0 %v2543
    %2577 = vmatprep.subr.bf16.mxu0 %v2546
    %2578 = vmatpush1.bf16.msra.mxu0 %v2545
    %2579 = vmatprep.subr.bf16.mxu0 %v2548
    %2580 = vmatpush1.bf16.msra.mxu0 %v2547
    %2581 = vmatprep.subr.bf16.mxu0 %v2550
    %2582 = vmatpush1.bf16.msra.mxu0 %v2549
    %2583 = vmatprep.subr.bf16.mxu0 0
    %2584 = vmatpush1.bf16.msra.mxu0 0
    %2585 = vmatprep.subr.bf16.mxu0 0
    %2586 = vmatpush1.bf16.msra.mxu0 0
    %2587 = vmatprep.subr.bf16.mxu0 0
    %2588 = vmatpush1.bf16.msra.mxu0 0
    %2589 = vmatprep.subr.bf16.mxu0 0
    %2590 = vmatpush1.bf16.msra.mxu0 0
    %2591 = vmatprep.subr.bf16.mxu0 0
    %2592 = vmatpush1.bf16.msra.mxu0 0
    %2593 = vmatprep.subr.bf16.mxu0 0
    %2594 = vmatpush1.bf16.msra.mxu0 0
    %2595 = vmatprep.subr.bf16.mxu0 0
    %2596 = vmatpush1.bf16.msra.mxu0 0
    %2597 = vmatprep.subr.bf16.mxu0 0
    %2598 = vmatpush1.bf16.msra.mxu0 0
    %2599 = vmatprep.mubr.bf16.mxu0 0
    %2600 = vmatmul.mubr.bf16.gmra.mrb[0].mxu0 %v2314
    %v2601 = vpop.f32.mrb[0].mxu0
    %v2602 = vadd.f32 0.0, %v2601
    %v2603 = vpop.f32.mrb[0].mxu0
    %v2604 = vadd.f32 0.0, %v2603
    %v2605 = vpop.f32.mrb[0].mxu0
    %v2606 = vpop.f32.mrb[0].mxu0
    %2607 = vdwg.mxu0
    %v2608 = vld [vmem:[#allocation10] sm:$0xf]
    %v2609 = vpack.c.bf16 %v2464, %v2464
    %v2610 = vpack.c.bf16 %v2466, %v2466
    %vm2611 = vcmask 31744
    %v2613 = vsel %vm2611, %v2608, 0
    %vm2615 = vcmask 1041408
    %v2617 = vsel %vm2615, %v2609, 0
    %v2620 = vsel %vm2615, %v2610, 0
    %2622 = vmatprep.subr.bf16.mxu0 %v2620
    %2623 = vmatpush1.bf16.msra.mxu0 %v2617
    %2624 = vmatprep.subr.bf16.mxu0 0
    %2625 = vmatpush1.bf16.msra.mxu0 0
    %2626 = vmatprep.subr.bf16.mxu0 0
    %2627 = vmatpush1.bf16.msra.mxu0 0
    %2628 = vmatprep.subr.bf16.mxu0 0
    %2629 = vmatpush1.bf16.msra.mxu0 0
    %2630 = vmatprep.subr.bf16.mxu0 0
    %2631 = vmatpush1.bf16.msra.mxu0 0
    %2632 = vmatprep.subr.bf16.mxu0 0
    %2633 = vmatpush1.bf16.msra.mxu0 0
    %2634 = vmatprep.subr.bf16.mxu0 0
    %2635 = vmatpush1.bf16.msra.mxu0 0
    %2636 = vmatprep.subr.bf16.mxu0 0
    %2637 = vmatpush1.bf16.msra.mxu0 0
    %2638 = vmatprep.subr.bf16.mxu0 0
    %2639 = vmatpush1.bf16.msra.mxu0 0
    %2640 = vmatprep.subr.bf16.mxu0 0
    %2641 = vmatpush1.bf16.msra.mxu0 0
    %2642 = vmatprep.subr.bf16.mxu0 0
    %2643 = vmatpush1.bf16.msra.mxu0 0
    %2644 = vmatprep.subr.bf16.mxu0 0
    %2645 = vmatpush1.bf16.msra.mxu0 0
    %2646 = vmatprep.subr.bf16.mxu0 0
    %2647 = vmatpush1.bf16.msra.mxu0 0
    %2648 = vmatprep.subr.bf16.mxu0 0
    %2649 = vmatpush1.bf16.msra.mxu0 0
    %2650 = vmatprep.subr.bf16.mxu0 0
    %2651 = vmatpush1.bf16.msra.mxu0 0
    %2652 = vmatprep.subr.bf16.mxu0 0
    %2653 = vmatpush1.bf16.msra.mxu0 0
    %2654 = vmatprep.mubr.bf16.mxu0 0
    %2655 = vmatmul.mubr.bf16.gmra.mrb[0].mxu0 %v2613
    %v2656 = vpop.f32.mrb[0].mxu0
    %v2657 = vadd.f32 0.0, %v2656
    %v2658 = vpop.f32.mrb[0].mxu0
    %v2659 = vadd.f32 0.0, %v2658
    %v2660 = vpop.f32.mrb[0].mxu0
    %v2661 = vpop.f32.mrb[0].mxu0
    %2662 = vdwg.mxu0
    %v2679 = vunpack.c.l.b16 %v2316
    %v2680 = vunpack.c.h.b16 %v2316
    %v2681 = vunpack.c.l.b16 %v2317
    %v2682 = vunpack.c.h.b16 %v2317
    %v2683 = vunpack.c.l.b16 %v2318
    %v2684 = vunpack.c.h.b16 %v2318
    %v2685 = vunpack.c.l.b16 %v2319
    %v2686 = vunpack.c.h.b16 %v2319
    %v2687 = vunpack.c.l.b16 %v2320
    %v2688 = vunpack.c.h.b16 %v2320
    %v2689 = vunpack.c.l.b16 %v2321
    %v2690 = vunpack.c.h.b16 %v2321
    %v2691 = vunpack.c.l.b16 %v2322
    %v2692 = vunpack.c.h.b16 %v2322
    %v2693 = vunpack.c.l.b16 %v2323
    %v2694 = vunpack.c.h.b16 %v2323
    %v2695 = vunpack.c.l.b16 %v2324
    %v2696 = vunpack.c.h.b16 %v2324
    %v2697 = vunpack.c.l.b16 %v2325
    %v2698 = vunpack.c.h.b16 %v2325
    %v2699 = vunpack.c.l.b16 %v2326
    %v2700 = vunpack.c.h.b16 %v2326
    %v2701 = vunpack.c.l.b16 %v2327
    %v2702 = vunpack.c.h.b16 %v2327
    %v2703 = vunpack.c.l.b16 %v2328
    %v2704 = vunpack.c.h.b16 %v2328
    %v2705 = vunpack.c.l.b16 %v2329
    %v2706 = vunpack.c.h.b16 %v2329
    %v2707 = vunpack.c.l.b16 %v2330
    %v2708 = vunpack.c.h.b16 %v2330
    %v2709 = vunpack.c.l.b16 %v2331
    %v2710 = vunpack.c.h.b16 %v2331
    %v2711 = vpack.c.b16 %v2681, %v2679
    %v2712 = vpack.c.b16 %v2682, %v2680
    %v2713 = vpack.c.b16 %v2685, %v2683
    %v2714 = vpack.c.b16 %v2686, %v2684
    %v2715 = vpack.c.b16 %v2689, %v2687
    %v2716 = vpack.c.b16 %v2690, %v2688
    %v2717 = vpack.c.b16 %v2693, %v2691
    %v2718 = vpack.c.b16 %v2694, %v2692
    %v2719 = vpack.c.b16 %v2697, %v2695
    %v2720 = vpack.c.b16 %v2698, %v2696
    %v2721 = vpack.c.b16 %v2701, %v2699
    %v2722 = vpack.c.b16 %v2702, %v2700
    %v2723 = vpack.c.b16 %v2705, %v2703
    %v2724 = vpack.c.b16 %v2706, %v2704
    %v2725 = vpack.c.b16 %v2709, %v2707
    %v2726 = vpack.c.b16 %v2710, %v2708
    %2743 = vmatprep.subr.bf16.mxu0 %v2712
    %2744 = vmatpush1.bf16.msra.mxu0 %v2711
    %2745 = vmatprep.subr.bf16.mxu0 %v2714
    %2746 = vmatpush1.bf16.msra.mxu0 %v2713
    %2747 = vmatprep.subr.bf16.mxu0 %v2716
    %2748 = vmatpush1.bf16.msra.mxu0 %v2715
    %2749 = vmatprep.subr.bf16.mxu0 %v2718
    %2750 = vmatpush1.bf16.msra.mxu0 %v2717
    %2751 = vmatprep.subr.bf16.mxu0 %v2720
    %2752 = vmatpush1.bf16.msra.mxu0 %v2719
    %2753 = vmatprep.subr.bf16.mxu0 %v2722
    %2754 = vmatpush1.bf16.msra.mxu0 %v2721
    %2755 = vmatprep.subr.bf16.mxu0 %v2724
    %2756 = vmatpush1.bf16.msra.mxu0 %v2723
    %2757 = vmatprep.subr.bf16.mxu0 %v2726
    %2758 = vmatpush1.bf16.msra.mxu0 %v2725
    %2759 = vmatprep.subr.bf16.mxu0 0
    %2760 = vmatpush1.bf16.msra.mxu0 0
    %2761 = vmatprep.subr.bf16.mxu0 0
    %2762 = vmatpush1.bf16.msra.mxu0 0
    %2763 = vmatprep.subr.bf16.mxu0 0
    %2764 = vmatpush1.bf16.msra.mxu0 0
    %2765 = vmatprep.subr.bf16.mxu0 0
    %2766 = vmatpush1.bf16.msra.mxu0 0
    %2767 = vmatprep.subr.bf16.mxu0 0
    %2768 = vmatpush1.bf16.msra.mxu0 0
    %2769 = vmatprep.subr.bf16.mxu0 0
    %2770 = vmatpush1.bf16.msra.mxu0 0
    %2771 = vmatprep.subr.bf16.mxu0 0
    %2772 = vmatpush1.bf16.msra.mxu0 0
    %2773 = vmatprep.subr.bf16.mxu0 0
    %2774 = vmatpush1.bf16.msra.mxu0 0
    %2775 = vmatprep.mubr.bf16.mxu0 0
    %2776 = vmatmul.mubr.bf16.gmra.mrb[0].mxu0 %v2314
    %v2777 = vpop.f32.mrb[0].mxu0
    %v2778 = vadd.f32 %v2657, %v2777
    %v2779 = vpop.f32.mrb[0].mxu0
    %v2780 = vadd.f32 %v2659, %v2779
    %v2781 = vpop.f32.mrb[0].mxu0
    %v2782 = vpop.f32.mrb[0].mxu0
    %2783 = vdwg.mxu0
    %s2784 = scalar_lea.vmem [#allocation10], 16
    %v2785 = vld [vmem:[%s2784] sm:$0xf]
    %v2786 = vpack.c.bf16 %v2602, %v2602
    %v2787 = vpack.c.bf16 %v2604, %v2604
    %v2789 = vsel %vm2611, %v2785, 0
    %v2792 = vsel %vm2615, %v2786, 0
    %v2795 = vsel %vm2615, %v2787, 0
    %2797 = vmatprep.subr.bf16.mxu0 %v2795
    %2798 = vmatpush1.bf16.msra.mxu0 %v2792
    %2799 = vmatprep.subr.bf16.mxu0 0
    %2800 = vmatpush1.bf16.msra.mxu0 0
    %2801 = vmatprep.subr.bf16.mxu0 0
    %2802 = vmatpush1.bf16.msra.mxu0 0
    %2803 = vmatprep.subr.bf16.mxu0 0
    %2804 = vmatpush1.bf16.msra.mxu0 0
    %2805 = vmatprep.subr.bf16.mxu0 0
    %2806 = vmatpush1.bf16.msra.mxu0 0
    %2807 = vmatprep.subr.bf16.mxu0 0
    %2808 = vmatpush1.bf16.msra.mxu0 0
    %2809 = vmatprep.subr.bf16.mxu0 0
    %2810 = vmatpush1.bf16.msra.mxu0 0
    %2811 = vmatprep.subr.bf16.mxu0 0
    %2812 = vmatpush1.bf16.msra.mxu0 0
    %2813 = vmatprep.subr.bf16.mxu0 0
    %2814 = vmatpush1.bf16.msra.mxu0 0
    %2815 = vmatprep.subr.bf16.mxu0 0
    %2816 = vmatpush1.bf16.msra.mxu0 0
    %2817 = vmatprep.subr.bf16.mxu0 0
    %2818 = vmatpush1.bf16.msra.mxu0 0
    %2819 = vmatprep.subr.bf16.mxu0 0
    %2820 = vmatpush1.bf16.msra.mxu0 0
    %2821 = vmatprep.subr.bf16.mxu0 0
    %2822 = vmatpush1.bf16.msra.mxu0 0
    %2823 = vmatprep.subr.bf16.mxu0 0
    %2824 = vmatpush1.bf16.msra.mxu0 0
    %2825 = vmatprep.subr.bf16.mxu0 0
    %2826 = vmatpush1.bf16.msra.mxu0 0
    %2827 = vmatprep.subr.bf16.mxu0 0
    %2828 = vmatpush1.bf16.msra.mxu0 0
    %2829 = vmatprep.mubr.bf16.mxu0 0
    %2830 = vmatmul.mubr.bf16.gmra.mrb[0].mxu0 %v2789
    %v2831 = vpop.f32.mrb[0].mxu0
    %v2832 = vadd.f32 0.0, %v2831
    %v2833 = vpop.f32.mrb[0].mxu0
    %v2834 = vadd.f32 0.0, %v2833
    %v2835 = vpop.f32.mrb[0].mxu0
    %v2836 = vpop.f32.mrb[0].mxu0
    %2837 = vdwg.mxu0
    %v2838 = vadd.f32 %v2778, %v2832
    %v2839 = vadd.f32 %v2780, %v2834
    %s2840 = scalar_lea.vmem [#allocation9], 3
    %v2841 = vld [vmem:[%s2840] ss:$8 sm:$0x3]
    %v2843 = vlaneseq
    %v2844 = vshrl.u32 %v2843, 7
    %v2845 = vsub.s32 0, %v2844
    %v2846 = vrot.slane %v2841, %v2845
    %v2847 = vlaneseq
    %v2848 = vshrl.u32 %v2847, 7
    %v2849 = vsub.s32 1, %v2848
    %v2850 = vrot.slane %v2841, %v2849
    %v2853 = vadd.f32 %v2838, %v2846
    %v2854 = vadd.f32 %v2839, %v2850
    %v2855 = vmax.f32 %v2853, 0.0
    %v2856 = vmax.f32 %v2854, 0.0
    %v2857 = vmax.f32 %v2855, %v2856
    %v2858 = vpack.c.bf16 %v2857, %v2857
    %s2859 = scalar_lea.vmem [#allocation10], 80
    %v2860 = vld [vmem:[%s2859] sm:$0xf]
    %v2862 = vsel %vm2611, %v2860, 0
    %v2865 = vsel %vm2615, %v2858, 0
    %2867 = vmatprep.subr.bf16.mxu0 %v2865
    %2868 = vmatpush1.bf16.msra.mxu0 %v2865
    %2869 = vmatprep.subr.bf16.mxu0 0
    %2870 = vmatpush1.bf16.msra.mxu0 0
    %2871 = vmatprep.subr.bf16.mxu0 0
    %2872 = vmatpush1.bf16.msra.mxu0 0
    %2873 = vmatprep.subr.bf16.mxu0 0
    %2874 = vmatpush1.bf16.msra.mxu0 0
    %2875 = vmatprep.subr.bf16.mxu0 0
    %2876 = vmatpush1.bf16.msra.mxu0 0
    %2877 = vmatprep.subr.bf16.mxu0 0
    %2878 = vmatpush1.bf16.msra.mxu0 0
    %2879 = vmatprep.subr.bf16.mxu0 0
    %2880 = vmatpush1.bf16.msra.mxu0 0
    %2881 = vmatprep.subr.bf16.mxu0 0
    %2882 = vmatpush1.bf16.msra.mxu0 0
    %2883 = vmatprep.subr.bf16.mxu0 0
    %2884 = vmatpush1.bf16.msra.mxu0 0
    %2885 = vmatprep.subr.bf16.mxu0 0
    %2886 = vmatpush1.bf16.msra.mxu0 0
    %2887 = vmatprep.subr.bf16.mxu0 0
    %2888 = vmatpush1.bf16.msra.mxu0 0
    %2889 = vmatprep.subr.bf16.mxu0 0
    %2890 = vmatpush1.bf16.msra.mxu0 0
    %2891 = vmatprep.subr.bf16.mxu0 0
    %2892 = vmatpush1.bf16.msra.mxu0 0
    %2893 = vmatprep.subr.bf16.mxu0 0
    %2894 = vmatpush1.bf16.msra.mxu0 0
    %2895 = vmatprep.subr.bf16.mxu0 0
    %2896 = vmatpush1.bf16.msra.mxu0 0
    %2897 = vmatprep.subr.bf16.mxu0 0
    %2898 = vmatpush1.bf16.msra.mxu0 0
    %2899 = vmatprep.mubr.bf16.mxu0 0
    %2900 = vmatmul.mubr.bf16.gmra.mrb[0].mxu0 %v2862
    %v2901 = vpop.f32.mrb[0].mxu0
    %v2902 = vadd.f32 0.0, %v2901
    %v2903 = vpop.f32.mrb[0].mxu0
    %v2904 = vadd.f32 0.0, %v2903
    %v2905 = vpop.f32.mrb[0].mxu0
    %v2906 = vpop.f32.mrb[0].mxu0
    %2907 = vdwg.mxu0
    %s2908 = scalar_lea.vmem [#allocation10], 96
    %v2909 = vld [vmem:[%s2908] sm:$0xf]
    %v2911 = vsel %vm2611, %v2909, 0
    %2913 = vmatprep.subr.bf16.mxu0 %v2865
    %2914 = vmatpush1.bf16.msra.mxu0 %v2865
    %2915 = vmatprep.subr.bf16.mxu0 0
    %2916 = vmatpush1.bf16.msra.mxu0 0
    %2917 = vmatprep.subr.bf16.mxu0 0
    %2918 = vmatpush1.bf16.msra.mxu0 0
    %2919 = vmatprep.subr.bf16.mxu0 0
    %2920 = vmatpush1.bf16.msra.mxu0 0
    %2921 = vmatprep.subr.bf16.mxu0 0
    %2922 = vmatpush1.bf16.msra.mxu0 0
    %2923 = vmatprep.subr.bf16.mxu0 0
    %2924 = vmatpush1.bf16.msra.mxu0 0
    %2925 = vmatprep.subr.bf16.mxu0 0
    %2926 = vmatpush1.bf16.msra.mxu0 0
    %2927 = vmatprep.subr.bf16.mxu0 0
    %2928 = vmatpush1.bf16.msra.mxu0 0
    %2929 = vmatprep.subr.bf16.mxu0 0
    %2930 = vmatpush1.bf16.msra.mxu0 0
    %2931 = vmatprep.subr.bf16.mxu0 0
    %2932 = vmatpush1.bf16.msra.mxu0 0
    %2933 = vmatprep.subr.bf16.mxu0 0
    %2934 = vmatpush1.bf16.msra.mxu0 0
    %2935 = vmatprep.subr.bf16.mxu0 0
    %2936 = vmatpush1.bf16.msra.mxu0 0
    %2937 = vmatprep.subr.bf16.mxu0 0
    %2938 = vmatpush1.bf16.msra.mxu0 0
    %2939 = vmatprep.subr.bf16.mxu0 0
    %2940 = vmatpush1.bf16.msra.mxu0 0
    %2941 = vmatprep.subr.bf16.mxu0 0
    %2942 = vmatpush1.bf16.msra.mxu0 0
    %2943 = vmatprep.subr.bf16.mxu0 0
    %2944 = vmatpush1.bf16.msra.mxu0 0
    %2945 = vmatprep.mubr.bf16.mxu0 0
    %2946 = vmatmul.mubr.bf16.gmra.mrb[0].mxu0 %v2911
    %v2947 = vpop.f32.mrb[0].mxu0
    %v2948 = vadd.f32 0.0, %v2947
    %v2949 = vpop.f32.mrb[0].mxu0
    %v2950 = vadd.f32 0.0, %v2949
    %v2951 = vpop.f32.mrb[0].mxu0
    %v2952 = vpop.f32.mrb[0].mxu0
    %2953 = vdwg.mxu0
    %v2954 = vmax.f32 %v2902, %v2948
    %v2955 = vmax.f32 %v2904, %v2950
    %s2956 = scalar_lea.vmem [#allocation12], 384
    %v2957 = vld [vmem:[%s2956] sm:$0xf]
    %v2958 = vld [vmem:[%s2956 + $0x4] sm:$0xf]
    %v2959 = vld [vmem:[%s2956 + $0x8] sm:$0xf]
    %v2960 = vld [vmem:[%s2956 + $0xc] sm:$0xf]
    %v2961 = vld [vmem:[%s2956 + $0x10] sm:$0xf]
    %v2962 = vld [vmem:[%s2956 + $0x14] sm:$0xf]
    %v2963 = vld [vmem:[%s2956 + $0x18] sm:$0xf]
    %v2964 = vld [vmem:[%s2956 + $0x1c] sm:$0xf]
    %v2965 = vld [vmem:[%s2956 + $0x20] sm:$0xf]
    %v2966 = vld [vmem:[%s2956 + $0x24] sm:$0xf]
    %v2967 = vld [vmem:[%s2956 + $0x28] sm:$0xf]
    %v2968 = vld [vmem:[%s2956 + $0x2c] sm:$0xf]
    %v2969 = vld [vmem:[%s2956 + $0x30] sm:$0xf]
    %v2970 = vld [vmem:[%s2956 + $0x34] sm:$0xf]
    %v2971 = vld [vmem:[%s2956 + $0x38] sm:$0xf]
    %v2972 = vld [vmem:[%s2956 + $0x3c] sm:$0xf]
    %v2973 = vld [vmem:[%s2956 + $0x40] sm:$0xf]
    %v2974 = vld [vmem:[%s2956 + $0x44] sm:$0xf]
    %v2975 = vld [vmem:[%s2956 + $0x48] sm:$0xf]
    %v2976 = vld [vmem:[%s2956 + $0x4c] sm:$0xf]
    %v2977 = vld [vmem:[%s2956 + $0x50] sm:$0xf]
    %v2978 = vld [vmem:[%s2956 + $0x54] sm:$0xf]
    %v2979 = vld [vmem:[%s2956 + $0x58] sm:$0xf]
    %v2980 = vld [vmem:[%s2956 + $0x5c] sm:$0xf]
    %v2981 = vld [vmem:[%s2956 + $0x60] sm:$0xf]
    %v2982 = vld [vmem:[%s2956 + $0x64] sm:$0xf]
    %v2983 = vld [vmem:[%s2956 + $0x68] sm:$0xf]
    %v2984 = vld [vmem:[%s2956 + $0x6c] sm:$0xf]
    %v2985 = vld [vmem:[%s2956 + $0x70] sm:$0xf]
    %v2986 = vld [vmem:[%s2956 + $0x74] sm:$0xf]
    %v2987 = vld [vmem:[%s2956 + $0x78] sm:$0xf]
    %v2988 = vld [vmem:[%s2956 + $0x7c] sm:$0xf]
    %v2989 = vpack.c.bf16 %v2954, %v2954
    %v2990 = vpack.c.bf16 %v2955, %v2955
    %v3023 = vunpack.c.l.b16 %v2957
    %v3024 = vunpack.c.l.b16 %v2958
    %v3025 = vunpack.c.l.b16 %v2959
    %v3026 = vunpack.c.l.b16 %v2960
    %v3027 = vunpack.c.l.b16 %v2961
    %v3028 = vunpack.c.l.b16 %v2962
    %v3029 = vunpack.c.l.b16 %v2963
    %v3030 = vunpack.c.l.b16 %v2964
    %v3031 = vunpack.c.l.b16 %v2965
    %v3032 = vunpack.c.l.b16 %v2966
    %v3033 = vunpack.c.l.b16 %v2967
    %v3034 = vunpack.c.l.b16 %v2968
    %v3035 = vunpack.c.l.b16 %v2969
    %v3036 = vunpack.c.l.b16 %v2970
    %v3037 = vunpack.c.l.b16 %v2971
    %v3038 = vunpack.c.l.b16 %v2972
    %v3039 = vunpack.c.l.b16 %v2973
    %v3040 = vunpack.c.l.b16 %v2974
    %v3041 = vunpack.c.l.b16 %v2975
    %v3042 = vunpack.c.l.b16 %v2976
    %v3043 = vunpack.c.l.b16 %v2977
    %v3044 = vunpack.c.l.b16 %v2978
    %v3045 = vunpack.c.l.b16 %v2979
    %v3046 = vunpack.c.l.b16 %v2980
    %v3047 = vunpack.c.l.b16 %v2981
    %v3048 = vunpack.c.l.b16 %v2982
    %v3049 = vunpack.c.l.b16 %v2983
    %v3050 = vunpack.c.l.b16 %v2984
    %v3051 = vunpack.c.l.b16 %v2985
    %v3052 = vunpack.c.l.b16 %v2986
    %v3053 = vunpack.c.l.b16 %v2987
    %v3054 = vunpack.c.l.b16 %v2988
    %v3055 = vpack.c.b16 %v3024, %v3023
    %v3056 = vpack.c.b16 %v3026, %v3025
    %v3057 = vpack.c.b16 %v3028, %v3027
    %v3058 = vpack.c.b16 %v3030, %v3029
    %v3059 = vpack.c.b16 %v3032, %v3031
    %v3060 = vpack.c.b16 %v3034, %v3033
    %v3061 = vpack.c.b16 %v3036, %v3035
    %v3062 = vpack.c.b16 %v3038, %v3037
    %v3063 = vpack.c.b16 %v3040, %v3039
    %v3064 = vpack.c.b16 %v3042, %v3041
    %v3065 = vpack.c.b16 %v3044, %v3043
    %v3066 = vpack.c.b16 %v3046, %v3045
    %v3067 = vpack.c.b16 %v3048, %v3047
    %v3068 = vpack.c.b16 %v3050, %v3049
    %v3069 = vpack.c.b16 %v3052, %v3051
    %v3070 = vpack.c.b16 %v3054, %v3053
    %3087 = vmatprep.subr.bf16.mxu0 0
    %3088 = vmatpush1.bf16.msra.mxu0 %v3055
    %3089 = vmatprep.subr.bf16.mxu0 0
    %3090 = vmatpush1.bf16.msra.mxu0 %v3056
    %3091 = vmatprep.subr.bf16.mxu0 0
    %3092 = vmatpush1.bf16.msra.mxu0 %v3057
    %3093 = vmatprep.subr.bf16.mxu0 0
    %3094 = vmatpush1.bf16.msra.mxu0 %v3058
    %3095 = vmatprep.subr.bf16.mxu0 0
    %3096 = vmatpush1.bf16.msra.mxu0 %v3059
    %3097 = vmatprep.subr.bf16.mxu0 0
    %3098 = vmatpush1.bf16.msra.mxu0 %v3060
    %3099 = vmatprep.subr.bf16.mxu0 0
    %3100 = vmatpush1.bf16.msra.mxu0 %v3061
    %3101 = vmatprep.subr.bf16.mxu0 0
    %3102 = vmatpush1.bf16.msra.mxu0 %v3062
    %3103 = vmatprep.subr.bf16.mxu0 0
    %3104 = vmatpush1.bf16.msra.mxu0 %v3063
    %3105 = vmatprep.subr.bf16.mxu0 0
    %3106 = vmatpush1.bf16.msra.mxu0 %v3064
    %3107 = vmatprep.subr.bf16.mxu0 0
    %3108 = vmatpush1.bf16.msra.mxu0 %v3065
    %3109 = vmatprep.subr.bf16.mxu0 0
    %3110 = vmatpush1.bf16.msra.mxu0 %v3066
    %3111 = vmatprep.subr.bf16.mxu0 0
    %3112 = vmatpush1.bf16.msra.mxu0 %v3067
    %3113 = vmatprep.subr.bf16.mxu0 0
    %3114 = vmatpush1.bf16.msra.mxu0 %v3068
    %3115 = vmatprep.subr.bf16.mxu0 0
    %3116 = vmatpush1.bf16.msra.mxu0 %v3069
    %3117 = vmatprep.subr.bf16.mxu0 0
    %3118 = vmatpush1.bf16.msra.mxu0 %v3070
    %3119 = vmatprep.mubr.bf16.mxu0 %v2990
    %3120 = vmatmul.mubr.bf16.gmra.mrb[0].mxu0 %v2989
    %v3121 = vpop.f32.mrb[0].mxu0
    %v3122 = vadd.f32 0.0, %v3121
    %v3123 = vpop.f32.mrb[0].mxu0
    %v3124 = vpop.f32.mrb[0].mxu0
    %v3125 = vpop.f32.mrb[0].mxu0
    %3126 = vdwg.mxu0
    %v3127 = vpack.c.bf16 %v3122, %v3122
    %s3128 = scalar_lea.vmem [#allocation7], 1280
    %v3129 = vld [vmem:[%s3128] sm:$0xff]
    %v3130 = vld [vmem:[%s3128 + $0x8] sm:$0xff]
    %v3131 = vld [vmem:[%s3128 + $0x10] sm:$0xff]
    %v3132 = vld [vmem:[%s3128 + $0x18] sm:$0xff]
    %v3133 = vld [vmem:[%s3128 + $0x20] sm:$0xff]
    %v3134 = vld [vmem:[%s3128 + $0x28] sm:$0xff]
    %v3135 = vld [vmem:[%s3128 + $0x30] sm:$0xff]
    %v3136 = vld [vmem:[%s3128 + $0x38] sm:$0xff]
    %v3137 = vld [vmem:[%s3128 + $0x40] sm:$0xff]
    %v3138 = vld [vmem:[%s3128 + $0x48] sm:$0xff]
    %v3139 = vld [vmem:[%s3128 + $0x50] sm:$0xff]
    %v3140 = vld [vmem:[%s3128 + $0x58] sm:$0xff]
    %v3141 = vld [vmem:[%s3128 + $0x60] sm:$0xff]
    %v3142 = vld [vmem:[%s3128 + $0x68] sm:$0xff]
    %v3143 = vld [vmem:[%s3128 + $0x70] sm:$0xff]
    %v3144 = vld [vmem:[%s3128 + $0x78] sm:$0xff]
    %s3145 = scalar_lea.vmem [#allocation9], 4
    %v3146 = vld [vmem:[%s3145] ss:$8 sm:$0x3]
    %v3148 = vlaneseq
    %v3149 = vshrl.u32 %v3148, 7
    %v3150 = vsub.s32 0, %v3149
    %v3151 = vrot.slane %v3146, %v3150
    %v3152 = vlaneseq
    %v3153 = vshrl.u32 %v3152, 7
    %v3154 = vsub.s32 1, %v3153
    %v3155 = vrot.slane %v3146, %v3154
    %v3174 = vunpack.c.l.b16 %v3129
    %v3175 = vunpack.c.h.b16 %v3129
    %v3176 = vunpack.c.l.b16 %v3130
    %v3177 = vunpack.c.h.b16 %v3130
    %v3178 = vunpack.c.l.b16 %v3131
    %v3179 = vunpack.c.h.b16 %v3131
    %v3180 = vunpack.c.l.b16 %v3132
    %v3181 = vunpack.c.h.b16 %v3132
    %v3182 = vunpack.c.l.b16 %v3133
    %v3183 = vunpack.c.h.b16 %v3133
    %v3184 = vunpack.c.l.b16 %v3134
    %v3185 = vunpack.c.h.b16 %v3134
    %v3186 = vunpack.c.l.b16 %v3135
    %v3187 = vunpack.c.h.b16 %v3135
    %v3188 = vunpack.c.l.b16 %v3136
    %v3189 = vunpack.c.h.b16 %v3136
    %v3190 = vunpack.c.l.b16 %v3137
    %v3191 = vunpack.c.h.b16 %v3137
    %v3192 = vunpack.c.l.b16 %v3138
    %v3193 = vunpack.c.h.b16 %v3138
    %v3194 = vunpack.c.l.b16 %v3139
    %v3195 = vunpack.c.h.b16 %v3139
    %v3196 = vunpack.c.l.b16 %v3140
    %v3197 = vunpack.c.h.b16 %v3140
    %v3198 = vunpack.c.l.b16 %v3141
    %v3199 = vunpack.c.h.b16 %v3141
    %v3200 = vunpack.c.l.b16 %v3142
    %v3201 = vunpack.c.h.b16 %v3142
    %v3202 = vunpack.c.l.b16 %v3143
    %v3203 = vunpack.c.h.b16 %v3143
    %v3204 = vunpack.c.l.b16 %v3144
    %v3205 = vunpack.c.h.b16 %v3144
    %v3206 = vpack.c.b16 %v3176, %v3174
    %v3207 = vpack.c.b16 %v3177, %v3175
    %v3208 = vpack.c.b16 %v3180, %v3178
    %v3209 = vpack.c.b16 %v3181, %v3179
    %v3210 = vpack.c.b16 %v3184, %v3182
    %v3211 = vpack.c.b16 %v3185, %v3183
    %v3212 = vpack.c.b16 %v3188, %v3186
    %v3213 = vpack.c.b16 %v3189, %v3187
    %v3214 = vpack.c.b16 %v3192, %v3190
    %v3215 = vpack.c.b16 %v3193, %v3191
    %v3216 = vpack.c.b16 %v3196, %v3194
    %v3217 = vpack.c.b16 %v3197, %v3195
    %v3218 = vpack.c.b16 %v3200, %v3198
    %v3219 = vpack.c.b16 %v3201, %v3199
    %v3220 = vpack.c.b16 %v3204, %v3202
    %v3221 = vpack.c.b16 %v3205, %v3203
    %3238 = vmatprep.subr.bf16.mxu0 %v3207
    %3239 = vmatpush1.bf16.msra.mxu0 %v3206
    %3240 = vmatprep.subr.bf16.mxu0 %v3209
    %3241 = vmatpush1.bf16.msra.mxu0 %v3208
    %3242 = vmatprep.subr.bf16.mxu0 %v3211
    %3243 = vmatpush1.bf16.msra.mxu0 %v3210
    %3244 = vmatprep.subr.bf16.mxu0 %v3213
    %3245 = vmatpush1.bf16.msra.mxu0 %v3212
    %3246 = vmatprep.subr.bf16.mxu0 %v3215
    %3247 = vmatpush1.bf16.msra.mxu0 %v3214
    %3248 = vmatprep.subr.bf16.mxu0 %v3217
    %3249 = vmatpush1.bf16.msra.mxu0 %v3216
    %3250 = vmatprep.subr.bf16.mxu0 %v3219
    %3251 = vmatpush1.bf16.msra.mxu0 %v3218
    %3252 = vmatprep.subr.bf16.mxu0 %v3221
    %3253 = vmatpush1.bf16.msra.mxu0 %v3220
    %3254 = vmatprep.subr.bf16.mxu0 0
    %3255 = vmatpush1.bf16.msra.mxu0 0
    %3256 = vmatprep.subr.bf16.mxu0 0
    %3257 = vmatpush1.bf16.msra.mxu0 0
    %3258 = vmatprep.subr.bf16.mxu0 0
    %3259 = vmatpush1.bf16.msra.mxu0 0
    %3260 = vmatprep.subr.bf16.mxu0 0
    %3261 = vmatpush1.bf16.msra.mxu0 0
    %3262 = vmatprep.subr.bf16.mxu0 0
    %3263 = vmatpush1.bf16.msra.mxu0 0
    %3264 = vmatprep.subr.bf16.mxu0 0
    %3265 = vmatpush1.bf16.msra.mxu0 0
    %3266 = vmatprep.subr.bf16.mxu0 0
    %3267 = vmatpush1.bf16.msra.mxu0 0
    %3268 = vmatprep.subr.bf16.mxu0 0
    %3269 = vmatpush1.bf16.msra.mxu0 0
    %3270 = vmatprep.mubr.bf16.mxu0 0
    %3271 = vmatmul.mubr.bf16.gmra.mrb[0].mxu0 %v3127
    %v3272 = vpop.f32.mrb[0].mxu0
    %v3273 = vadd.f32 %v3151, %v3272
    %v3274 = vpop.f32.mrb[0].mxu0
    %v3275 = vadd.f32 %v3155, %v3274
    %v3276 = vpop.f32.mrb[0].mxu0
    %v3277 = vpop.f32.mrb[0].mxu0
    %3278 = vdwg.mxu0
    %v3279 = vmax.f32 %v3273, 0.0
    %v3280 = vmax.f32 %v3275, 0.0
    %s3281 = smul.u32 4, 8
    %s3282 = smul.u32 %s3281, 32
    %s3283 = smul.u32 %s3282, 2
    %s3284 = sshll.u32 %s3283, 4
    %3285 = dma.done [#allocation4], %s3284
    %s3286 = smul.u32 4, 24
    %s3287 = smul.u32 %s3286, 32
    %s3288 = smul.u32 %s3287, 2
    %s3289 = sshll.u32 %s3288, 4
    %3290 = dma.done %s150, %s3289
    %v3291 = vpack.c.bf16 %v3279, %v3279
    %v3292 = vpack.c.bf16 %v3280, %v3280
    %v3293 = vld [vmem:[#allocation2] sm:$0xff]
    %v3294 = vld [vmem:[#allocation2 + $0x8] sm:$0xff]
    %v3295 = vld [vmem:[#allocation2 + $0x10] sm:$0xff]
    %v3296 = vld [vmem:[#allocation2 + $0x18] sm:$0xff]
    %v3297 = vld [vmem:[#allocation2 + $0x20] sm:$0xff]
    %v3298 = vld [vmem:[#allocation2 + $0x28] sm:$0xff]
    %v3299 = vld [vmem:[#allocation2 + $0x30] sm:$0xff]
    %v3300 = vld [vmem:[#allocation2 + $0x38] sm:$0xff]
    %v3301 = vld [vmem:[#allocation2 + $0x40] sm:$0xff]
    %v3302 = vld [vmem:[#allocation2 + $0x48] sm:$0xff]
    %v3303 = vld [vmem:[#allocation2 + $0x50] sm:$0xff]
    %v3304 = vld [vmem:[#allocation2 + $0x58] sm:$0xff]
    %v3305 = vld [vmem:[#allocation2 + $0x60] sm:$0xff]
    %v3306 = vld [vmem:[#allocation2 + $0x68] sm:$0xff]
    %v3307 = vld [vmem:[#allocation2 + $0x70] sm:$0xff]
    %v3308 = vld [vmem:[#allocation2 + $0x78] sm:$0xff]
    %v3309 = vld [vmem:[#allocation2 + $0x80] sm:$0xff]
    %v3310 = vld [vmem:[#allocation2 + $0x88] sm:$0xff]
    %v3311 = vld [vmem:[#allocation2 + $0x90] sm:$0xff]
    %v3312 = vld [vmem:[#allocation2 + $0x98] sm:$0xff]
    %v3313 = vld [vmem:[#allocation2 + $0xa0] sm:$0xff]
    %v3314 = vld [vmem:[#allocation2 + $0xa8] sm:$0xff]
    %v3315 = vld [vmem:[#allocation2 + $0xb0] sm:$0xff]
    %v3316 = vld [vmem:[#allocation2 + $0xb8] sm:$0xff]
    %v3317 = vld [vmem:[#allocation2 + $0xc0] sm:$0xff]
    %v3318 = vld [vmem:[#allocation2 + $0xc8] sm:$0xff]
    %v3319 = vld [vmem:[#allocation2 + $0xd0] sm:$0xff]
    %v3320 = vld [vmem:[#allocation2 + $0xd8] sm:$0xff]
    %v3321 = vld [vmem:[#allocation2 + $0xe0] sm:$0xff]
    %v3322 = vld [vmem:[#allocation2 + $0xe8] sm:$0xff]
    %v3323 = vld [vmem:[#allocation2 + $0xf0] sm:$0xff]
    %v3324 = vld [vmem:[#allocation2 + $0xf8] sm:$0xff]
    %3325 = vmatprep.subr.bf16.mxu0 %v3294
    %3326 = vmatpush1.bf16.msra.mxu0 %v3293
    %3327 = vmatprep.subr.bf16.mxu0 %v3296
    %3328 = vmatpush1.bf16.msra.mxu0 %v3295
    %3329 = vmatprep.subr.bf16.mxu0 %v3298
    %3330 = vmatpush1.bf16.msra.mxu0 %v3297
    %3331 = vmatprep.subr.bf16.mxu0 %v3300
    %3332 = vmatpush1.bf16.msra.mxu0 %v3299
    %3333 = vmatprep.subr.bf16.mxu0 %v3302
    %3334 = vmatpush1.bf16.msra.mxu0 %v3301
    %3335 = vmatprep.subr.bf16.mxu0 %v3304
    %3336 = vmatpush1.bf16.msra.mxu0 %v3303
    %3337 = vmatprep.subr.bf16.mxu0 %v3306
    %3338 = vmatpush1.bf16.msra.mxu0 %v3305
    %3339 = vmatprep.subr.bf16.mxu0 %v3308
    %3340 = vmatpush1.bf16.msra.mxu0 %v3307
    %3341 = vmatprep.subr.bf16.mxu0 %v3310
    %3342 = vmatpush1.bf16.msra.mxu0 %v3309
    %3343 = vmatprep.subr.bf16.mxu0 %v3312
    %3344 = vmatpush1.bf16.msra.mxu0 %v3311
    %3345 = vmatprep.subr.bf16.mxu0 %v3314
    %3346 = vmatpush1.bf16.msra.mxu0 %v3313
    %3347 = vmatprep.subr.bf16.mxu0 %v3316
    %3348 = vmatpush1.bf16.msra.mxu0 %v3315
    %3349 = vmatprep.subr.bf16.mxu0 %v3318
    %3350 = vmatpush1.bf16.msra.mxu0 %v3317
    %3351 = vmatprep.subr.bf16.mxu0 %v3320
    %3352 = vmatpush1.bf16.msra.mxu0 %v3319
    %3353 = vmatprep.subr.bf16.mxu0 %v3322
    %3354 = vmatpush1.bf16.msra.mxu0 %v3321
    %3355 = vmatprep.subr.bf16.mxu0 %v3324
    %3356 = vmatpush1.bf16.msra.mxu0 %v3323
    %3357 = vmatprep.mubr.bf16.mxu0 %v3292
    %3358 = vmatmul.mubr.bf16.gmra.mrb[0].mxu0 %v3291
    %v3359 = vpop.f32.mrb[0].mxu0
    %v3360 = vadd.f32 0.0, %v3359
    %v3361 = vpop.f32.mrb[0].mxu0
    %v3362 = vadd.f32 0.0, %v3361
    %v3363 = vpop.f32.mrb[0].mxu0
    %v3364 = vpop.f32.mrb[0].mxu0
    %3365 = vdwg.mxu0
    %s3366 = scalar_lea.vmem [#allocation2], 256
    %v3367 = vld [vmem:[%s3366] sm:$0xff]
    %v3368 = vld [vmem:[%s3366 + $0x8] sm:$0xff]
    %v3369 = vld [vmem:[%s3366 + $0x10] sm:$0xff]
    %v3370 = vld [vmem:[%s3366 + $0x18] sm:$0xff]
    %v3371 = vld [vmem:[%s3366 + $0x20] sm:$0xff]
    %v3372 = vld [vmem:[%s3366 + $0x28] sm:$0xff]
    %v3373 = vld [vmem:[%s3366 + $0x30] sm:$0xff]
    %v3374 = vld [vmem:[%s3366 + $0x38] sm:$0xff]
    %v3375 = vld [vmem:[%s3366 + $0x40] sm:$0xff]
    %v3376 = vld [vmem:[%s3366 + $0x48] sm:$0xff]
    %v3377 = vld [vmem:[%s3366 + $0x50] sm:$0xff]
    %v3378 = vld [vmem:[%s3366 + $0x58] sm:$0xff]
    %v3379 = vld [vmem:[%s3366 + $0x60] sm:$0xff]
    %v3380 = vld [vmem:[%s3366 + $0x68] sm:$0xff]
    %v3381 = vld [vmem:[%s3366 + $0x70] sm:$0xff]
    %v3382 = vld [vmem:[%s3366 + $0x78] sm:$0xff]
    %v3383 = vld [vmem:[%s3366 + $0x80] sm:$0xff]
    %v3384 = vld [vmem:[%s3366 + $0x88] sm:$0xff]
    %v3385 = vld [vmem:[%s3366 + $0x90] sm:$0xff]
    %v3386 = vld [vmem:[%s3366 + $0x98] sm:$0xff]
    %v3387 = vld [vmem:[%s3366 + $0xa0] sm:$0xff]
    %v3388 = vld [vmem:[%s3366 + $0xa8] sm:$0xff]
    %v3389 = vld [vmem:[%s3366 + $0xb0] sm:$0xff]
    %v3390 = vld [vmem:[%s3366 + $0xb8] sm:$0xff]
    %v3391 = vld [vmem:[%s3366 + $0xc0] sm:$0xff]
    %v3392 = vld [vmem:[%s3366 + $0xc8] sm:$0xff]
    %v3393 = vld [vmem:[%s3366 + $0xd0] sm:$0xff]
    %v3394 = vld [vmem:[%s3366 + $0xd8] sm:$0xff]
    %v3395 = vld [vmem:[%s3366 + $0xe0] sm:$0xff]
    %v3396 = vld [vmem:[%s3366 + $0xe8] sm:$0xff]
    %v3397 = vld [vmem:[%s3366 + $0xf0] sm:$0xff]
    %v3398 = vld [vmem:[%s3366 + $0xf8] sm:$0xff]
    %3399 = vmatprep.subr.bf16.mxu0 %v3368
    %3400 = vmatpush1.bf16.msra.mxu0 %v3367
    %3401 = vmatprep.subr.bf16.mxu0 %v3370
    %3402 = vmatpush1.bf16.msra.mxu0 %v3369
    %3403 = vmatprep.subr.bf16.mxu0 %v3372
    %3404 = vmatpush1.bf16.msra.mxu0 %v3371
    %3405 = vmatprep.subr.bf16.mxu0 %v3374
    %3406 = vmatpush1.bf16.msra.mxu0 %v3373
    %3407 = vmatprep.subr.bf16.mxu0 %v3376
    %3408 = vmatpush1.bf16.msra.mxu0 %v3375
    %3409 = vmatprep.subr.bf16.mxu0 %v3378
    %3410 = vmatpush1.bf16.msra.mxu0 %v3377
    %3411 = vmatprep.subr.bf16.mxu0 %v3380
    %3412 = vmatpush1.bf16.msra.mxu0 %v3379
    %3413 = vmatprep.subr.bf16.mxu0 %v3382
    %3414 = vmatpush1.bf16.msra.mxu0 %v3381
    %3415 = vmatprep.subr.bf16.mxu0 %v3384
    %3416 = vmatpush1.bf16.msra.mxu0 %v3383
    %3417 = vmatprep.subr.bf16.mxu0 %v3386
    %3418 = vmatpush1.bf16.msra.mxu0 %v3385
    %3419 = vmatprep.subr.bf16.mxu0 %v3388
    %3420 = vmatpush1.bf16.msra.mxu0 %v3387
    %3421 = vmatprep.subr.bf16.mxu0 %v3390
    %3422 = vmatpush1.bf16.msra.mxu0 %v3389
    %3423 = vmatprep.subr.bf16.mxu0 %v3392
    %3424 = vmatpush1.bf16.msra.mxu0 %v3391
    %3425 = vmatprep.subr.bf16.mxu0 %v3394
    %3426 = vmatpush1.bf16.msra.mxu0 %v3393
    %3427 = vmatprep.subr.bf16.mxu0 %v3396
    %3428 = vmatpush1.bf16.msra.mxu0 %v3395
    %3429 = vmatprep.subr.bf16.mxu0 %v3398
    %3430 = vmatpush1.bf16.msra.mxu0 %v3397
    %3431 = vmatprep.mubr.bf16.mxu0 %v3292
    %3432 = vmatmul.mubr.bf16.gmra.mrb[0].mxu0 %v3291
    %v3433 = vpop.f32.mrb[0].mxu0
    %v3434 = vadd.f32 0.0, %v3433
    %v3435 = vpop.f32.mrb[0].mxu0
    %v3436 = vadd.f32 0.0, %v3435
    %v3437 = vpop.f32.mrb[0].mxu0
    %v3438 = vpop.f32.mrb[0].mxu0
    %3439 = vdwg.mxu0
    %s3440 = scalar_lea.vmem [#allocation10], 112
    %v3441 = vld [vmem:[%s3440] sm:$0xf]
    %v3442 = vpack.c.bf16 %v3360, %v3360
    %v3443 = vpack.c.bf16 %v3362, %v3362
    %s3444 = scalar_lea.vmem [#allocation10], 128
    %v3445 = vld [vmem:[%s3444] sm:$0xf]
    %v3446 = vpack.c.bf16 %v3434, %v3434
    %v3447 = vpack.c.bf16 %v3436, %v3436
    %vm3448 = vcmask 15360
    %v3450 = vsel %vm3448, %v3445, 0
    %vm3452 = vcmask 1040384
    %v3454 = vsel %vm3452, %v3446, 0
    %v3457 = vsel %vm3452, %v3447, 0
    %3459 = vmatprep.subr.bf16.mxu0 %v3457
    %3460 = vmatpush1.bf16.msra.mxu0 %v3454
    %3461 = vmatprep.subr.bf16.mxu0 0
    %3462 = vmatpush1.bf16.msra.mxu0 0
    %3463 = vmatprep.subr.bf16.mxu0 0
    %3464 = vmatpush1.bf16.msra.mxu0 0
    %3465 = vmatprep.subr.bf16.mxu0 0
    %3466 = vmatpush1.bf16.msra.mxu0 0
    %3467 = vmatprep.subr.bf16.mxu0 0
    %3468 = vmatpush1.bf16.msra.mxu0 0
    %3469 = vmatprep.subr.bf16.mxu0 0
    %3470 = vmatpush1.bf16.msra.mxu0 0
    %3471 = vmatprep.subr.bf16.mxu0 0
    %3472 = vmatpush1.bf16.msra.mxu0 0
    %3473 = vmatprep.subr.bf16.mxu0 0
    %3474 = vmatpush1.bf16.msra.mxu0 0
    %3475 = vmatprep.subr.bf16.mxu0 0
    %3476 = vmatpush1.bf16.msra.mxu0 0
    %3477 = vmatprep.subr.bf16.mxu0 0
    %3478 = vmatpush1.bf16.msra.mxu0 0
    %3479 = vmatprep.subr.bf16.mxu0 0
    %3480 = vmatpush1.bf16.msra.mxu0 0
    %3481 = vmatprep.subr.bf16.mxu0 0
    %3482 = vmatpush1.bf16.msra.mxu0 0
    %3483 = vmatprep.subr.bf16.mxu0 0
    %3484 = vmatpush1.bf16.msra.mxu0 0
    %3485 = vmatprep.subr.bf16.mxu0 0
    %3486 = vmatpush1.bf16.msra.mxu0 0
    %3487 = vmatprep.subr.bf16.mxu0 0
    %3488 = vmatpush1.bf16.msra.mxu0 0
    %3489 = vmatprep.subr.bf16.mxu0 0
    %3490 = vmatpush1.bf16.msra.mxu0 0
    %3491 = vmatprep.mubr.bf16.mxu0 0
    %3492 = vmatmul.mubr.bf16.gmra.mrb[0].mxu0 %v3450
    %v3493 = vpop.f32.mrb[0].mxu0
    %v3494 = vadd.f32 0.0, %v3493
    %v3495 = vpop.f32.mrb[0].mxu0
    %v3496 = vadd.f32 0.0, %v3495
    %v3497 = vpop.f32.mrb[0].mxu0
    %v3498 = vpop.f32.mrb[0].mxu0
    %3499 = vdwg.mxu0
    %v3501 = vsel %vm3448, %v3441, 0
    %v3504 = vsel %vm3452, %v3442, 0
    %v3507 = vsel %vm3452, %v3443, 0
    %3509 = vmatprep.subr.bf16.mxu0 %v3507
    %3510 = vmatpush1.bf16.msra.mxu0 %v3504
    %3511 = vmatprep.subr.bf16.mxu0 0
    %3512 = vmatpush1.bf16.msra.mxu0 0
    %3513 = vmatprep.subr.bf16.mxu0 0
    %3514 = vmatpush1.bf16.msra.mxu0 0
    %3515 = vmatprep.subr.bf16.mxu0 0
    %3516 = vmatpush1.bf16.msra.mxu0 0
    %3517 = vmatprep.subr.bf16.mxu0 0
    %3518 = vmatpush1.bf16.msra.mxu0 0
    %3519 = vmatprep.subr.bf16.mxu0 0
    %3520 = vmatpush1.bf16.msra.mxu0 0
    %3521 = vmatprep.subr.bf16.mxu0 0
    %3522 = vmatpush1.bf16.msra.mxu0 0
    %3523 = vmatprep.subr.bf16.mxu0 0
    %3524 = vmatpush1.bf16.msra.mxu0 0
    %3525 = vmatprep.subr.bf16.mxu0 0
    %3526 = vmatpush1.bf16.msra.mxu0 0
    %3527 = vmatprep.subr.bf16.mxu0 0
    %3528 = vmatpush1.bf16.msra.mxu0 0
    %3529 = vmatprep.subr.bf16.mxu0 0
    %3530 = vmatpush1.bf16.msra.mxu0 0
    %3531 = vmatprep.subr.bf16.mxu0 0
    %3532 = vmatpush1.bf16.msra.mxu0 0
    %3533 = vmatprep.subr.bf16.mxu0 0
    %3534 = vmatpush1.bf16.msra.mxu0 0
    %3535 = vmatprep.subr.bf16.mxu0 0
    %3536 = vmatpush1.bf16.msra.mxu0 0
    %3537 = vmatprep.subr.bf16.mxu0 0
    %3538 = vmatpush1.bf16.msra.mxu0 0
    %3539 = vmatprep.subr.bf16.mxu0 0
    %3540 = vmatpush1.bf16.msra.mxu0 0
    %3541 = vmatprep.mubr.bf16.mxu0 0
    %3542 = vmatmul.mubr.bf16.gmra.mrb[0].mxu0 %v3501
    %v3543 = vpop.f32.mrb[0].mxu0
    %v3544 = vadd.f32 %v3494, %v3543
    %v3545 = vpop.f32.mrb[0].mxu0
    %v3546 = vadd.f32 %v3496, %v3545
    %v3547 = vpop.f32.mrb[0].mxu0
    %v3548 = vpop.f32.mrb[0].mxu0
    %3549 = vdwg.mxu0
    %s3550 = scalar_lea.vmem [#allocation9], 5
    %v3551 = vld [vmem:[%s3550] ss:$8 sm:$0x3]
    %v3553 = vlaneseq
    %v3554 = vshrl.u32 %v3553, 7
    %v3555 = vsub.s32 0, %v3554
    %v3556 = vrot.slane %v3551, %v3555
    %v3557 = vlaneseq
    %v3558 = vshrl.u32 %v3557, 7
    %v3559 = vsub.s32 1, %v3558
    %v3560 = vrot.slane %v3551, %v3559
    %v3563 = vadd.f32 %v3544, %v3556
    %v3564 = vadd.f32 %v3546, %v3560
    %v3565 = vpack.c.bf16 %v3563, %v3563
    %v3566 = vpack.c.bf16 %v3564, %v3564
    %v3567 = vpack.c.bf16 %v2855, %v2855
    %v3568 = vpack.c.bf16 %v2856, %v2856
    %s3569 = scalar_lea.vmem [#allocation3], 256
    %v3570 = vld [vmem:[%s3569] sm:$0xff]
    %v3571 = vld [vmem:[%s3569 + $0x8] sm:$0xff]
    %v3572 = vld [vmem:[%s3569 + $0x10] sm:$0xff]
    %v3573 = vld [vmem:[%s3569 + $0x18] sm:$0xff]
    %v3574 = vld [vmem:[%s3569 + $0x20] sm:$0xff]
    %v3575 = vld [vmem:[%s3569 + $0x28] sm:$0xff]
    %v3576 = vld [vmem:[%s3569 + $0x30] sm:$0xff]
    %v3577 = vld [vmem:[%s3569 + $0x38] sm:$0xff]
    %v3578 = vld [vmem:[%s3569 + $0x40] sm:$0xff]
    %v3579 = vld [vmem:[%s3569 + $0x48] sm:$0xff]
    %v3580 = vld [vmem:[%s3569 + $0x50] sm:$0xff]
    %v3581 = vld [vmem:[%s3569 + $0x58] sm:$0xff]
    %v3582 = vld [vmem:[%s3569 + $0x60] sm:$0xff]
    %v3583 = vld [vmem:[%s3569 + $0x68] sm:$0xff]
    %v3584 = vld [vmem:[%s3569 + $0x70] sm:$0xff]
    %v3585 = vld [vmem:[%s3569 + $0x78] sm:$0xff]
    %v3586 = vld [vmem:[%s3569 + $0x80] sm:$0xff]
    %v3587 = vld [vmem:[%s3569 + $0x88] sm:$0xff]
    %v3588 = vld [vmem:[%s3569 + $0x90] sm:$0xff]
    %v3589 = vld [vmem:[%s3569 + $0x98] sm:$0xff]
    %v3590 = vld [vmem:[%s3569 + $0xa0] sm:$0xff]
    %v3591 = vld [vmem:[%s3569 + $0xa8] sm:$0xff]
    %v3592 = vld [vmem:[%s3569 + $0xb0] sm:$0xff]
    %v3593 = vld [vmem:[%s3569 + $0xb8] sm:$0xff]
    %v3594 = vld [vmem:[%s3569 + $0xc0] sm:$0xff]
    %v3595 = vld [vmem:[%s3569 + $0xc8] sm:$0xff]
    %v3596 = vld [vmem:[%s3569 + $0xd0] sm:$0xff]
    %v3597 = vld [vmem:[%s3569 + $0xd8] sm:$0xff]
    %v3598 = vld [vmem:[%s3569 + $0xe0] sm:$0xff]
    %v3599 = vld [vmem:[%s3569 + $0xe8] sm:$0xff]
    %v3600 = vld [vmem:[%s3569 + $0xf0] sm:$0xff]
    %v3601 = vld [vmem:[%s3569 + $0xf8] sm:$0xff]
    %s3602 = scalar_lea.vmem [#allocation3], 1024
    %v3603 = vld [vmem:[%s3602] sm:$0xff]
    %v3604 = vld [vmem:[%s3602 + $0x8] sm:$0xff]
    %v3605 = vld [vmem:[%s3602 + $0x10] sm:$0xff]
    %v3606 = vld [vmem:[%s3602 + $0x18] sm:$0xff]
    %v3607 = vld [vmem:[%s3602 + $0x20] sm:$0xff]
    %v3608 = vld [vmem:[%s3602 + $0x28] sm:$0xff]
    %v3609 = vld [vmem:[%s3602 + $0x30] sm:$0xff]
    %v3610 = vld [vmem:[%s3602 + $0x38] sm:$0xff]
    %v3611 = vld [vmem:[%s3602 + $0x40] sm:$0xff]
    %v3612 = vld [vmem:[%s3602 + $0x48] sm:$0xff]
    %v3613 = vld [vmem:[%s3602 + $0x50] sm:$0xff]
    %v3614 = vld [vmem:[%s3602 + $0x58] sm:$0xff]
    %v3615 = vld [vmem:[%s3602 + $0x60] sm:$0xff]
    %v3616 = vld [vmem:[%s3602 + $0x68] sm:$0xff]
    %v3617 = vld [vmem:[%s3602 + $0x70] sm:$0xff]
    %v3618 = vld [vmem:[%s3602 + $0x78] sm:$0xff]
    %v3619 = vld [vmem:[%s3602 + $0x80] sm:$0xff]
    %v3620 = vld [vmem:[%s3602 + $0x88] sm:$0xff]
    %v3621 = vld [vmem:[%s3602 + $0x90] sm:$0xff]
    %v3622 = vld [vmem:[%s3602 + $0x98] sm:$0xff]
    %v3623 = vld [vmem:[%s3602 + $0xa0] sm:$0xff]
    %v3624 = vld [vmem:[%s3602 + $0xa8] sm:$0xff]
    %v3625 = vld [vmem:[%s3602 + $0xb0] sm:$0xff]
    %v3626 = vld [vmem:[%s3602 + $0xb8] sm:$0xff]
    %v3627 = vld [vmem:[%s3602 + $0xc0] sm:$0xff]
    %v3628 = vld [vmem:[%s3602 + $0xc8] sm:$0xff]
    %v3629 = vld [vmem:[%s3602 + $0xd0] sm:$0xff]
    %v3630 = vld [vmem:[%s3602 + $0xd8] sm:$0xff]
    %v3631 = vld [vmem:[%s3602 + $0xe0] sm:$0xff]
    %v3632 = vld [vmem:[%s3602 + $0xe8] sm:$0xff]
    %v3633 = vld [vmem:[%s3602 + $0xf0] sm:$0xff]
    %v3634 = vld [vmem:[%s3602 + $0xf8] sm:$0xff]
    %3635 = vmatprep.subr.bf16.mxu0 %v3604
    %3636 = vmatpush1.bf16.msra.mxu0 %v3603
    %3637 = vmatprep.subr.bf16.mxu0 %v3606
    %3638 = vmatpush1.bf16.msra.mxu0 %v3605
    %3639 = vmatprep.subr.bf16.mxu0 %v3608
    %3640 = vmatpush1.bf16.msra.mxu0 %v3607
    %3641 = vmatprep.subr.bf16.mxu0 %v3610
    %3642 = vmatpush1.bf16.msra.mxu0 %v3609
    %3643 = vmatprep.subr.bf16.mxu0 %v3612
    %3644 = vmatpush1.bf16.msra.mxu0 %v3611
    %3645 = vmatprep.subr.bf16.mxu0 %v3614
    %3646 = vmatpush1.bf16.msra.mxu0 %v3613
    %3647 = vmatprep.subr.bf16.mxu0 %v3616
    %3648 = vmatpush1.bf16.msra.mxu0 %v3615
    %3649 = vmatprep.subr.bf16.mxu0 %v3618
    %3650 = vmatpush1.bf16.msra.mxu0 %v3617
    %3651 = vmatprep.subr.bf16.mxu0 %v3620
    %3652 = vmatpush1.bf16.msra.mxu0 %v3619
    %3653 = vmatprep.subr.bf16.mxu0 %v3622
    %3654 = vmatpush1.bf16.msra.mxu0 %v3621
    %3655 = vmatprep.subr.bf16.mxu0 %v3624
    %3656 = vmatpush1.bf16.msra.mxu0 %v3623
    %3657 = vmatprep.subr.bf16.mxu0 %v3626
    %3658 = vmatpush1.bf16.msra.mxu0 %v3625
    %3659 = vmatprep.subr.bf16.mxu0 %v3628
    %3660 = vmatpush1.bf16.msra.mxu0 %v3627
    %3661 = vmatprep.subr.bf16.mxu0 %v3630
    %3662 = vmatpush1.bf16.msra.mxu0 %v3629
    %3663 = vmatprep.subr.bf16.mxu0 %v3632
    %3664 = vmatpush1.bf16.msra.mxu0 %v3631
    %3665 = vmatprep.subr.bf16.mxu0 %v3634
    %3666 = vmatpush1.bf16.msra.mxu0 %v3633
    %3667 = vmatprep.mubr.bf16.mxu0 %v3568
    %3668 = vmatmul.mubr.bf16.gmra.mrb[0].mxu0 %v3567
    %v3669 = vpop.f32.mrb[0].mxu0
    %v3670 = vadd.f32 0.0, %v3669
    %v3671 = vpop.f32.mrb[0].mxu0
    %v3672 = vadd.f32 0.0, %v3671
    %v3673 = vpop.f32.mrb[0].mxu0
    %v3674 = vpop.f32.mrb[0].mxu0
    %3675 = vdwg.mxu0
    %3676 = vmatprep.subr.bf16.mxu0 %v3571
    %3677 = vmatpush1.bf16.msra.mxu0 %v3570
    %3678 = vmatprep.subr.bf16.mxu0 %v3573
    %3679 = vmatpush1.bf16.msra.mxu0 %v3572
    %3680 = vmatprep.subr.bf16.mxu0 %v3575
    %3681 = vmatpush1.bf16.msra.mxu0 %v3574
    %3682 = vmatprep.subr.bf16.mxu0 %v3577
    %3683 = vmatpush1.bf16.msra.mxu0 %v3576
    %3684 = vmatprep.subr.bf16.mxu0 %v3579
    %3685 = vmatpush1.bf16.msra.mxu0 %v3578
    %3686 = vmatprep.subr.bf16.mxu0 %v3581
    %3687 = vmatpush1.bf16.msra.mxu0 %v3580
    %3688 = vmatprep.subr.bf16.mxu0 %v3583
    %3689 = vmatpush1.bf16.msra.mxu0 %v3582
    %3690 = vmatprep.subr.bf16.mxu0 %v3585
    %3691 = vmatpush1.bf16.msra.mxu0 %v3584
    %3692 = vmatprep.subr.bf16.mxu0 %v3587
    %3693 = vmatpush1.bf16.msra.mxu0 %v3586
    %3694 = vmatprep.subr.bf16.mxu0 %v3589
    %3695 = vmatpush1.bf16.msra.mxu0 %v3588
    %3696 = vmatprep.subr.bf16.mxu0 %v3591
    %3697 = vmatpush1.bf16.msra.mxu0 %v3590
    %3698 = vmatprep.subr.bf16.mxu0 %v3593
    %3699 = vmatpush1.bf16.msra.mxu0 %v3592
    %3700 = vmatprep.subr.bf16.mxu0 %v3595
    %3701 = vmatpush1.bf16.msra.mxu0 %v3594
    %3702 = vmatprep.subr.bf16.mxu0 %v3597
    %3703 = vmatpush1.bf16.msra.mxu0 %v3596
    %3704 = vmatprep.subr.bf16.mxu0 %v3599
    %3705 = vmatpush1.bf16.msra.mxu0 %v3598
    %3706 = vmatprep.subr.bf16.mxu0 %v3601
    %3707 = vmatpush1.bf16.msra.mxu0 %v3600
    %3708 = vmatprep.mubr.bf16.mxu0 %v3566
    %3709 = vmatmul.mubr.bf16.gmra.mrb[0].mxu0 %v3565
    %v3710 = vpop.f32.mrb[0].mxu0
    %v3711 = vadd.f32 %v3670, %v3710
    %v3712 = vpop.f32.mrb[0].mxu0
    %v3713 = vadd.f32 %v3672, %v3712
    %v3714 = vpop.f32.mrb[0].mxu0
    %v3715 = vpop.f32.mrb[0].mxu0
    %3716 = vdwg.mxu0
    %v3717 = vld [vmem:[#allocation3] sm:$0xff]
    %v3718 = vld [vmem:[#allocation3 + $0x8] sm:$0xff]
    %v3719 = vld [vmem:[#allocation3 + $0x10] sm:$0xff]
    %v3720 = vld [vmem:[#allocation3 + $0x18] sm:$0xff]
    %v3721 = vld [vmem:[#allocation3 + $0x20] sm:$0xff]
    %v3722 = vld [vmem:[#allocation3 + $0x28] sm:$0xff]
    %v3723 = vld [vmem:[#allocation3 + $0x30] sm:$0xff]
    %v3724 = vld [vmem:[#allocation3 + $0x38] sm:$0xff]
    %v3725 = vld [vmem:[#allocation3 + $0x40] sm:$0xff]
    %v3726 = vld [vmem:[#allocation3 + $0x48] sm:$0xff]
    %v3727 = vld [vmem:[#allocation3 + $0x50] sm:$0xff]
    %v3728 = vld [vmem:[#allocation3 + $0x58] sm:$0xff]
    %v3729 = vld [vmem:[#allocation3 + $0x60] sm:$0xff]
    %v3730 = vld [vmem:[#allocation3 + $0x68] sm:$0xff]
    %v3731 = vld [vmem:[#allocation3 + $0x70] sm:$0xff]
    %v3732 = vld [vmem:[#allocation3 + $0x78] sm:$0xff]
    %v3733 = vld [vmem:[#allocation3 + $0x80] sm:$0xff]
    %v3734 = vld [vmem:[#allocation3 + $0x88] sm:$0xff]
    %v3735 = vld [vmem:[#allocation3 + $0x90] sm:$0xff]
    %v3736 = vld [vmem:[#allocation3 + $0x98] sm:$0xff]
    %v3737 = vld [vmem:[#allocation3 + $0xa0] sm:$0xff]
    %v3738 = vld [vmem:[#allocation3 + $0xa8] sm:$0xff]
    %v3739 = vld [vmem:[#allocation3 + $0xb0] sm:$0xff]
    %v3740 = vld [vmem:[#allocation3 + $0xb8] sm:$0xff]
    %v3741 = vld [vmem:[#allocation3 + $0xc0] sm:$0xff]
    %v3742 = vld [vmem:[#allocation3 + $0xc8] sm:$0xff]
    %v3743 = vld [vmem:[#allocation3 + $0xd0] sm:$0xff]
    %v3744 = vld [vmem:[#allocation3 + $0xd8] sm:$0xff]
    %v3745 = vld [vmem:[#allocation3 + $0xe0] sm:$0xff]
    %v3746 = vld [vmem:[#allocation3 + $0xe8] sm:$0xff]
    %v3747 = vld [vmem:[#allocation3 + $0xf0] sm:$0xff]
    %v3748 = vld [vmem:[#allocation3 + $0xf8] sm:$0xff]
    %s3749 = scalar_lea.vmem [#allocation3], 768
    %v3750 = vld [vmem:[%s3749] sm:$0xff]
    %v3751 = vld [vmem:[%s3749 + $0x8] sm:$0xff]
    %v3752 = vld [vmem:[%s3749 + $0x10] sm:$0xff]
    %v3753 = vld [vmem:[%s3749 + $0x18] sm:$0xff]
    %v3754 = vld [vmem:[%s3749 + $0x20] sm:$0xff]
    %v3755 = vld [vmem:[%s3749 + $0x28] sm:$0xff]
    %v3756 = vld [vmem:[%s3749 + $0x30] sm:$0xff]
    %v3757 = vld [vmem:[%s3749 + $0x38] sm:$0xff]
    %v3758 = vld [vmem:[%s3749 + $0x40] sm:$0xff]
    %v3759 = vld [vmem:[%s3749 + $0x48] sm:$0xff]
    %v3760 = vld [vmem:[%s3749 + $0x50] sm:$0xff]
    %v3761 = vld [vmem:[%s3749 + $0x58] sm:$0xff]
    %v3762 = vld [vmem:[%s3749 + $0x60] sm:$0xff]
    %v3763 = vld [vmem:[%s3749 + $0x68] sm:$0xff]
    %v3764 = vld [vmem:[%s3749 + $0x70] sm:$0xff]
    %v3765 = vld [vmem:[%s3749 + $0x78] sm:$0xff]
    %v3766 = vld [vmem:[%s3749 + $0x80] sm:$0xff]
    %v3767 = vld [vmem:[%s3749 + $0x88] sm:$0xff]
    %v3768 = vld [vmem:[%s3749 + $0x90] sm:$0xff]
    %v3769 = vld [vmem:[%s3749 + $0x98] sm:$0xff]
    %v3770 = vld [vmem:[%s3749 + $0xa0] sm:$0xff]
    %v3771 = vld [vmem:[%s3749 + $0xa8] sm:$0xff]
    %v3772 = vld [vmem:[%s3749 + $0xb0] sm:$0xff]
    %v3773 = vld [vmem:[%s3749 + $0xb8] sm:$0xff]
    %v3774 = vld [vmem:[%s3749 + $0xc0] sm:$0xff]
    %v3775 = vld [vmem:[%s3749 + $0xc8] sm:$0xff]
    %v3776 = vld [vmem:[%s3749 + $0xd0] sm:$0xff]
    %v3777 = vld [vmem:[%s3749 + $0xd8] sm:$0xff]
    %v3778 = vld [vmem:[%s3749 + $0xe0] sm:$0xff]
    %v3779 = vld [vmem:[%s3749 + $0xe8] sm:$0xff]
    %v3780 = vld [vmem:[%s3749 + $0xf0] sm:$0xff]
    %v3781 = vld [vmem:[%s3749 + $0xf8] sm:$0xff]
    %3782 = vmatprep.subr.bf16.mxu0 %v3751
    %3783 = vmatpush1.bf16.msra.mxu0 %v3750
    %3784 = vmatprep.subr.bf16.mxu0 %v3753
    %3785 = vmatpush1.bf16.msra.mxu0 %v3752
    %3786 = vmatprep.subr.bf16.mxu0 %v3755
    %3787 = vmatpush1.bf16.msra.mxu0 %v3754
    %3788 = vmatprep.subr.bf16.mxu0 %v3757
    %3789 = vmatpush1.bf16.msra.mxu0 %v3756
    %3790 = vmatprep.subr.bf16.mxu0 %v3759
    %3791 = vmatpush1.bf16.msra.mxu0 %v3758
    %3792 = vmatprep.subr.bf16.mxu0 %v3761
    %3793 = vmatpush1.bf16.msra.mxu0 %v3760
    %3794 = vmatprep.subr.bf16.mxu0 %v3763
    %3795 = vmatpush1.bf16.msra.mxu0 %v3762
    %3796 = vmatprep.subr.bf16.mxu0 %v3765
    %3797 = vmatpush1.bf16.msra.mxu0 %v3764
    %3798 = vmatprep.subr.bf16.mxu0 %v3767
    %3799 = vmatpush1.bf16.msra.mxu0 %v3766
    %3800 = vmatprep.subr.bf16.mxu0 %v3769
    %3801 = vmatpush1.bf16.msra.mxu0 %v3768
    %3802 = vmatprep.subr.bf16.mxu0 %v3771
    %3803 = vmatpush1.bf16.msra.mxu0 %v3770
    %3804 = vmatprep.subr.bf16.mxu0 %v3773
    %3805 = vmatpush1.bf16.msra.mxu0 %v3772
    %3806 = vmatprep.subr.bf16.mxu0 %v3775
    %3807 = vmatpush1.bf16.msra.mxu0 %v3774
    %3808 = vmatprep.subr.bf16.mxu0 %v3777
    %3809 = vmatpush1.bf16.msra.mxu0 %v3776
    %3810 = vmatprep.subr.bf16.mxu0 %v3779
    %3811 = vmatpush1.bf16.msra.mxu0 %v3778
    %3812 = vmatprep.subr.bf16.mxu0 %v3781
    %3813 = vmatpush1.bf16.msra.mxu0 %v3780
    %3814 = vmatprep.mubr.bf16.mxu0 %v3568
    %3815 = vmatmul.mubr.bf16.gmra.mrb[0].mxu0 %v3567
    %v3816 = vpop.f32.mrb[0].mxu0
    %v3817 = vadd.f32 0.0, %v3816
    %v3818 = vpop.f32.mrb[0].mxu0
    %v3819 = vadd.f32 0.0, %v3818
    %v3820 = vpop.f32.mrb[0].mxu0
    %v3821 = vpop.f32.mrb[0].mxu0
    %3822 = vdwg.mxu0
    %3823 = vmatprep.subr.bf16.mxu0 %v3718
    %3824 = vmatpush1.bf16.msra.mxu0 %v3717
    %3825 = vmatprep.subr.bf16.mxu0 %v3720
    %3826 = vmatpush1.bf16.msra.mxu0 %v3719
    %3827 = vmatprep.subr.bf16.mxu0 %v3722
    %3828 = vmatpush1.bf16.msra.mxu0 %v3721
    %3829 = vmatprep.subr.bf16.mxu0 %v3724
    %3830 = vmatpush1.bf16.msra.mxu0 %v3723
    %3831 = vmatprep.subr.bf16.mxu0 %v3726
    %3832 = vmatpush1.bf16.msra.mxu0 %v3725
    %3833 = vmatprep.subr.bf16.mxu0 %v3728
    %3834 = vmatpush1.bf16.msra.mxu0 %v3727
    %3835 = vmatprep.subr.bf16.mxu0 %v3730
    %3836 = vmatpush1.bf16.msra.mxu0 %v3729
    %3837 = vmatprep.subr.bf16.mxu0 %v3732
    %3838 = vmatpush1.bf16.msra.mxu0 %v3731
    %3839 = vmatprep.subr.bf16.mxu0 %v3734
    %3840 = vmatpush1.bf16.msra.mxu0 %v3733
    %3841 = vmatprep.subr.bf16.mxu0 %v3736
    %3842 = vmatpush1.bf16.msra.mxu0 %v3735
    %3843 = vmatprep.subr.bf16.mxu0 %v3738
    %3844 = vmatpush1.bf16.msra.mxu0 %v3737
    %3845 = vmatprep.subr.bf16.mxu0 %v3740
    %3846 = vmatpush1.bf16.msra.mxu0 %v3739
    %3847 = vmatprep.subr.bf16.mxu0 %v3742
    %3848 = vmatpush1.bf16.msra.mxu0 %v3741
    %3849 = vmatprep.subr.bf16.mxu0 %v3744
    %3850 = vmatpush1.bf16.msra.mxu0 %v3743
    %3851 = vmatprep.subr.bf16.mxu0 %v3746
    %3852 = vmatpush1.bf16.msra.mxu0 %v3745
    %3853 = vmatprep.subr.bf16.mxu0 %v3748
    %3854 = vmatpush1.bf16.msra.mxu0 %v3747
    %3855 = vmatprep.mubr.bf16.mxu0 %v3566
    %3856 = vmatmul.mubr.bf16.gmra.mrb[0].mxu0 %v3565
    %v3857 = vpop.f32.mrb[0].mxu0
    %v3858 = vadd.f32 %v3817, %v3857
    %v3859 = vpop.f32.mrb[0].mxu0
    %v3860 = vadd.f32 %v3819, %v3859
    %v3861 = vpop.f32.mrb[0].mxu0
    %v3862 = vpop.f32.mrb[0].mxu0
    %3863 = vdwg.mxu0
    %s3864 = scalar_lea.vmem [#allocation3], 512
    %v3865 = vld [vmem:[%s3864] sm:$0xff]
    %v3866 = vld [vmem:[%s3864 + $0x8] sm:$0xff]
    %v3867 = vld [vmem:[%s3864 + $0x10] sm:$0xff]
    %v3868 = vld [vmem:[%s3864 + $0x18] sm:$0xff]
    %v3869 = vld [vmem:[%s3864 + $0x20] sm:$0xff]
    %v3870 = vld [vmem:[%s3864 + $0x28] sm:$0xff]
    %v3871 = vld [vmem:[%s3864 + $0x30] sm:$0xff]
    %v3872 = vld [vmem:[%s3864 + $0x38] sm:$0xff]
    %v3873 = vld [vmem:[%s3864 + $0x40] sm:$0xff]
    %v3874 = vld [vmem:[%s3864 + $0x48] sm:$0xff]
    %v3875 = vld [vmem:[%s3864 + $0x50] sm:$0xff]
    %v3876 = vld [vmem:[%s3864 + $0x58] sm:$0xff]
    %v3877 = vld [vmem:[%s3864 + $0x60] sm:$0xff]
    %v3878 = vld [vmem:[%s3864 + $0x68] sm:$0xff]
    %v3879 = vld [vmem:[%s3864 + $0x70] sm:$0xff]
    %v3880 = vld [vmem:[%s3864 + $0x78] sm:$0xff]
    %v3881 = vld [vmem:[%s3864 + $0x80] sm:$0xff]
    %v3882 = vld [vmem:[%s3864 + $0x88] sm:$0xff]
    %v3883 = vld [vmem:[%s3864 + $0x90] sm:$0xff]
    %v3884 = vld [vmem:[%s3864 + $0x98] sm:$0xff]
    %v3885 = vld [vmem:[%s3864 + $0xa0] sm:$0xff]
    %v3886 = vld [vmem:[%s3864 + $0xa8] sm:$0xff]
    %v3887 = vld [vmem:[%s3864 + $0xb0] sm:$0xff]
    %v3888 = vld [vmem:[%s3864 + $0xb8] sm:$0xff]
    %v3889 = vld [vmem:[%s3864 + $0xc0] sm:$0xff]
    %v3890 = vld [vmem:[%s3864 + $0xc8] sm:$0xff]
    %v3891 = vld [vmem:[%s3864 + $0xd0] sm:$0xff]
    %v3892 = vld [vmem:[%s3864 + $0xd8] sm:$0xff]
    %v3893 = vld [vmem:[%s3864 + $0xe0] sm:$0xff]
    %v3894 = vld [vmem:[%s3864 + $0xe8] sm:$0xff]
    %v3895 = vld [vmem:[%s3864 + $0xf0] sm:$0xff]
    %v3896 = vld [vmem:[%s3864 + $0xf8] sm:$0xff]
    %s3897 = scalar_lea.vmem [#allocation3], 1280
    %v3898 = vld [vmem:[%s3897] sm:$0xff]
    %v3899 = vld [vmem:[%s3897 + $0x8] sm:$0xff]
    %v3900 = vld [vmem:[%s3897 + $0x10] sm:$0xff]
    %v3901 = vld [vmem:[%s3897 + $0x18] sm:$0xff]
    %v3902 = vld [vmem:[%s3897 + $0x20] sm:$0xff]
    %v3903 = vld [vmem:[%s3897 + $0x28] sm:$0xff]
    %v3904 = vld [vmem:[%s3897 + $0x30] sm:$0xff]
    %v3905 = vld [vmem:[%s3897 + $0x38] sm:$0xff]
    %v3906 = vld [vmem:[%s3897 + $0x40] sm:$0xff]
    %v3907 = vld [vmem:[%s3897 + $0x48] sm:$0xff]
    %v3908 = vld [vmem:[%s3897 + $0x50] sm:$0xff]
    %v3909 = vld [vmem:[%s3897 + $0x58] sm:$0xff]
    %v3910 = vld [vmem:[%s3897 + $0x60] sm:$0xff]
    %v3911 = vld [vmem:[%s3897 + $0x68] sm:$0xff]
    %v3912 = vld [vmem:[%s3897 + $0x70] sm:$0xff]
    %v3913 = vld [vmem:[%s3897 + $0x78] sm:$0xff]
    %v3914 = vld [vmem:[%s3897 + $0x80] sm:$0xff]
    %v3915 = vld [vmem:[%s3897 + $0x88] sm:$0xff]
    %v3916 = vld [vmem:[%s3897 + $0x90] sm:$0xff]
    %v3917 = vld [vmem:[%s3897 + $0x98] sm:$0xff]
    %v3918 = vld [vmem:[%s3897 + $0xa0] sm:$0xff]
    %v3919 = vld [vmem:[%s3897 + $0xa8] sm:$0xff]
    %v3920 = vld [vmem:[%s3897 + $0xb0] sm:$0xff]
    %v3921 = vld [vmem:[%s3897 + $0xb8] sm:$0xff]
    %v3922 = vld [vmem:[%s3897 + $0xc0] sm:$0xff]
    %v3923 = vld [vmem:[%s3897 + $0xc8] sm:$0xff]
    %v3924 = vld [vmem:[%s3897 + $0xd0] sm:$0xff]
    %v3925 = vld [vmem:[%s3897 + $0xd8] sm:$0xff]
    %v3926 = vld [vmem:[%s3897 + $0xe0] sm:$0xff]
    %v3927 = vld [vmem:[%s3897 + $0xe8] sm:$0xff]
    %v3928 = vld [vmem:[%s3897 + $0xf0] sm:$0xff]
    %v3929 = vld [vmem:[%s3897 + $0xf8] sm:$0xff]
    %3930 = vmatprep.subr.bf16.mxu0 %v3899
    %3931 = vmatpush1.bf16.msra.mxu0 %v3898
    %3932 = vmatprep.subr.bf16.mxu0 %v3901
    %3933 = vmatpush1.bf16.msra.mxu0 %v3900
    %3934 = vmatprep.subr.bf16.mxu0 %v3903
    %3935 = vmatpush1.bf16.msra.mxu0 %v3902
    %3936 = vmatprep.subr.bf16.mxu0 %v3905
    %3937 = vmatpush1.bf16.msra.mxu0 %v3904
    %3938 = vmatprep.subr.bf16.mxu0 %v3907
    %3939 = vmatpush1.bf16.msra.mxu0 %v3906
    %3940 = vmatprep.subr.bf16.mxu0 %v3909
    %3941 = vmatpush1.bf16.msra.mxu0 %v3908
    %3942 = vmatprep.subr.bf16.mxu0 %v3911
    %3943 = vmatpush1.bf16.msra.mxu0 %v3910
    %3944 = vmatprep.subr.bf16.mxu0 %v3913
    %3945 = vmatpush1.bf16.msra.mxu0 %v3912
    %3946 = vmatprep.subr.bf16.mxu0 %v3915
    %3947 = vmatpush1.bf16.msra.mxu0 %v3914
    %3948 = vmatprep.subr.bf16.mxu0 %v3917
    %3949 = vmatpush1.bf16.msra.mxu0 %v3916
    %3950 = vmatprep.subr.bf16.mxu0 %v3919
    %3951 = vmatpush1.bf16.msra.mxu0 %v3918
    %3952 = vmatprep.subr.bf16.mxu0 %v3921
    %3953 = vmatpush1.bf16.msra.mxu0 %v3920
    %3954 = vmatprep.subr.bf16.mxu0 %v3923
    %3955 = vmatpush1.bf16.msra.mxu0 %v3922
    %3956 = vmatprep.subr.bf16.mxu0 %v3925
    %3957 = vmatpush1.bf16.msra.mxu0 %v3924
    %3958 = vmatprep.subr.bf16.mxu0 %v3927
    %3959 = vmatpush1.bf16.msra.mxu0 %v3926
    %3960 = vmatprep.subr.bf16.mxu0 %v3929
    %3961 = vmatpush1.bf16.msra.mxu0 %v3928
    %3962 = vmatprep.mubr.bf16.mxu0 %v3568
    %3963 = vmatmul.mubr.bf16.gmra.mrb[0].mxu0 %v3567
    %v3964 = vpop.f32.mrb[0].mxu0
    %v3965 = vadd.f32 0.0, %v3964
    %v3966 = vpop.f32.mrb[0].mxu0
    %v3967 = vadd.f32 0.0, %v3966
    %v3968 = vpop.f32.mrb[0].mxu0
    %v3969 = vpop.f32.mrb[0].mxu0
    %3970 = vdwg.mxu0
    %3971 = vmatprep.subr.bf16.mxu0 %v3866
    %3972 = vmatpush1.bf16.msra.mxu0 %v3865
    %3973 = vmatprep.subr.bf16.mxu0 %v3868
    %3974 = vmatpush1.bf16.msra.mxu0 %v3867
    %3975 = vmatprep.subr.bf16.mxu0 %v3870
    %3976 = vmatpush1.bf16.msra.mxu0 %v3869
    %3977 = vmatprep.subr.bf16.mxu0 %v3872
    %3978 = vmatpush1.bf16.msra.mxu0 %v3871
    %3979 = vmatprep.subr.bf16.mxu0 %v3874
    %3980 = vmatpush1.bf16.msra.mxu0 %v3873
    %3981 = vmatprep.subr.bf16.mxu0 %v3876
    %3982 = vmatpush1.bf16.msra.mxu0 %v3875
    %3983 = vmatprep.subr.bf16.mxu0 %v3878
    %3984 = vmatpush1.bf16.msra.mxu0 %v3877
    %3985 = vmatprep.subr.bf16.mxu0 %v3880
    %3986 = vmatpush1.bf16.msra.mxu0 %v3879
    %3987 = vmatprep.subr.bf16.mxu0 %v3882
    %3988 = vmatpush1.bf16.msra.mxu0 %v3881
    %3989 = vmatprep.subr.bf16.mxu0 %v3884
    %3990 = vmatpush1.bf16.msra.mxu0 %v3883
    %3991 = vmatprep.subr.bf16.mxu0 %v3886
    %3992 = vmatpush1.bf16.msra.mxu0 %v3885
    %3993 = vmatprep.subr.bf16.mxu0 %v3888
    %3994 = vmatpush1.bf16.msra.mxu0 %v3887
    %3995 = vmatprep.subr.bf16.mxu0 %v3890
    %3996 = vmatpush1.bf16.msra.mxu0 %v3889
    %3997 = vmatprep.subr.bf16.mxu0 %v3892
    %3998 = vmatpush1.bf16.msra.mxu0 %v3891
    %3999 = vmatprep.subr.bf16.mxu0 %v3894
    %4000 = vmatpush1.bf16.msra.mxu0 %v3893
    %4001 = vmatprep.subr.bf16.mxu0 %v3896
    %4002 = vmatpush1.bf16.msra.mxu0 %v3895
    %4003 = vmatprep.mubr.bf16.mxu0 %v3566
    %4004 = vmatmul.mubr.bf16.gmra.mrb[0].mxu0 %v3565
    %v4005 = vpop.f32.mrb[0].mxu0
    %v4006 = vadd.f32 %v3965, %v4005
    %v4007 = vpop.f32.mrb[0].mxu0
    %v4008 = vadd.f32 %v3967, %v4007
    %v4009 = vpop.f32.mrb[0].mxu0
    %v4010 = vpop.f32.mrb[0].mxu0
    %4011 = vdwg.mxu0
    %v4012 = vld [vmem:[#allocation10] sm:$0xf]
    %v4013 = vpack.c.bf16 %v3858, %v3858
    %v4014 = vpack.c.bf16 %v3860, %v3860
    %v4016 = vsel %vm2611, %v4012, 0
    %v4019 = vsel %vm2615, %v4013, 0
    %v4022 = vsel %vm2615, %v4014, 0
    %4024 = vmatprep.subr.bf16.mxu0 %v4022
    %4025 = vmatpush1.bf16.msra.mxu0 %v4019
    %4026 = vmatprep.subr.bf16.mxu0 0
    %4027 = vmatpush1.bf16.msra.mxu0 0
    %4028 = vmatprep.subr.bf16.mxu0 0
    %4029 = vmatpush1.bf16.msra.mxu0 0
    %4030 = vmatprep.subr.bf16.mxu0 0
    %4031 = vmatpush1.bf16.msra.mxu0 0
    %4032 = vmatprep.subr.bf16.mxu0 0
    %4033 = vmatpush1.bf16.msra.mxu0 0
    %4034 = vmatprep.subr.bf16.mxu0 0
    %4035 = vmatpush1.bf16.msra.mxu0 0
    %4036 = vmatprep.subr.bf16.mxu0 0
    %4037 = vmatpush1.bf16.msra.mxu0 0
    %4038 = vmatprep.subr.bf16.mxu0 0
    %4039 = vmatpush1.bf16.msra.mxu0 0
    %4040 = vmatprep.subr.bf16.mxu0 0
    %4041 = vmatpush1.bf16.msra.mxu0 0
    %4042 = vmatprep.subr.bf16.mxu0 0
    %4043 = vmatpush1.bf16.msra.mxu0 0
    %4044 = vmatprep.subr.bf16.mxu0 0
    %4045 = vmatpush1.bf16.msra.mxu0 0
    %4046 = vmatprep.subr.bf16.mxu0 0
    %4047 = vmatpush1.bf16.msra.mxu0 0
    %4048 = vmatprep.subr.bf16.mxu0 0
    %4049 = vmatpush1.bf16.msra.mxu0 0
    %4050 = vmatprep.subr.bf16.mxu0 0
    %4051 = vmatpush1.bf16.msra.mxu0 0
    %4052 = vmatprep.subr.bf16.mxu0 0
    %4053 = vmatpush1.bf16.msra.mxu0 0
    %4054 = vmatprep.subr.bf16.mxu0 0
    %4055 = vmatpush1.bf16.msra.mxu0 0
    %4056 = vmatprep.mubr.bf16.mxu0 0
    %4057 = vmatmul.mubr.bf16.gmra.mrb[0].mxu0 %v4016
    %v4058 = vpop.f32.mrb[0].mxu0
    %v4059 = vadd.f32 0.0, %v4058
    %v4060 = vpop.f32.mrb[0].mxu0
    %v4061 = vadd.f32 0.0, %v4060
    %v4062 = vpop.f32.mrb[0].mxu0
    %v4063 = vpop.f32.mrb[0].mxu0
    %4064 = vdwg.mxu0
    %v4065 = vadd.f32 %v3711, %v4059
    %v4066 = vadd.f32 %v3713, %v4061
    %v4067 = vld [vmem:[%s2784] sm:$0xf]
    %v4068 = vpack.c.bf16 %v4006, %v4006
    %v4069 = vpack.c.bf16 %v4008, %v4008
    %v4071 = vsel %vm2611, %v4067, 0
    %v4074 = vsel %vm2615, %v4068, 0
    %v4077 = vsel %vm2615, %v4069, 0
    %4079 = vmatprep.subr.bf16.mxu0 %v4077
    %4080 = vmatpush1.bf16.msra.mxu0 %v4074
    %4081 = vmatprep.subr.bf16.mxu0 0
    %4082 = vmatpush1.bf16.msra.mxu0 0
    %4083 = vmatprep.subr.bf16.mxu0 0
    %4084 = vmatpush1.bf16.msra.mxu0 0
    %4085 = vmatprep.subr.bf16.mxu0 0
    %4086 = vmatpush1.bf16.msra.mxu0 0
    %4087 = vmatprep.subr.bf16.mxu0 0
    %4088 = vmatpush1.bf16.msra.mxu0 0
    %4089 = vmatprep.subr.bf16.mxu0 0
    %4090 = vmatpush1.bf16.msra.mxu0 0
    %4091 = vmatprep.subr.bf16.mxu0 0
    %4092 = vmatpush1.bf16.msra.mxu0 0
    %4093 = vmatprep.subr.bf16.mxu0 0
    %4094 = vmatpush1.bf16.msra.mxu0 0
    %4095 = vmatprep.subr.bf16.mxu0 0
    %4096 = vmatpush1.bf16.msra.mxu0 0
    %4097 = vmatprep.subr.bf16.mxu0 0
    %4098 = vmatpush1.bf16.msra.mxu0 0
    %4099 = vmatprep.subr.bf16.mxu0 0
    %4100 = vmatpush1.bf16.msra.mxu0 0
    %4101 = vmatprep.subr.bf16.mxu0 0
    %4102 = vmatpush1.bf16.msra.mxu0 0
    %4103 = vmatprep.subr.bf16.mxu0 0
    %4104 = vmatpush1.bf16.msra.mxu0 0
    %4105 = vmatprep.subr.bf16.mxu0 0
    %4106 = vmatpush1.bf16.msra.mxu0 0
    %4107 = vmatprep.subr.bf16.mxu0 0
    %4108 = vmatpush1.bf16.msra.mxu0 0
    %4109 = vmatprep.subr.bf16.mxu0 0
    %4110 = vmatpush1.bf16.msra.mxu0 0
    %4111 = vmatprep.mubr.bf16.mxu0 0
    %4112 = vmatmul.mubr.bf16.gmra.mrb[0].mxu0 %v4071
    %v4113 = vpop.f32.mrb[0].mxu0
    %v4114 = vadd.f32 0.0, %v4113
    %v4115 = vpop.f32.mrb[0].mxu0
    %v4116 = vadd.f32 0.0, %v4115
    %v4117 = vpop.f32.mrb[0].mxu0
    %v4118 = vpop.f32.mrb[0].mxu0
    %4119 = vdwg.mxu0
    %v4120 = vadd.f32 %v4065, %v4114
    %v4121 = vadd.f32 %v4066, %v4116
    %s4122 = scalar_lea.vmem [#allocation9], 6
    %v4123 = vld [vmem:[%s4122] ss:$8 sm:$0x3]
    %v4125 = vlaneseq
    %v4126 = vshrl.u32 %v4125, 7
    %v4127 = vsub.s32 0, %v4126
    %v4128 = vrot.slane %v4123, %v4127
    %v4129 = vlaneseq
    %v4130 = vshrl.u32 %v4129, 7
    %v4131 = vsub.s32 1, %v4130
    %v4132 = vrot.slane %v4123, %v4131
    %v4135 = vadd.f32 %v4120, %v4128
    %v4136 = vadd.f32 %v4121, %v4132
    %v4137 = vmax.f32 %v4135, 0.0
    %v4138 = vmax.f32 %v4136, 0.0
    %v4139 = vpack.c.bf16 %v4137, %v4137
    %v4140 = vpack.c.bf16 %v4138, %v4138
    %s4141 = scalar_lea.vmem [#allocation2], 512
    %v4142 = vld [vmem:[%s4141] sm:$0xff]
    %v4143 = vld [vmem:[%s4141 + $0x8] sm:$0xff]
    %v4144 = vld [vmem:[%s4141 + $0x10] sm:$0xff]
    %v4145 = vld [vmem:[%s4141 + $0x18] sm:$0xff]
    %v4146 = vld [vmem:[%s4141 + $0x20] sm:$0xff]
    %v4147 = vld [vmem:[%s4141 + $0x28] sm:$0xff]
    %v4148 = vld [vmem:[%s4141 + $0x30] sm:$0xff]
    %v4149 = vld [vmem:[%s4141 + $0x38] sm:$0xff]
    %v4150 = vld [vmem:[%s4141 + $0x40] sm:$0xff]
    %v4151 = vld [vmem:[%s4141 + $0x48] sm:$0xff]
    %v4152 = vld [vmem:[%s4141 + $0x50] sm:$0xff]
    %v4153 = vld [vmem:[%s4141 + $0x58] sm:$0xff]
    %v4154 = vld [vmem:[%s4141 + $0x60] sm:$0xff]
    %v4155 = vld [vmem:[%s4141 + $0x68] sm:$0xff]
    %v4156 = vld [vmem:[%s4141 + $0x70] sm:$0xff]
    %v4157 = vld [vmem:[%s4141 + $0x78] sm:$0xff]
    %v4158 = vld [vmem:[%s4141 + $0x80] sm:$0xff]
    %v4159 = vld [vmem:[%s4141 + $0x88] sm:$0xff]
    %v4160 = vld [vmem:[%s4141 + $0x90] sm:$0xff]
    %v4161 = vld [vmem:[%s4141 + $0x98] sm:$0xff]
    %v4162 = vld [vmem:[%s4141 + $0xa0] sm:$0xff]
    %v4163 = vld [vmem:[%s4141 + $0xa8] sm:$0xff]
    %v4164 = vld [vmem:[%s4141 + $0xb0] sm:$0xff]
    %v4165 = vld [vmem:[%s4141 + $0xb8] sm:$0xff]
    %v4166 = vld [vmem:[%s4141 + $0xc0] sm:$0xff]
    %v4167 = vld [vmem:[%s4141 + $0xc8] sm:$0xff]
    %v4168 = vld [vmem:[%s4141 + $0xd0] sm:$0xff]
    %v4169 = vld [vmem:[%s4141 + $0xd8] sm:$0xff]
    %v4170 = vld [vmem:[%s4141 + $0xe0] sm:$0xff]
    %v4171 = vld [vmem:[%s4141 + $0xe8] sm:$0xff]
    %v4172 = vld [vmem:[%s4141 + $0xf0] sm:$0xff]
    %v4173 = vld [vmem:[%s4141 + $0xf8] sm:$0xff]
    %4174 = vmatprep.subr.bf16.mxu0 %v4143
    %4175 = vmatpush1.bf16.msra.mxu0 %v4142
    %4176 = vmatprep.subr.bf16.mxu0 %v4145
    %4177 = vmatpush1.bf16.msra.mxu0 %v4144
    %4178 = vmatprep.subr.bf16.mxu0 %v4147
    %4179 = vmatpush1.bf16.msra.mxu0 %v4146
    %4180 = vmatprep.subr.bf16.mxu0 %v4149
    %4181 = vmatpush1.bf16.msra.mxu0 %v4148
    %4182 = vmatprep.subr.bf16.mxu0 %v4151
    %4183 = vmatpush1.bf16.msra.mxu0 %v4150
    %4184 = vmatprep.subr.bf16.mxu0 %v4153
    %4185 = vmatpush1.bf16.msra.mxu0 %v4152
    %4186 = vmatprep.subr.bf16.mxu0 %v4155
    %4187 = vmatpush1.bf16.msra.mxu0 %v4154
    %4188 = vmatprep.subr.bf16.mxu0 %v4157
    %4189 = vmatpush1.bf16.msra.mxu0 %v4156
    %4190 = vmatprep.subr.bf16.mxu0 %v4159
    %4191 = vmatpush1.bf16.msra.mxu0 %v4158
    %4192 = vmatprep.subr.bf16.mxu0 %v4161
    %4193 = vmatpush1.bf16.msra.mxu0 %v4160
    %4194 = vmatprep.subr.bf16.mxu0 %v4163
    %4195 = vmatpush1.bf16.msra.mxu0 %v4162
    %4196 = vmatprep.subr.bf16.mxu0 %v4165
    %4197 = vmatpush1.bf16.msra.mxu0 %v4164
    %4198 = vmatprep.subr.bf16.mxu0 %v4167
    %4199 = vmatpush1.bf16.msra.mxu0 %v4166
    %4200 = vmatprep.subr.bf16.mxu0 %v4169
    %4201 = vmatpush1.bf16.msra.mxu0 %v4168
    %4202 = vmatprep.subr.bf16.mxu0 %v4171
    %4203 = vmatpush1.bf16.msra.mxu0 %v4170
    %4204 = vmatprep.subr.bf16.mxu0 %v4173
    %4205 = vmatpush1.bf16.msra.mxu0 %v4172
    %4206 = vmatprep.mubr.bf16.mxu0 %v4140
    %4207 = vmatmul.mubr.bf16.gmra.mrb[0].mxu0 %v4139
    %v4208 = vpop.f32.mrb[0].mxu0
    %v4209 = vadd.f32 0.0, %v4208
    %v4210 = vpop.f32.mrb[0].mxu0
    %v4211 = vadd.f32 0.0, %v4210
    %v4212 = vpop.f32.mrb[0].mxu0
    %v4213 = vpop.f32.mrb[0].mxu0
    %4214 = vdwg.mxu0
    %s4215 = scalar_lea.vmem [#allocation2], 768
    %v4216 = vld [vmem:[%s4215] sm:$0xff]
    %v4217 = vld [vmem:[%s4215 + $0x8] sm:$0xff]
    %v4218 = vld [vmem:[%s4215 + $0x10] sm:$0xff]
    %v4219 = vld [vmem:[%s4215 + $0x18] sm:$0xff]
    %v4220 = vld [vmem:[%s4215 + $0x20] sm:$0xff]
    %v4221 = vld [vmem:[%s4215 + $0x28] sm:$0xff]
    %v4222 = vld [vmem:[%s4215 + $0x30] sm:$0xff]
    %v4223 = vld [vmem:[%s4215 + $0x38] sm:$0xff]
    %v4224 = vld [vmem:[%s4215 + $0x40] sm:$0xff]
    %v4225 = vld [vmem:[%s4215 + $0x48] sm:$0xff]
    %v4226 = vld [vmem:[%s4215 + $0x50] sm:$0xff]
    %v4227 = vld [vmem:[%s4215 + $0x58] sm:$0xff]
    %v4228 = vld [vmem:[%s4215 + $0x60] sm:$0xff]
    %v4229 = vld [vmem:[%s4215 + $0x68] sm:$0xff]
    %v4230 = vld [vmem:[%s4215 + $0x70] sm:$0xff]
    %v4231 = vld [vmem:[%s4215 + $0x78] sm:$0xff]
    %v4232 = vld [vmem:[%s4215 + $0x80] sm:$0xff]
    %v4233 = vld [vmem:[%s4215 + $0x88] sm:$0xff]
    %v4234 = vld [vmem:[%s4215 + $0x90] sm:$0xff]
    %v4235 = vld [vmem:[%s4215 + $0x98] sm:$0xff]
    %v4236 = vld [vmem:[%s4215 + $0xa0] sm:$0xff]
    %v4237 = vld [vmem:[%s4215 + $0xa8] sm:$0xff]
    %v4238 = vld [vmem:[%s4215 + $0xb0] sm:$0xff]
    %v4239 = vld [vmem:[%s4215 + $0xb8] sm:$0xff]
    %v4240 = vld [vmem:[%s4215 + $0xc0] sm:$0xff]
    %v4241 = vld [vmem:[%s4215 + $0xc8] sm:$0xff]
    %v4242 = vld [vmem:[%s4215 + $0xd0] sm:$0xff]
    %v4243 = vld [vmem:[%s4215 + $0xd8] sm:$0xff]
    %v4244 = vld [vmem:[%s4215 + $0xe0] sm:$0xff]
    %v4245 = vld [vmem:[%s4215 + $0xe8] sm:$0xff]
    %v4246 = vld [vmem:[%s4215 + $0xf0] sm:$0xff]
    %v4247 = vld [vmem:[%s4215 + $0xf8] sm:$0xff]
    %4248 = vmatprep.subr.bf16.mxu0 %v4217
    %4249 = vmatpush1.bf16.msra.mxu0 %v4216
    %4250 = vmatprep.subr.bf16.mxu0 %v4219
    %4251 = vmatpush1.bf16.msra.mxu0 %v4218
    %4252 = vmatprep.subr.bf16.mxu0 %v4221
    %4253 = vmatpush1.bf16.msra.mxu0 %v4220
    %4254 = vmatprep.subr.bf16.mxu0 %v4223
    %4255 = vmatpush1.bf16.msra.mxu0 %v4222
    %4256 = vmatprep.subr.bf16.mxu0 %v4225
    %4257 = vmatpush1.bf16.msra.mxu0 %v4224
    %4258 = vmatprep.subr.bf16.mxu0 %v4227
    %4259 = vmatpush1.bf16.msra.mxu0 %v4226
    %4260 = vmatprep.subr.bf16.mxu0 %v4229
    %4261 = vmatpush1.bf16.msra.mxu0 %v4228
    %4262 = vmatprep.subr.bf16.mxu0 %v4231
    %4263 = vmatpush1.bf16.msra.mxu0 %v4230
    %4264 = vmatprep.subr.bf16.mxu0 %v4233
    %4265 = vmatpush1.bf16.msra.mxu0 %v4232
    %4266 = vmatprep.subr.bf16.mxu0 %v4235
    %4267 = vmatpush1.bf16.msra.mxu0 %v4234
    %4268 = vmatprep.subr.bf16.mxu0 %v4237
    %4269 = vmatpush1.bf16.msra.mxu0 %v4236
    %4270 = vmatprep.subr.bf16.mxu0 %v4239
    %4271 = vmatpush1.bf16.msra.mxu0 %v4238
    %4272 = vmatprep.subr.bf16.mxu0 %v4241
    %4273 = vmatpush1.bf16.msra.mxu0 %v4240
    %4274 = vmatprep.subr.bf16.mxu0 %v4243
    %4275 = vmatpush1.bf16.msra.mxu0 %v4242
    %4276 = vmatprep.subr.bf16.mxu0 %v4245
    %4277 = vmatpush1.bf16.msra.mxu0 %v4244
    %4278 = vmatprep.subr.bf16.mxu0 %v4247
    %4279 = vmatpush1.bf16.msra.mxu0 %v4246
    %4280 = vmatprep.mubr.bf16.mxu0 %v4140
    %4281 = vmatmul.mubr.bf16.gmra.mrb[0].mxu0 %v4139
    %v4282 = vpop.f32.mrb[0].mxu0
    %v4283 = vadd.f32 0.0, %v4282
    %v4284 = vpop.f32.mrb[0].mxu0
    %v4285 = vadd.f32 0.0, %v4284
    %v4286 = vpop.f32.mrb[0].mxu0
    %v4287 = vpop.f32.mrb[0].mxu0
    %4288 = vdwg.mxu0
    %s4289 = scalar_lea.vmem [#allocation10], 144
    %v4290 = vld [vmem:[%s4289] sm:$0xf]
    %v4291 = vpack.c.bf16 %v4209, %v4209
    %v4292 = vpack.c.bf16 %v4211, %v4211
    %s4293 = scalar_lea.vmem [#allocation10], 160
    %v4294 = vld [vmem:[%s4293] sm:$0xf]
    %v4295 = vpack.c.bf16 %v4283, %v4283
    %v4296 = vpack.c.bf16 %v4285, %v4285
    %v4298 = vsel %vm2611, %v4294, 0
    %v4301 = vsel %vm2615, %v4295, 0
    %v4304 = vsel %vm2615, %v4296, 0
    %4306 = vmatprep.subr.bf16.mxu0 %v4304
    %4307 = vmatpush1.bf16.msra.mxu0 %v4301
    %4308 = vmatprep.subr.bf16.mxu0 0
    %4309 = vmatpush1.bf16.msra.mxu0 0
    %4310 = vmatprep.subr.bf16.mxu0 0
    %4311 = vmatpush1.bf16.msra.mxu0 0
    %4312 = vmatprep.subr.bf16.mxu0 0
    %4313 = vmatpush1.bf16.msra.mxu0 0
    %4314 = vmatprep.subr.bf16.mxu0 0
    %4315 = vmatpush1.bf16.msra.mxu0 0
    %4316 = vmatprep.subr.bf16.mxu0 0
    %4317 = vmatpush1.bf16.msra.mxu0 0
    %4318 = vmatprep.subr.bf16.mxu0 0
    %4319 = vmatpush1.bf16.msra.mxu0 0
    %4320 = vmatprep.subr.bf16.mxu0 0
    %4321 = vmatpush1.bf16.msra.mxu0 0
    %4322 = vmatprep.subr.bf16.mxu0 0
    %4323 = vmatpush1.bf16.msra.mxu0 0
    %4324 = vmatprep.subr.bf16.mxu0 0
    %4325 = vmatpush1.bf16.msra.mxu0 0
    %4326 = vmatprep.subr.bf16.mxu0 0
    %4327 = vmatpush1.bf16.msra.mxu0 0
    %4328 = vmatprep.subr.bf16.mxu0 0
    %4329 = vmatpush1.bf16.msra.mxu0 0
    %4330 = vmatprep.subr.bf16.mxu0 0
    %4331 = vmatpush1.bf16.msra.mxu0 0
    %4332 = vmatprep.subr.bf16.mxu0 0
    %4333 = vmatpush1.bf16.msra.mxu0 0
    %4334 = vmatprep.subr.bf16.mxu0 0
    %4335 = vmatpush1.bf16.msra.mxu0 0
    %4336 = vmatprep.subr.bf16.mxu0 0
    %4337 = vmatpush1.bf16.msra.mxu0 0
    %4338 = vmatprep.mubr.bf16.mxu0 0
    %4339 = vmatmul.mubr.bf16.gmra.mrb[0].mxu0 %v4298
    %v4340 = vpop.f32.mrb[0].mxu0
    %v4341 = vadd.f32 0.0, %v4340
    %v4342 = vpop.f32.mrb[0].mxu0
    %v4343 = vadd.f32 0.0, %v4342
    %v4344 = vpop.f32.mrb[0].mxu0
    %v4345 = vpop.f32.mrb[0].mxu0
    %4346 = vdwg.mxu0
    %v4348 = vsel %vm2611, %v4290, 0
    %v4351 = vsel %vm2615, %v4291, 0
    %v4354 = vsel %vm2615, %v4292, 0
    %4356 = vmatprep.subr.bf16.mxu0 %v4354
    %4357 = vmatpush1.bf16.msra.mxu0 %v4351
    %4358 = vmatprep.subr.bf16.mxu0 0
    %4359 = vmatpush1.bf16.msra.mxu0 0
    %4360 = vmatprep.subr.bf16.mxu0 0
    %4361 = vmatpush1.bf16.msra.mxu0 0
    %4362 = vmatprep.subr.bf16.mxu0 0
    %4363 = vmatpush1.bf16.msra.mxu0 0
    %4364 = vmatprep.subr.bf16.mxu0 0
    %4365 = vmatpush1.bf16.msra.mxu0 0
    %4366 = vmatprep.subr.bf16.mxu0 0
    %4367 = vmatpush1.bf16.msra.mxu0 0
    %4368 = vmatprep.subr.bf16.mxu0 0
    %4369 = vmatpush1.bf16.msra.mxu0 0
    %4370 = vmatprep.subr.bf16.mxu0 0
    %4371 = vmatpush1.bf16.msra.mxu0 0
    %4372 = vmatprep.subr.bf16.mxu0 0
    %4373 = vmatpush1.bf16.msra.mxu0 0
    %4374 = vmatprep.subr.bf16.mxu0 0
    %4375 = vmatpush1.bf16.msra.mxu0 0
    %4376 = vmatprep.subr.bf16.mxu0 0
    %4377 = vmatpush1.bf16.msra.mxu0 0
    %4378 = vmatprep.subr.bf16.mxu0 0
    %4379 = vmatpush1.bf16.msra.mxu0 0
    %4380 = vmatprep.subr.bf16.mxu0 0
    %4381 = vmatpush1.bf16.msra.mxu0 0
    %4382 = vmatprep.subr.bf16.mxu0 0
    %4383 = vmatpush1.bf16.msra.mxu0 0
    %4384 = vmatprep.subr.bf16.mxu0 0
    %4385 = vmatpush1.bf16.msra.mxu0 0
    %4386 = vmatprep.subr.bf16.mxu0 0
    %4387 = vmatpush1.bf16.msra.mxu0 0
    %4388 = vmatprep.mubr.bf16.mxu0 0
    %4389 = vmatmul.mubr.bf16.gmra.mrb[0].mxu0 %v4348
    %v4390 = vpop.f32.mrb[0].mxu0
    %v4391 = vadd.f32 %v4341, %v4390
    %v4392 = vpop.f32.mrb[0].mxu0
    %v4393 = vadd.f32 %v4343, %v4392
    %v4394 = vpop.f32.mrb[0].mxu0
    %v4395 = vpop.f32.mrb[0].mxu0
    %4396 = vdwg.mxu0
    %s4397 = scalar_lea.vmem [#allocation9], 7
    %v4398 = vld [vmem:[%s4397] ss:$8 sm:$0x3]
    %v4400 = vlaneseq
    %v4401 = vshrl.u32 %v4400, 7
    %v4402 = vsub.s32 0, %v4401
    %v4403 = vrot.slane %v4398, %v4402
    %v4404 = vlaneseq
    %v4405 = vshrl.u32 %v4404, 7
    %v4406 = vsub.s32 1, %v4405
    %v4407 = vrot.slane %v4398, %v4406
    %v4410 = vadd.f32 %v4391, %v4403
    %v4411 = vadd.f32 %v4393, %v4407
    %v4412 = vpack.c.bf16 %v4410, %v4410
    %v4413 = vpack.c.bf16 %v4411, %v4411
    %v4414 = vpack.c.bf16 %v2072, %v2072
    %v4415 = vpack.c.bf16 %v2073, %v2073
    %s4416 = scalar_lea.vmem [#allocation3], 1792
    %v4417 = vld [vmem:[%s4416] sm:$0xff]
    %v4418 = vld [vmem:[%s4416 + $0x8] sm:$0xff]
    %v4419 = vld [vmem:[%s4416 + $0x10] sm:$0xff]
    %v4420 = vld [vmem:[%s4416 + $0x18] sm:$0xff]
    %v4421 = vld [vmem:[%s4416 + $0x20] sm:$0xff]
    %v4422 = vld [vmem:[%s4416 + $0x28] sm:$0xff]
    %v4423 = vld [vmem:[%s4416 + $0x30] sm:$0xff]
    %v4424 = vld [vmem:[%s4416 + $0x38] sm:$0xff]
    %v4425 = vld [vmem:[%s4416 + $0x40] sm:$0xff]
    %v4426 = vld [vmem:[%s4416 + $0x48] sm:$0xff]
    %v4427 = vld [vmem:[%s4416 + $0x50] sm:$0xff]
    %v4428 = vld [vmem:[%s4416 + $0x58] sm:$0xff]
    %v4429 = vld [vmem:[%s4416 + $0x60] sm:$0xff]
    %v4430 = vld [vmem:[%s4416 + $0x68] sm:$0xff]
    %v4431 = vld [vmem:[%s4416 + $0x70] sm:$0xff]
    %v4432 = vld [vmem:[%s4416 + $0x78] sm:$0xff]
    %v4433 = vld [vmem:[%s4416 + $0x80] sm:$0xff]
    %v4434 = vld [vmem:[%s4416 + $0x88] sm:$0xff]
    %v4435 = vld [vmem:[%s4416 + $0x90] sm:$0xff]
    %v4436 = vld [vmem:[%s4416 + $0x98] sm:$0xff]
    %v4437 = vld [vmem:[%s4416 + $0xa0] sm:$0xff]
    %v4438 = vld [vmem:[%s4416 + $0xa8] sm:$0xff]
    %v4439 = vld [vmem:[%s4416 + $0xb0] sm:$0xff]
    %v4440 = vld [vmem:[%s4416 + $0xb8] sm:$0xff]
    %v4441 = vld [vmem:[%s4416 + $0xc0] sm:$0xff]
    %v4442 = vld [vmem:[%s4416 + $0xc8] sm:$0xff]
    %v4443 = vld [vmem:[%s4416 + $0xd0] sm:$0xff]
    %v4444 = vld [vmem:[%s4416 + $0xd8] sm:$0xff]
    %v4445 = vld [vmem:[%s4416 + $0xe0] sm:$0xff]
    %v4446 = vld [vmem:[%s4416 + $0xe8] sm:$0xff]
    %v4447 = vld [vmem:[%s4416 + $0xf0] sm:$0xff]
    %v4448 = vld [vmem:[%s4416 + $0xf8] sm:$0xff]
    %s4449 = scalar_lea.vmem [#allocation3], 2560
    %v4450 = vld [vmem:[%s4449] sm:$0xff]
    %v4451 = vld [vmem:[%s4449 + $0x8] sm:$0xff]
    %v4452 = vld [vmem:[%s4449 + $0x10] sm:$0xff]
    %v4453 = vld [vmem:[%s4449 + $0x18] sm:$0xff]
    %v4454 = vld [vmem:[%s4449 + $0x20] sm:$0xff]
    %v4455 = vld [vmem:[%s4449 + $0x28] sm:$0xff]
    %v4456 = vld [vmem:[%s4449 + $0x30] sm:$0xff]
    %v4457 = vld [vmem:[%s4449 + $0x38] sm:$0xff]
    %v4458 = vld [vmem:[%s4449 + $0x40] sm:$0xff]
    %v4459 = vld [vmem:[%s4449 + $0x48] sm:$0xff]
    %v4460 = vld [vmem:[%s4449 + $0x50] sm:$0xff]
    %v4461 = vld [vmem:[%s4449 + $0x58] sm:$0xff]
    %v4462 = vld [vmem:[%s4449 + $0x60] sm:$0xff]
    %v4463 = vld [vmem:[%s4449 + $0x68] sm:$0xff]
    %v4464 = vld [vmem:[%s4449 + $0x70] sm:$0xff]
    %v4465 = vld [vmem:[%s4449 + $0x78] sm:$0xff]
    %v4466 = vld [vmem:[%s4449 + $0x80] sm:$0xff]
    %v4467 = vld [vmem:[%s4449 + $0x88] sm:$0xff]
    %v4468 = vld [vmem:[%s4449 + $0x90] sm:$0xff]
    %v4469 = vld [vmem:[%s4449 + $0x98] sm:$0xff]
    %v4470 = vld [vmem:[%s4449 + $0xa0] sm:$0xff]
    %v4471 = vld [vmem:[%s4449 + $0xa8] sm:$0xff]
    %v4472 = vld [vmem:[%s4449 + $0xb0] sm:$0xff]
    %v4473 = vld [vmem:[%s4449 + $0xb8] sm:$0xff]
    %v4474 = vld [vmem:[%s4449 + $0xc0] sm:$0xff]
    %v4475 = vld [vmem:[%s4449 + $0xc8] sm:$0xff]
    %v4476 = vld [vmem:[%s4449 + $0xd0] sm:$0xff]
    %v4477 = vld [vmem:[%s4449 + $0xd8] sm:$0xff]
    %v4478 = vld [vmem:[%s4449 + $0xe0] sm:$0xff]
    %v4479 = vld [vmem:[%s4449 + $0xe8] sm:$0xff]
    %v4480 = vld [vmem:[%s4449 + $0xf0] sm:$0xff]
    %v4481 = vld [vmem:[%s4449 + $0xf8] sm:$0xff]
    %4482 = vmatprep.subr.bf16.mxu0 %v4451
    %4483 = vmatpush1.bf16.msra.mxu0 %v4450
    %4484 = vmatprep.subr.bf16.mxu0 %v4453
    %4485 = vmatpush1.bf16.msra.mxu0 %v4452
    %4486 = vmatprep.subr.bf16.mxu0 %v4455
    %4487 = vmatpush1.bf16.msra.mxu0 %v4454
    %4488 = vmatprep.subr.bf16.mxu0 %v4457
    %4489 = vmatpush1.bf16.msra.mxu0 %v4456
    %4490 = vmatprep.subr.bf16.mxu0 %v4459
    %4491 = vmatpush1.bf16.msra.mxu0 %v4458
    %4492 = vmatprep.subr.bf16.mxu0 %v4461
    %4493 = vmatpush1.bf16.msra.mxu0 %v4460
    %4494 = vmatprep.subr.bf16.mxu0 %v4463
    %4495 = vmatpush1.bf16.msra.mxu0 %v4462
    %4496 = vmatprep.subr.bf16.mxu0 %v4465
    %4497 = vmatpush1.bf16.msra.mxu0 %v4464
    %4498 = vmatprep.subr.bf16.mxu0 %v4467
    %4499 = vmatpush1.bf16.msra.mxu0 %v4466
    %4500 = vmatprep.subr.bf16.mxu0 %v4469
    %4501 = vmatpush1.bf16.msra.mxu0 %v4468
    %4502 = vmatprep.subr.bf16.mxu0 %v4471
    %4503 = vmatpush1.bf16.msra.mxu0 %v4470
    %4504 = vmatprep.subr.bf16.mxu0 %v4473
    %4505 = vmatpush1.bf16.msra.mxu0 %v4472
    %4506 = vmatprep.subr.bf16.mxu0 %v4475
    %4507 = vmatpush1.bf16.msra.mxu0 %v4474
    %4508 = vmatprep.subr.bf16.mxu0 %v4477
    %4509 = vmatpush1.bf16.msra.mxu0 %v4476
    %4510 = vmatprep.subr.bf16.mxu0 %v4479
    %4511 = vmatpush1.bf16.msra.mxu0 %v4478
    %4512 = vmatprep.subr.bf16.mxu0 %v4481
    %4513 = vmatpush1.bf16.msra.mxu0 %v4480
    %4514 = vmatprep.mubr.bf16.mxu0 %v4415
    %4515 = vmatmul.mubr.bf16.gmra.mrb[0].mxu0 %v4414
    %v4516 = vpop.f32.mrb[0].mxu0
    %v4517 = vadd.f32 0.0, %v4516
    %v4518 = vpop.f32.mrb[0].mxu0
    %v4519 = vadd.f32 0.0, %v4518
    %v4520 = vpop.f32.mrb[0].mxu0
    %v4521 = vpop.f32.mrb[0].mxu0
    %4522 = vdwg.mxu0
    %4523 = vmatprep.subr.bf16.mxu0 %v4418
    %4524 = vmatpush1.bf16.msra.mxu0 %v4417
    %4525 = vmatprep.subr.bf16.mxu0 %v4420
    %4526 = vmatpush1.bf16.msra.mxu0 %v4419
    %4527 = vmatprep.subr.bf16.mxu0 %v4422
    %4528 = vmatpush1.bf16.msra.mxu0 %v4421
    %4529 = vmatprep.subr.bf16.mxu0 %v4424
    %4530 = vmatpush1.bf16.msra.mxu0 %v4423
    %4531 = vmatprep.subr.bf16.mxu0 %v4426
    %4532 = vmatpush1.bf16.msra.mxu0 %v4425
    %4533 = vmatprep.subr.bf16.mxu0 %v4428
    %4534 = vmatpush1.bf16.msra.mxu0 %v4427
    %4535 = vmatprep.subr.bf16.mxu0 %v4430
    %4536 = vmatpush1.bf16.msra.mxu0 %v4429
    %4537 = vmatprep.subr.bf16.mxu0 %v4432
    %4538 = vmatpush1.bf16.msra.mxu0 %v4431
    %4539 = vmatprep.subr.bf16.mxu0 %v4434
    %4540 = vmatpush1.bf16.msra.mxu0 %v4433
    %4541 = vmatprep.subr.bf16.mxu0 %v4436
    %4542 = vmatpush1.bf16.msra.mxu0 %v4435
    %4543 = vmatprep.subr.bf16.mxu0 %v4438
    %4544 = vmatpush1.bf16.msra.mxu0 %v4437
    %4545 = vmatprep.subr.bf16.mxu0 %v4440
    %4546 = vmatpush1.bf16.msra.mxu0 %v4439
    %4547 = vmatprep.subr.bf16.mxu0 %v4442
    %4548 = vmatpush1.bf16.msra.mxu0 %v4441
    %4549 = vmatprep.subr.bf16.mxu0 %v4444
    %4550 = vmatpush1.bf16.msra.mxu0 %v4443
    %4551 = vmatprep.subr.bf16.mxu0 %v4446
    %4552 = vmatpush1.bf16.msra.mxu0 %v4445
    %4553 = vmatprep.subr.bf16.mxu0 %v4448
    %4554 = vmatpush1.bf16.msra.mxu0 %v4447
    %4555 = vmatprep.mubr.bf16.mxu0 %v4413
    %4556 = vmatmul.mubr.bf16.gmra.mrb[0].mxu0 %v4412
    %v4557 = vpop.f32.mrb[0].mxu0
    %v4558 = vadd.f32 %v4517, %v4557
    %v4559 = vpop.f32.mrb[0].mxu0
    %v4560 = vadd.f32 %v4519, %v4559
    %v4561 = vpop.f32.mrb[0].mxu0
    %v4562 = vpop.f32.mrb[0].mxu0
    %4563 = vdwg.mxu0
    %s4564 = scalar_lea.vmem [#allocation3], 1536
    %v4565 = vld [vmem:[%s4564] sm:$0xff]
    %v4566 = vld [vmem:[%s4564 + $0x8] sm:$0xff]
    %v4567 = vld [vmem:[%s4564 + $0x10] sm:$0xff]
    %v4568 = vld [vmem:[%s4564 + $0x18] sm:$0xff]
    %v4569 = vld [vmem:[%s4564 + $0x20] sm:$0xff]
    %v4570 = vld [vmem:[%s4564 + $0x28] sm:$0xff]
    %v4571 = vld [vmem:[%s4564 + $0x30] sm:$0xff]
    %v4572 = vld [vmem:[%s4564 + $0x38] sm:$0xff]
    %v4573 = vld [vmem:[%s4564 + $0x40] sm:$0xff]
    %v4574 = vld [vmem:[%s4564 + $0x48] sm:$0xff]
    %v4575 = vld [vmem:[%s4564 + $0x50] sm:$0xff]
    %v4576 = vld [vmem:[%s4564 + $0x58] sm:$0xff]
    %v4577 = vld [vmem:[%s4564 + $0x60] sm:$0xff]
    %v4578 = vld [vmem:[%s4564 + $0x68] sm:$0xff]
    %v4579 = vld [vmem:[%s4564 + $0x70] sm:$0xff]
    %v4580 = vld [vmem:[%s4564 + $0x78] sm:$0xff]
    %v4581 = vld [vmem:[%s4564 + $0x80] sm:$0xff]
    %v4582 = vld [vmem:[%s4564 + $0x88] sm:$0xff]
    %v4583 = vld [vmem:[%s4564 + $0x90] sm:$0xff]
    %v4584 = vld [vmem:[%s4564 + $0x98] sm:$0xff]
    %v4585 = vld [vmem:[%s4564 + $0xa0] sm:$0xff]
    %v4586 = vld [vmem:[%s4564 + $0xa8] sm:$0xff]
    %v4587 = vld [vmem:[%s4564 + $0xb0] sm:$0xff]
    %v4588 = vld [vmem:[%s4564 + $0xb8] sm:$0xff]
    %v4589 = vld [vmem:[%s4564 + $0xc0] sm:$0xff]
    %v4590 = vld [vmem:[%s4564 + $0xc8] sm:$0xff]
    %v4591 = vld [vmem:[%s4564 + $0xd0] sm:$0xff]
    %v4592 = vld [vmem:[%s4564 + $0xd8] sm:$0xff]
    %v4593 = vld [vmem:[%s4564 + $0xe0] sm:$0xff]
    %v4594 = vld [vmem:[%s4564 + $0xe8] sm:$0xff]
    %v4595 = vld [vmem:[%s4564 + $0xf0] sm:$0xff]
    %v4596 = vld [vmem:[%s4564 + $0xf8] sm:$0xff]
    %s4597 = scalar_lea.vmem [#allocation3], 2304
    %v4598 = vld [vmem:[%s4597] sm:$0xff]
    %v4599 = vld [vmem:[%s4597 + $0x8] sm:$0xff]
    %v4600 = vld [vmem:[%s4597 + $0x10] sm:$0xff]
    %v4601 = vld [vmem:[%s4597 + $0x18] sm:$0xff]
    %v4602 = vld [vmem:[%s4597 + $0x20] sm:$0xff]
    %v4603 = vld [vmem:[%s4597 + $0x28] sm:$0xff]
    %v4604 = vld [vmem:[%s4597 + $0x30] sm:$0xff]
    %v4605 = vld [vmem:[%s4597 + $0x38] sm:$0xff]
    %v4606 = vld [vmem:[%s4597 + $0x40] sm:$0xff]
    %v4607 = vld [vmem:[%s4597 + $0x48] sm:$0xff]
    %v4608 = vld [vmem:[%s4597 + $0x50] sm:$0xff]
    %v4609 = vld [vmem:[%s4597 + $0x58] sm:$0xff]
    %v4610 = vld [vmem:[%s4597 + $0x60] sm:$0xff]
    %v4611 = vld [vmem:[%s4597 + $0x68] sm:$0xff]
    %v4612 = vld [vmem:[%s4597 + $0x70] sm:$0xff]
    %v4613 = vld [vmem:[%s4597 + $0x78] sm:$0xff]
    %v4614 = vld [vmem:[%s4597 + $0x80] sm:$0xff]
    %v4615 = vld [vmem:[%s4597 + $0x88] sm:$0xff]
    %v4616 = vld [vmem:[%s4597 + $0x90] sm:$0xff]
    %v4617 = vld [vmem:[%s4597 + $0x98] sm:$0xff]
    %v4618 = vld [vmem:[%s4597 + $0xa0] sm:$0xff]
    %v4619 = vld [vmem:[%s4597 + $0xa8] sm:$0xff]
    %v4620 = vld [vmem:[%s4597 + $0xb0] sm:$0xff]
    %v4621 = vld [vmem:[%s4597 + $0xb8] sm:$0xff]
    %v4622 = vld [vmem:[%s4597 + $0xc0] sm:$0xff]
    %v4623 = vld [vmem:[%s4597 + $0xc8] sm:$0xff]
    %v4624 = vld [vmem:[%s4597 + $0xd0] sm:$0xff]
    %v4625 = vld [vmem:[%s4597 + $0xd8] sm:$0xff]
    %v4626 = vld [vmem:[%s4597 + $0xe0] sm:$0xff]
    %v4627 = vld [vmem:[%s4597 + $0xe8] sm:$0xff]
    %v4628 = vld [vmem:[%s4597 + $0xf0] sm:$0xff]
    %v4629 = vld [vmem:[%s4597 + $0xf8] sm:$0xff]
    %4630 = vmatprep.subr.bf16.mxu0 %v4599
    %4631 = vmatpush1.bf16.msra.mxu0 %v4598
    %4632 = vmatprep.subr.bf16.mxu0 %v4601
    %4633 = vmatpush1.bf16.msra.mxu0 %v4600
    %4634 = vmatprep.subr.bf16.mxu0 %v4603
    %4635 = vmatpush1.bf16.msra.mxu0 %v4602
    %4636 = vmatprep.subr.bf16.mxu0 %v4605
    %4637 = vmatpush1.bf16.msra.mxu0 %v4604
    %4638 = vmatprep.subr.bf16.mxu0 %v4607
    %4639 = vmatpush1.bf16.msra.mxu0 %v4606
    %4640 = vmatprep.subr.bf16.mxu0 %v4609
    %4641 = vmatpush1.bf16.msra.mxu0 %v4608
    %4642 = vmatprep.subr.bf16.mxu0 %v4611
    %4643 = vmatpush1.bf16.msra.mxu0 %v4610
    %4644 = vmatprep.subr.bf16.mxu0 %v4613
    %4645 = vmatpush1.bf16.msra.mxu0 %v4612
    %4646 = vmatprep.subr.bf16.mxu0 %v4615
    %4647 = vmatpush1.bf16.msra.mxu0 %v4614
    %4648 = vmatprep.subr.bf16.mxu0 %v4617
    %4649 = vmatpush1.bf16.msra.mxu0 %v4616
    %4650 = vmatprep.subr.bf16.mxu0 %v4619
    %4651 = vmatpush1.bf16.msra.mxu0 %v4618
    %4652 = vmatprep.subr.bf16.mxu0 %v4621
    %4653 = vmatpush1.bf16.msra.mxu0 %v4620
    %4654 = vmatprep.subr.bf16.mxu0 %v4623
    %4655 = vmatpush1.bf16.msra.mxu0 %v4622
    %4656 = vmatprep.subr.bf16.mxu0 %v4625
    %4657 = vmatpush1.bf16.msra.mxu0 %v4624
    %4658 = vmatprep.subr.bf16.mxu0 %v4627
    %4659 = vmatpush1.bf16.msra.mxu0 %v4626
    %4660 = vmatprep.subr.bf16.mxu0 %v4629
    %4661 = vmatpush1.bf16.msra.mxu0 %v4628
    %4662 = vmatprep.mubr.bf16.mxu0 %v4415
    %4663 = vmatmul.mubr.bf16.gmra.mrb[0].mxu0 %v4414
    %v4664 = vpop.f32.mrb[0].mxu0
    %v4665 = vadd.f32 0.0, %v4664
    %v4666 = vpop.f32.mrb[0].mxu0
    %v4667 = vadd.f32 0.0, %v4666
    %v4668 = vpop.f32.mrb[0].mxu0
    %v4669 = vpop.f32.mrb[0].mxu0
    %4670 = vdwg.mxu0
    %4671 = vmatprep.subr.bf16.mxu0 %v4566
    %4672 = vmatpush1.bf16.msra.mxu0 %v4565
    %4673 = vmatprep.subr.bf16.mxu0 %v4568
    %4674 = vmatpush1.bf16.msra.mxu0 %v4567
    %4675 = vmatprep.subr.bf16.mxu0 %v4570
    %4676 = vmatpush1.bf16.msra.mxu0 %v4569
    %4677 = vmatprep.subr.bf16.mxu0 %v4572
    %4678 = vmatpush1.bf16.msra.mxu0 %v4571
    %4679 = vmatprep.subr.bf16.mxu0 %v4574
    %4680 = vmatpush1.bf16.msra.mxu0 %v4573
    %4681 = vmatprep.subr.bf16.mxu0 %v4576
    %4682 = vmatpush1.bf16.msra.mxu0 %v4575
    %4683 = vmatprep.subr.bf16.mxu0 %v4578
    %4684 = vmatpush1.bf16.msra.mxu0 %v4577
    %4685 = vmatprep.subr.bf16.mxu0 %v4580
    %4686 = vmatpush1.bf16.msra.mxu0 %v4579
    %4687 = vmatprep.subr.bf16.mxu0 %v4582
    %4688 = vmatpush1.bf16.msra.mxu0 %v4581
    %4689 = vmatprep.subr.bf16.mxu0 %v4584
    %4690 = vmatpush1.bf16.msra.mxu0 %v4583
    %4691 = vmatprep.subr.bf16.mxu0 %v4586
    %4692 = vmatpush1.bf16.msra.mxu0 %v4585
    %4693 = vmatprep.subr.bf16.mxu0 %v4588
    %4694 = vmatpush1.bf16.msra.mxu0 %v4587
    %4695 = vmatprep.subr.bf16.mxu0 %v4590
    %4696 = vmatpush1.bf16.msra.mxu0 %v4589
    %4697 = vmatprep.subr.bf16.mxu0 %v4592
    %4698 = vmatpush1.bf16.msra.mxu0 %v4591
    %4699 = vmatprep.subr.bf16.mxu0 %v4594
    %4700 = vmatpush1.bf16.msra.mxu0 %v4593
    %4701 = vmatprep.subr.bf16.mxu0 %v4596
    %4702 = vmatpush1.bf16.msra.mxu0 %v4595
    %4703 = vmatprep.mubr.bf16.mxu0 %v4413
    %4704 = vmatmul.mubr.bf16.gmra.mrb[0].mxu0 %v4412
    %v4705 = vpop.f32.mrb[0].mxu0
    %v4706 = vadd.f32 %v4665, %v4705
    %v4707 = vpop.f32.mrb[0].mxu0
    %v4708 = vadd.f32 %v4667, %v4707
    %v4709 = vpop.f32.mrb[0].mxu0
    %v4710 = vpop.f32.mrb[0].mxu0
    %4711 = vdwg.mxu0
    %s4712 = scalar_lea.vmem [#allocation3], 2048
    %v4713 = vld [vmem:[%s4712] sm:$0xff]
    %v4714 = vld [vmem:[%s4712 + $0x8] sm:$0xff]
    %v4715 = vld [vmem:[%s4712 + $0x10] sm:$0xff]
    %v4716 = vld [vmem:[%s4712 + $0x18] sm:$0xff]
    %v4717 = vld [vmem:[%s4712 + $0x20] sm:$0xff]
    %v4718 = vld [vmem:[%s4712 + $0x28] sm:$0xff]
    %v4719 = vld [vmem:[%s4712 + $0x30] sm:$0xff]
    %v4720 = vld [vmem:[%s4712 + $0x38] sm:$0xff]
    %v4721 = vld [vmem:[%s4712 + $0x40] sm:$0xff]
    %v4722 = vld [vmem:[%s4712 + $0x48] sm:$0xff]
    %v4723 = vld [vmem:[%s4712 + $0x50] sm:$0xff]
    %v4724 = vld [vmem:[%s4712 + $0x58] sm:$0xff]
    %v4725 = vld [vmem:[%s4712 + $0x60] sm:$0xff]
    %v4726 = vld [vmem:[%s4712 + $0x68] sm:$0xff]
    %v4727 = vld [vmem:[%s4712 + $0x70] sm:$0xff]
    %v4728 = vld [vmem:[%s4712 + $0x78] sm:$0xff]
    %v4729 = vld [vmem:[%s4712 + $0x80] sm:$0xff]
    %v4730 = vld [vmem:[%s4712 + $0x88] sm:$0xff]
    %v4731 = vld [vmem:[%s4712 + $0x90] sm:$0xff]
    %v4732 = vld [vmem:[%s4712 + $0x98] sm:$0xff]
    %v4733 = vld [vmem:[%s4712 + $0xa0] sm:$0xff]
    %v4734 = vld [vmem:[%s4712 + $0xa8] sm:$0xff]
    %v4735 = vld [vmem:[%s4712 + $0xb0] sm:$0xff]
    %v4736 = vld [vmem:[%s4712 + $0xb8] sm:$0xff]
    %v4737 = vld [vmem:[%s4712 + $0xc0] sm:$0xff]
    %v4738 = vld [vmem:[%s4712 + $0xc8] sm:$0xff]
    %v4739 = vld [vmem:[%s4712 + $0xd0] sm:$0xff]
    %v4740 = vld [vmem:[%s4712 + $0xd8] sm:$0xff]
    %v4741 = vld [vmem:[%s4712 + $0xe0] sm:$0xff]
    %v4742 = vld [vmem:[%s4712 + $0xe8] sm:$0xff]
    %v4743 = vld [vmem:[%s4712 + $0xf0] sm:$0xff]
    %v4744 = vld [vmem:[%s4712 + $0xf8] sm:$0xff]
    %s4745 = scalar_lea.vmem [#allocation3], 2816
    %v4746 = vld [vmem:[%s4745] sm:$0xff]
    %v4747 = vld [vmem:[%s4745 + $0x8] sm:$0xff]
    %v4748 = vld [vmem:[%s4745 + $0x10] sm:$0xff]
    %v4749 = vld [vmem:[%s4745 + $0x18] sm:$0xff]
    %v4750 = vld [vmem:[%s4745 + $0x20] sm:$0xff]
    %v4751 = vld [vmem:[%s4745 + $0x28] sm:$0xff]
    %v4752 = vld [vmem:[%s4745 + $0x30] sm:$0xff]
    %v4753 = vld [vmem:[%s4745 + $0x38] sm:$0xff]
    %v4754 = vld [vmem:[%s4745 + $0x40] sm:$0xff]
    %v4755 = vld [vmem:[%s4745 + $0x48] sm:$0xff]
    %v4756 = vld [vmem:[%s4745 + $0x50] sm:$0xff]
    %v4757 = vld [vmem:[%s4745 + $0x58] sm:$0xff]
    %v4758 = vld [vmem:[%s4745 + $0x60] sm:$0xff]
    %v4759 = vld [vmem:[%s4745 + $0x68] sm:$0xff]
    %v4760 = vld [vmem:[%s4745 + $0x70] sm:$0xff]
    %v4761 = vld [vmem:[%s4745 + $0x78] sm:$0xff]
    %v4762 = vld [vmem:[%s4745 + $0x80] sm:$0xff]
    %v4763 = vld [vmem:[%s4745 + $0x88] sm:$0xff]
    %v4764 = vld [vmem:[%s4745 + $0x90] sm:$0xff]
    %v4765 = vld [vmem:[%s4745 + $0x98] sm:$0xff]
    %v4766 = vld [vmem:[%s4745 + $0xa0] sm:$0xff]
    %v4767 = vld [vmem:[%s4745 + $0xa8] sm:$0xff]
    %v4768 = vld [vmem:[%s4745 + $0xb0] sm:$0xff]
    %v4769 = vld [vmem:[%s4745 + $0xb8] sm:$0xff]
    %v4770 = vld [vmem:[%s4745 + $0xc0] sm:$0xff]
    %v4771 = vld [vmem:[%s4745 + $0xc8] sm:$0xff]
    %v4772 = vld [vmem:[%s4745 + $0xd0] sm:$0xff]
    %v4773 = vld [vmem:[%s4745 + $0xd8] sm:$0xff]
    %v4774 = vld [vmem:[%s4745 + $0xe0] sm:$0xff]
    %v4775 = vld [vmem:[%s4745 + $0xe8] sm:$0xff]
    %v4776 = vld [vmem:[%s4745 + $0xf0] sm:$0xff]
    %v4777 = vld [vmem:[%s4745 + $0xf8] sm:$0xff]
    %4778 = vmatprep.subr.bf16.mxu0 %v4747
    %4779 = vmatpush1.bf16.msra.mxu0 %v4746
    %4780 = vmatprep.subr.bf16.mxu0 %v4749
    %4781 = vmatpush1.bf16.msra.mxu0 %v4748
    %4782 = vmatprep.subr.bf16.mxu0 %v4751
    %4783 = vmatpush1.bf16.msra.mxu0 %v4750
    %4784 = vmatprep.subr.bf16.mxu0 %v4753
    %4785 = vmatpush1.bf16.msra.mxu0 %v4752
    %4786 = vmatprep.subr.bf16.mxu0 %v4755
    %4787 = vmatpush1.bf16.msra.mxu0 %v4754
    %4788 = vmatprep.subr.bf16.mxu0 %v4757
    %4789 = vmatpush1.bf16.msra.mxu0 %v4756
    %4790 = vmatprep.subr.bf16.mxu0 %v4759
    %4791 = vmatpush1.bf16.msra.mxu0 %v4758
    %4792 = vmatprep.subr.bf16.mxu0 %v4761
    %4793 = vmatpush1.bf16.msra.mxu0 %v4760
    %4794 = vmatprep.subr.bf16.mxu0 %v4763
    %4795 = vmatpush1.bf16.msra.mxu0 %v4762
    %4796 = vmatprep.subr.bf16.mxu0 %v4765
    %4797 = vmatpush1.bf16.msra.mxu0 %v4764
    %4798 = vmatprep.subr.bf16.mxu0 %v4767
    %4799 = vmatpush1.bf16.msra.mxu0 %v4766
    %4800 = vmatprep.subr.bf16.mxu0 %v4769
    %4801 = vmatpush1.bf16.msra.mxu0 %v4768
    %4802 = vmatprep.subr.bf16.mxu0 %v4771
    %4803 = vmatpush1.bf16.msra.mxu0 %v4770
    %4804 = vmatprep.subr.bf16.mxu0 %v4773
    %4805 = vmatpush1.bf16.msra.mxu0 %v4772
    %4806 = vmatprep.subr.bf16.mxu0 %v4775
    %4807 = vmatpush1.bf16.msra.mxu0 %v4774
    %4808 = vmatprep.subr.bf16.mxu0 %v4777
    %4809 = vmatpush1.bf16.msra.mxu0 %v4776
    %4810 = vmatprep.mubr.bf16.mxu0 %v4415
    %4811 = vmatmul.mubr.bf16.gmra.mrb[0].mxu0 %v4414
    %v4812 = vpop.f32.mrb[0].mxu0
    %v4813 = vadd.f32 0.0, %v4812
    %v4814 = vpop.f32.mrb[0].mxu0
    %v4815 = vadd.f32 0.0, %v4814
    %v4816 = vpop.f32.mrb[0].mxu0
    %v4817 = vpop.f32.mrb[0].mxu0
    %4818 = vdwg.mxu0
    %4819 = vmatprep.subr.bf16.mxu0 %v4714
    %4820 = vmatpush1.bf16.msra.mxu0 %v4713
    %4821 = vmatprep.subr.bf16.mxu0 %v4716
    %4822 = vmatpush1.bf16.msra.mxu0 %v4715
    %4823 = vmatprep.subr.bf16.mxu0 %v4718
    %4824 = vmatpush1.bf16.msra.mxu0 %v4717
    %4825 = vmatprep.subr.bf16.mxu0 %v4720
    %4826 = vmatpush1.bf16.msra.mxu0 %v4719
    %4827 = vmatprep.subr.bf16.mxu0 %v4722
    %4828 = vmatpush1.bf16.msra.mxu0 %v4721
    %4829 = vmatprep.subr.bf16.mxu0 %v4724
    %4830 = vmatpush1.bf16.msra.mxu0 %v4723
    %4831 = vmatprep.subr.bf16.mxu0 %v4726
    %4832 = vmatpush1.bf16.msra.mxu0 %v4725
    %4833 = vmatprep.subr.bf16.mxu0 %v4728
    %4834 = vmatpush1.bf16.msra.mxu0 %v4727
    %4835 = vmatprep.subr.bf16.mxu0 %v4730
    %4836 = vmatpush1.bf16.msra.mxu0 %v4729
    %4837 = vmatprep.subr.bf16.mxu0 %v4732
    %4838 = vmatpush1.bf16.msra.mxu0 %v4731
    %4839 = vmatprep.subr.bf16.mxu0 %v4734
    %4840 = vmatpush1.bf16.msra.mxu0 %v4733
    %4841 = vmatprep.subr.bf16.mxu0 %v4736
    %4842 = vmatpush1.bf16.msra.mxu0 %v4735
    %4843 = vmatprep.subr.bf16.mxu0 %v4738
    %4844 = vmatpush1.bf16.msra.mxu0 %v4737
    %4845 = vmatprep.subr.bf16.mxu0 %v4740
    %4846 = vmatpush1.bf16.msra.mxu0 %v4739
    %4847 = vmatprep.subr.bf16.mxu0 %v4742
    %4848 = vmatpush1.bf16.msra.mxu0 %v4741
    %4849 = vmatprep.subr.bf16.mxu0 %v4744
    %4850 = vmatpush1.bf16.msra.mxu0 %v4743
    %4851 = vmatprep.mubr.bf16.mxu0 %v4413
    %4852 = vmatmul.mubr.bf16.gmra.mrb[0].mxu0 %v4412
    %v4853 = vpop.f32.mrb[0].mxu0
    %v4854 = vadd.f32 %v4813, %v4853
    %v4855 = vpop.f32.mrb[0].mxu0
    %v4856 = vadd.f32 %v4815, %v4855
    %v4857 = vpop.f32.mrb[0].mxu0
    %v4858 = vpop.f32.mrb[0].mxu0
    %4859 = vdwg.mxu0
    %v4860 = vld [vmem:[%s5] sm:$0xff]
    %v4861 = vrot.slane %v4706, 7
    %v4862 = vrot.slane %v4708, 7
    %4864 = vset.pattern.permute.xlu0 4
    %4865 = vperm.xlu0 %4864, %v4860
    %v4866 = vpop.permute.xlu0 %4865
    %v4868 = vmul.f32 %v4866, %v4861
    %v4869 = vmul.f32 %v4866, %v4862
    %v4870 = vadd.f32 %v4558, %v4868
    %v4871 = vadd.f32 %v4560, %v4869
    %v4872 = vrot.slane %v4854, 1
    %v4873 = vrot.slane %v4856, 1
    %4874 = vset.pattern.permute.xlu0 5
    %4875 = vperm.xlu0 %4874, %v4860
    %v4876 = vpop.permute.xlu0 %4875
    %v4878 = vmul.f32 %v4876, %v4872
    %v4879 = vmul.f32 %v4876, %v4873
    %v4880 = vadd.f32 %v4870, %v4878
    %v4881 = vadd.f32 %v4871, %v4879
    %s4882 = scalar_lea.vmem [#allocation9], 16
    %v4883 = vld [vmem:[%s4882] ss:$8 sm:$0x3]
    %v4885 = vlaneseq
    %v4886 = vshrl.u32 %v4885, 7
    %v4887 = vsub.s32 0, %v4886
    %v4888 = vrot.slane %v4883, %v4887
    %v4889 = vlaneseq
    %v4890 = vshrl.u32 %v4889, 7
    %v4891 = vsub.s32 1, %v4890
    %v4892 = vrot.slane %v4883, %v4891
    %v4895 = vadd.f32 %v4880, %v4888
    %v4896 = vadd.f32 %v4881, %v4892
    %v4897 = vmax.f32 %v4895, 0.0
    %v4898 = vmax.f32 %v4896, 0.0
    %v4899 = vpack.c.bf16 %v4897, %v4897
    %v4900 = vpack.c.bf16 %v4898, %v4898
    %s4901 = scalar_lea.vmem [#allocation2], 1024
    %v4902 = vld [vmem:[%s4901] sm:$0xff]
    %v4903 = vld [vmem:[%s4901 + $0x8] sm:$0xff]
    %v4904 = vld [vmem:[%s4901 + $0x10] sm:$0xff]
    %v4905 = vld [vmem:[%s4901 + $0x18] sm:$0xff]
    %v4906 = vld [vmem:[%s4901 + $0x20] sm:$0xff]
    %v4907 = vld [vmem:[%s4901 + $0x28] sm:$0xff]
    %v4908 = vld [vmem:[%s4901 + $0x30] sm:$0xff]
    %v4909 = vld [vmem:[%s4901 + $0x38] sm:$0xff]
    %v4910 = vld [vmem:[%s4901 + $0x40] sm:$0xff]
    %v4911 = vld [vmem:[%s4901 + $0x48] sm:$0xff]
    %v4912 = vld [vmem:[%s4901 + $0x50] sm:$0xff]
    %v4913 = vld [vmem:[%s4901 + $0x58] sm:$0xff]
    %v4914 = vld [vmem:[%s4901 + $0x60] sm:$0xff]
    %v4915 = vld [vmem:[%s4901 + $0x68] sm:$0xff]
    %v4916 = vld [vmem:[%s4901 + $0x70] sm:$0xff]
    %v4917 = vld [vmem:[%s4901 + $0x78] sm:$0xff]
    %v4918 = vld [vmem:[%s4901 + $0x80] sm:$0xff]
    %v4919 = vld [vmem:[%s4901 + $0x88] sm:$0xff]
    %v4920 = vld [vmem:[%s4901 + $0x90] sm:$0xff]
    %v4921 = vld [vmem:[%s4901 + $0x98] sm:$0xff]
    %v4922 = vld [vmem:[%s4901 + $0xa0] sm:$0xff]
    %v4923 = vld [vmem:[%s4901 + $0xa8] sm:$0xff]
    %v4924 = vld [vmem:[%s4901 + $0xb0] sm:$0xff]
    %v4925 = vld [vmem:[%s4901 + $0xb8] sm:$0xff]
    %v4926 = vld [vmem:[%s4901 + $0xc0] sm:$0xff]
    %v4927 = vld [vmem:[%s4901 + $0xc8] sm:$0xff]
    %v4928 = vld [vmem:[%s4901 + $0xd0] sm:$0xff]
    %v4929 = vld [vmem:[%s4901 + $0xd8] sm:$0xff]
    %v4930 = vld [vmem:[%s4901 + $0xe0] sm:$0xff]
    %v4931 = vld [vmem:[%s4901 + $0xe8] sm:$0xff]
    %v4932 = vld [vmem:[%s4901 + $0xf0] sm:$0xff]
    %v4933 = vld [vmem:[%s4901 + $0xf8] sm:$0xff]
    %4934 = vmatprep.subr.bf16.mxu0 %v4903
    %4935 = vmatpush1.bf16.msra.mxu0 %v4902
    %4936 = vmatprep.subr.bf16.mxu0 %v4905
    %4937 = vmatpush1.bf16.msra.mxu0 %v4904
    %4938 = vmatprep.subr.bf16.mxu0 %v4907
    %4939 = vmatpush1.bf16.msra.mxu0 %v4906
    %4940 = vmatprep.subr.bf16.mxu0 %v4909
    %4941 = vmatpush1.bf16.msra.mxu0 %v4908
    %4942 = vmatprep.subr.bf16.mxu0 %v4911
    %4943 = vmatpush1.bf16.msra.mxu0 %v4910
    %4944 = vmatprep.subr.bf16.mxu0 %v4913
    %4945 = vmatpush1.bf16.msra.mxu0 %v4912
    %4946 = vmatprep.subr.bf16.mxu0 %v4915
    %4947 = vmatpush1.bf16.msra.mxu0 %v4914
    %4948 = vmatprep.subr.bf16.mxu0 %v4917
    %4949 = vmatpush1.bf16.msra.mxu0 %v4916
    %4950 = vmatprep.subr.bf16.mxu0 %v4919
    %4951 = vmatpush1.bf16.msra.mxu0 %v4918
    %4952 = vmatprep.subr.bf16.mxu0 %v4921
    %4953 = vmatpush1.bf16.msra.mxu0 %v4920
    %4954 = vmatprep.subr.bf16.mxu0 %v4923
    %4955 = vmatpush1.bf16.msra.mxu0 %v4922
    %4956 = vmatprep.subr.bf16.mxu0 %v4925
    %4957 = vmatpush1.bf16.msra.mxu0 %v4924
    %4958 = vmatprep.subr.bf16.mxu0 %v4927
    %4959 = vmatpush1.bf16.msra.mxu0 %v4926
    %4960 = vmatprep.subr.bf16.mxu0 %v4929
    %4961 = vmatpush1.bf16.msra.mxu0 %v4928
    %4962 = vmatprep.subr.bf16.mxu0 %v4931
    %4963 = vmatpush1.bf16.msra.mxu0 %v4930
    %4964 = vmatprep.subr.bf16.mxu0 %v4933
    %4965 = vmatpush1.bf16.msra.mxu0 %v4932
    %4966 = vmatprep.mubr.bf16.mxu0 %v4900
    %4967 = vmatmul.mubr.bf16.gmra.mrb[0].mxu0 %v4899
    %v4968 = vpop.f32.mrb[0].mxu0
    %v4969 = vadd.f32 0.0, %v4968
    %v4970 = vpop.f32.mrb[0].mxu0
    %v4971 = vadd.f32 0.0, %v4970
    %v4972 = vpop.f32.mrb[0].mxu0
    %v4973 = vpop.f32.mrb[0].mxu0
    %4974 = vdwg.mxu0
    %s4975 = scalar_lea.vmem [#allocation2], 1280
    %v4976 = vld [vmem:[%s4975] sm:$0xff]
    %v4977 = vld [vmem:[%s4975 + $0x8] sm:$0xff]
    %v4978 = vld [vmem:[%s4975 + $0x10] sm:$0xff]
    %v4979 = vld [vmem:[%s4975 + $0x18] sm:$0xff]
    %v4980 = vld [vmem:[%s4975 + $0x20] sm:$0xff]
    %v4981 = vld [vmem:[%s4975 + $0x28] sm:$0xff]
    %v4982 = vld [vmem:[%s4975 + $0x30] sm:$0xff]
    %v4983 = vld [vmem:[%s4975 + $0x38] sm:$0xff]
    %v4984 = vld [vmem:[%s4975 + $0x40] sm:$0xff]
    %v4985 = vld [vmem:[%s4975 + $0x48] sm:$0xff]
    %v4986 = vld [vmem:[%s4975 + $0x50] sm:$0xff]
    %v4987 = vld [vmem:[%s4975 + $0x58] sm:$0xff]
    %v4988 = vld [vmem:[%s4975 + $0x60] sm:$0xff]
    %v4989 = vld [vmem:[%s4975 + $0x68] sm:$0xff]
    %v4990 = vld [vmem:[%s4975 + $0x70] sm:$0xff]
    %v4991 = vld [vmem:[%s4975 + $0x78] sm:$0xff]
    %v4992 = vld [vmem:[%s4975 + $0x80] sm:$0xff]
    %v4993 = vld [vmem:[%s4975 + $0x88] sm:$0xff]
    %v4994 = vld [vmem:[%s4975 + $0x90] sm:$0xff]
    %v4995 = vld [vmem:[%s4975 + $0x98] sm:$0xff]
    %v4996 = vld [vmem:[%s4975 + $0xa0] sm:$0xff]
    %v4997 = vld [vmem:[%s4975 + $0xa8] sm:$0xff]
    %v4998 = vld [vmem:[%s4975 + $0xb0] sm:$0xff]
    %v4999 = vld [vmem:[%s4975 + $0xb8] sm:$0xff]
    %v5000 = vld [vmem:[%s4975 + $0xc0] sm:$0xff]
    %v5001 = vld [vmem:[%s4975 + $0xc8] sm:$0xff]
    %v5002 = vld [vmem:[%s4975 + $0xd0] sm:$0xff]
    %v5003 = vld [vmem:[%s4975 + $0xd8] sm:$0xff]
    %v5004 = vld [vmem:[%s4975 + $0xe0] sm:$0xff]
    %v5005 = vld [vmem:[%s4975 + $0xe8] sm:$0xff]
    %v5006 = vld [vmem:[%s4975 + $0xf0] sm:$0xff]
    %v5007 = vld [vmem:[%s4975 + $0xf8] sm:$0xff]
    %5008 = vmatprep.subr.bf16.mxu0 %v4977
    %5009 = vmatpush1.bf16.msra.mxu0 %v4976
    %5010 = vmatprep.subr.bf16.mxu0 %v4979
    %5011 = vmatpush1.bf16.msra.mxu0 %v4978
    %5012 = vmatprep.subr.bf16.mxu0 %v4981
    %5013 = vmatpush1.bf16.msra.mxu0 %v4980
    %5014 = vmatprep.subr.bf16.mxu0 %v4983
    %5015 = vmatpush1.bf16.msra.mxu0 %v4982
    %5016 = vmatprep.subr.bf16.mxu0 %v4985
    %5017 = vmatpush1.bf16.msra.mxu0 %v4984
    %5018 = vmatprep.subr.bf16.mxu0 %v4987
    %5019 = vmatpush1.bf16.msra.mxu0 %v4986
    %5020 = vmatprep.subr.bf16.mxu0 %v4989
    %5021 = vmatpush1.bf16.msra.mxu0 %v4988
    %5022 = vmatprep.subr.bf16.mxu0 %v4991
    %5023 = vmatpush1.bf16.msra.mxu0 %v4990
    %5024 = vmatprep.subr.bf16.mxu0 %v4993
    %5025 = vmatpush1.bf16.msra.mxu0 %v4992
    %5026 = vmatprep.subr.bf16.mxu0 %v4995
    %5027 = vmatpush1.bf16.msra.mxu0 %v4994
    %5028 = vmatprep.subr.bf16.mxu0 %v4997
    %5029 = vmatpush1.bf16.msra.mxu0 %v4996
    %5030 = vmatprep.subr.bf16.mxu0 %v4999
    %5031 = vmatpush1.bf16.msra.mxu0 %v4998
    %5032 = vmatprep.subr.bf16.mxu0 %v5001
    %5033 = vmatpush1.bf16.msra.mxu0 %v5000
    %5034 = vmatprep.subr.bf16.mxu0 %v5003
    %5035 = vmatpush1.bf16.msra.mxu0 %v5002
    %5036 = vmatprep.subr.bf16.mxu0 %v5005
    %5037 = vmatpush1.bf16.msra.mxu0 %v5004
    %5038 = vmatprep.subr.bf16.mxu0 %v5007
    %5039 = vmatpush1.bf16.msra.mxu0 %v5006
    %5040 = vmatprep.mubr.bf16.mxu0 %v4900
    %5041 = vmatmul.mubr.bf16.gmra.mrb[0].mxu0 %v4899
    %v5042 = vpop.f32.mrb[0].mxu0
    %v5043 = vadd.f32 0.0, %v5042
    %v5044 = vpop.f32.mrb[0].mxu0
    %v5045 = vadd.f32 0.0, %v5044
    %v5046 = vpop.f32.mrb[0].mxu0
    %v5047 = vpop.f32.mrb[0].mxu0
    %5048 = vdwg.mxu0
    %s5049 = scalar_lea.vmem [#allocation10], 176
    %v5050 = vld [vmem:[%s5049] sm:$0xf]
    %v5051 = vld [vmem:[%s5049 + $0x4] sm:$0xf]
    %v5052 = vpack.c.bf16 %v4969, %v4969
    %v5053 = vpack.c.bf16 %v4971, %v4971
    %s5054 = scalar_lea.vmem [#allocation10], 192
    %v5055 = vld [vmem:[%s5054] sm:$0xf]
    %v5056 = vld [vmem:[%s5054 + $0x4] sm:$0xf]
    %v5057 = vpack.c.bf16 %v5043, %v5043
    %v5058 = vpack.c.bf16 %v5045, %v5045
    %v5061 = vunpack.c.l.b16 %v5055
    %v5062 = vunpack.c.l.b16 %v5056
    %v5063 = vpack.c.b16 %v5062, %v5061
    %v5065 = vsel %vm2091, %v5063, 0
    %v5068 = vsel %vm2095, %v5057, 0
    %v5071 = vsel %vm2095, %v5058, 0
    %5073 = vmatprep.subr.bf16.mxu0 %v5071
    %5074 = vmatpush1.bf16.msra.mxu0 %v5068
    %5075 = vmatprep.subr.bf16.mxu0 0
    %5076 = vmatpush1.bf16.msra.mxu0 0
    %5077 = vmatprep.subr.bf16.mxu0 0
    %5078 = vmatpush1.bf16.msra.mxu0 0
    %5079 = vmatprep.subr.bf16.mxu0 0
    %5080 = vmatpush1.bf16.msra.mxu0 0
    %5081 = vmatprep.subr.bf16.mxu0 0
    %5082 = vmatpush1.bf16.msra.mxu0 0
    %5083 = vmatprep.subr.bf16.mxu0 0
    %5084 = vmatpush1.bf16.msra.mxu0 0
    %5085 = vmatprep.subr.bf16.mxu0 0
    %5086 = vmatpush1.bf16.msra.mxu0 0
    %5087 = vmatprep.subr.bf16.mxu0 0
    %5088 = vmatpush1.bf16.msra.mxu0 0
    %5089 = vmatprep.subr.bf16.mxu0 0
    %5090 = vmatpush1.bf16.msra.mxu0 0
    %5091 = vmatprep.subr.bf16.mxu0 0
    %5092 = vmatpush1.bf16.msra.mxu0 0
    %5093 = vmatprep.subr.bf16.mxu0 0
    %5094 = vmatpush1.bf16.msra.mxu0 0
    %5095 = vmatprep.subr.bf16.mxu0 0
    %5096 = vmatpush1.bf16.msra.mxu0 0
    %5097 = vmatprep.subr.bf16.mxu0 0
    %5098 = vmatpush1.bf16.msra.mxu0 0
    %5099 = vmatprep.subr.bf16.mxu0 0
    %5100 = vmatpush1.bf16.msra.mxu0 0
    %5101 = vmatprep.subr.bf16.mxu0 0
    %5102 = vmatpush1.bf16.msra.mxu0 0
    %5103 = vmatprep.subr.bf16.mxu0 0
    %5104 = vmatpush1.bf16.msra.mxu0 0
    %5105 = vmatprep.mubr.bf16.mxu0 0
    %5106 = vmatmul.mubr.bf16.gmra.mrb[0].mxu0 %v5065
    %v5107 = vpop.f32.mrb[0].mxu0
    %v5108 = vadd.f32 0.0, %v5107
    %v5109 = vpop.f32.mrb[0].mxu0
    %v5110 = vadd.f32 0.0, %v5109
    %v5111 = vpop.f32.mrb[0].mxu0
    %v5112 = vadd.f32 0.0, %v5111
    %v5113 = vpop.f32.mrb[0].mxu0
    %v5114 = vadd.f32 0.0, %v5113
    %5115 = vdwg.mxu0
    %v5118 = vunpack.c.l.b16 %v5050
    %v5119 = vunpack.c.l.b16 %v5051
    %v5120 = vpack.c.b16 %v5119, %v5118
    %v5122 = vsel %vm2091, %v5120, 0
    %v5125 = vsel %vm2095, %v5052, 0
    %v5128 = vsel %vm2095, %v5053, 0
    %5130 = vmatprep.subr.bf16.mxu0 %v5128
    %5131 = vmatpush1.bf16.msra.mxu0 %v5125
    %5132 = vmatprep.subr.bf16.mxu0 0
    %5133 = vmatpush1.bf16.msra.mxu0 0
    %5134 = vmatprep.subr.bf16.mxu0 0
    %5135 = vmatpush1.bf16.msra.mxu0 0
    %5136 = vmatprep.subr.bf16.mxu0 0
    %5137 = vmatpush1.bf16.msra.mxu0 0
    %5138 = vmatprep.subr.bf16.mxu0 0
    %5139 = vmatpush1.bf16.msra.mxu0 0
    %5140 = vmatprep.subr.bf16.mxu0 0
    %5141 = vmatpush1.bf16.msra.mxu0 0
    %5142 = vmatprep.subr.bf16.mxu0 0
    %5143 = vmatpush1.bf16.msra.mxu0 0
    %5144 = vmatprep.subr.bf16.mxu0 0
    %5145 = vmatpush1.bf16.msra.mxu0 0
    %5146 = vmatprep.subr.bf16.mxu0 0
    %5147 = vmatpush1.bf16.msra.mxu0 0
    %5148 = vmatprep.subr.bf16.mxu0 0
    %5149 = vmatpush1.bf16.msra.mxu0 0
    %5150 = vmatprep.subr.bf16.mxu0 0
    %5151 = vmatpush1.bf16.msra.mxu0 0
    %5152 = vmatprep.subr.bf16.mxu0 0
    %5153 = vmatpush1.bf16.msra.mxu0 0
    %5154 = vmatprep.subr.bf16.mxu0 0
    %5155 = vmatpush1.bf16.msra.mxu0 0
    %5156 = vmatprep.subr.bf16.mxu0 0
    %5157 = vmatpush1.bf16.msra.mxu0 0
    %5158 = vmatprep.subr.bf16.mxu0 0
    %5159 = vmatpush1.bf16.msra.mxu0 0
    %5160 = vmatprep.subr.bf16.mxu0 0
    %5161 = vmatpush1.bf16.msra.mxu0 0
    %5162 = vmatprep.mubr.bf16.mxu0 0
    %5163 = vmatmul.mubr.bf16.gmra.mrb[0].mxu0 %v5122
    %v5164 = vpop.f32.mrb[0].mxu0
    %v5165 = vadd.f32 %v5108, %v5164
    %v5166 = vpop.f32.mrb[0].mxu0
    %v5167 = vadd.f32 %v5110, %v5166
    %v5168 = vpop.f32.mrb[0].mxu0
    %v5169 = vadd.f32 %v5112, %v5168
    %v5170 = vpop.f32.mrb[0].mxu0
    %v5171 = vadd.f32 %v5114, %v5170
    %5172 = vdwg.mxu0
    %s5173 = scalar_lea.vmem [#allocation9], 17
    %v5174 = vld [vmem:[%s5173] ss:$8 sm:$0x3]
    %v5176 = vlaneseq
    %v5177 = vshrl.u32 %v5176, 7
    %v5178 = vsub.s32 0, %v5177
    %v5179 = vrot.slane %v5174, %v5178
    %v5180 = vlaneseq
    %v5181 = vshrl.u32 %v5180, 7
    %v5182 = vsub.s32 1, %v5181
    %v5183 = vrot.slane %v5174, %v5182
    %v5186 = vadd.f32 %v5165, %v5179
    %v5187 = vadd.f32 %v5167, %v5183
    %v5188 = vadd.f32 %v5169, %v5179
    %v5189 = vadd.f32 %v5171, %v5183
    %v5190 = vpack.c.bf16 %v5188, %v5186
    %v5191 = vpack.c.bf16 %v5189, %v5187
    %v5192 = vpack.c.bf16 %v1371, %v1369
    %v5193 = vpack.c.bf16 %v1372, %v1370
    %s5194 = scalar_lea.vmem [#allocation3], 3328
    %v5195 = vld [vmem:[%s5194] sm:$0xff]
    %v5196 = vld [vmem:[%s5194 + $0x8] sm:$0xff]
    %v5197 = vld [vmem:[%s5194 + $0x10] sm:$0xff]
    %v5198 = vld [vmem:[%s5194 + $0x18] sm:$0xff]
    %v5199 = vld [vmem:[%s5194 + $0x20] sm:$0xff]
    %v5200 = vld [vmem:[%s5194 + $0x28] sm:$0xff]
    %v5201 = vld [vmem:[%s5194 + $0x30] sm:$0xff]
    %v5202 = vld [vmem:[%s5194 + $0x38] sm:$0xff]
    %v5203 = vld [vmem:[%s5194 + $0x40] sm:$0xff]
    %v5204 = vld [vmem:[%s5194 + $0x48] sm:$0xff]
    %v5205 = vld [vmem:[%s5194 + $0x50] sm:$0xff]
    %v5206 = vld [vmem:[%s5194 + $0x58] sm:$0xff]
    %v5207 = vld [vmem:[%s5194 + $0x60] sm:$0xff]
    %v5208 = vld [vmem:[%s5194 + $0x68] sm:$0xff]
    %v5209 = vld [vmem:[%s5194 + $0x70] sm:$0xff]
    %v5210 = vld [vmem:[%s5194 + $0x78] sm:$0xff]
    %v5211 = vld [vmem:[%s5194 + $0x80] sm:$0xff]
    %v5212 = vld [vmem:[%s5194 + $0x88] sm:$0xff]
    %v5213 = vld [vmem:[%s5194 + $0x90] sm:$0xff]
    %v5214 = vld [vmem:[%s5194 + $0x98] sm:$0xff]
    %v5215 = vld [vmem:[%s5194 + $0xa0] sm:$0xff]
    %v5216 = vld [vmem:[%s5194 + $0xa8] sm:$0xff]
    %v5217 = vld [vmem:[%s5194 + $0xb0] sm:$0xff]
    %v5218 = vld [vmem:[%s5194 + $0xb8] sm:$0xff]
    %v5219 = vld [vmem:[%s5194 + $0xc0] sm:$0xff]
    %v5220 = vld [vmem:[%s5194 + $0xc8] sm:$0xff]
    %v5221 = vld [vmem:[%s5194 + $0xd0] sm:$0xff]
    %v5222 = vld [vmem:[%s5194 + $0xd8] sm:$0xff]
    %v5223 = vld [vmem:[%s5194 + $0xe0] sm:$0xff]
    %v5224 = vld [vmem:[%s5194 + $0xe8] sm:$0xff]
    %v5225 = vld [vmem:[%s5194 + $0xf0] sm:$0xff]
    %v5226 = vld [vmem:[%s5194 + $0xf8] sm:$0xff]
    %s5227 = scalar_lea.vmem [#allocation3], 4096
    %v5228 = vld [vmem:[%s5227] sm:$0xff]
    %v5229 = vld [vmem:[%s5227 + $0x8] sm:$0xff]
    %v5230 = vld [vmem:[%s5227 + $0x10] sm:$0xff]
    %v5231 = vld [vmem:[%s5227 + $0x18] sm:$0xff]
    %v5232 = vld [vmem:[%s5227 + $0x20] sm:$0xff]
    %v5233 = vld [vmem:[%s5227 + $0x28] sm:$0xff]
    %v5234 = vld [vmem:[%s5227 + $0x30] sm:$0xff]
    %v5235 = vld [vmem:[%s5227 + $0x38] sm:$0xff]
    %v5236 = vld [vmem:[%s5227 + $0x40] sm:$0xff]
    %v5237 = vld [vmem:[%s5227 + $0x48] sm:$0xff]
    %v5238 = vld [vmem:[%s5227 + $0x50] sm:$0xff]
    %v5239 = vld [vmem:[%s5227 + $0x58] sm:$0xff]
    %v5240 = vld [vmem:[%s5227 + $0x60] sm:$0xff]
    %v5241 = vld [vmem:[%s5227 + $0x68] sm:$0xff]
    %v5242 = vld [vmem:[%s5227 + $0x70] sm:$0xff]
    %v5243 = vld [vmem:[%s5227 + $0x78] sm:$0xff]
    %v5244 = vld [vmem:[%s5227 + $0x80] sm:$0xff]
    %v5245 = vld [vmem:[%s5227 + $0x88] sm:$0xff]
    %v5246 = vld [vmem:[%s5227 + $0x90] sm:$0xff]
    %v5247 = vld [vmem:[%s5227 + $0x98] sm:$0xff]
    %v5248 = vld [vmem:[%s5227 + $0xa0] sm:$0xff]
    %v5249 = vld [vmem:[%s5227 + $0xa8] sm:$0xff]
    %v5250 = vld [vmem:[%s5227 + $0xb0] sm:$0xff]
    %v5251 = vld [vmem:[%s5227 + $0xb8] sm:$0xff]
    %v5252 = vld [vmem:[%s5227 + $0xc0] sm:$0xff]
    %v5253 = vld [vmem:[%s5227 + $0xc8] sm:$0xff]
    %v5254 = vld [vmem:[%s5227 + $0xd0] sm:$0xff]
    %v5255 = vld [vmem:[%s5227 + $0xd8] sm:$0xff]
    %v5256 = vld [vmem:[%s5227 + $0xe0] sm:$0xff]
    %v5257 = vld [vmem:[%s5227 + $0xe8] sm:$0xff]
    %v5258 = vld [vmem:[%s5227 + $0xf0] sm:$0xff]
    %v5259 = vld [vmem:[%s5227 + $0xf8] sm:$0xff]
    %5260 = vmatprep.subr.bf16.mxu0 %v5229
    %5261 = vmatpush1.bf16.msra.mxu0 %v5228
    %5262 = vmatprep.subr.bf16.mxu0 %v5231
    %5263 = vmatpush1.bf16.msra.mxu0 %v5230
    %5264 = vmatprep.subr.bf16.mxu0 %v5233
    %5265 = vmatpush1.bf16.msra.mxu0 %v5232
    %5266 = vmatprep.subr.bf16.mxu0 %v5235
    %5267 = vmatpush1.bf16.msra.mxu0 %v5234
    %5268 = vmatprep.subr.bf16.mxu0 %v5237
    %5269 = vmatpush1.bf16.msra.mxu0 %v5236
    %5270 = vmatprep.subr.bf16.mxu0 %v5239
    %5271 = vmatpush1.bf16.msra.mxu0 %v5238
    %5272 = vmatprep.subr.bf16.mxu0 %v5241
    %5273 = vmatpush1.bf16.msra.mxu0 %v5240
    %5274 = vmatprep.subr.bf16.mxu0 %v5243
    %5275 = vmatpush1.bf16.msra.mxu0 %v5242
    %5276 = vmatprep.subr.bf16.mxu0 %v5245
    %5277 = vmatpush1.bf16.msra.mxu0 %v5244
    %5278 = vmatprep.subr.bf16.mxu0 %v5247
    %5279 = vmatpush1.bf16.msra.mxu0 %v5246
    %5280 = vmatprep.subr.bf16.mxu0 %v5249
    %5281 = vmatpush1.bf16.msra.mxu0 %v5248
    %5282 = vmatprep.subr.bf16.mxu0 %v5251
    %5283 = vmatpush1.bf16.msra.mxu0 %v5250
    %5284 = vmatprep.subr.bf16.mxu0 %v5253
    %5285 = vmatpush1.bf16.msra.mxu0 %v5252
    %5286 = vmatprep.subr.bf16.mxu0 %v5255
    %5287 = vmatpush1.bf16.msra.mxu0 %v5254
    %5288 = vmatprep.subr.bf16.mxu0 %v5257
    %5289 = vmatpush1.bf16.msra.mxu0 %v5256
    %5290 = vmatprep.subr.bf16.mxu0 %v5259
    %5291 = vmatpush1.bf16.msra.mxu0 %v5258
    %5292 = vmatprep.mubr.bf16.mxu0 %v5193
    %5293 = vmatmul.mubr.bf16.gmra.mrb[0].mxu0 %v5192
    %v5294 = vpop.f32.mrb[0].mxu0
    %v5295 = vadd.f32 0.0, %v5294
    %v5296 = vpop.f32.mrb[0].mxu0
    %v5297 = vadd.f32 0.0, %v5296
    %v5298 = vpop.f32.mrb[0].mxu0
    %v5299 = vadd.f32 0.0, %v5298
    %v5300 = vpop.f32.mrb[0].mxu0
    %v5301 = vadd.f32 0.0, %v5300
    %5302 = vdwg.mxu0
    %5303 = vmatprep.subr.bf16.mxu0 %v5196
    %5304 = vmatpush1.bf16.msra.mxu0 %v5195
    %5305 = vmatprep.subr.bf16.mxu0 %v5198
    %5306 = vmatpush1.bf16.msra.mxu0 %v5197
    %5307 = vmatprep.subr.bf16.mxu0 %v5200
    %5308 = vmatpush1.bf16.msra.mxu0 %v5199
    %5309 = vmatprep.subr.bf16.mxu0 %v5202
    %5310 = vmatpush1.bf16.msra.mxu0 %v5201
    %5311 = vmatprep.subr.bf16.mxu0 %v5204
    %5312 = vmatpush1.bf16.msra.mxu0 %v5203
    %5313 = vmatprep.subr.bf16.mxu0 %v5206
    %5314 = vmatpush1.bf16.msra.mxu0 %v5205
    %5315 = vmatprep.subr.bf16.mxu0 %v5208
    %5316 = vmatpush1.bf16.msra.mxu0 %v5207
    %5317 = vmatprep.subr.bf16.mxu0 %v5210
    %5318 = vmatpush1.bf16.msra.mxu0 %v5209
    %5319 = vmatprep.subr.bf16.mxu0 %v5212
    %5320 = vmatpush1.bf16.msra.mxu0 %v5211
    %5321 = vmatprep.subr.bf16.mxu0 %v5214
    %5322 = vmatpush1.bf16.msra.mxu0 %v5213
    %5323 = vmatprep.subr.bf16.mxu0 %v5216
    %5324 = vmatpush1.bf16.msra.mxu0 %v5215
    %5325 = vmatprep.subr.bf16.mxu0 %v5218
    %5326 = vmatpush1.bf16.msra.mxu0 %v5217
    %5327 = vmatprep.subr.bf16.mxu0 %v5220
    %5328 = vmatpush1.bf16.msra.mxu0 %v5219
    %5329 = vmatprep.subr.bf16.mxu0 %v5222
    %5330 = vmatpush1.bf16.msra.mxu0 %v5221
    %5331 = vmatprep.subr.bf16.mxu0 %v5224
    %5332 = vmatpush1.bf16.msra.mxu0 %v5223
    %5333 = vmatprep.subr.bf16.mxu0 %v5226
    %5334 = vmatpush1.bf16.msra.mxu0 %v5225
    %5335 = vmatprep.mubr.bf16.mxu0 %v5191
    %5336 = vmatmul.mubr.bf16.gmra.mrb[0].mxu0 %v5190
    %v5337 = vpop.f32.mrb[0].mxu0
    %v5338 = vadd.f32 %v5295, %v5337
    %v5339 = vpop.f32.mrb[0].mxu0
    %v5340 = vadd.f32 %v5297, %v5339
    %v5341 = vpop.f32.mrb[0].mxu0
    %v5342 = vadd.f32 %v5299, %v5341
    %v5343 = vpop.f32.mrb[0].mxu0
    %v5344 = vadd.f32 %v5301, %v5343
    %5345 = vdwg.mxu0
    %s5346 = scalar_lea.vmem [#allocation3], 3072
    %v5347 = vld [vmem:[%s5346] sm:$0xff]
    %v5348 = vld [vmem:[%s5346 + $0x8] sm:$0xff]
    %v5349 = vld [vmem:[%s5346 + $0x10] sm:$0xff]
    %v5350 = vld [vmem:[%s5346 + $0x18] sm:$0xff]
    %v5351 = vld [vmem:[%s5346 + $0x20] sm:$0xff]
    %v5352 = vld [vmem:[%s5346 + $0x28] sm:$0xff]
    %v5353 = vld [vmem:[%s5346 + $0x30] sm:$0xff]
    %v5354 = vld [vmem:[%s5346 + $0x38] sm:$0xff]
    %v5355 = vld [vmem:[%s5346 + $0x40] sm:$0xff]
    %v5356 = vld [vmem:[%s5346 + $0x48] sm:$0xff]
    %v5357 = vld [vmem:[%s5346 + $0x50] sm:$0xff]
    %v5358 = vld [vmem:[%s5346 + $0x58] sm:$0xff]
    %v5359 = vld [vmem:[%s5346 + $0x60] sm:$0xff]
    %v5360 = vld [vmem:[%s5346 + $0x68] sm:$0xff]
    %v5361 = vld [vmem:[%s5346 + $0x70] sm:$0xff]
    %v5362 = vld [vmem:[%s5346 + $0x78] sm:$0xff]
    %v5363 = vld [vmem:[%s5346 + $0x80] sm:$0xff]
    %v5364 = vld [vmem:[%s5346 + $0x88] sm:$0xff]
    %v5365 = vld [vmem:[%s5346 + $0x90] sm:$0xff]
    %v5366 = vld [vmem:[%s5346 + $0x98] sm:$0xff]
    %v5367 = vld [vmem:[%s5346 + $0xa0] sm:$0xff]
    %v5368 = vld [vmem:[%s5346 + $0xa8] sm:$0xff]
    %v5369 = vld [vmem:[%s5346 + $0xb0] sm:$0xff]
    %v5370 = vld [vmem:[%s5346 + $0xb8] sm:$0xff]
    %v5371 = vld [vmem:[%s5346 + $0xc0] sm:$0xff]
    %v5372 = vld [vmem:[%s5346 + $0xc8] sm:$0xff]
    %v5373 = vld [vmem:[%s5346 + $0xd0] sm:$0xff]
    %v5374 = vld [vmem:[%s5346 + $0xd8] sm:$0xff]
    %v5375 = vld [vmem:[%s5346 + $0xe0] sm:$0xff]
    %v5376 = vld [vmem:[%s5346 + $0xe8] sm:$0xff]
    %v5377 = vld [vmem:[%s5346 + $0xf0] sm:$0xff]
    %v5378 = vld [vmem:[%s5346 + $0xf8] sm:$0xff]
    %s5379 = scalar_lea.vmem [#allocation3], 3840
    %v5380 = vld [vmem:[%s5379] sm:$0xff]
    %v5381 = vld [vmem:[%s5379 + $0x8] sm:$0xff]
    %v5382 = vld [vmem:[%s5379 + $0x10] sm:$0xff]
    %v5383 = vld [vmem:[%s5379 + $0x18] sm:$0xff]
    %v5384 = vld [vmem:[%s5379 + $0x20] sm:$0xff]
    %v5385 = vld [vmem:[%s5379 + $0x28] sm:$0xff]
    %v5386 = vld [vmem:[%s5379 + $0x30] sm:$0xff]
    %v5387 = vld [vmem:[%s5379 + $0x38] sm:$0xff]
    %v5388 = vld [vmem:[%s5379 + $0x40] sm:$0xff]
    %v5389 = vld [vmem:[%s5379 + $0x48] sm:$0xff]
    %v5390 = vld [vmem:[%s5379 + $0x50] sm:$0xff]
    %v5391 = vld [vmem:[%s5379 + $0x58] sm:$0xff]
    %v5392 = vld [vmem:[%s5379 + $0x60] sm:$0xff]
    %v5393 = vld [vmem:[%s5379 + $0x68] sm:$0xff]
    %v5394 = vld [vmem:[%s5379 + $0x70] sm:$0xff]
    %v5395 = vld [vmem:[%s5379 + $0x78] sm:$0xff]
    %v5396 = vld [vmem:[%s5379 + $0x80] sm:$0xff]
    %v5397 = vld [vmem:[%s5379 + $0x88] sm:$0xff]
    %v5398 = vld [vmem:[%s5379 + $0x90] sm:$0xff]
    %v5399 = vld [vmem:[%s5379 + $0x98] sm:$0xff]
    %v5400 = vld [vmem:[%s5379 + $0xa0] sm:$0xff]
    %v5401 = vld [vmem:[%s5379 + $0xa8] sm:$0xff]
    %v5402 = vld [vmem:[%s5379 + $0xb0] sm:$0xff]
    %v5403 = vld [vmem:[%s5379 + $0xb8] sm:$0xff]
    %v5404 = vld [vmem:[%s5379 + $0xc0] sm:$0xff]
    %v5405 = vld [vmem:[%s5379 + $0xc8] sm:$0xff]
    %v5406 = vld [vmem:[%s5379 + $0xd0] sm:$0xff]
    %v5407 = vld [vmem:[%s5379 + $0xd8] sm:$0xff]
    %v5408 = vld [vmem:[%s5379 + $0xe0] sm:$0xff]
    %v5409 = vld [vmem:[%s5379 + $0xe8] sm:$0xff]
    %v5410 = vld [vmem:[%s5379 + $0xf0] sm:$0xff]
    %v5411 = vld [vmem:[%s5379 + $0xf8] sm:$0xff]
    %5412 = vmatprep.subr.bf16.mxu0 %v5381
    %5413 = vmatpush1.bf16.msra.mxu0 %v5380
    %5414 = vmatprep.subr.bf16.mxu0 %v5383
    %5415 = vmatpush1.bf16.msra.mxu0 %v5382
    %5416 = vmatprep.subr.bf16.mxu0 %v5385
    %5417 = vmatpush1.bf16.msra.mxu0 %v5384
    %5418 = vmatprep.subr.bf16.mxu0 %v5387
    %5419 = vmatpush1.bf16.msra.mxu0 %v5386
    %5420 = vmatprep.subr.bf16.mxu0 %v5389
    %5421 = vmatpush1.bf16.msra.mxu0 %v5388
    %5422 = vmatprep.subr.bf16.mxu0 %v5391
    %5423 = vmatpush1.bf16.msra.mxu0 %v5390
    %5424 = vmatprep.subr.bf16.mxu0 %v5393
    %5425 = vmatpush1.bf16.msra.mxu0 %v5392
    %5426 = vmatprep.subr.bf16.mxu0 %v5395
    %5427 = vmatpush1.bf16.msra.mxu0 %v5394
    %5428 = vmatprep.subr.bf16.mxu0 %v5397
    %5429 = vmatpush1.bf16.msra.mxu0 %v5396
    %5430 = vmatprep.subr.bf16.mxu0 %v5399
    %5431 = vmatpush1.bf16.msra.mxu0 %v5398
    %5432 = vmatprep.subr.bf16.mxu0 %v5401
    %5433 = vmatpush1.bf16.msra.mxu0 %v5400
    %5434 = vmatprep.subr.bf16.mxu0 %v5403
    %5435 = vmatpush1.bf16.msra.mxu0 %v5402
    %5436 = vmatprep.subr.bf16.mxu0 %v5405
    %5437 = vmatpush1.bf16.msra.mxu0 %v5404
    %5438 = vmatprep.subr.bf16.mxu0 %v5407
    %5439 = vmatpush1.bf16.msra.mxu0 %v5406
    %5440 = vmatprep.subr.bf16.mxu0 %v5409
    %5441 = vmatpush1.bf16.msra.mxu0 %v5408
    %5442 = vmatprep.subr.bf16.mxu0 %v5411
    %5443 = vmatpush1.bf16.msra.mxu0 %v5410
    %5444 = vmatprep.mubr.bf16.mxu0 %v5193
    %5445 = vmatmul.mubr.bf16.gmra.mrb[0].mxu0 %v5192
    %v5446 = vpop.f32.mrb[0].mxu0
    %v5447 = vadd.f32 0.0, %v5446
    %v5448 = vpop.f32.mrb[0].mxu0
    %v5449 = vadd.f32 0.0, %v5448
    %v5450 = vpop.f32.mrb[0].mxu0
    %v5451 = vadd.f32 0.0, %v5450
    %v5452 = vpop.f32.mrb[0].mxu0
    %v5453 = vadd.f32 0.0, %v5452
    %5454 = vdwg.mxu0
    %5455 = vmatprep.subr.bf16.mxu0 %v5348
    %5456 = vmatpush1.bf16.msra.mxu0 %v5347
    %5457 = vmatprep.subr.bf16.mxu0 %v5350
    %5458 = vmatpush1.bf16.msra.mxu0 %v5349
    %5459 = vmatprep.subr.bf16.mxu0 %v5352
    %5460 = vmatpush1.bf16.msra.mxu0 %v5351
    %5461 = vmatprep.subr.bf16.mxu0 %v5354
    %5462 = vmatpush1.bf16.msra.mxu0 %v5353
    %5463 = vmatprep.subr.bf16.mxu0 %v5356
    %5464 = vmatpush1.bf16.msra.mxu0 %v5355
    %5465 = vmatprep.subr.bf16.mxu0 %v5358
    %5466 = vmatpush1.bf16.msra.mxu0 %v5357
    %5467 = vmatprep.subr.bf16.mxu0 %v5360
    %5468 = vmatpush1.bf16.msra.mxu0 %v5359
    %5469 = vmatprep.subr.bf16.mxu0 %v5362
    %5470 = vmatpush1.bf16.msra.mxu0 %v5361
    %5471 = vmatprep.subr.bf16.mxu0 %v5364
    %5472 = vmatpush1.bf16.msra.mxu0 %v5363
    %5473 = vmatprep.subr.bf16.mxu0 %v5366
    %5474 = vmatpush1.bf16.msra.mxu0 %v5365
    %5475 = vmatprep.subr.bf16.mxu0 %v5368
    %5476 = vmatpush1.bf16.msra.mxu0 %v5367
    %5477 = vmatprep.subr.bf16.mxu0 %v5370
    %5478 = vmatpush1.bf16.msra.mxu0 %v5369
    %5479 = vmatprep.subr.bf16.mxu0 %v5372
    %5480 = vmatpush1.bf16.msra.mxu0 %v5371
    %5481 = vmatprep.subr.bf16.mxu0 %v5374
    %5482 = vmatpush1.bf16.msra.mxu0 %v5373
    %5483 = vmatprep.subr.bf16.mxu0 %v5376
    %5484 = vmatpush1.bf16.msra.mxu0 %v5375
    %5485 = vmatprep.subr.bf16.mxu0 %v5378
    %5486 = vmatpush1.bf16.msra.mxu0 %v5377
    %5487 = vmatprep.mubr.bf16.mxu0 %v5191
    %5488 = vmatmul.mubr.bf16.gmra.mrb[0].mxu0 %v5190
    %v5489 = vpop.f32.mrb[0].mxu0
    %v5490 = vadd.f32 %v5447, %v5489
    %v5491 = vpop.f32.mrb[0].mxu0
    %v5492 = vadd.f32 %v5449, %v5491
    %v5493 = vpop.f32.mrb[0].mxu0
    %v5494 = vadd.f32 %v5451, %v5493
    %v5495 = vpop.f32.mrb[0].mxu0
    %v5496 = vadd.f32 %v5453, %v5495
    %5497 = vdwg.mxu0
    %s5498 = scalar_lea.vmem [#allocation3], 3584
    %v5499 = vld [vmem:[%s5498] sm:$0xff]
    %v5500 = vld [vmem:[%s5498 + $0x8] sm:$0xff]
    %v5501 = vld [vmem:[%s5498 + $0x10] sm:$0xff]
    %v5502 = vld [vmem:[%s5498 + $0x18] sm:$0xff]
    %v5503 = vld [vmem:[%s5498 + $0x20] sm:$0xff]
    %v5504 = vld [vmem:[%s5498 + $0x28] sm:$0xff]
    %v5505 = vld [vmem:[%s5498 + $0x30] sm:$0xff]
    %v5506 = vld [vmem:[%s5498 + $0x38] sm:$0xff]
    %v5507 = vld [vmem:[%s5498 + $0x40] sm:$0xff]
    %v5508 = vld [vmem:[%s5498 + $0x48] sm:$0xff]
    %v5509 = vld [vmem:[%s5498 + $0x50] sm:$0xff]
    %v5510 = vld [vmem:[%s5498 + $0x58] sm:$0xff]
    %v5511 = vld [vmem:[%s5498 + $0x60] sm:$0xff]
    %v5512 = vld [vmem:[%s5498 + $0x68] sm:$0xff]
    %v5513 = vld [vmem:[%s5498 + $0x70] sm:$0xff]
    %v5514 = vld [vmem:[%s5498 + $0x78] sm:$0xff]
    %v5515 = vld [vmem:[%s5498 + $0x80] sm:$0xff]
    %v5516 = vld [vmem:[%s5498 + $0x88] sm:$0xff]
    %v5517 = vld [vmem:[%s5498 + $0x90] sm:$0xff]
    %v5518 = vld [vmem:[%s5498 + $0x98] sm:$0xff]
    %v5519 = vld [vmem:[%s5498 + $0xa0] sm:$0xff]
    %v5520 = vld [vmem:[%s5498 + $0xa8] sm:$0xff]
    %v5521 = vld [vmem:[%s5498 + $0xb0] sm:$0xff]
    %v5522 = vld [vmem:[%s5498 + $0xb8] sm:$0xff]
    %v5523 = vld [vmem:[%s5498 + $0xc0] sm:$0xff]
    %v5524 = vld [vmem:[%s5498 + $0xc8] sm:$0xff]
    %v5525 = vld [vmem:[%s5498 + $0xd0] sm:$0xff]
    %v5526 = vld [vmem:[%s5498 + $0xd8] sm:$0xff]
    %v5527 = vld [vmem:[%s5498 + $0xe0] sm:$0xff]
    %v5528 = vld [vmem:[%s5498 + $0xe8] sm:$0xff]
    %v5529 = vld [vmem:[%s5498 + $0xf0] sm:$0xff]
    %v5530 = vld [vmem:[%s5498 + $0xf8] sm:$0xff]
    %s5531 = scalar_lea.vmem [#allocation3], 4352
    %v5532 = vld [vmem:[%s5531] sm:$0xff]
    %v5533 = vld [vmem:[%s5531 + $0x8] sm:$0xff]
    %v5534 = vld [vmem:[%s5531 + $0x10] sm:$0xff]
    %v5535 = vld [vmem:[%s5531 + $0x18] sm:$0xff]
    %v5536 = vld [vmem:[%s5531 + $0x20] sm:$0xff]
    %v5537 = vld [vmem:[%s5531 + $0x28] sm:$0xff]
    %v5538 = vld [vmem:[%s5531 + $0x30] sm:$0xff]
    %v5539 = vld [vmem:[%s5531 + $0x38] sm:$0xff]
    %v5540 = vld [vmem:[%s5531 + $0x40] sm:$0xff]
    %v5541 = vld [vmem:[%s5531 + $0x48] sm:$0xff]
    %v5542 = vld [vmem:[%s5531 + $0x50] sm:$0xff]
    %v5543 = vld [vmem:[%s5531 + $0x58] sm:$0xff]
    %v5544 = vld [vmem:[%s5531 + $0x60] sm:$0xff]
    %v5545 = vld [vmem:[%s5531 + $0x68] sm:$0xff]
    %v5546 = vld [vmem:[%s5531 + $0x70] sm:$0xff]
    %v5547 = vld [vmem:[%s5531 + $0x78] sm:$0xff]
    %v5548 = vld [vmem:[%s5531 + $0x80] sm:$0xff]
    %v5549 = vld [vmem:[%s5531 + $0x88] sm:$0xff]
    %v5550 = vld [vmem:[%s5531 + $0x90] sm:$0xff]
    %v5551 = vld [vmem:[%s5531 + $0x98] sm:$0xff]
    %v5552 = vld [vmem:[%s5531 + $0xa0] sm:$0xff]
    %v5553 = vld [vmem:[%s5531 + $0xa8] sm:$0xff]
    %v5554 = vld [vmem:[%s5531 + $0xb0] sm:$0xff]
    %v5555 = vld [vmem:[%s5531 + $0xb8] sm:$0xff]
    %v5556 = vld [vmem:[%s5531 + $0xc0] sm:$0xff]
    %v5557 = vld [vmem:[%s5531 + $0xc8] sm:$0xff]
    %v5558 = vld [vmem:[%s5531 + $0xd0] sm:$0xff]
    %v5559 = vld [vmem:[%s5531 + $0xd8] sm:$0xff]
    %v5560 = vld [vmem:[%s5531 + $0xe0] sm:$0xff]
    %v5561 = vld [vmem:[%s5531 + $0xe8] sm:$0xff]
    %v5562 = vld [vmem:[%s5531 + $0xf0] sm:$0xff]
    %v5563 = vld [vmem:[%s5531 + $0xf8] sm:$0xff]
    %5564 = vmatprep.subr.bf16.mxu0 %v5533
    %5565 = vmatpush1.bf16.msra.mxu0 %v5532
    %5566 = vmatprep.subr.bf16.mxu0 %v5535
    %5567 = vmatpush1.bf16.msra.mxu0 %v5534
    %5568 = vmatprep.subr.bf16.mxu0 %v5537
    %5569 = vmatpush1.bf16.msra.mxu0 %v5536
    %5570 = vmatprep.subr.bf16.mxu0 %v5539
    %5571 = vmatpush1.bf16.msra.mxu0 %v5538
    %5572 = vmatprep.subr.bf16.mxu0 %v5541
    %5573 = vmatpush1.bf16.msra.mxu0 %v5540
    %5574 = vmatprep.subr.bf16.mxu0 %v5543
    %5575 = vmatpush1.bf16.msra.mxu0 %v5542
    %5576 = vmatprep.subr.bf16.mxu0 %v5545
    %5577 = vmatpush1.bf16.msra.mxu0 %v5544
    %5578 = vmatprep.subr.bf16.mxu0 %v5547
    %5579 = vmatpush1.bf16.msra.mxu0 %v5546
    %5580 = vmatprep.subr.bf16.mxu0 %v5549
    %5581 = vmatpush1.bf16.msra.mxu0 %v5548
    %5582 = vmatprep.subr.bf16.mxu0 %v5551
    %5583 = vmatpush1.bf16.msra.mxu0 %v5550
    %5584 = vmatprep.subr.bf16.mxu0 %v5553
    %5585 = vmatpush1.bf16.msra.mxu0 %v5552
    %5586 = vmatprep.subr.bf16.mxu0 %v5555
    %5587 = vmatpush1.bf16.msra.mxu0 %v5554
    %5588 = vmatprep.subr.bf16.mxu0 %v5557
    %5589 = vmatpush1.bf16.msra.mxu0 %v5556
    %5590 = vmatprep.subr.bf16.mxu0 %v5559
    %5591 = vmatpush1.bf16.msra.mxu0 %v5558
    %5592 = vmatprep.subr.bf16.mxu0 %v5561
    %5593 = vmatpush1.bf16.msra.mxu0 %v5560
    %5594 = vmatprep.subr.bf16.mxu0 %v5563
    %5595 = vmatpush1.bf16.msra.mxu0 %v5562
    %5596 = vmatprep.mubr.bf16.mxu0 %v5193
    %5597 = vmatmul.mubr.bf16.gmra.mrb[0].mxu0 %v5192
    %v5598 = vpop.f32.mrb[0].mxu0
    %v5599 = vadd.f32 0.0, %v5598
    %v5600 = vpop.f32.mrb[0].mxu0
    %v5601 = vadd.f32 0.0, %v5600
    %v5602 = vpop.f32.mrb[0].mxu0
    %v5603 = vadd.f32 0.0, %v5602
    %v5604 = vpop.f32.mrb[0].mxu0
    %v5605 = vadd.f32 0.0, %v5604
    %5606 = vdwg.mxu0
    %5607 = vmatprep.subr.bf16.mxu0 %v5500
    %5608 = vmatpush1.bf16.msra.mxu0 %v5499
    %5609 = vmatprep.subr.bf16.mxu0 %v5502
    %5610 = vmatpush1.bf16.msra.mxu0 %v5501
    %5611 = vmatprep.subr.bf16.mxu0 %v5504
    %5612 = vmatpush1.bf16.msra.mxu0 %v5503
    %5613 = vmatprep.subr.bf16.mxu0 %v5506
    %5614 = vmatpush1.bf16.msra.mxu0 %v5505
    %5615 = vmatprep.subr.bf16.mxu0 %v5508
    %5616 = vmatpush1.bf16.msra.mxu0 %v5507
    %5617 = vmatprep.subr.bf16.mxu0 %v5510
    %5618 = vmatpush1.bf16.msra.mxu0 %v5509
    %5619 = vmatprep.subr.bf16.mxu0 %v5512
    %5620 = vmatpush1.bf16.msra.mxu0 %v5511
    %5621 = vmatprep.subr.bf16.mxu0 %v5514
    %5622 = vmatpush1.bf16.msra.mxu0 %v5513
    %5623 = vmatprep.subr.bf16.mxu0 %v5516
    %5624 = vmatpush1.bf16.msra.mxu0 %v5515
    %5625 = vmatprep.subr.bf16.mxu0 %v5518
    %5626 = vmatpush1.bf16.msra.mxu0 %v5517
    %5627 = vmatprep.subr.bf16.mxu0 %v5520
    %5628 = vmatpush1.bf16.msra.mxu0 %v5519
    %5629 = vmatprep.subr.bf16.mxu0 %v5522
    %5630 = vmatpush1.bf16.msra.mxu0 %v5521
    %5631 = vmatprep.subr.bf16.mxu0 %v5524
    %5632 = vmatpush1.bf16.msra.mxu0 %v5523
    %5633 = vmatprep.subr.bf16.mxu0 %v5526
    %5634 = vmatpush1.bf16.msra.mxu0 %v5525
    %5635 = vmatprep.subr.bf16.mxu0 %v5528
    %5636 = vmatpush1.bf16.msra.mxu0 %v5527
    %5637 = vmatprep.subr.bf16.mxu0 %v5530
    %5638 = vmatpush1.bf16.msra.mxu0 %v5529
    %5639 = vmatprep.mubr.bf16.mxu0 %v5191
    %5640 = vmatmul.mubr.bf16.gmra.mrb[0].mxu0 %v5190
    %v5641 = vpop.f32.mrb[0].mxu0
    %v5642 = vadd.f32 %v5599, %v5641
    %v5643 = vpop.f32.mrb[0].mxu0
    %v5644 = vadd.f32 %v5601, %v5643
    %v5645 = vpop.f32.mrb[0].mxu0
    %v5646 = vadd.f32 %v5603, %v5645
    %v5647 = vpop.f32.mrb[0].mxu0
    %v5648 = vadd.f32 %v5605, %v5647
    %5649 = vdwg.mxu0
    %v5650 = vld [vmem:[%s5] sm:$0xff]
    %v5651 = vld [vmem:[%s5 + $0x8] sm:$0xff]
    %v5652 = vrot.slane %v5490, 7
    %v5653 = vrot.slane %v5492, 7
    %v5654 = vrot.slane %v5494, 7
    %v5655 = vrot.slane %v5496, 7
    %v5656 = vsel %vm398, %v5652, %v5654
    %v5657 = vsel %vm398, %v5653, %v5655
    %v5658 = vsel %vm398, %v5654, %v5652
    %v5659 = vsel %vm398, %v5655, %v5653
    %5661 = vset.pattern.permute.xlu0 2
    %5662 = vperm.xlu0 %5661, %v5650
    %v5663 = vpop.permute.xlu0 %5662
    %5666 = vset.pattern.permute.xlu0 2
    %5667 = vperm.xlu0 %5666, %v5651
    %v5668 = vpop.permute.xlu0 %5667
    %v5670 = vmul.f32 %v5663, %v5658
    %v5671 = vmul.f32 %v5663, %v5659
    %v5672 = vmul.f32 %v5668, %v5656
    %v5673 = vmul.f32 %v5668, %v5657
    %v5674 = vadd.f32 %v5338, %v5670
    %v5675 = vadd.f32 %v5340, %v5671
    %v5676 = vadd.f32 %v5342, %v5672
    %v5677 = vadd.f32 %v5344, %v5673
    %v5678 = vrot.slane %v5642, 1
    %v5679 = vrot.slane %v5644, 1
    %v5680 = vrot.slane %v5646, 1
    %v5681 = vrot.slane %v5648, 1
    %v5682 = vsel %vm526, %v5678, %v5680
    %v5683 = vsel %vm526, %v5679, %v5681
    %v5684 = vsel %vm526, %v5680, %v5678
    %v5685 = vsel %vm526, %v5681, %v5679
    %5686 = vset.pattern.permute.xlu0 3
    %5687 = vperm.xlu0 %5686, %v5650
    %v5688 = vpop.permute.xlu0 %5687
    %5690 = vset.pattern.permute.xlu0 3
    %5691 = vperm.xlu0 %5690, %v5651
    %v5692 = vpop.permute.xlu0 %5691
    %v5694 = vmul.f32 %v5688, %v5682
    %v5695 = vmul.f32 %v5688, %v5683
    %v5696 = vmul.f32 %v5692, %v5684
    %v5697 = vmul.f32 %v5692, %v5685
    %v5698 = vadd.f32 %v5674, %v5694
    %v5699 = vadd.f32 %v5675, %v5695
    %v5700 = vadd.f32 %v5676, %v5696
    %v5701 = vadd.f32 %v5677, %v5697
    %s5702 = scalar_lea.vmem [#allocation9], 18
    %v5703 = vld [vmem:[%s5702] ss:$8 sm:$0x3]
    %v5705 = vlaneseq
    %v5706 = vshrl.u32 %v5705, 7
    %v5707 = vsub.s32 0, %v5706
    %v5708 = vrot.slane %v5703, %v5707
    %v5709 = vlaneseq
    %v5710 = vshrl.u32 %v5709, 7
    %v5711 = vsub.s32 1, %v5710
    %v5712 = vrot.slane %v5703, %v5711
    %v5715 = vadd.f32 %v5698, %v5708
    %v5716 = vadd.f32 %v5699, %v5712
    %v5717 = vadd.f32 %v5700, %v5708
    %v5718 = vadd.f32 %v5701, %v5712
    %v5719 = vmax.f32 %v5715, 0.0
    %v5720 = vmax.f32 %v5716, 0.0
    %v5721 = vmax.f32 %v5717, 0.0
    %v5722 = vmax.f32 %v5718, 0.0
    %v5723 = vpack.c.bf16 %v5721, %v5719
    %v5724 = vpack.c.bf16 %v5722, %v5720
    %s5725 = scalar_lea.vmem [#allocation2], 1536
    %v5726 = vld [vmem:[%s5725] sm:$0xff]
    %v5727 = vld [vmem:[%s5725 + $0x8] sm:$0xff]
    %v5728 = vld [vmem:[%s5725 + $0x10] sm:$0xff]
    %v5729 = vld [vmem:[%s5725 + $0x18] sm:$0xff]
    %v5730 = vld [vmem:[%s5725 + $0x20] sm:$0xff]
    %v5731 = vld [vmem:[%s5725 + $0x28] sm:$0xff]
    %v5732 = vld [vmem:[%s5725 + $0x30] sm:$0xff]
    %v5733 = vld [vmem:[%s5725 + $0x38] sm:$0xff]
    %v5734 = vld [vmem:[%s5725 + $0x40] sm:$0xff]
    %v5735 = vld [vmem:[%s5725 + $0x48] sm:$0xff]
    %v5736 = vld [vmem:[%s5725 + $0x50] sm:$0xff]
    %v5737 = vld [vmem:[%s5725 + $0x58] sm:$0xff]
    %v5738 = vld [vmem:[%s5725 + $0x60] sm:$0xff]
    %v5739 = vld [vmem:[%s5725 + $0x68] sm:$0xff]
    %v5740 = vld [vmem:[%s5725 + $0x70] sm:$0xff]
    %v5741 = vld [vmem:[%s5725 + $0x78] sm:$0xff]
    %v5742 = vld [vmem:[%s5725 + $0x80] sm:$0xff]
    %v5743 = vld [vmem:[%s5725 + $0x88] sm:$0xff]
    %v5744 = vld [vmem:[%s5725 + $0x90] sm:$0xff]
    %v5745 = vld [vmem:[%s5725 + $0x98] sm:$0xff]
    %v5746 = vld [vmem:[%s5725 + $0xa0] sm:$0xff]
    %v5747 = vld [vmem:[%s5725 + $0xa8] sm:$0xff]
    %v5748 = vld [vmem:[%s5725 + $0xb0] sm:$0xff]
    %v5749 = vld [vmem:[%s5725 + $0xb8] sm:$0xff]
    %v5750 = vld [vmem:[%s5725 + $0xc0] sm:$0xff]
    %v5751 = vld [vmem:[%s5725 + $0xc8] sm:$0xff]
    %v5752 = vld [vmem:[%s5725 + $0xd0] sm:$0xff]
    %v5753 = vld [vmem:[%s5725 + $0xd8] sm:$0xff]
    %v5754 = vld [vmem:[%s5725 + $0xe0] sm:$0xff]
    %v5755 = vld [vmem:[%s5725 + $0xe8] sm:$0xff]
    %v5756 = vld [vmem:[%s5725 + $0xf0] sm:$0xff]
    %v5757 = vld [vmem:[%s5725 + $0xf8] sm:$0xff]
    %5758 = vmatprep.subr.bf16.mxu0 %v5727
    %5759 = vmatpush1.bf16.msra.mxu0 %v5726
    %5760 = vmatprep.subr.bf16.mxu0 %v5729
    %5761 = vmatpush1.bf16.msra.mxu0 %v5728
    %5762 = vmatprep.subr.bf16.mxu0 %v5731
    %5763 = vmatpush1.bf16.msra.mxu0 %v5730
    %5764 = vmatprep.subr.bf16.mxu0 %v5733
    %5765 = vmatpush1.bf16.msra.mxu0 %v5732
    %5766 = vmatprep.subr.bf16.mxu0 %v5735
    %5767 = vmatpush1.bf16.msra.mxu0 %v5734
    %5768 = vmatprep.subr.bf16.mxu0 %v5737
    %5769 = vmatpush1.bf16.msra.mxu0 %v5736
    %5770 = vmatprep.subr.bf16.mxu0 %v5739
    %5771 = vmatpush1.bf16.msra.mxu0 %v5738
    %5772 = vmatprep.subr.bf16.mxu0 %v5741
    %5773 = vmatpush1.bf16.msra.mxu0 %v5740
    %5774 = vmatprep.subr.bf16.mxu0 %v5743
    %5775 = vmatpush1.bf16.msra.mxu0 %v5742
    %5776 = vmatprep.subr.bf16.mxu0 %v5745
    %5777 = vmatpush1.bf16.msra.mxu0 %v5744
    %5778 = vmatprep.subr.bf16.mxu0 %v5747
    %5779 = vmatpush1.bf16.msra.mxu0 %v5746
    %5780 = vmatprep.subr.bf16.mxu0 %v5749
    %5781 = vmatpush1.bf16.msra.mxu0 %v5748
    %5782 = vmatprep.subr.bf16.mxu0 %v5751
    %5783 = vmatpush1.bf16.msra.mxu0 %v5750
    %5784 = vmatprep.subr.bf16.mxu0 %v5753
    %5785 = vmatpush1.bf16.msra.mxu0 %v5752
    %5786 = vmatprep.subr.bf16.mxu0 %v5755
    %5787 = vmatpush1.bf16.msra.mxu0 %v5754
    %5788 = vmatprep.subr.bf16.mxu0 %v5757
    %5789 = vmatpush1.bf16.msra.mxu0 %v5756
    %5790 = vmatprep.mubr.bf16.mxu0 %v5724
    %5791 = vmatmul.mubr.bf16.gmra.mrb[0].mxu0 %v5723
    %v5792 = vpop.f32.mrb[0].mxu0
    %v5793 = vadd.f32 0.0, %v5792
    %v5794 = vpop.f32.mrb[0].mxu0
    %v5795 = vadd.f32 0.0, %v5794
    %v5796 = vpop.f32.mrb[0].mxu0
    %v5797 = vadd.f32 0.0, %v5796
    %v5798 = vpop.f32.mrb[0].mxu0
    %v5799 = vadd.f32 0.0, %v5798
    %5800 = vdwg.mxu0
    %s5801 = scalar_lea.vmem [#allocation2], 1792
    %v5802 = vld [vmem:[%s5801] sm:$0xff]
    %v5803 = vld [vmem:[%s5801 + $0x8] sm:$0xff]
    %v5804 = vld [vmem:[%s5801 + $0x10] sm:$0xff]
    %v5805 = vld [vmem:[%s5801 + $0x18] sm:$0xff]
    %v5806 = vld [vmem:[%s5801 + $0x20] sm:$0xff]
    %v5807 = vld [vmem:[%s5801 + $0x28] sm:$0xff]
    %v5808 = vld [vmem:[%s5801 + $0x30] sm:$0xff]
    %v5809 = vld [vmem:[%s5801 + $0x38] sm:$0xff]
    %v5810 = vld [vmem:[%s5801 + $0x40] sm:$0xff]
    %v5811 = vld [vmem:[%s5801 + $0x48] sm:$0xff]
    %v5812 = vld [vmem:[%s5801 + $0x50] sm:$0xff]
    %v5813 = vld [vmem:[%s5801 + $0x58] sm:$0xff]
    %v5814 = vld [vmem:[%s5801 + $0x60] sm:$0xff]
    %v5815 = vld [vmem:[%s5801 + $0x68] sm:$0xff]
    %v5816 = vld [vmem:[%s5801 + $0x70] sm:$0xff]
    %v5817 = vld [vmem:[%s5801 + $0x78] sm:$0xff]
    %v5818 = vld [vmem:[%s5801 + $0x80] sm:$0xff]
    %v5819 = vld [vmem:[%s5801 + $0x88] sm:$0xff]
    %v5820 = vld [vmem:[%s5801 + $0x90] sm:$0xff]
    %v5821 = vld [vmem:[%s5801 + $0x98] sm:$0xff]
    %v5822 = vld [vmem:[%s5801 + $0xa0] sm:$0xff]
    %v5823 = vld [vmem:[%s5801 + $0xa8] sm:$0xff]
    %v5824 = vld [vmem:[%s5801 + $0xb0] sm:$0xff]
    %v5825 = vld [vmem:[%s5801 + $0xb8] sm:$0xff]
    %v5826 = vld [vmem:[%s5801 + $0xc0] sm:$0xff]
    %v5827 = vld [vmem:[%s5801 + $0xc8] sm:$0xff]
    %v5828 = vld [vmem:[%s5801 + $0xd0] sm:$0xff]
    %v5829 = vld [vmem:[%s5801 + $0xd8] sm:$0xff]
    %v5830 = vld [vmem:[%s5801 + $0xe0] sm:$0xff]
    %v5831 = vld [vmem:[%s5801 + $0xe8] sm:$0xff]
    %v5832 = vld [vmem:[%s5801 + $0xf0] sm:$0xff]
    %v5833 = vld [vmem:[%s5801 + $0xf8] sm:$0xff]
    %5834 = vmatprep.subr.bf16.mxu0 %v5803
    %5835 = vmatpush1.bf16.msra.mxu0 %v5802
    %5836 = vmatprep.subr.bf16.mxu0 %v5805
    %5837 = vmatpush1.bf16.msra.mxu0 %v5804
    %5838 = vmatprep.subr.bf16.mxu0 %v5807
    %5839 = vmatpush1.bf16.msra.mxu0 %v5806
    %5840 = vmatprep.subr.bf16.mxu0 %v5809
    %5841 = vmatpush1.bf16.msra.mxu0 %v5808
    %5842 = vmatprep.subr.bf16.mxu0 %v5811
    %5843 = vmatpush1.bf16.msra.mxu0 %v5810
    %5844 = vmatprep.subr.bf16.mxu0 %v5813
    %5845 = vmatpush1.bf16.msra.mxu0 %v5812
    %5846 = vmatprep.subr.bf16.mxu0 %v5815
    %5847 = vmatpush1.bf16.msra.mxu0 %v5814
    %5848 = vmatprep.subr.bf16.mxu0 %v5817
    %5849 = vmatpush1.bf16.msra.mxu0 %v5816
    %5850 = vmatprep.subr.bf16.mxu0 %v5819
    %5851 = vmatpush1.bf16.msra.mxu0 %v5818
    %5852 = vmatprep.subr.bf16.mxu0 %v5821
    %5853 = vmatpush1.bf16.msra.mxu0 %v5820
    %5854 = vmatprep.subr.bf16.mxu0 %v5823
    %5855 = vmatpush1.bf16.msra.mxu0 %v5822
    %5856 = vmatprep.subr.bf16.mxu0 %v5825
    %5857 = vmatpush1.bf16.msra.mxu0 %v5824
    %5858 = vmatprep.subr.bf16.mxu0 %v5827
    %5859 = vmatpush1.bf16.msra.mxu0 %v5826
    %5860 = vmatprep.subr.bf16.mxu0 %v5829
    %5861 = vmatpush1.bf16.msra.mxu0 %v5828
    %5862 = vmatprep.subr.bf16.mxu0 %v5831
    %5863 = vmatpush1.bf16.msra.mxu0 %v5830
    %5864 = vmatprep.subr.bf16.mxu0 %v5833
    %5865 = vmatpush1.bf16.msra.mxu0 %v5832
    %5866 = vmatprep.mubr.bf16.mxu0 %v5724
    %5867 = vmatmul.mubr.bf16.gmra.mrb[0].mxu0 %v5723
    %v5868 = vpop.f32.mrb[0].mxu0
    %v5869 = vadd.f32 0.0, %v5868
    %v5870 = vpop.f32.mrb[0].mxu0
    %v5871 = vadd.f32 0.0, %v5870
    %v5872 = vpop.f32.mrb[0].mxu0
    %v5873 = vadd.f32 0.0, %v5872
    %v5874 = vpop.f32.mrb[0].mxu0
    %v5875 = vadd.f32 0.0, %v5874
    %5876 = vdwg.mxu0
    %s5877 = scalar_lea.vmem [#allocation10], 208
    %v5878 = vld [vmem:[%s5877] sm:$0xf]
    %v5879 = vld [vmem:[%s5877 + $0x4] sm:$0xf]
    %v5880 = vld [vmem:[%s5877 + $0x8] sm:$0xf]
    %v5881 = vld [vmem:[%s5877 + $0xc] sm:$0xf]
    %v5882 = vpack.c.bf16 %v5797, %v5793
    %v5883 = vpack.c.bf16 %v5799, %v5795
    %s5884 = scalar_lea.vmem [#allocation10], 224
    %v5885 = vld [vmem:[%s5884] sm:$0xf]
    %v5886 = vld [vmem:[%s5884 + $0x4] sm:$0xf]
    %v5887 = vld [vmem:[%s5884 + $0x8] sm:$0xf]
    %v5888 = vld [vmem:[%s5884 + $0xc] sm:$0xf]
    %v5889 = vpack.c.bf16 %v5873, %v5869
    %v5890 = vpack.c.bf16 %v5875, %v5871
    %v5895 = vunpack.c.l.b16 %v5885
    %v5896 = vunpack.c.l.b16 %v5886
    %v5897 = vunpack.c.l.b16 %v5887
    %v5898 = vunpack.c.l.b16 %v5888
    %v5899 = vpack.c.b16 %v5896, %v5895
    %v5900 = vpack.c.b16 %v5898, %v5897
    %v5902 = vsel %vm1406, %v5899, 0
    %v5905 = vsel %vm1406, %v5900, 0
    %5907 = vmatprep.subr.bf16.mxu0 %v5890
    %5908 = vmatpush1.bf16.msra.mxu0 %v5889
    %5909 = vmatprep.subr.bf16.mxu0 0
    %5910 = vmatpush1.bf16.msra.mxu0 0
    %5911 = vmatprep.subr.bf16.mxu0 0
    %5912 = vmatpush1.bf16.msra.mxu0 0
    %5913 = vmatprep.subr.bf16.mxu0 0
    %5914 = vmatpush1.bf16.msra.mxu0 0
    %5915 = vmatprep.subr.bf16.mxu0 0
    %5916 = vmatpush1.bf16.msra.mxu0 0
    %5917 = vmatprep.subr.bf16.mxu0 0
    %5918 = vmatpush1.bf16.msra.mxu0 0
    %5919 = vmatprep.subr.bf16.mxu0 0
    %5920 = vmatpush1.bf16.msra.mxu0 0
    %5921 = vmatprep.subr.bf16.mxu0 0
    %5922 = vmatpush1.bf16.msra.mxu0 0
    %5923 = vmatprep.subr.bf16.mxu0 0
    %5924 = vmatpush1.bf16.msra.mxu0 0
    %5925 = vmatprep.subr.bf16.mxu0 0
    %5926 = vmatpush1.bf16.msra.mxu0 0
    %5927 = vmatprep.subr.bf16.mxu0 0
    %5928 = vmatpush1.bf16.msra.mxu0 0
    %5929 = vmatprep.subr.bf16.mxu0 0
    %5930 = vmatpush1.bf16.msra.mxu0 0
    %5931 = vmatprep.subr.bf16.mxu0 0
    %5932 = vmatpush1.bf16.msra.mxu0 0
    %5933 = vmatprep.subr.bf16.mxu0 0
    %5934 = vmatpush1.bf16.msra.mxu0 0
    %5935 = vmatprep.subr.bf16.mxu0 0
    %5936 = vmatpush1.bf16.msra.mxu0 0
    %5937 = vmatprep.subr.bf16.mxu0 0
    %5938 = vmatpush1.bf16.msra.mxu0 0
    %5939 = vmatprep.mubr.bf16.mxu0 0
    %5940 = vmatmul.mubr.bf16.gmra.mrb[0].mxu0 %v5902
    %v5941 = vpop.f32.mrb[0].mxu0
    %v5942 = vadd.f32 0.0, %v5941
    %v5943 = vpop.f32.mrb[0].mxu0
    %v5944 = vadd.f32 0.0, %v5943
    %v5945 = vpop.f32.mrb[0].mxu0
    %v5946 = vadd.f32 0.0, %v5945
    %v5947 = vpop.f32.mrb[0].mxu0
    %v5948 = vadd.f32 0.0, %v5947
    %5949 = vmatprep.mubr.bf16.mxu0 0
    %5950 = vmatmul.mubr.bf16.gmra.mrb[0].mxu0 %v5905
    %v5951 = vpop.f32.mrb[0].mxu0
    %v5952 = vadd.f32 0.0, %v5951
    %v5953 = vpop.f32.mrb[0].mxu0
    %v5954 = vadd.f32 0.0, %v5953
    %v5955 = vpop.f32.mrb[0].mxu0
    %v5956 = vadd.f32 0.0, %v5955
    %v5957 = vpop.f32.mrb[0].mxu0
    %v5958 = vadd.f32 0.0, %v5957
    %5959 = vdwg.mxu0
    %v5964 = vunpack.c.l.b16 %v5878
    %v5965 = vunpack.c.l.b16 %v5879
    %v5966 = vunpack.c.l.b16 %v5880
    %v5967 = vunpack.c.l.b16 %v5881
    %v5968 = vpack.c.b16 %v5965, %v5964
    %v5969 = vpack.c.b16 %v5967, %v5966
    %v5971 = vsel %vm1406, %v5968, 0
    %v5974 = vsel %vm1406, %v5969, 0
    %5976 = vmatprep.subr.bf16.mxu0 %v5883
    %5977 = vmatpush1.bf16.msra.mxu0 %v5882
    %5978 = vmatprep.subr.bf16.mxu0 0
    %5979 = vmatpush1.bf16.msra.mxu0 0
    %5980 = vmatprep.subr.bf16.mxu0 0
    %5981 = vmatpush1.bf16.msra.mxu0 0
    %5982 = vmatprep.subr.bf16.mxu0 0
    %5983 = vmatpush1.bf16.msra.mxu0 0
    %5984 = vmatprep.subr.bf16.mxu0 0
    %5985 = vmatpush1.bf16.msra.mxu0 0
    %5986 = vmatprep.subr.bf16.mxu0 0
    %5987 = vmatpush1.bf16.msra.mxu0 0
    %5988 = vmatprep.subr.bf16.mxu0 0
    %5989 = vmatpush1.bf16.msra.mxu0 0
    %5990 = vmatprep.subr.bf16.mxu0 0
    %5991 = vmatpush1.bf16.msra.mxu0 0
    %5992 = vmatprep.subr.bf16.mxu0 0
    %5993 = vmatpush1.bf16.msra.mxu0 0
    %5994 = vmatprep.subr.bf16.mxu0 0
    %5995 = vmatpush1.bf16.msra.mxu0 0
    %5996 = vmatprep.subr.bf16.mxu0 0
    %5997 = vmatpush1.bf16.msra.mxu0 0
    %5998 = vmatprep.subr.bf16.mxu0 0
    %5999 = vmatpush1.bf16.msra.mxu0 0
    %6000 = vmatprep.subr.bf16.mxu0 0
    %6001 = vmatpush1.bf16.msra.mxu0 0
    %6002 = vmatprep.subr.bf16.mxu0 0
    %6003 = vmatpush1.bf16.msra.mxu0 0
    %6004 = vmatprep.subr.bf16.mxu0 0
    %6005 = vmatpush1.bf16.msra.mxu0 0
    %6006 = vmatprep.subr.bf16.mxu0 0
    %6007 = vmatpush1.bf16.msra.mxu0 0
    %6008 = vmatprep.mubr.bf16.mxu0 0
    %6009 = vmatmul.mubr.bf16.gmra.mrb[0].mxu0 %v5971
    %v6010 = vpop.f32.mrb[0].mxu0
    %v6011 = vadd.f32 %v5942, %v6010
    %v6012 = vpop.f32.mrb[0].mxu0
    %v6013 = vadd.f32 %v5944, %v6012
    %v6014 = vpop.f32.mrb[0].mxu0
    %v6015 = vadd.f32 %v5946, %v6014
    %v6016 = vpop.f32.mrb[0].mxu0
    %v6017 = vadd.f32 %v5948, %v6016
    %6018 = vmatprep.mubr.bf16.mxu0 0
    %6019 = vmatmul.mubr.bf16.gmra.mrb[0].mxu0 %v5974
    %v6020 = vpop.f32.mrb[0].mxu0
    %v6021 = vadd.f32 %v5952, %v6020
    %v6022 = vpop.f32.mrb[0].mxu0
    %v6023 = vadd.f32 %v5954, %v6022
    %v6024 = vpop.f32.mrb[0].mxu0
    %v6025 = vadd.f32 %v5956, %v6024
    %v6026 = vpop.f32.mrb[0].mxu0
    %v6027 = vadd.f32 %v5958, %v6026
    %6028 = vdwg.mxu0
    %s6029 = scalar_lea.vmem [#allocation9], 19
    %v6030 = vld [vmem:[%s6029] ss:$8 sm:$0x3]
    %v6032 = vlaneseq
    %v6033 = vshrl.u32 %v6032, 7
    %v6034 = vsub.s32 0, %v6033
    %v6035 = vrot.slane %v6030, %v6034
    %v6036 = vlaneseq
    %v6037 = vshrl.u32 %v6036, 7
    %v6038 = vsub.s32 1, %v6037
    %v6039 = vrot.slane %v6030, %v6038
    %v6042 = vadd.f32 %v6011, %v6035
    %v6043 = vadd.f32 %v6013, %v6039
    %v6044 = vadd.f32 %v6015, %v6035
    %v6045 = vadd.f32 %v6017, %v6039
    %v6046 = vadd.f32 %v6021, %v6035
    %v6047 = vadd.f32 %v6023, %v6039
    %v6048 = vadd.f32 %v6025, %v6035
    %v6049 = vadd.f32 %v6027, %v6039
    %v6050 = vpack.c.bf16 %v6044, %v6042
    %v6051 = vpack.c.bf16 %v6045, %v6043
    %v6052 = vpack.c.bf16 %v6048, %v6046
    %v6053 = vpack.c.bf16 %v6049, %v6047
    %v6054 = vpack.c.bf16 %v589, %v587
    %v6055 = vpack.c.bf16 %v590, %v588
    %v6056 = vpack.c.bf16 %v593, %v591
    %v6057 = vpack.c.bf16 %v594, %v592
    %s6058 = scalar_lea.vmem [#allocation3], 4864
    %v6059 = vld [vmem:[%s6058] sm:$0xff]
    %v6060 = vld [vmem:[%s6058 + $0x8] sm:$0xff]
    %v6061 = vld [vmem:[%s6058 + $0x10] sm:$0xff]
    %v6062 = vld [vmem:[%s6058 + $0x18] sm:$0xff]
    %v6063 = vld [vmem:[%s6058 + $0x20] sm:$0xff]
    %v6064 = vld [vmem:[%s6058 + $0x28] sm:$0xff]
    %v6065 = vld [vmem:[%s6058 + $0x30] sm:$0xff]
    %v6066 = vld [vmem:[%s6058 + $0x38] sm:$0xff]
    %v6067 = vld [vmem:[%s6058 + $0x40] sm:$0xff]
    %v6068 = vld [vmem:[%s6058 + $0x48] sm:$0xff]
    %v6069 = vld [vmem:[%s6058 + $0x50] sm:$0xff]
    %v6070 = vld [vmem:[%s6058 + $0x58] sm:$0xff]
    %v6071 = vld [vmem:[%s6058 + $0x60] sm:$0xff]
    %v6072 = vld [vmem:[%s6058 + $0x68] sm:$0xff]
    %v6073 = vld [vmem:[%s6058 + $0x70] sm:$0xff]
    %v6074 = vld [vmem:[%s6058 + $0x78] sm:$0xff]
    %v6075 = vld [vmem:[%s6058 + $0x80] sm:$0xff]
    %v6076 = vld [vmem:[%s6058 + $0x88] sm:$0xff]
    %v6077 = vld [vmem:[%s6058 + $0x90] sm:$0xff]
    %v6078 = vld [vmem:[%s6058 + $0x98] sm:$0xff]
    %v6079 = vld [vmem:[%s6058 + $0xa0] sm:$0xff]
    %v6080 = vld [vmem:[%s6058 + $0xa8] sm:$0xff]
    %v6081 = vld [vmem:[%s6058 + $0xb0] sm:$0xff]
    %v6082 = vld [vmem:[%s6058 + $0xb8] sm:$0xff]
    %v6083 = vld [vmem:[%s6058 + $0xc0] sm:$0xff]
    %v6084 = vld [vmem:[%s6058 + $0xc8] sm:$0xff]
    %v6085 = vld [vmem:[%s6058 + $0xd0] sm:$0xff]
    %v6086 = vld [vmem:[%s6058 + $0xd8] sm:$0xff]
    %v6087 = vld [vmem:[%s6058 + $0xe0] sm:$0xff]
    %v6088 = vld [vmem:[%s6058 + $0xe8] sm:$0xff]
    %v6089 = vld [vmem:[%s6058 + $0xf0] sm:$0xff]
    %v6090 = vld [vmem:[%s6058 + $0xf8] sm:$0xff]
    %s6091 = scalar_lea.vmem [#allocation3], 5632
    %v6092 = vld [vmem:[%s6091] sm:$0xff]
    %v6093 = vld [vmem:[%s6091 + $0x8] sm:$0xff]
    %v6094 = vld [vmem:[%s6091 + $0x10] sm:$0xff]
    %v6095 = vld [vmem:[%s6091 + $0x18] sm:$0xff]
    %v6096 = vld [vmem:[%s6091 + $0x20] sm:$0xff]
    %v6097 = vld [vmem:[%s6091 + $0x28] sm:$0xff]
    %v6098 = vld [vmem:[%s6091 + $0x30] sm:$0xff]
    %v6099 = vld [vmem:[%s6091 + $0x38] sm:$0xff]
    %v6100 = vld [vmem:[%s6091 + $0x40] sm:$0xff]
    %v6101 = vld [vmem:[%s6091 + $0x48] sm:$0xff]
    %v6102 = vld [vmem:[%s6091 + $0x50] sm:$0xff]
    %v6103 = vld [vmem:[%s6091 + $0x58] sm:$0xff]
    %v6104 = vld [vmem:[%s6091 + $0x60] sm:$0xff]
    %v6105 = vld [vmem:[%s6091 + $0x68] sm:$0xff]
    %v6106 = vld [vmem:[%s6091 + $0x70] sm:$0xff]
    %v6107 = vld [vmem:[%s6091 + $0x78] sm:$0xff]
    %v6108 = vld [vmem:[%s6091 + $0x80] sm:$0xff]
    %v6109 = vld [vmem:[%s6091 + $0x88] sm:$0xff]
    %v6110 = vld [vmem:[%s6091 + $0x90] sm:$0xff]
    %v6111 = vld [vmem:[%s6091 + $0x98] sm:$0xff]
    %v6112 = vld [vmem:[%s6091 + $0xa0] sm:$0xff]
    %v6113 = vld [vmem:[%s6091 + $0xa8] sm:$0xff]
    %v6114 = vld [vmem:[%s6091 + $0xb0] sm:$0xff]
    %v6115 = vld [vmem:[%s6091 + $0xb8] sm:$0xff]
    %v6116 = vld [vmem:[%s6091 + $0xc0] sm:$0xff]
    %v6117 = vld [vmem:[%s6091 + $0xc8] sm:$0xff]
    %v6118 = vld [vmem:[%s6091 + $0xd0] sm:$0xff]
    %v6119 = vld [vmem:[%s6091 + $0xd8] sm:$0xff]
    %v6120 = vld [vmem:[%s6091 + $0xe0] sm:$0xff]
    %v6121 = vld [vmem:[%s6091 + $0xe8] sm:$0xff]
    %v6122 = vld [vmem:[%s6091 + $0xf0] sm:$0xff]
    %v6123 = vld [vmem:[%s6091 + $0xf8] sm:$0xff]
    %6124 = vmatprep.subr.bf16.mxu0 %v6093
    %6125 = vmatpush1.bf16.msra.mxu0 %v6092
    %6126 = vmatprep.subr.bf16.mxu0 %v6095
    %6127 = vmatpush1.bf16.msra.mxu0 %v6094
    %6128 = vmatprep.subr.bf16.mxu0 %v6097
    %6129 = vmatpush1.bf16.msra.mxu0 %v6096
    %6130 = vmatprep.subr.bf16.mxu0 %v6099
    %6131 = vmatpush1.bf16.msra.mxu0 %v6098
    %6132 = vmatprep.subr.bf16.mxu0 %v6101
    %6133 = vmatpush1.bf16.msra.mxu0 %v6100
    %6134 = vmatprep.subr.bf16.mxu0 %v6103
    %6135 = vmatpush1.bf16.msra.mxu0 %v6102
    %6136 = vmatprep.subr.bf16.mxu0 %v6105
    %6137 = vmatpush1.bf16.msra.mxu0 %v6104
    %6138 = vmatprep.subr.bf16.mxu0 %v6107
    %6139 = vmatpush1.bf16.msra.mxu0 %v6106
    %6140 = vmatprep.subr.bf16.mxu0 %v6109
    %6141 = vmatpush1.bf16.msra.mxu0 %v6108
    %6142 = vmatprep.subr.bf16.mxu0 %v6111
    %6143 = vmatpush1.bf16.msra.mxu0 %v6110
    %6144 = vmatprep.subr.bf16.mxu0 %v6113
    %6145 = vmatpush1.bf16.msra.mxu0 %v6112
    %6146 = vmatprep.subr.bf16.mxu0 %v6115
    %6147 = vmatpush1.bf16.msra.mxu0 %v6114
    %6148 = vmatprep.subr.bf16.mxu0 %v6117
    %6149 = vmatpush1.bf16.msra.mxu0 %v6116
    %6150 = vmatprep.subr.bf16.mxu0 %v6119
    %6151 = vmatpush1.bf16.msra.mxu0 %v6118
    %6152 = vmatprep.subr.bf16.mxu0 %v6121
    %6153 = vmatpush1.bf16.msra.mxu0 %v6120
    %6154 = vmatprep.subr.bf16.mxu0 %v6123
    %6155 = vmatpush1.bf16.msra.mxu0 %v6122
    %6156 = vmatprep.mubr.bf16.mxu0 %v6055
    %6157 = vmatmul.mubr.bf16.gmra.mrb[0].mxu0 %v6054
    %v6158 = vpop.f32.mrb[0].mxu0
    %v6159 = vadd.f32 0.0, %v6158
    %v6160 = vpop.f32.mrb[0].mxu0
    %v6161 = vadd.f32 0.0, %v6160
    %v6162 = vpop.f32.mrb[0].mxu0
    %v6163 = vadd.f32 0.0, %v6162
    %v6164 = vpop.f32.mrb[0].mxu0
    %v6165 = vadd.f32 0.0, %v6164
    %6166 = vmatprep.mubr.bf16.mxu0 %v6057
    %6167 = vmatmul.mubr.bf16.gmra.mrb[0].mxu0 %v6056
    %v6168 = vpop.f32.mrb[0].mxu0
    %v6169 = vadd.f32 0.0, %v6168
    %v6170 = vpop.f32.mrb[0].mxu0
    %v6171 = vadd.f32 0.0, %v6170
    %v6172 = vpop.f32.mrb[0].mxu0
    %v6173 = vadd.f32 0.0, %v6172
    %v6174 = vpop.f32.mrb[0].mxu0
    %v6175 = vadd.f32 0.0, %v6174
    %6176 = vdwg.mxu0
    %6177 = vmatprep.subr.bf16.mxu0 %v6060
    %6178 = vmatpush1.bf16.msra.mxu0 %v6059
    %6179 = vmatprep.subr.bf16.mxu0 %v6062
    %6180 = vmatpush1.bf16.msra.mxu0 %v6061
    %6181 = vmatprep.subr.bf16.mxu0 %v6064
    %6182 = vmatpush1.bf16.msra.mxu0 %v6063
    %6183 = vmatprep.subr.bf16.mxu0 %v6066
    %6184 = vmatpush1.bf16.msra.mxu0 %v6065
    %6185 = vmatprep.subr.bf16.mxu0 %v6068
    %6186 = vmatpush1.bf16.msra.mxu0 %v6067
    %6187 = vmatprep.subr.bf16.mxu0 %v6070
    %6188 = vmatpush1.bf16.msra.mxu0 %v6069
    %6189 = vmatprep.subr.bf16.mxu0 %v6072
    %6190 = vmatpush1.bf16.msra.mxu0 %v6071
    %6191 = vmatprep.subr.bf16.mxu0 %v6074
    %6192 = vmatpush1.bf16.msra.mxu0 %v6073
    %6193 = vmatprep.subr.bf16.mxu0 %v6076
    %6194 = vmatpush1.bf16.msra.mxu0 %v6075
    %6195 = vmatprep.subr.bf16.mxu0 %v6078
    %6196 = vmatpush1.bf16.msra.mxu0 %v6077
    %6197 = vmatprep.subr.bf16.mxu0 %v6080
    %6198 = vmatpush1.bf16.msra.mxu0 %v6079
    %6199 = vmatprep.subr.bf16.mxu0 %v6082
    %6200 = vmatpush1.bf16.msra.mxu0 %v6081
    %6201 = vmatprep.subr.bf16.mxu0 %v6084
    %6202 = vmatpush1.bf16.msra.mxu0 %v6083
    %6203 = vmatprep.subr.bf16.mxu0 %v6086
    %6204 = vmatpush1.bf16.msra.mxu0 %v6085
    %6205 = vmatprep.subr.bf16.mxu0 %v6088
    %6206 = vmatpush1.bf16.msra.mxu0 %v6087
    %6207 = vmatprep.subr.bf16.mxu0 %v6090
    %6208 = vmatpush1.bf16.msra.mxu0 %v6089
    %6209 = vmatprep.mubr.bf16.mxu0 %v6051
    %6210 = vmatmul.mubr.bf16.gmra.mrb[0].mxu0 %v6050
    %v6211 = vpop.f32.mrb[0].mxu0
    %v6212 = vadd.f32 %v6159, %v6211
    %v6213 = vpop.f32.mrb[0].mxu0
    %v6214 = vadd.f32 %v6161, %v6213
    %v6215 = vpop.f32.mrb[0].mxu0
    %v6216 = vadd.f32 %v6163, %v6215
    %v6217 = vpop.f32.mrb[0].mxu0
    %v6218 = vadd.f32 %v6165, %v6217
    %6219 = vmatprep.mubr.bf16.mxu0 %v6053
    %6220 = vmatmul.mubr.bf16.gmra.mrb[0].mxu0 %v6052
    %v6221 = vpop.f32.mrb[0].mxu0
    %v6222 = vadd.f32 %v6169, %v6221
    %v6223 = vpop.f32.mrb[0].mxu0
    %v6224 = vadd.f32 %v6171, %v6223
    %v6225 = vpop.f32.mrb[0].mxu0
    %v6226 = vadd.f32 %v6173, %v6225
    %v6227 = vpop.f32.mrb[0].mxu0
    %v6228 = vadd.f32 %v6175, %v6227
    %6229 = vdwg.mxu0
    %s6230 = scalar_lea.vmem [#allocation3], 4608
    %v6231 = vld [vmem:[%s6230] sm:$0xff]
    %v6232 = vld [vmem:[%s6230 + $0x8] sm:$0xff]
    %v6233 = vld [vmem:[%s6230 + $0x10] sm:$0xff]
    %v6234 = vld [vmem:[%s6230 + $0x18] sm:$0xff]
    %v6235 = vld [vmem:[%s6230 + $0x20] sm:$0xff]
    %v6236 = vld [vmem:[%s6230 + $0x28] sm:$0xff]
    %v6237 = vld [vmem:[%s6230 + $0x30] sm:$0xff]
    %v6238 = vld [vmem:[%s6230 + $0x38] sm:$0xff]
    %v6239 = vld [vmem:[%s6230 + $0x40] sm:$0xff]
    %v6240 = vld [vmem:[%s6230 + $0x48] sm:$0xff]
    %v6241 = vld [vmem:[%s6230 + $0x50] sm:$0xff]
    %v6242 = vld [vmem:[%s6230 + $0x58] sm:$0xff]
    %v6243 = vld [vmem:[%s6230 + $0x60] sm:$0xff]
    %v6244 = vld [vmem:[%s6230 + $0x68] sm:$0xff]
    %v6245 = vld [vmem:[%s6230 + $0x70] sm:$0xff]
    %v6246 = vld [vmem:[%s6230 + $0x78] sm:$0xff]
    %v6247 = vld [vmem:[%s6230 + $0x80] sm:$0xff]
    %v6248 = vld [vmem:[%s6230 + $0x88] sm:$0xff]
    %v6249 = vld [vmem:[%s6230 + $0x90] sm:$0xff]
    %v6250 = vld [vmem:[%s6230 + $0x98] sm:$0xff]
    %v6251 = vld [vmem:[%s6230 + $0xa0] sm:$0xff]
    %v6252 = vld [vmem:[%s6230 + $0xa8] sm:$0xff]
    %v6253 = vld [vmem:[%s6230 + $0xb0] sm:$0xff]
    %v6254 = vld [vmem:[%s6230 + $0xb8] sm:$0xff]
    %v6255 = vld [vmem:[%s6230 + $0xc0] sm:$0xff]
    %v6256 = vld [vmem:[%s6230 + $0xc8] sm:$0xff]
    %v6257 = vld [vmem:[%s6230 + $0xd0] sm:$0xff]
    %v6258 = vld [vmem:[%s6230 + $0xd8] sm:$0xff]
    %v6259 = vld [vmem:[%s6230 + $0xe0] sm:$0xff]
    %v6260 = vld [vmem:[%s6230 + $0xe8] sm:$0xff]
    %v6261 = vld [vmem:[%s6230 + $0xf0] sm:$0xff]
    %v6262 = vld [vmem:[%s6230 + $0xf8] sm:$0xff]
    %s6263 = scalar_lea.vmem [#allocation3], 5376
    %v6264 = vld [vmem:[%s6263] sm:$0xff]
    %v6265 = vld [vmem:[%s6263 + $0x8] sm:$0xff]
    %v6266 = vld [vmem:[%s6263 + $0x10] sm:$0xff]
    %v6267 = vld [vmem:[%s6263 + $0x18] sm:$0xff]
    %v6268 = vld [vmem:[%s6263 + $0x20] sm:$0xff]
    %v6269 = vld [vmem:[%s6263 + $0x28] sm:$0xff]
    %v6270 = vld [vmem:[%s6263 + $0x30] sm:$0xff]
    %v6271 = vld [vmem:[%s6263 + $0x38] sm:$0xff]
    %v6272 = vld [vmem:[%s6263 + $0x40] sm:$0xff]
    %v6273 = vld [vmem:[%s6263 + $0x48] sm:$0xff]
    %v6274 = vld [vmem:[%s6263 + $0x50] sm:$0xff]
    %v6275 = vld [vmem:[%s6263 + $0x58] sm:$0xff]
    %v6276 = vld [vmem:[%s6263 + $0x60] sm:$0xff]
    %v6277 = vld [vmem:[%s6263 + $0x68] sm:$0xff]
    %v6278 = vld [vmem:[%s6263 + $0x70] sm:$0xff]
    %v6279 = vld [vmem:[%s6263 + $0x78] sm:$0xff]
    %v6280 = vld [vmem:[%s6263 + $0x80] sm:$0xff]
    %v6281 = vld [vmem:[%s6263 + $0x88] sm:$0xff]
    %v6282 = vld [vmem:[%s6263 + $0x90] sm:$0xff]
    %v6283 = vld [vmem:[%s6263 + $0x98] sm:$0xff]
    %v6284 = vld [vmem:[%s6263 + $0xa0] sm:$0xff]
    %v6285 = vld [vmem:[%s6263 + $0xa8] sm:$0xff]
    %v6286 = vld [vmem:[%s6263 + $0xb0] sm:$0xff]
    %v6287 = vld [vmem:[%s6263 + $0xb8] sm:$0xff]
    %v6288 = vld [vmem:[%s6263 + $0xc0] sm:$0xff]
    %v6289 = vld [vmem:[%s6263 + $0xc8] sm:$0xff]
    %v6290 = vld [vmem:[%s6263 + $0xd0] sm:$0xff]
    %v6291 = vld [vmem:[%s6263 + $0xd8] sm:$0xff]
    %v6292 = vld [vmem:[%s6263 + $0xe0] sm:$0xff]
    %v6293 = vld [vmem:[%s6263 + $0xe8] sm:$0xff]
    %v6294 = vld [vmem:[%s6263 + $0xf0] sm:$0xff]
    %v6295 = vld [vmem:[%s6263 + $0xf8] sm:$0xff]
    %6296 = vmatprep.subr.bf16.mxu0 %v6265
    %6297 = vmatpush1.bf16.msra.mxu0 %v6264
    %6298 = vmatprep.subr.bf16.mxu0 %v6267
    %6299 = vmatpush1.bf16.msra.mxu0 %v6266
    %6300 = vmatprep.subr.bf16.mxu0 %v6269
    %6301 = vmatpush1.bf16.msra.mxu0 %v6268
    %6302 = vmatprep.subr.bf16.mxu0 %v6271
    %6303 = vmatpush1.bf16.msra.mxu0 %v6270
    %6304 = vmatprep.subr.bf16.mxu0 %v6273
    %6305 = vmatpush1.bf16.msra.mxu0 %v6272
    %6306 = vmatprep.subr.bf16.mxu0 %v6275
    %6307 = vmatpush1.bf16.msra.mxu0 %v6274
    %6308 = vmatprep.subr.bf16.mxu0 %v6277
    %6309 = vmatpush1.bf16.msra.mxu0 %v6276
    %6310 = vmatprep.subr.bf16.mxu0 %v6279
    %6311 = vmatpush1.bf16.msra.mxu0 %v6278
    %6312 = vmatprep.subr.bf16.mxu0 %v6281
    %6313 = vmatpush1.bf16.msra.mxu0 %v6280
    %6314 = vmatprep.subr.bf16.mxu0 %v6283
    %6315 = vmatpush1.bf16.msra.mxu0 %v6282
    %6316 = vmatprep.subr.bf16.mxu0 %v6285
    %6317 = vmatpush1.bf16.msra.mxu0 %v6284
    %6318 = vmatprep.subr.bf16.mxu0 %v6287
    %6319 = vmatpush1.bf16.msra.mxu0 %v6286
    %6320 = vmatprep.subr.bf16.mxu0 %v6289
    %6321 = vmatpush1.bf16.msra.mxu0 %v6288
    %6322 = vmatprep.subr.bf16.mxu0 %v6291
    %6323 = vmatpush1.bf16.msra.mxu0 %v6290
    %6324 = vmatprep.subr.bf16.mxu0 %v6293
    %6325 = vmatpush1.bf16.msra.mxu0 %v6292
    %6326 = vmatprep.subr.bf16.mxu0 %v6295
    %6327 = vmatpush1.bf16.msra.mxu0 %v6294
    %6328 = vmatprep.mubr.bf16.mxu0 %v6055
    %6329 = vmatmul.mubr.bf16.gmra.mrb[0].mxu0 %v6054
    %v6330 = vpop.f32.mrb[0].mxu0
    %v6331 = vadd.f32 0.0, %v6330
    %v6332 = vpop.f32.mrb[0].mxu0
    %v6333 = vadd.f32 0.0, %v6332
    %v6334 = vpop.f32.mrb[0].mxu0
    %v6335 = vadd.f32 0.0, %v6334
    %v6336 = vpop.f32.mrb[0].mxu0
    %v6337 = vadd.f32 0.0, %v6336
    %6338 = vmatprep.mubr.bf16.mxu0 %v6057
    %6339 = vmatmul.mubr.bf16.gmra.mrb[0].mxu0 %v6056
    %v6340 = vpop.f32.mrb[0].mxu0
    %v6341 = vadd.f32 0.0, %v6340
    %v6342 = vpop.f32.mrb[0].mxu0
    %v6343 = vadd.f32 0.0, %v6342
    %v6344 = vpop.f32.mrb[0].mxu0
    %v6345 = vadd.f32 0.0, %v6344
    %v6346 = vpop.f32.mrb[0].mxu0
    %v6347 = vadd.f32 0.0, %v6346
    %6348 = vdwg.mxu0
    %6349 = vmatprep.subr.bf16.mxu0 %v6232
    %6350 = vmatpush1.bf16.msra.mxu0 %v6231
    %6351 = vmatprep.subr.bf16.mxu0 %v6234
    %6352 = vmatpush1.bf16.msra.mxu0 %v6233
    %6353 = vmatprep.subr.bf16.mxu0 %v6236
    %6354 = vmatpush1.bf16.msra.mxu0 %v6235
    %6355 = vmatprep.subr.bf16.mxu0 %v6238
    %6356 = vmatpush1.bf16.msra.mxu0 %v6237
    %6357 = vmatprep.subr.bf16.mxu0 %v6240
    %6358 = vmatpush1.bf16.msra.mxu0 %v6239
    %6359 = vmatprep.subr.bf16.mxu0 %v6242
    %6360 = vmatpush1.bf16.msra.mxu0 %v6241
    %6361 = vmatprep.subr.bf16.mxu0 %v6244
    %6362 = vmatpush1.bf16.msra.mxu0 %v6243
    %6363 = vmatprep.subr.bf16.mxu0 %v6246
    %6364 = vmatpush1.bf16.msra.mxu0 %v6245
    %6365 = vmatprep.subr.bf16.mxu0 %v6248
    %6366 = vmatpush1.bf16.msra.mxu0 %v6247
    %6367 = vmatprep.subr.bf16.mxu0 %v6250
    %6368 = vmatpush1.bf16.msra.mxu0 %v6249
    %6369 = vmatprep.subr.bf16.mxu0 %v6252
    %6370 = vmatpush1.bf16.msra.mxu0 %v6251
    %6371 = vmatprep.subr.bf16.mxu0 %v6254
    %6372 = vmatpush1.bf16.msra.mxu0 %v6253
    %6373 = vmatprep.subr.bf16.mxu0 %v6256
    %6374 = vmatpush1.bf16.msra.mxu0 %v6255
    %6375 = vmatprep.subr.bf16.mxu0 %v6258
    %6376 = vmatpush1.bf16.msra.mxu0 %v6257
    %6377 = vmatprep.subr.bf16.mxu0 %v6260
    %6378 = vmatpush1.bf16.msra.mxu0 %v6259
    %6379 = vmatprep.subr.bf16.mxu0 %v6262
    %6380 = vmatpush1.bf16.msra.mxu0 %v6261
    %6381 = vmatprep.mubr.bf16.mxu0 %v6051
    %6382 = vmatmul.mubr.bf16.gmra.mrb[0].mxu0 %v6050
    %v6383 = vpop.f32.mrb[0].mxu0
    %v6384 = vadd.f32 %v6331, %v6383
    %v6385 = vpop.f32.mrb[0].mxu0
    %v6386 = vadd.f32 %v6333, %v6385
    %v6387 = vpop.f32.mrb[0].mxu0
    %v6388 = vadd.f32 %v6335, %v6387
    %v6389 = vpop.f32.mrb[0].mxu0
    %v6390 = vadd.f32 %v6337, %v6389
    %6391 = vmatprep.mubr.bf16.mxu0 %v6053
    %6392 = vmatmul.mubr.bf16.gmra.mrb[0].mxu0 %v6052
    %v6393 = vpop.f32.mrb[0].mxu0
    %v6394 = vadd.f32 %v6341, %v6393
    %v6395 = vpop.f32.mrb[0].mxu0
    %v6396 = vadd.f32 %v6343, %v6395
    %v6397 = vpop.f32.mrb[0].mxu0
    %v6398 = vadd.f32 %v6345, %v6397
    %v6399 = vpop.f32.mrb[0].mxu0
    %v6400 = vadd.f32 %v6347, %v6399
    %6401 = vdwg.mxu0
    %s6402 = scalar_lea.vmem [#allocation3], 5120
    %v6403 = vld [vmem:[%s6402] sm:$0xff]
    %v6404 = vld [vmem:[%s6402 + $0x8] sm:$0xff]
    %v6405 = vld [vmem:[%s6402 + $0x10] sm:$0xff]
    %v6406 = vld [vmem:[%s6402 + $0x18] sm:$0xff]
    %v6407 = vld [vmem:[%s6402 + $0x20] sm:$0xff]
    %v6408 = vld [vmem:[%s6402 + $0x28] sm:$0xff]
    %v6409 = vld [vmem:[%s6402 + $0x30] sm:$0xff]
    %v6410 = vld [vmem:[%s6402 + $0x38] sm:$0xff]
    %v6411 = vld [vmem:[%s6402 + $0x40] sm:$0xff]
    %v6412 = vld [vmem:[%s6402 + $0x48] sm:$0xff]
    %v6413 = vld [vmem:[%s6402 + $0x50] sm:$0xff]
    %v6414 = vld [vmem:[%s6402 + $0x58] sm:$0xff]
    %v6415 = vld [vmem:[%s6402 + $0x60] sm:$0xff]
    %v6416 = vld [vmem:[%s6402 + $0x68] sm:$0xff]
    %v6417 = vld [vmem:[%s6402 + $0x70] sm:$0xff]
    %v6418 = vld [vmem:[%s6402 + $0x78] sm:$0xff]
    %v6419 = vld [vmem:[%s6402 + $0x80] sm:$0xff]
    %v6420 = vld [vmem:[%s6402 + $0x88] sm:$0xff]
    %v6421 = vld [vmem:[%s6402 + $0x90] sm:$0xff]
    %v6422 = vld [vmem:[%s6402 + $0x98] sm:$0xff]
    %v6423 = vld [vmem:[%s6402 + $0xa0] sm:$0xff]
    %v6424 = vld [vmem:[%s6402 + $0xa8] sm:$0xff]
    %v6425 = vld [vmem:[%s6402 + $0xb0] sm:$0xff]
    %v6426 = vld [vmem:[%s6402 + $0xb8] sm:$0xff]
    %v6427 = vld [vmem:[%s6402 + $0xc0] sm:$0xff]
    %v6428 = vld [vmem:[%s6402 + $0xc8] sm:$0xff]
    %v6429 = vld [vmem:[%s6402 + $0xd0] sm:$0xff]
    %v6430 = vld [vmem:[%s6402 + $0xd8] sm:$0xff]
    %v6431 = vld [vmem:[%s6402 + $0xe0] sm:$0xff]
    %v6432 = vld [vmem:[%s6402 + $0xe8] sm:$0xff]
    %v6433 = vld [vmem:[%s6402 + $0xf0] sm:$0xff]
    %v6434 = vld [vmem:[%s6402 + $0xf8] sm:$0xff]
    %s6435 = scalar_lea.vmem [#allocation3], 5888
    %v6436 = vld [vmem:[%s6435] sm:$0xff]
    %v6437 = vld [vmem:[%s6435 + $0x8] sm:$0xff]
    %v6438 = vld [vmem:[%s6435 + $0x10] sm:$0xff]
    %v6439 = vld [vmem:[%s6435 + $0x18] sm:$0xff]
    %v6440 = vld [vmem:[%s6435 + $0x20] sm:$0xff]
    %v6441 = vld [vmem:[%s6435 + $0x28] sm:$0xff]
    %v6442 = vld [vmem:[%s6435 + $0x30] sm:$0xff]
    %v6443 = vld [vmem:[%s6435 + $0x38] sm:$0xff]
    %v6444 = vld [vmem:[%s6435 + $0x40] sm:$0xff]
    %v6445 = vld [vmem:[%s6435 + $0x48] sm:$0xff]
    %v6446 = vld [vmem:[%s6435 + $0x50] sm:$0xff]
    %v6447 = vld [vmem:[%s6435 + $0x58] sm:$0xff]
    %v6448 = vld [vmem:[%s6435 + $0x60] sm:$0xff]
    %v6449 = vld [vmem:[%s6435 + $0x68] sm:$0xff]
    %v6450 = vld [vmem:[%s6435 + $0x70] sm:$0xff]
    %v6451 = vld [vmem:[%s6435 + $0x78] sm:$0xff]
    %v6452 = vld [vmem:[%s6435 + $0x80] sm:$0xff]
    %v6453 = vld [vmem:[%s6435 + $0x88] sm:$0xff]
    %v6454 = vld [vmem:[%s6435 + $0x90] sm:$0xff]
    %v6455 = vld [vmem:[%s6435 + $0x98] sm:$0xff]
    %v6456 = vld [vmem:[%s6435 + $0xa0] sm:$0xff]
    %v6457 = vld [vmem:[%s6435 + $0xa8] sm:$0xff]
    %v6458 = vld [vmem:[%s6435 + $0xb0] sm:$0xff]
    %v6459 = vld [vmem:[%s6435 + $0xb8] sm:$0xff]
    %v6460 = vld [vmem:[%s6435 + $0xc0] sm:$0xff]
    %v6461 = vld [vmem:[%s6435 + $0xc8] sm:$0xff]
    %v6462 = vld [vmem:[%s6435 + $0xd0] sm:$0xff]
    %v6463 = vld [vmem:[%s6435 + $0xd8] sm:$0xff]
    %v6464 = vld [vmem:[%s6435 + $0xe0] sm:$0xff]
    %v6465 = vld [vmem:[%s6435 + $0xe8] sm:$0xff]
    %v6466 = vld [vmem:[%s6435 + $0xf0] sm:$0xff]
    %v6467 = vld [vmem:[%s6435 + $0xf8] sm:$0xff]
    %6468 = vmatprep.subr.bf16.mxu0 %v6437
    %6469 = vmatpush1.bf16.msra.mxu0 %v6436
    %6470 = vmatprep.subr.bf16.mxu0 %v6439
    %6471 = vmatpush1.bf16.msra.mxu0 %v6438
    %6472 = vmatprep.subr.bf16.mxu0 %v6441
    %6473 = vmatpush1.bf16.msra.mxu0 %v6440
    %6474 = vmatprep.subr.bf16.mxu0 %v6443
    %6475 = vmatpush1.bf16.msra.mxu0 %v6442
    %6476 = vmatprep.subr.bf16.mxu0 %v6445
    %6477 = vmatpush1.bf16.msra.mxu0 %v6444
    %6478 = vmatprep.subr.bf16.mxu0 %v6447
    %6479 = vmatpush1.bf16.msra.mxu0 %v6446
    %6480 = vmatprep.subr.bf16.mxu0 %v6449
    %6481 = vmatpush1.bf16.msra.mxu0 %v6448
    %6482 = vmatprep.subr.bf16.mxu0 %v6451
    %6483 = vmatpush1.bf16.msra.mxu0 %v6450
    %6484 = vmatprep.subr.bf16.mxu0 %v6453
    %6485 = vmatpush1.bf16.msra.mxu0 %v6452
    %6486 = vmatprep.subr.bf16.mxu0 %v6455
    %6487 = vmatpush1.bf16.msra.mxu0 %v6454
    %6488 = vmatprep.subr.bf16.mxu0 %v6457
    %6489 = vmatpush1.bf16.msra.mxu0 %v6456
    %6490 = vmatprep.subr.bf16.mxu0 %v6459
    %6491 = vmatpush1.bf16.msra.mxu0 %v6458
    %6492 = vmatprep.subr.bf16.mxu0 %v6461
    %6493 = vmatpush1.bf16.msra.mxu0 %v6460
    %6494 = vmatprep.subr.bf16.mxu0 %v6463
    %6495 = vmatpush1.bf16.msra.mxu0 %v6462
    %6496 = vmatprep.subr.bf16.mxu0 %v6465
    %6497 = vmatpush1.bf16.msra.mxu0 %v6464
    %6498 = vmatprep.subr.bf16.mxu0 %v6467
    %6499 = vmatpush1.bf16.msra.mxu0 %v6466
    %6500 = vmatprep.mubr.bf16.mxu0 %v6055
    %6501 = vmatmul.mubr.bf16.gmra.mrb[0].mxu0 %v6054
    %v6502 = vpop.f32.mrb[0].mxu0
    %v6503 = vadd.f32 0.0, %v6502
    %v6504 = vpop.f32.mrb[0].mxu0
    %v6505 = vadd.f32 0.0, %v6504
    %v6506 = vpop.f32.mrb[0].mxu0
    %v6507 = vadd.f32 0.0, %v6506
    %v6508 = vpop.f32.mrb[0].mxu0
    %v6509 = vadd.f32 0.0, %v6508
    %6510 = vmatprep.mubr.bf16.mxu0 %v6057
    %6511 = vmatmul.mubr.bf16.gmra.mrb[0].mxu0 %v6056
    %v6512 = vpop.f32.mrb[0].mxu0
    %v6513 = vadd.f32 0.0, %v6512
    %v6514 = vpop.f32.mrb[0].mxu0
    %v6515 = vadd.f32 0.0, %v6514
    %v6516 = vpop.f32.mrb[0].mxu0
    %v6517 = vadd.f32 0.0, %v6516
    %v6518 = vpop.f32.mrb[0].mxu0
    %v6519 = vadd.f32 0.0, %v6518
    %6520 = vdwg.mxu0
    %6521 = vmatprep.subr.bf16.mxu0 %v6404
    %6522 = vmatpush1.bf16.msra.mxu0 %v6403
    %6523 = vmatprep.subr.bf16.mxu0 %v6406
    %6524 = vmatpush1.bf16.msra.mxu0 %v6405
    %6525 = vmatprep.subr.bf16.mxu0 %v6408
    %6526 = vmatpush1.bf16.msra.mxu0 %v6407
    %6527 = vmatprep.subr.bf16.mxu0 %v6410
    %6528 = vmatpush1.bf16.msra.mxu0 %v6409
    %6529 = vmatprep.subr.bf16.mxu0 %v6412
    %6530 = vmatpush1.bf16.msra.mxu0 %v6411
    %6531 = vmatprep.subr.bf16.mxu0 %v6414
    %6532 = vmatpush1.bf16.msra.mxu0 %v6413
    %6533 = vmatprep.subr.bf16.mxu0 %v6416
    %6534 = vmatpush1.bf16.msra.mxu0 %v6415
    %6535 = vmatprep.subr.bf16.mxu0 %v6418
    %6536 = vmatpush1.bf16.msra.mxu0 %v6417
    %6537 = vmatprep.subr.bf16.mxu0 %v6420
    %6538 = vmatpush1.bf16.msra.mxu0 %v6419
    %6539 = vmatprep.subr.bf16.mxu0 %v6422
    %6540 = vmatpush1.bf16.msra.mxu0 %v6421
    %6541 = vmatprep.subr.bf16.mxu0 %v6424
    %6542 = vmatpush1.bf16.msra.mxu0 %v6423
    %6543 = vmatprep.subr.bf16.mxu0 %v6426
    %6544 = vmatpush1.bf16.msra.mxu0 %v6425
    %6545 = vmatprep.subr.bf16.mxu0 %v6428
    %6546 = vmatpush1.bf16.msra.mxu0 %v6427
    %6547 = vmatprep.subr.bf16.mxu0 %v6430
    %6548 = vmatpush1.bf16.msra.mxu0 %v6429
    %6549 = vmatprep.subr.bf16.mxu0 %v6432
    %6550 = vmatpush1.bf16.msra.mxu0 %v6431
    %6551 = vmatprep.subr.bf16.mxu0 %v6434
    %6552 = vmatpush1.bf16.msra.mxu0 %v6433
    %6553 = vmatprep.mubr.bf16.mxu0 %v6051
    %6554 = vmatmul.mubr.bf16.gmra.mrb[0].mxu0 %v6050
    %v6555 = vpop.f32.mrb[0].mxu0
    %v6556 = vadd.f32 %v6503, %v6555
    %v6557 = vpop.f32.mrb[0].mxu0
    %v6558 = vadd.f32 %v6505, %v6557
    %v6559 = vpop.f32.mrb[0].mxu0
    %v6560 = vadd.f32 %v6507, %v6559
    %v6561 = vpop.f32.mrb[0].mxu0
    %v6562 = vadd.f32 %v6509, %v6561
    %6563 = vmatprep.mubr.bf16.mxu0 %v6053
    %6564 = vmatmul.mubr.bf16.gmra.mrb[0].mxu0 %v6052
    %v6565 = vpop.f32.mrb[0].mxu0
    %v6566 = vadd.f32 %v6513, %v6565
    %v6567 = vpop.f32.mrb[0].mxu0
    %v6568 = vadd.f32 %v6515, %v6567
    %v6569 = vpop.f32.mrb[0].mxu0
    %v6570 = vadd.f32 %v6517, %v6569
    %v6571 = vpop.f32.mrb[0].mxu0
    %v6572 = vadd.f32 %v6519, %v6571
    %6573 = vdwg.mxu0
    %v6574 = vld [vmem:[%s5] sm:$0xff]
    %v6575 = vld [vmem:[%s5 + $0x8] sm:$0xff]
    %v6576 = vld [vmem:[%s5 + $0x10] sm:$0xff]
    %v6577 = vld [vmem:[%s5 + $0x18] sm:$0xff]
    %v6578 = vrot.slane %v6384, 7
    %v6579 = vrot.slane %v6386, 7
    %v6580 = vrot.slane %v6388, 7
    %v6581 = vrot.slane %v6390, 7
    %v6582 = vrot.slane %v6394, 7
    %v6583 = vrot.slane %v6396, 7
    %v6584 = vrot.slane %v6398, 7
    %v6585 = vrot.slane %v6400, 7
    %v6586 = vsel %vm398, %v6582, %v6584
    %v6587 = vsel %vm398, %v6583, %v6585
    %v6588 = vsel %vm398, %v6580, %v6582
    %v6589 = vsel %vm398, %v6581, %v6583
    %v6590 = vsel %vm398, %v6578, %v6580
    %v6591 = vsel %vm398, %v6579, %v6581
    %v6592 = vsel %vm398, %v6584, %v6578
    %v6593 = vsel %vm398, %v6585, %v6579
    %6595 = vset.pattern.permute.xlu0 0
    %6596 = vperm.xlu0 %6595, %v6574
    %v6597 = vpop.permute.xlu0 %6596
    %6600 = vset.pattern.permute.xlu0 0
    %6601 = vperm.xlu0 %6600, %v6575
    %v6602 = vpop.permute.xlu0 %6601
    %6605 = vset.pattern.permute.xlu0 0
    %6606 = vperm.xlu0 %6605, %v6576
    %v6607 = vpop.permute.xlu0 %6606
    %6610 = vset.pattern.permute.xlu0 0
    %6611 = vperm.xlu0 %6610, %v6577
    %v6612 = vpop.permute.xlu0 %6611
    %v6614 = vmul.f32 %v6597, %v6592
    %v6615 = vmul.f32 %v6597, %v6593
    %v6616 = vmul.f32 %v6602, %v6590
    %v6617 = vmul.f32 %v6602, %v6591
    %v6618 = vmul.f32 %v6607, %v6588
    %v6619 = vmul.f32 %v6607, %v6589
    %v6620 = vmul.f32 %v6612, %v6586
    %v6621 = vmul.f32 %v6612, %v6587
    %v6622 = vadd.f32 %v6212, %v6614
    %v6623 = vadd.f32 %v6214, %v6615
    %v6624 = vadd.f32 %v6216, %v6616
    %v6625 = vadd.f32 %v6218, %v6617
    %v6626 = vadd.f32 %v6222, %v6618
    %v6627 = vadd.f32 %v6224, %v6619
    %v6628 = vadd.f32 %v6226, %v6620
    %v6629 = vadd.f32 %v6228, %v6621
    %v6630 = vrot.slane %v6556, 1
    %v6631 = vrot.slane %v6558, 1
    %v6632 = vrot.slane %v6560, 1
    %v6633 = vrot.slane %v6562, 1
    %v6634 = vrot.slane %v6566, 1
    %v6635 = vrot.slane %v6568, 1
    %v6636 = vrot.slane %v6570, 1
    %v6637 = vrot.slane %v6572, 1
    %v6638 = vsel %vm526, %v6634, %v6636
    %v6639 = vsel %vm526, %v6635, %v6637
    %v6640 = vsel %vm526, %v6632, %v6634
    %v6641 = vsel %vm526, %v6633, %v6635
    %v6642 = vsel %vm526, %v6630, %v6632
    %v6643 = vsel %vm526, %v6631, %v6633
    %v6644 = vsel %vm526, %v6636, %v6630
    %v6645 = vsel %vm526, %v6637, %v6631
    %6646 = vset.pattern.permute.xlu0 1
    %6647 = vperm.xlu0 %6646, %v6574
    %v6648 = vpop.permute.xlu0 %6647
    %6650 = vset.pattern.permute.xlu0 1
    %6651 = vperm.xlu0 %6650, %v6575
    %v6652 = vpop.permute.xlu0 %6651
    %6654 = vset.pattern.permute.xlu0 1
    %6655 = vperm.xlu0 %6654, %v6576
    %v6656 = vpop.permute.xlu0 %6655
    %6658 = vset.pattern.permute.xlu0 1
    %6659 = vperm.xlu0 %6658, %v6577
    %v6660 = vpop.permute.xlu0 %6659
    %v6662 = vmul.f32 %v6648, %v6642
    %v6663 = vmul.f32 %v6648, %v6643
    %v6664 = vmul.f32 %v6652, %v6640
    %v6665 = vmul.f32 %v6652, %v6641
    %v6666 = vmul.f32 %v6656, %v6638
    %v6667 = vmul.f32 %v6656, %v6639
    %v6668 = vmul.f32 %v6660, %v6644
    %v6669 = vmul.f32 %v6660, %v6645
    %v6670 = vadd.f32 %v6622, %v6662
    %v6671 = vadd.f32 %v6623, %v6663
    %v6672 = vadd.f32 %v6624, %v6664
    %v6673 = vadd.f32 %v6625, %v6665
    %v6674 = vadd.f32 %v6626, %v6666
    %v6675 = vadd.f32 %v6627, %v6667
    %v6676 = vadd.f32 %v6628, %v6668
    %v6677 = vadd.f32 %v6629, %v6669
    %s6678 = scalar_lea.vmem [#allocation9], 20
    %v6679 = vld [vmem:[%s6678] ss:$8 sm:$0x3]
    %v6681 = vlaneseq
    %v6682 = vshrl.u32 %v6681, 7
    %v6683 = vsub.s32 0, %v6682
    %v6684 = vrot.slane %v6679, %v6683
    %v6685 = vlaneseq
    %v6686 = vshrl.u32 %v6685, 7
    %v6687 = vsub.s32 1, %v6686
    %v6688 = vrot.slane %v6679, %v6687
    %v6691 = vadd.f32 %v6670, %v6684
    %v6692 = vadd.f32 %v6671, %v6688
    %v6693 = vadd.f32 %v6672, %v6684
    %v6694 = vadd.f32 %v6673, %v6688
    %v6695 = vadd.f32 %v6674, %v6684
    %v6696 = vadd.f32 %v6675, %v6688
    %v6697 = vadd.f32 %v6676, %v6684
    %v6698 = vadd.f32 %v6677, %v6688
    %v6699 = vmax.f32 %v6691, 0.0
    %v6700 = vmax.f32 %v6692, 0.0
    %v6701 = vmax.f32 %v6693, 0.0
    %v6702 = vmax.f32 %v6694, 0.0
    %v6703 = vmax.f32 %v6695, 0.0
    %v6704 = vmax.f32 %v6696, 0.0
    %v6705 = vmax.f32 %v6697, 0.0
    %v6706 = vmax.f32 %v6698, 0.0
    %v6707 = vpack.c.bf16 %v6701, %v6699
    %v6708 = vpack.c.bf16 %v6702, %v6700
    %v6709 = vpack.c.bf16 %v6705, %v6703
    %v6710 = vpack.c.bf16 %v6706, %v6704
    %v6711 = vld [vmem:[%s7] sm:$0xf]
    %v6712 = vld [vmem:[%s7 + $0x4] sm:$0xf]
    %v6713 = vld [vmem:[%s7 + $0x8] sm:$0xf]
    %v6714 = vld [vmem:[%s7 + $0xc] sm:$0xf]
    %v6715 = vld [vmem:[%s7 + $0x10] sm:$0xf]
    %v6716 = vld [vmem:[%s7 + $0x14] sm:$0xf]
    %v6717 = vld [vmem:[%s7 + $0x18] sm:$0xf]
    %v6718 = vld [vmem:[%s7 + $0x1c] sm:$0xf]
    %v6719 = vld [vmem:[%s7 + $0x20] sm:$0xf]
    %v6720 = vld [vmem:[%s7 + $0x24] sm:$0xf]
    %v6721 = vld [vmem:[%s7 + $0x28] sm:$0xf]
    %v6722 = vld [vmem:[%s7 + $0x2c] sm:$0xf]
    %v6723 = vld [vmem:[%s7 + $0x30] sm:$0xf]
    %v6724 = vld [vmem:[%s7 + $0x34] sm:$0xf]
    %v6725 = vld [vmem:[%s7 + $0x38] sm:$0xf]
    %v6726 = vld [vmem:[%s7 + $0x3c] sm:$0xf]
    %v6727 = vld [vmem:[%s7 + $0x40] sm:$0xf]
    %v6728 = vld [vmem:[%s7 + $0x44] sm:$0xf]
    %v6729 = vld [vmem:[%s7 + $0x48] sm:$0xf]
    %v6730 = vld [vmem:[%s7 + $0x4c] sm:$0xf]
    %v6731 = vld [vmem:[%s7 + $0x50] sm:$0xf]
    %v6732 = vld [vmem:[%s7 + $0x54] sm:$0xf]
    %v6733 = vld [vmem:[%s7 + $0x58] sm:$0xf]
    %v6734 = vld [vmem:[%s7 + $0x5c] sm:$0xf]
    %v6735 = vld [vmem:[%s7 + $0x60] sm:$0xf]
    %v6736 = vld [vmem:[%s7 + $0x64] sm:$0xf]
    %v6737 = vld [vmem:[%s7 + $0x68] sm:$0xf]
    %v6738 = vld [vmem:[%s7 + $0x6c] sm:$0xf]
    %v6739 = vld [vmem:[%s7 + $0x70] sm:$0xf]
    %v6740 = vld [vmem:[%s7 + $0x74] sm:$0xf]
    %v6741 = vld [vmem:[%s7 + $0x78] sm:$0xf]
    %v6742 = vld [vmem:[%s7 + $0x7c] sm:$0xf]
    %v6743 = vld [vmem:[#allocation13] sm:$0x1]
    %v6745 = vlaneseq
    %v6746 = vshrl.u32 %v6745, 7
    %v6747 = vsub.s32 0, %v6746
    %v6748 = vrot.slane %v6743, %v6747
    %v6782 = vunpack.c.l.b16 %v6711
    %v6783 = vunpack.c.l.b16 %v6712
    %v6784 = vunpack.c.l.b16 %v6713
    %v6785 = vunpack.c.l.b16 %v6714
    %v6786 = vunpack.c.l.b16 %v6715
    %v6787 = vunpack.c.l.b16 %v6716
    %v6788 = vunpack.c.l.b16 %v6717
    %v6789 = vunpack.c.l.b16 %v6718
    %v6790 = vunpack.c.l.b16 %v6719
    %v6791 = vunpack.c.l.b16 %v6720
    %v6792 = vunpack.c.l.b16 %v6721
    %v6793 = vunpack.c.l.b16 %v6722
    %v6794 = vunpack.c.l.b16 %v6723
    %v6795 = vunpack.c.l.b16 %v6724
    %v6796 = vunpack.c.l.b16 %v6725
    %v6797 = vunpack.c.l.b16 %v6726
    %v6798 = vunpack.c.l.b16 %v6727
    %v6799 = vunpack.c.l.b16 %v6728
    %v6800 = vunpack.c.l.b16 %v6729
    %v6801 = vunpack.c.l.b16 %v6730
    %v6802 = vunpack.c.l.b16 %v6731
    %v6803 = vunpack.c.l.b16 %v6732
    %v6804 = vunpack.c.l.b16 %v6733
    %v6805 = vunpack.c.l.b16 %v6734
    %v6806 = vunpack.c.l.b16 %v6735
    %v6807 = vunpack.c.l.b16 %v6736
    %v6808 = vunpack.c.l.b16 %v6737
    %v6809 = vunpack.c.l.b16 %v6738
    %v6810 = vunpack.c.l.b16 %v6739
    %v6811 = vunpack.c.l.b16 %v6740
    %v6812 = vunpack.c.l.b16 %v6741
    %v6813 = vunpack.c.l.b16 %v6742
    %v6814 = vpack.c.b16 %v6783, %v6782
    %v6815 = vpack.c.b16 %v6785, %v6784
    %v6816 = vpack.c.b16 %v6787, %v6786
    %v6817 = vpack.c.b16 %v6789, %v6788
    %v6818 = vpack.c.b16 %v6791, %v6790
    %v6819 = vpack.c.b16 %v6793, %v6792
    %v6820 = vpack.c.b16 %v6795, %v6794
    %v6821 = vpack.c.b16 %v6797, %v6796
    %v6822 = vpack.c.b16 %v6799, %v6798
    %v6823 = vpack.c.b16 %v6801, %v6800
    %v6824 = vpack.c.b16 %v6803, %v6802
    %v6825 = vpack.c.b16 %v6805, %v6804
    %v6826 = vpack.c.b16 %v6807, %v6806
    %v6827 = vpack.c.b16 %v6809, %v6808
    %v6828 = vpack.c.b16 %v6811, %v6810
    %v6829 = vpack.c.b16 %v6813, %v6812
    %6846 = vmatprep.subr.bf16.mxu0 0
    %6847 = vmatpush1.bf16.msra.mxu0 %v6814
    %6848 = vmatprep.subr.bf16.mxu0 0
    %6849 = vmatpush1.bf16.msra.mxu0 %v6815
    %6850 = vmatprep.subr.bf16.mxu0 0
    %6851 = vmatpush1.bf16.msra.mxu0 %v6816
    %6852 = vmatprep.subr.bf16.mxu0 0
    %6853 = vmatpush1.bf16.msra.mxu0 %v6817
    %6854 = vmatprep.subr.bf16.mxu0 0
    %6855 = vmatpush1.bf16.msra.mxu0 %v6818
    %6856 = vmatprep.subr.bf16.mxu0 0
    %6857 = vmatpush1.bf16.msra.mxu0 %v6819
    %6858 = vmatprep.subr.bf16.mxu0 0
    %6859 = vmatpush1.bf16.msra.mxu0 %v6820
    %6860 = vmatprep.subr.bf16.mxu0 0
    %6861 = vmatpush1.bf16.msra.mxu0 %v6821
    %6862 = vmatprep.subr.bf16.mxu0 0
    %6863 = vmatpush1.bf16.msra.mxu0 %v6822
    %6864 = vmatprep.subr.bf16.mxu0 0
    %6865 = vmatpush1.bf16.msra.mxu0 %v6823
    %6866 = vmatprep.subr.bf16.mxu0 0
    %6867 = vmatpush1.bf16.msra.mxu0 %v6824
    %6868 = vmatprep.subr.bf16.mxu0 0
    %6869 = vmatpush1.bf16.msra.mxu0 %v6825
    %6870 = vmatprep.subr.bf16.mxu0 0
    %6871 = vmatpush1.bf16.msra.mxu0 %v6826
    %6872 = vmatprep.subr.bf16.mxu0 0
    %6873 = vmatpush1.bf16.msra.mxu0 %v6827
    %6874 = vmatprep.subr.bf16.mxu0 0
    %6875 = vmatpush1.bf16.msra.mxu0 %v6828
    %6876 = vmatprep.subr.bf16.mxu0 0
    %6877 = vmatpush1.bf16.msra.mxu0 %v6829
    %6878 = vmatprep.mubr.bf16.mxu0 %v6708
    %6879 = vmatmul.mubr.bf16.gmra.mrb[0].mxu0 %v6707
    %v6880 = vpop.f32.mrb[0].mxu0
    %v6881 = vadd.f32 %v6748, %v6880
    %v6882 = vpop.f32.mrb[0].mxu0
    %v6883 = vpop.f32.mrb[0].mxu0
    %v6884 = vadd.f32 %v6748, %v6883
    %v6885 = vpop.f32.mrb[0].mxu0
    %6886 = vmatprep.mubr.bf16.mxu0 %v6710
    %6887 = vmatmul.mubr.bf16.gmra.mrb[0].mxu0 %v6709
    %v6888 = vpop.f32.mrb[0].mxu0
    %v6889 = vadd.f32 %v6748, %v6888
    %v6890 = vpop.f32.mrb[0].mxu0
    %v6891 = vpop.f32.mrb[0].mxu0
    %v6892 = vadd.f32 %v6748, %v6891
    %v6893 = vpop.f32.mrb[0].mxu0
    %6894 = vdwg.mxu0
    %vm6895 = vcmask 523264
    %6896 = vst.msk [vmem:[%s11] sm:$0xff] %vm6895, %v6881
    %6897 = vst.msk [vmem:[%s11 + $0x8] sm:$0xff] %vm6895, %v6884
    %6898 = vst.msk [vmem:[%s11 + $0x10] sm:$0xff] %vm6895, %v6889
    %6899 = vst.msk [vmem:[%s11 + $0x18] sm:$0xff] %vm6895, %v6892
    // Predicated region
    $region62: #{miniunet_forward.1} parent=1 // pred_check
      _
    $region63: #{miniunet_forward.1} parent=1 // pred_check_branch
      %6901 = sbr.rel (0) target = $region65
    $region64: #{miniunet_forward.1} parent=1 // pred_region
      _
    $region65: #{miniunet_forward.1} parent=1 // pred_fallthru
      _
    // Predicated region
    $region66: #{miniunet_forward.1} parent=1 // pred_check
      _
    $region67: #{miniunet_forward.1} parent=1 // pred_check_branch
      %6903 = sbr.rel (0) target = $region69
    $region68: #{miniunet_forward.1} parent=1 // pred_region
      _
    $region69: #{miniunet_forward.1} parent=1 // pred_fallthru
      _
    %6904 = vsyncpa [#allocation6], 1
    %6905 = vsyncpa [#allocation8], 1
    %6906 = vsyncpa [#allocation11], 1
    %6907 = vsyncpa [#allocation14], 1
  %6908 = vsyncmov [#allocation4]
  %s6909 = vpop.sfrf %6908
  %p6910 = scmp.eq.s32.totalorder %s6909, 0
  %p6911 = pneg %p6910
  %6913 = shalt.err (%p6911)
  %s6914 = scalar_lea.sflag [#allocation4], 1
  %6915 = vsyncmov %s6914
  %s6916 = vpop.sfrf %6915
  %p6917 = scmp.eq.s32.totalorder %s6916, 0
  %p6918 = pneg %p6917
  %6920 = shalt.err (%p6918)

</llo_original>
